<compile_context>
chip_gen: v6e
topology: v6e:2x2x1
jax: 0.10.0
libtpu: 0.0.40
codegen_flags: <defaults>
</compile_context>

<pallas_src>
import functools
import math

import jax
import jax.numpy as jnp
from jax import lax
from jax.experimental import pallas as pl
from jax.experimental.pallas import tpu as pltpu


# ----------------------- generation-aware caps / budgets ----------------------

def _gen_caps():
    try:
        info = pltpu.get_tpu_info()
        vmem_cap = int(getattr(info, "vmem_capacity_bytes", 64 * 1024 * 1024))
    except Exception:
        vmem_cap = 64 * 1024 * 1024
    if vmem_cap <= 64 * 1024 * 1024:          # v7x-class: 64 MiB physical VMEM
        return {"vmem_limit": 48 * 1024 * 1024, "tq_cap": 256}
    return {"vmem_limit": 100 * 1024 * 1024, "tq_cap": 1024}   # v5e / v6e: 128 MiB


_CAPS = _gen_caps()
VMEM_LIMIT = _CAPS["vmem_limit"]


def _pick_tile_rows(R, HW, target_bytes=4 * 1024 * 1024):
    # row tile of the instance-norm kernel; multiple of 8 that divides R.
    if R % 8 != 0:
        return R
    tr = min(R, max(8, (target_bytes // (HW * 4)) // 8 * 8))
    while R % tr != 0:
        tr -= 8
    return tr


def _pick_tile_q(HW):
    # column tile of the HW x HW score matrix; multiple of 128 that divides HW.
    cap = _CAPS["tq_cap"]
    if HW <= cap or HW % 128 != 0:
        # TODO(synk): pad HW to a multiple of 128 (with masked softmax rows) instead
        # of falling back to a single full-extent block for odd sizes.
        return HW
    t = cap
    while HW % t != 0:
        t -= 128
    return t


# ------------------------------- conv kernel ----------------------------------

def _direct_conv_kernel(w_ref, b_ref, x_ref, o_ref, *, k, wp, act):
    # w: (k*k, Cout, Cin) bf16   b: (Cout, 1) f32
    # x: (1, Cin, L) bf16  -- one batch item's padded plane, rows flattened (stride wp)
    # o: (1, Cout, Ho*wp)  -- lane-dense; columns c%wp >= Wo are junk, stripped in glue
    cout, n = o_ref.shape[1], o_ref.shape[2]
    acc = jnp.zeros((cout, n), jnp.float32)
    for dh in range(k):                        # taps fully unrolled; input read once
        for dw in range(k):
            off = dh * wp + dw
            xw = x_ref[0, :, off:off + n]                       # (Cin, n) bf16
            acc = acc + jnp.dot(w_ref[dh * k + dw], xw,
                                preferred_element_type=jnp.float32)
    y = acc + b_ref[...]
    if act == "relu":
        y = jnp.maximum(y, 0.0)
    elif act == "tanh":
        y = jnp.tanh(y)
    o_ref[0] = y.astype(o_ref.dtype)


def direct_conv(x_flat, w_taps, bias, *, k, wp, ho, act):
    # x_flat: (B, Cin, L) bf16, w_taps: (k*k, Cout, Cin) bf16, bias: (Cout,) f32
    B, Cin, L = x_flat.shape
    kk, Cout, _ = w_taps.shape
    n = ho * wp
    return pl.pallas_call(
        functools.partial(_direct_conv_kernel, k=k, wp=wp, act=act),
        out_shape=jax.ShapeDtypeStruct((B, Cout, n), jnp.bfloat16),
        grid=(B,),
        in_specs=[
            pl.BlockSpec((kk, Cout, Cin), lambda b: (0, 0, 0)),   # weights resident
            pl.BlockSpec((Cout, 1), lambda b: (0, 0)),            # bias
            pl.BlockSpec((1, Cin, L), lambda b: (b, 0, 0)),       # padded plane, once
        ],
        out_specs=pl.BlockSpec((1, Cout, n), lambda b: (b, 0, 0)),
        compiler_params=pltpu.CompilerParams(
            dimension_semantics=("parallel",),
            vmem_limit_bytes=VMEM_LIMIT),
    )(w_taps, bias.reshape(Cout, 1).astype(jnp.float32), x_flat)


# ---------------------------- instance-norm kernel -----------------------------

def _instnorm_act_kernel(x_ref, *rest, act, eps):
    # x: (tr, HW) bf16, rows = (batch, channel) planes; biased var like InstanceNorm2d.
    if len(rest) == 2:
        res_ref, o_ref = rest
    else:
        res_ref, o_ref = None, rest[0]
    x = x_ref[...].astype(jnp.float32)
    mean = jnp.mean(x, axis=-1, keepdims=True)
    var = jnp.mean(jnp.square(x - mean), axis=-1, keepdims=True)
    y = (x - mean) * lax.rsqrt(var + eps)
    if act == "relu":
        y = jnp.maximum(y, 0.0)
    if res_ref is not None:                    # fused residual add (activation 'none')
        y = y + res_ref[...].astype(jnp.float32)
    o_ref[...] = y.astype(o_ref.dtype)


def instance_norm_act(x2d, act, residual=None, eps=1e-5):
    R, HW = x2d.shape
    tr = _pick_tile_rows(R, HW)
    spec = pl.BlockSpec((tr, HW), lambda i: (i, 0))
    in_specs = [spec] + ([spec] if residual is not None else [])
    args = (x2d,) + ((residual,) if residual is not None else ())
    return pl.pallas_call(
        functools.partial(_instnorm_act_kernel, act=act, eps=eps),
        out_shape=jax.ShapeDtypeStruct((R, HW), jnp.bfloat16),
        grid=(R // tr,),
        in_specs=in_specs,
        out_specs=spec,
        compiler_params=pltpu.CompilerParams(
            dimension_semantics=("parallel",),
            vmem_limit_bytes=VMEM_LIMIT),
    )(*args)


# ------------------------- correlation attention kernels -----------------------

def _ca_center_kernel(x_ref, xc_ref, mu_ref):
    # Per-batch: channel mean + centered bf16 xc, computed ONCE (hoisted out of the
    # per-column-tile score kernel).
    x = x_ref[0].astype(jnp.float32)               # (C, HW)
    mu = jnp.mean(x, axis=0, keepdims=True)        # (1, HW)
    xc_ref[0] = (x - mu).astype(xc_ref.dtype)
    mu_ref[0] = mu


def _ca_scores_kernel(xcf_ref, xcc_ref, s_ref, *, scale):
    # (HW, tq) column tile of softmax(lamda/(C-1) * xc^T xc, dim=1).
    # TODO(synk): compute exp in bf16 on v6e/v7x (EUP bf16) once gated on chip version.
    xcf = xcf_ref[0]                               # (C, HW)  bf16
    xcc = xcc_ref[0] * scale                       # (C, tq)  bf16, scale on small operand
    s = lax.dot_general(xcf, xcc, (((0,), (0,)), ((), ())),
                        preferred_element_type=jnp.float32)       # (HW, tq)
    m = jnp.max(s, axis=0, keepdims=True)
    e = jnp.exp(s - m)
    d = jnp.sum(e, axis=0, keepdims=True)
    s_ref[0] = e * pl.reciprocal(d, approx=True)


def correlation_attention(content, lamda):
    # content: (B, C, HW) bf16 (native layout, no transpose pass).
    B, C, HW = content.shape
    scale = float(lamda) / float(max(C - 1, 1))

    xc, mu = pl.pallas_call(
        _ca_center_kernel,
        out_shape=(jax.ShapeDtypeStruct((B, C, HW), jnp.bfloat16),
                   jax.ShapeDtypeStruct((B, 1, HW), jnp.float32)),
        grid=(B,),
        in_specs=[pl.BlockSpec((1, C, HW), lambda b: (b, 0, 0))],
        out_specs=(pl.BlockSpec((1, C, HW), lambda b: (b, 0, 0)),
                   pl.BlockSpec((1, 1, HW), lambda b: (b, 0, 0))),
        compiler_params=pltpu.CompilerParams(
            dimension_semantics=("parallel",),
            vmem_limit_bytes=VMEM_LIMIT),
    )(content)

    tq = _pick_tile_q(HW)
    scores = pl.pallas_call(
        functools.partial(_ca_scores_kernel, scale=scale),
        out_shape=jax.ShapeDtypeStruct((B, HW, HW), jnp.float32),
        grid=(B, HW // tq),
        in_specs=[pl.BlockSpec((1, C, HW), lambda b, q: (b, 0, 0)),   # xc (rows)
                  pl.BlockSpec((1, C, tq), lambda b, q: (b, 0, q))],  # xc (columns)
        out_specs=pl.BlockSpec((1, HW, tq), lambda b, q: (b, 0, q)),
        compiler_params=pltpu.CompilerParams(
            dimension_semantics=("parallel", "parallel"),   # both axes core-shardable
            vmem_limit_bytes=VMEM_LIMIT),
    )(xc, xc)
    return scores, mu


# ---------------------------------- JAX glue -----------------------------------

def conv2d_block(x, w, b, stride, padding, norm, activation, residual=None):
    # Conv2dBlock: ZeroPad2d -> Conv2d(bias) -> [InstanceNorm2d] -> [activation].
    # x: (B, Cin, H, W) bf16.  Residual (if given) is added after norm (fused there).
    B, Cin, H, W = x.shape
    Cout, _, k, _ = w.shape
    s = stride
    xp = jnp.pad(x, ((0, 0), (0, 0), (padding, padding), (padding, padding)))

    if s > 1:
        # space-to-depth: stride-s conv == stride-1 conv with (k//s) kernel on
        # s*s*Cin phase-stacked channels -> no im2col / HBM read amplification.
        Hp, Wp = xp.shape[2], xp.shape[3]
        assert k % s == 0 and Hp % s == 0 and Wp % s == 0, "unsupported stride config"
        xp = jnp.concatenate(
            [xp[:, :, ph::s, pw::s] for ph in range(s) for pw in range(s)], axis=1)
        k2 = k // s
        w = w.reshape(Cout, Cin, k2, s, k2, s)                  # (co, ci, ah, ph, aw, pw)
        w = jnp.transpose(w, (0, 3, 5, 1, 2, 4)).reshape(Cout, s * s * Cin, k2, k2)
        Cin, k = s * s * Cin, k2

    Hp, Wp = xp.shape[2], xp.shape[3]
    Ho, Wo = Hp - k + 1, Wp - k + 1
    # one extra zero row so every tap's flat slice [dh*Wp+dw, +Ho*Wp) stays in bounds
    xp = jnp.pad(xp, ((0, 0), (0, 0), (0, 1), (0, 0)))
    x_flat = xp.reshape(B, Cin, (Hp + 1) * Wp).astype(jnp.bfloat16)
    w_taps = jnp.transpose(w, (2, 3, 0, 1)).reshape(k * k, Cout, Cin).astype(jnp.bfloat16)

    act_in_conv = activation if norm == "none" else "none"
    y = direct_conv(x_flat, w_taps, b, k=k, wp=Wp, ho=Ho, act=act_in_conv)
    # strip the Wo..Wp junk columns (artifact of the flat-tap formulation)
    y = y.reshape(B, Cout, Ho, Wp)[:, :, :, :Wo]

    hw = Ho * Wo
    if norm == "in":
        r2 = residual.reshape(B * Cout, hw) if residual is not None else None
        y = instance_norm_act(y.reshape(B * Cout, hw), activation, residual=r2)
        y = y.reshape(B, Cout, Ho, Wo)
    elif residual is not None:
        y = (y.astype(jnp.float32) + residual.astype(jnp.float32)).astype(jnp.bfloat16)
    return y


def init_params(key, n_downsample, n_res, input_dim, output_dim, dim):
    n_convs = 2 + n_downsample + 2 * n_res
    ks = jax.random.split(key, 2 * n_convs)
    ki = iter(range(2 * n_convs))

    def conv_p(cin, cout, k):
        w = jax.random.normal(ks[next(ki)], (cout, cin, k, k), jnp.float32)
        w = w * (1.0 / math.sqrt(cin * k * k))
        b = 0.01 * jax.random.normal(ks[next(ki)], (cout,), jnp.float32)
        return {"w": w, "b": b}

    params = {"stem": conv_p(input_dim, dim, 7), "down": [], "res": []}
    d = dim
    for _ in range(n_downsample):
        params["down"].append(conv_p(d, 2 * d, 4))
        d *= 2
    for _ in range(n_res):
        params["res"].append([conv_p(d, d, 3), conv_p(d, d, 3)])
    params["head"] = conv_p(d, output_dim, 3)
    return params


def inharmonyfree_ca_forward(x, params, lamda=10.0):
    h = x.astype(jnp.bfloat16)                                 # NCHW, bf16 activations
    h = conv2d_block(h, params["stem"]["w"], params["stem"]["b"],
                     stride=1, padding=3, norm="in", activation="relu")
    for p in params["down"]:
        h = conv2d_block(h, p["w"], p["b"], stride=2, padding=1,
                         norm="in", activation="relu")
    for rb in params["res"]:
        h1 = conv2d_block(h, rb[0]["w"], rb[0]["b"], 1, 1, "in", "relu")
        h = conv2d_block(h1, rb[1]["w"], rb[1]["b"], 1, 1, "in", "none", residual=h)
    content = conv2d_block(h, params["head"]["w"], params["head"]["b"],
                           1, 1, "none", "tanh")               # (B, C, hh, ww) bf16

    B, C, hh, ww = content.shape
    scores, mu = correlation_attention(content.reshape(B, C, hh * ww), lamda)
    match_score_soft = scores.reshape(B, hh * ww, hh, ww)      # softmax over dim=1
    content_mean = mu.reshape(B, 1, hh, ww)
    return match_score_soft, content_mean


if __name__ == "__main__":
    key = jax.random.PRNGKey(0)
    kx, kp = jax.random.split(key)

    n_downsample, n_res = 1, 1
    input_dim, output_dim, dim = 3, 4, 8

    x = jax.random.normal(kx, (2, input_dim, 16, 16), jnp.float32)
    params = init_params(kp, n_downsample, n_res, input_dim, output_dim, dim)

    fwd = jax.jit(lambda xx: inharmonyfree_ca_forward(xx, params, lamda=10.0))
    match_score_soft, content_mean = fwd(x)
    jax.block_until_ready((match_score_soft, content_mean))

    assert match_score_soft.shape == (2, 64, 8, 8), match_score_soft.shape
    assert content_mean.shape == (2, 1, 8, 8), content_mean.shape
    # softmax over dim=1 sums to ~1 (bf16 MXU + approx-reciprocal -> looser tol)
    assert jnp.allclose(match_score_soft.sum(axis=1), 1.0, atol=5e-3)
    assert bool(jnp.all(jnp.isfinite(match_score_soft)))
    print("KERNEL_OK")
</pallas_src>

<mosaic_0001>
module attributes {stable_mosaic.version = 11 : i64} {
  func.func @_direct_conv_kernel(%arg0: i32, %arg1: memref<49x8x3xbf16, #tpu.memory_space<vmem>>, %arg2: memref<8x1xf32, #tpu.memory_space<vmem>>, %arg3: memref<1x3x506xbf16, #tpu.memory_space<vmem>>, %arg4: memref<1x8x352xbf16, #tpu.memory_space<vmem>>) attributes {dimension_semantics = [#tpu.dimension_semantics<parallel>], iteration_bounds = array<i64: 2>, scalar_prefetch = 0 : i64, scratch_operands = 0 : i64, tpu.core_type = #tpu.core_type<tc>, window_params = [{pipeline_mode = #tpu.pipeline_mode<synchronous>, transform_indices = @transform_0, window_bounds = array<i64: 49, 8, 3>}, {pipeline_mode = #tpu.pipeline_mode<synchronous>, transform_indices = @transform_1, window_bounds = array<i64: 8, 1>}, {transform_indices = @transform_2, window_bounds = array<i64: 1, 3, 506>}, {transform_indices = @transform_3, window_bounds = array<i64: 1, 8, 352>}]} {
    %cst = arith.constant 0.000000e+00 : f32
    %0 = vector.broadcast %cst : f32 to vector<8x352xf32>
    %c0 = arith.constant 0 : index
    %c0_0 = arith.constant 0 : index
    %c0_1 = arith.constant 0 : index
    %1 = vector.load %arg3[%c0, %c0_0, %c0_1] : memref<1x3x506xbf16, #tpu.memory_space<vmem>>, vector<1x3x352xbf16>
    %2 = vector.shape_cast %1 : vector<1x3x352xbf16> to vector<3x352xbf16>
    %c0_2 = arith.constant 0 : index
    %c0_3 = arith.constant 0 : index
    %c0_4 = arith.constant 0 : index
    %3 = vector.load %arg1[%c0_2, %c0_3, %c0_4] : memref<49x8x3xbf16, #tpu.memory_space<vmem>>, vector<1x8x3xbf16>
    %4 = vector.shape_cast %3 : vector<1x8x3xbf16> to vector<8x3xbf16>
    %cst_5 = arith.constant dense<0.000000e+00> : vector<8x352xf32>
    %5 = tpu.matmul %4, %2, %cst_5 {dimension_numbers = #tpu.dot_dimension_numbers<[1], [0], [0], [1], [0, 0, 1, 1], [], []>} : vector<8x3xbf16>, vector<3x352xbf16>, vector<8x352xf32> -> vector<8x352xf32>
    %6 = arith.addf %0, %5 : vector<8x352xf32>
    %c0_6 = arith.constant 0 : index
    %c0_7 = arith.constant 0 : index
    %c1 = arith.constant 1 : index
    %7 = vector.load %arg3[%c0_6, %c0_7, %c1] : memref<1x3x506xbf16, #tpu.memory_space<vmem>>, vector<1x3x352xbf16>
    %8 = vector.shape_cast %7 : vector<1x3x352xbf16> to vector<3x352xbf16>
    %c1_8 = arith.constant 1 : index
    %c0_9 = arith.constant 0 : index
    %c0_10 = arith.constant 0 : index
    %9 = vector.load %arg1[%c1_8, %c0_9, %c0_10] : memref<49x8x3xbf16, #tpu.memory_space<vmem>>, vector<1x8x3xbf16>
    %10 = vector.shape_cast %9 : vector<1x8x3xbf16> to vector<8x3xbf16>
    %cst_11 = arith.constant dense<0.000000e+00> : vector<8x352xf32>
    %11 = tpu.matmul %10, %8, %cst_11 {dimension_numbers = #tpu.dot_dimension_numbers<[1], [0], [0], [1], [0, 0, 1, 1], [], []>} : vector<8x3xbf16>, vector<3x352xbf16>, vector<8x352xf32> -> vector<8x352xf32>
    %12 = arith.addf %6, %11 : vector<8x352xf32>
    %c0_12 = arith.constant 0 : index
    %c0_13 = arith.constant 0 : index
    %c2 = arith.constant 2 : index
    %13 = vector.load %arg3[%c0_12, %c0_13, %c2] : memref<1x3x506xbf16, #tpu.memory_space<vmem>>, vector<1x3x352xbf16>
    %14 = vector.shape_cast %13 : vector<1x3x352xbf16> to vector<3x352xbf16>
    %c2_14 = arith.constant 2 : index
    %c0_15 = arith.constant 0 : index
    %c0_16 = arith.constant 0 : index
    %15 = vector.load %arg1[%c2_14, %c0_15, %c0_16] : memref<49x8x3xbf16, #tpu.memory_space<vmem>>, vector<1x8x3xbf16>
    %16 = vector.shape_cast %15 : vector<1x8x3xbf16> to vector<8x3xbf16>
    %cst_17 = arith.constant dense<0.000000e+00> : vector<8x352xf32>
    %17 = tpu.matmul %16, %14, %cst_17 {dimension_numbers = #tpu.dot_dimension_numbers<[1], [0], [0], [1], [0, 0, 1, 1], [], []>} : vector<8x3xbf16>, vector<3x352xbf16>, vector<8x352xf32> -> vector<8x352xf32>
    %18 = arith.addf %12, %17 : vector<8x352xf32>
    %c0_18 = arith.constant 0 : index
    %c0_19 = arith.constant 0 : index
    %c3 = arith.constant 3 : index
    %19 = vector.load %arg3[%c0_18, %c0_19, %c3] : memref<1x3x506xbf16, #tpu.memory_space<vmem>>, vector<1x3x352xbf16>
    %20 = vector.shape_cast %19 : vector<1x3x352xbf16> to vector<3x352xbf16>
    %c3_20 = arith.constant 3 : index
    %c0_21 = arith.constant 0 : index
    %c0_22 = arith.constant 0 : index
    %21 = vector.load %arg1[%c3_20, %c0_21, %c0_22] : memref<49x8x3xbf16, #tpu.memory_space<vmem>>, vector<1x8x3xbf16>
    %22 = vector.shape_cast %21 : vector<1x8x3xbf16> to vector<8x3xbf16>
    %cst_23 = arith.constant dense<0.000000e+00> : vector<8x352xf32>
    %23 = tpu.matmul %22, %20, %cst_23 {dimension_numbers = #tpu.dot_dimension_numbers<[1], [0], [0], [1], [0, 0, 1, 1], [], []>} : vector<8x3xbf16>, vector<3x352xbf16>, vector<8x352xf32> -> vector<8x352xf32>
    %24 = arith.addf %18, %23 : vector<8x352xf32>
    %c0_24 = arith.constant 0 : index
    %c0_25 = arith.constant 0 : index
    %c4 = arith.constant 4 : index
    %25 = vector.load %arg3[%c0_24, %c0_25, %c4] : memref<1x3x506xbf16, #tpu.memory_space<vmem>>, vector<1x3x352xbf16>
    %26 = vector.shape_cast %25 : vector<1x3x352xbf16> to vector<3x352xbf16>
    %c4_26 = arith.constant 4 : index
    %c0_27 = arith.constant 0 : index
    %c0_28 = arith.constant 0 : index
    %27 = vector.load %arg1[%c4_26, %c0_27, %c0_28] : memref<49x8x3xbf16, #tpu.memory_space<vmem>>, vector<1x8x3xbf16>
    %28 = vector.shape_cast %27 : vector<1x8x3xbf16> to vector<8x3xbf16>
    %cst_29 = arith.constant dense<0.000000e+00> : vector<8x352xf32>
    %29 = tpu.matmul %28, %26, %cst_29 {dimension_numbers = #tpu.dot_dimension_numbers<[1], [0], [0], [1], [0, 0, 1, 1], [], []>} : vector<8x3xbf16>, vector<3x352xbf16>, vector<8x352xf32> -> vector<8x352xf32>
    %30 = arith.addf %24, %29 : vector<8x352xf32>
    %c0_30 = arith.constant 0 : index
    %c0_31 = arith.constant 0 : index
    %c5 = arith.constant 5 : index
    %31 = vector.load %arg3[%c0_30, %c0_31, %c5] : memref<1x3x506xbf16, #tpu.memory_space<vmem>>, vector<1x3x352xbf16>
    %32 = vector.shape_cast %31 : vector<1x3x352xbf16> to vector<3x352xbf16>
    %c5_32 = arith.constant 5 : index
    %c0_33 = arith.constant 0 : index
    %c0_34 = arith.constant 0 : index
    %33 = vector.load %arg1[%c5_32, %c0_33, %c0_34] : memref<49x8x3xbf16, #tpu.memory_space<vmem>>, vector<1x8x3xbf16>
    %34 = vector.shape_cast %33 : vector<1x8x3xbf16> to vector<8x3xbf16>
    %cst_35 = arith.constant dense<0.000000e+00> : vector<8x352xf32>
    %35 = tpu.matmul %34, %32, %cst_35 {dimension_numbers = #tpu.dot_dimension_numbers<[1], [0], [0], [1], [0, 0, 1, 1], [], []>} : vector<8x3xbf16>, vector<3x352xbf16>, vector<8x352xf32> -> vector<8x352xf32>
    %36 = arith.addf %30, %35 : vector<8x352xf32>
    %c0_36 = arith.constant 0 : index
    %c0_37 = arith.constant 0 : index
    %c6 = arith.constant 6 : index
    %37 = vector.load %arg3[%c0_36, %c0_37, %c6] : memref<1x3x506xbf16, #tpu.memory_space<vmem>>, vector<1x3x352xbf16>
    %38 = vector.shape_cast %37 : vector<1x3x352xbf16> to vector<3x352xbf16>
    %c6_38 = arith.constant 6 : index
    %c0_39 = arith.constant 0 : index
    %c0_40 = arith.constant 0 : index
    %39 = vector.load %arg1[%c6_38, %c0_39, %c0_40] : memref<49x8x3xbf16, #tpu.memory_space<vmem>>, vector<1x8x3xbf16>
    %40 = vector.shape_cast %39 : vector<1x8x3xbf16> to vector<8x3xbf16>
    %cst_41 = arith.constant dense<0.000000e+00> : vector<8x352xf32>
    %41 = tpu.matmul %40, %38, %cst_41 {dimension_numbers = #tpu.dot_dimension_numbers<[1], [0], [0], [1], [0, 0, 1, 1], [], []>} : vector<8x3xbf16>, vector<3x352xbf16>, vector<8x352xf32> -> vector<8x352xf32>
    %42 = arith.addf %36, %41 : vector<8x352xf32>
    %c0_42 = arith.constant 0 : index
    %c0_43 = arith.constant 0 : index
    %c22 = arith.constant 22 : index
    %43 = vector.load %arg3[%c0_42, %c0_43, %c22] : memref<1x3x506xbf16, #tpu.memory_space<vmem>>, vector<1x3x352xbf16>
    %44 = vector.shape_cast %43 : vector<1x3x352xbf16> to vector<3x352xbf16>
    %c7 = arith.constant 7 : index
    %c0_44 = arith.constant 0 : index
    %c0_45 = arith.constant 0 : index
    %45 = vector.load %arg1[%c7, %c0_44, %c0_45] : memref<49x8x3xbf16, #tpu.memory_space<vmem>>, vector<1x8x3xbf16>
    %46 = vector.shape_cast %45 : vector<1x8x3xbf16> to vector<8x3xbf16>
    %cst_46 = arith.constant dense<0.000000e+00> : vector<8x352xf32>
    %47 = tpu.matmul %46, %44, %cst_46 {dimension_numbers = #tpu.dot_dimension_numbers<[1], [0], [0], [1], [0, 0, 1, 1], [], []>} : vector<8x3xbf16>, vector<3x352xbf16>, vector<8x352xf32> -> vector<8x352xf32>
    %48 = arith.addf %42, %47 : vector<8x352xf32>
    %c0_47 = arith.constant 0 : index
    %c0_48 = arith.constant 0 : index
    %c23 = arith.constant 23 : index
    %49 = vector.load %arg3[%c0_47, %c0_48, %c23] : memref<1x3x506xbf16, #tpu.memory_space<vmem>>, vector<1x3x352xbf16>
    %50 = vector.shape_cast %49 : vector<1x3x352xbf16> to vector<3x352xbf16>
    %c8 = arith.constant 8 : index
    %c0_49 = arith.constant 0 : index
    %c0_50 = arith.constant 0 : index
    %51 = vector.load %arg1[%c8, %c0_49, %c0_50] : memref<49x8x3xbf16, #tpu.memory_space<vmem>>, vector<1x8x3xbf16>
    %52 = vector.shape_cast %51 : vector<1x8x3xbf16> to vector<8x3xbf16>
    %cst_51 = arith.constant dense<0.000000e+00> : vector<8x352xf32>
    %53 = tpu.matmul %52, %50, %cst_51 {dimension_numbers = #tpu.dot_dimension_numbers<[1], [0], [0], [1], [0, 0, 1, 1], [], []>} : vector<8x3xbf16>, vector<3x352xbf16>, vector<8x352xf32> -> vector<8x352xf32>
    %54 = arith.addf %48, %53 : vector<8x352xf32>
    %c0_52 = arith.constant 0 : index
    %c0_53 = arith.constant 0 : index
    %c24 = arith.constant 24 : index
    %55 = vector.load %arg3[%c0_52, %c0_53, %c24] : memref<1x3x506xbf16, #tpu.memory_space<vmem>>, vector<1x3x352xbf16>
    %56 = vector.shape_cast %55 : vector<1x3x352xbf16> to vector<3x352xbf16>
    %c9 = arith.constant 9 : index
    %c0_54 = arith.constant 0 : index
    %c0_55 = arith.constant 0 : index
    %57 = vector.load %arg1[%c9, %c0_54, %c0_55] : memref<49x8x3xbf16, #tpu.memory_space<vmem>>, vector<1x8x3xbf16>
    %58 = vector.shape_cast %57 : vector<1x8x3xbf16> to vector<8x3xbf16>
    %cst_56 = arith.constant dense<0.000000e+00> : vector<8x352xf32>
    %59 = tpu.matmul %58, %56, %cst_56 {dimension_numbers = #tpu.dot_dimension_numbers<[1], [0], [0], [1], [0, 0, 1, 1], [], []>} : vector<8x3xbf16>, vector<3x352xbf16>, vector<8x352xf32> -> vector<8x352xf32>
    %60 = arith.addf %54, %59 : vector<8x352xf32>
    %c0_57 = arith.constant 0 : index
    %c0_58 = arith.constant 0 : index
    %c25 = arith.constant 25 : index
    %61 = vector.load %arg3[%c0_57, %c0_58, %c25] : memref<1x3x506xbf16, #tpu.memory_space<vmem>>, vector<1x3x352xbf16>
    %62 = vector.shape_cast %61 : vector<1x3x352xbf16> to vector<3x352xbf16>
    %c10 = arith.constant 10 : index
    %c0_59 = arith.constant 0 : index
    %c0_60 = arith.constant 0 : index
    %63 = vector.load %arg1[%c10, %c0_59, %c0_60] : memref<49x8x3xbf16, #tpu.memory_space<vmem>>, vector<1x8x3xbf16>
    %64 = vector.shape_cast %63 : vector<1x8x3xbf16> to vector<8x3xbf16>
    %cst_61 = arith.constant dense<0.000000e+00> : vector<8x352xf32>
    %65 = tpu.matmul %64, %62, %cst_61 {dimension_numbers = #tpu.dot_dimension_numbers<[1], [0], [0], [1], [0, 0, 1, 1], [], []>} : vector<8x3xbf16>, vector<3x352xbf16>, vector<8x352xf32> -> vector<8x352xf32>
    %66 = arith.addf %60, %65 : vector<8x352xf32>
    %c0_62 = arith.constant 0 : index
    %c0_63 = arith.constant 0 : index
    %c26 = arith.constant 26 : index
    %67 = vector.load %arg3[%c0_62, %c0_63, %c26] : memref<1x3x506xbf16, #tpu.memory_space<vmem>>, vector<1x3x352xbf16>
    %68 = vector.shape_cast %67 : vector<1x3x352xbf16> to vector<3x352xbf16>
    %c11 = arith.constant 11 : index
    %c0_64 = arith.constant 0 : index
    %c0_65 = arith.constant 0 : index
    %69 = vector.load %arg1[%c11, %c0_64, %c0_65] : memref<49x8x3xbf16, #tpu.memory_space<vmem>>, vector<1x8x3xbf16>
    %70 = vector.shape_cast %69 : vector<1x8x3xbf16> to vector<8x3xbf16>
    %cst_66 = arith.constant dense<0.000000e+00> : vector<8x352xf32>
    %71 = tpu.matmul %70, %68, %cst_66 {dimension_numbers = #tpu.dot_dimension_numbers<[1], [0], [0], [1], [0, 0, 1, 1], [], []>} : vector<8x3xbf16>, vector<3x352xbf16>, vector<8x352xf32> -> vector<8x352xf32>
    %72 = arith.addf %66, %71 : vector<8x352xf32>
    %c0_67 = arith.constant 0 : index
    %c0_68 = arith.constant 0 : index
    %c27 = arith.constant 27 : index
    %73 = vector.load %arg3[%c0_67, %c0_68, %c27] : memref<1x3x506xbf16, #tpu.memory_space<vmem>>, vector<1x3x352xbf16>
    %74 = vector.shape_cast %73 : vector<1x3x352xbf16> to vector<3x352xbf16>
    %c12 = arith.constant 12 : index
    %c0_69 = arith.constant 0 : index
    %c0_70 = arith.constant 0 : index
    %75 = vector.load %arg1[%c12, %c0_69, %c0_70] : memref<49x8x3xbf16, #tpu.memory_space<vmem>>, vector<1x8x3xbf16>
    %76 = vector.shape_cast %75 : vector<1x8x3xbf16> to vector<8x3xbf16>
    %cst_71 = arith.constant dense<0.000000e+00> : vector<8x352xf32>
    %77 = tpu.matmul %76, %74, %cst_71 {dimension_numbers = #tpu.dot_dimension_numbers<[1], [0], [0], [1], [0, 0, 1, 1], [], []>} : vector<8x3xbf16>, vector<3x352xbf16>, vector<8x352xf32> -> vector<8x352xf32>
    %78 = arith.addf %72, %77 : vector<8x352xf32>
    %c0_72 = arith.constant 0 : index
    %c0_73 = arith.constant 0 : index
    %c28 = arith.constant 28 : index
    %79 = vector.load %arg3[%c0_72, %c0_73, %c28] : memref<1x3x506xbf16, #tpu.memory_space<vmem>>, vector<1x3x352xbf16>
    %80 = vector.shape_cast %79 : vector<1x3x352xbf16> to vector<3x352xbf16>
    %c13 = arith.constant 13 : index
    %c0_74 = arith.constant 0 : index
    %c0_75 = arith.constant 0 : index
    %81 = vector.load %arg1[%c13, %c0_74, %c0_75] : memref<49x8x3xbf16, #tpu.memory_space<vmem>>, vector<1x8x3xbf16>
    %82 = vector.shape_cast %81 : vector<1x8x3xbf16> to vector<8x3xbf16>
    %cst_76 = arith.constant dense<0.000000e+00> : vector<8x352xf32>
    %83 = tpu.matmul %82, %80, %cst_76 {dimension_numbers = #tpu.dot_dimension_numbers<[1], [0], [0], [1], [0, 0, 1, 1], [], []>} : vector<8x3xbf16>, vector<3x352xbf16>, vector<8x352xf32> -> vector<8x352xf32>
    %84 = arith.addf %78, %83 : vector<8x352xf32>
    %c0_77 = arith.constant 0 : index
    %c0_78 = arith.constant 0 : index
    %c44 = arith.constant 44 : index
    %85 = vector.load %arg3[%c0_77, %c0_78, %c44] : memref<1x3x506xbf16, #tpu.memory_space<vmem>>, vector<1x3x352xbf16>
    %86 = vector.shape_cast %85 : vector<1x3x352xbf16> to vector<3x352xbf16>
    %c14 = arith.constant 14 : index
    %c0_79 = arith.constant 0 : index
    %c0_80 = arith.constant 0 : index
    %87 = vector.load %arg1[%c14, %c0_79, %c0_80] : memref<49x8x3xbf16, #tpu.memory_space<vmem>>, vector<1x8x3xbf16>
    %88 = vector.shape_cast %87 : vector<1x8x3xbf16> to vector<8x3xbf16>
    %cst_81 = arith.constant dense<0.000000e+00> : vector<8x352xf32>
    %89 = tpu.matmul %88, %86, %cst_81 {dimension_numbers = #tpu.dot_dimension_numbers<[1], [0], [0], [1], [0, 0, 1, 1], [], []>} : vector<8x3xbf16>, vector<3x352xbf16>, vector<8x352xf32> -> vector<8x352xf32>
    %90 = arith.addf %84, %89 : vector<8x352xf32>
    %c0_82 = arith.constant 0 : index
    %c0_83 = arith.constant 0 : index
    %c45 = arith.constant 45 : index
    %91 = vector.load %arg3[%c0_82, %c0_83, %c45] : memref<1x3x506xbf16, #tpu.memory_space<vmem>>, vector<1x3x352xbf16>
    %92 = vector.shape_cast %91 : vector<1x3x352xbf16> to vector<3x352xbf16>
    %c15 = arith.constant 15 : index
    %c0_84 = arith.constant 0 : index
    %c0_85 = arith.constant 0 : index
    %93 = vector.load %arg1[%c15, %c0_84, %c0_85] : memref<49x8x3xbf16, #tpu.memory_space<vmem>>, vector<1x8x3xbf16>
    %94 = vector.shape_cast %93 : vector<1x8x3xbf16> to vector<8x3xbf16>
    %cst_86 = arith.constant dense<0.000000e+00> : vector<8x352xf32>
    %95 = tpu.matmul %94, %92, %cst_86 {dimension_numbers = #tpu.dot_dimension_numbers<[1], [0], [0], [1], [0, 0, 1, 1], [], []>} : vector<8x3xbf16>, vector<3x352xbf16>, vector<8x352xf32> -> vector<8x352xf32>
    %96 = arith.addf %90, %95 : vector<8x352xf32>
    %c0_87 = arith.constant 0 : index
    %c0_88 = arith.constant 0 : index
    %c46 = arith.constant 46 : index
    %97 = vector.load %arg3[%c0_87, %c0_88, %c46] : memref<1x3x506xbf16, #tpu.memory_space<vmem>>, vector<1x3x352xbf16>
    %98 = vector.shape_cast %97 : vector<1x3x352xbf16> to vector<3x352xbf16>
    %c16 = arith.constant 16 : index
    %c0_89 = arith.constant 0 : index
    %c0_90 = arith.constant 0 : index
    %99 = vector.load %arg1[%c16, %c0_89, %c0_90] : memref<49x8x3xbf16, #tpu.memory_space<vmem>>, vector<1x8x3xbf16>
    %100 = vector.shape_cast %99 : vector<1x8x3xbf16> to vector<8x3xbf16>
    %cst_91 = arith.constant dense<0.000000e+00> : vector<8x352xf32>
    %101 = tpu.matmul %100, %98, %cst_91 {dimension_numbers = #tpu.dot_dimension_numbers<[1], [0], [0], [1], [0, 0, 1, 1], [], []>} : vector<8x3xbf16>, vector<3x352xbf16>, vector<8x352xf32> -> vector<8x352xf32>
    %102 = arith.addf %96, %101 : vector<8x352xf32>
    %c0_92 = arith.constant 0 : index
    %c0_93 = arith.constant 0 : index
    %c47 = arith.constant 47 : index
    %103 = vector.load %arg3[%c0_92, %c0_93, %c47] : memref<1x3x506xbf16, #tpu.memory_space<vmem>>, vector<1x3x352xbf16>
    %104 = vector.shape_cast %103 : vector<1x3x352xbf16> to vector<3x352xbf16>
    %c17 = arith.constant 17 : index
    %c0_94 = arith.constant 0 : index
    %c0_95 = arith.constant 0 : index
    %105 = vector.load %arg1[%c17, %c0_94, %c0_95] : memref<49x8x3xbf16, #tpu.memory_space<vmem>>, vector<1x8x3xbf16>
    %106 = vector.shape_cast %105 : vector<1x8x3xbf16> to vector<8x3xbf16>
    %cst_96 = arith.constant dense<0.000000e+00> : vector<8x352xf32>
    %107 = tpu.matmul %106, %104, %cst_96 {dimension_numbers = #tpu.dot_dimension_numbers<[1], [0], [0], [1], [0, 0, 1, 1], [], []>} : vector<8x3xbf16>, vector<3x352xbf16>, vector<8x352xf32> -> vector<8x352xf32>
    %108 = arith.addf %102, %107 : vector<8x352xf32>
    %c0_97 = arith.constant 0 : index
    %c0_98 = arith.constant 0 : index
    %c48 = arith.constant 48 : index
    %109 = vector.load %arg3[%c0_97, %c0_98, %c48] : memref<1x3x506xbf16, #tpu.memory_space<vmem>>, vector<1x3x352xbf16>
    %110 = vector.shape_cast %109 : vector<1x3x352xbf16> to vector<3x352xbf16>
    %c18 = arith.constant 18 : index
    %c0_99 = arith.constant 0 : index
    %c0_100 = arith.constant 0 : index
    %111 = vector.load %arg1[%c18, %c0_99, %c0_100] : memref<49x8x3xbf16, #tpu.memory_space<vmem>>, vector<1x8x3xbf16>
    %112 = vector.shape_cast %111 : vector<1x8x3xbf16> to vector<8x3xbf16>
    %cst_101 = arith.constant dense<0.000000e+00> : vector<8x352xf32>
    %113 = tpu.matmul %112, %110, %cst_101 {dimension_numbers = #tpu.dot_dimension_numbers<[1], [0], [0], [1], [0, 0, 1, 1], [], []>} : vector<8x3xbf16>, vector<3x352xbf16>, vector<8x352xf32> -> vector<8x352xf32>
    %114 = arith.addf %108, %113 : vector<8x352xf32>
    %c0_102 = arith.constant 0 : index
    %c0_103 = arith.constant 0 : index
    %c49 = arith.constant 49 : index
    %115 = vector.load %arg3[%c0_102, %c0_103, %c49] : memref<1x3x506xbf16, #tpu.memory_space<vmem>>, vector<1x3x352xbf16>
    %116 = vector.shape_cast %115 : vector<1x3x352xbf16> to vector<3x352xbf16>
    %c19 = arith.constant 19 : index
    %c0_104 = arith.constant 0 : index
    %c0_105 = arith.constant 0 : index
    %117 = vector.load %arg1[%c19, %c0_104, %c0_105] : memref<49x8x3xbf16, #tpu.memory_space<vmem>>, vector<1x8x3xbf16>
    %118 = vector.shape_cast %117 : vector<1x8x3xbf16> to vector<8x3xbf16>
    %cst_106 = arith.constant dense<0.000000e+00> : vector<8x352xf32>
    %119 = tpu.matmul %118, %116, %cst_106 {dimension_numbers = #tpu.dot_dimension_numbers<[1], [0], [0], [1], [0, 0, 1, 1], [], []>} : vector<8x3xbf16>, vector<3x352xbf16>, vector<8x352xf32> -> vector<8x352xf32>
    %120 = arith.addf %114, %119 : vector<8x352xf32>
    %c0_107 = arith.constant 0 : index
    %c0_108 = arith.constant 0 : index
    %c50 = arith.constant 50 : index
    %121 = vector.load %arg3[%c0_107, %c0_108, %c50] : memref<1x3x506xbf16, #tpu.memory_space<vmem>>, vector<1x3x352xbf16>
    %122 = vector.shape_cast %121 : vector<1x3x352xbf16> to vector<3x352xbf16>
    %c20 = arith.constant 20 : index
    %c0_109 = arith.constant 0 : index
    %c0_110 = arith.constant 0 : index
    %123 = vector.load %arg1[%c20, %c0_109, %c0_110] : memref<49x8x3xbf16, #tpu.memory_space<vmem>>, vector<1x8x3xbf16>
    %124 = vector.shape_cast %123 : vector<1x8x3xbf16> to vector<8x3xbf16>
    %cst_111 = arith.constant dense<0.000000e+00> : vector<8x352xf32>
    %125 = tpu.matmul %124, %122, %cst_111 {dimension_numbers = #tpu.dot_dimension_numbers<[1], [0], [0], [1], [0, 0, 1, 1], [], []>} : vector<8x3xbf16>, vector<3x352xbf16>, vector<8x352xf32> -> vector<8x352xf32>
    %126 = arith.addf %120, %125 : vector<8x352xf32>
    %c0_112 = arith.constant 0 : index
    %c0_113 = arith.constant 0 : index
    %c66 = arith.constant 66 : index
    %127 = vector.load %arg3[%c0_112, %c0_113, %c66] : memref<1x3x506xbf16, #tpu.memory_space<vmem>>, vector<1x3x352xbf16>
    %128 = vector.shape_cast %127 : vector<1x3x352xbf16> to vector<3x352xbf16>
    %c21 = arith.constant 21 : index
    %c0_114 = arith.constant 0 : index
    %c0_115 = arith.constant 0 : index
    %129 = vector.load %arg1[%c21, %c0_114, %c0_115] : memref<49x8x3xbf16, #tpu.memory_space<vmem>>, vector<1x8x3xbf16>
    %130 = vector.shape_cast %129 : vector<1x8x3xbf16> to vector<8x3xbf16>
    %cst_116 = arith.constant dense<0.000000e+00> : vector<8x352xf32>
    %131 = tpu.matmul %130, %128, %cst_116 {dimension_numbers = #tpu.dot_dimension_numbers<[1], [0], [0], [1], [0, 0, 1, 1], [], []>} : vector<8x3xbf16>, vector<3x352xbf16>, vector<8x352xf32> -> vector<8x352xf32>
    %132 = arith.addf %126, %131 : vector<8x352xf32>
    %c0_117 = arith.constant 0 : index
    %c0_118 = arith.constant 0 : index
    %c67 = arith.constant 67 : index
    %133 = vector.load %arg3[%c0_117, %c0_118, %c67] : memref<1x3x506xbf16, #tpu.memory_space<vmem>>, vector<1x3x352xbf16>
    %134 = vector.shape_cast %133 : vector<1x3x352xbf16> to vector<3x352xbf16>
    %c22_119 = arith.constant 22 : index
    %c0_120 = arith.constant 0 : index
    %c0_121 = arith.constant 0 : index
    %135 = vector.load %arg1[%c22_119, %c0_120, %c0_121] : memref<49x8x3xbf16, #tpu.memory_space<vmem>>, vector<1x8x3xbf16>
    %136 = vector.shape_cast %135 : vector<1x8x3xbf16> to vector<8x3xbf16>
    %cst_122 = arith.constant dense<0.000000e+00> : vector<8x352xf32>
    %137 = tpu.matmul %136, %134, %cst_122 {dimension_numbers = #tpu.dot_dimension_numbers<[1], [0], [0], [1], [0, 0, 1, 1], [], []>} : vector<8x3xbf16>, vector<3x352xbf16>, vector<8x352xf32> -> vector<8x352xf32>
    %138 = arith.addf %132, %137 : vector<8x352xf32>
    %c0_123 = arith.constant 0 : index
    %c0_124 = arith.constant 0 : index
    %c68 = arith.constant 68 : index
    %139 = vector.load %arg3[%c0_123, %c0_124, %c68] : memref<1x3x506xbf16, #tpu.memory_space<vmem>>, vector<1x3x352xbf16>
    %140 = vector.shape_cast %139 : vector<1x3x352xbf16> to vector<3x352xbf16>
    %c23_125 = arith.constant 23 : index
    %c0_126 = arith.constant 0 : index
    %c0_127 = arith.constant 0 : index
    %141 = vector.load %arg1[%c23_125, %c0_126, %c0_127] : memref<49x8x3xbf16, #tpu.memory_space<vmem>>, vector<1x8x3xbf16>
    %142 = vector.shape_cast %141 : vector<1x8x3xbf16> to vector<8x3xbf16>
    %cst_128 = arith.constant dense<0.000000e+00> : vector<8x352xf32>
    %143 = tpu.matmul %142, %140, %cst_128 {dimension_numbers = #tpu.dot_dimension_numbers<[1], [0], [0], [1], [0, 0, 1, 1], [], []>} : vector<8x3xbf16>, vector<3x352xbf16>, vector<8x352xf32> -> vector<8x352xf32>
    %144 = arith.addf %138, %143 : vector<8x352xf32>
    %c0_129 = arith.constant 0 : index
    %c0_130 = arith.constant 0 : index
    %c69 = arith.constant 69 : index
    %145 = vector.load %arg3[%c0_129, %c0_130, %c69] : memref<1x3x506xbf16, #tpu.memory_space<vmem>>, vector<1x3x352xbf16>
    %146 = vector.shape_cast %145 : vector<1x3x352xbf16> to vector<3x352xbf16>
    %c24_131 = arith.constant 24 : index
    %c0_132 = arith.constant 0 : index
    %c0_133 = arith.constant 0 : index
    %147 = vector.load %arg1[%c24_131, %c0_132, %c0_133] : memref<49x8x3xbf16, #tpu.memory_space<vmem>>, vector<1x8x3xbf16>
    %148 = vector.shape_cast %147 : vector<1x8x3xbf16> to vector<8x3xbf16>
    %cst_134 = arith.constant dense<0.000000e+00> : vector<8x352xf32>
    %149 = tpu.matmul %148, %146, %cst_134 {dimension_numbers = #tpu.dot_dimension_numbers<[1], [0], [0], [1], [0, 0, 1, 1], [], []>} : vector<8x3xbf16>, vector<3x352xbf16>, vector<8x352xf32> -> vector<8x352xf32>
    %150 = arith.addf %144, %149 : vector<8x352xf32>
    %c0_135 = arith.constant 0 : index
    %c0_136 = arith.constant 0 : index
    %c70 = arith.constant 70 : index
    %151 = vector.load %arg3[%c0_135, %c0_136, %c70] : memref<1x3x506xbf16, #tpu.memory_space<vmem>>, vector<1x3x352xbf16>
    %152 = vector.shape_cast %151 : vector<1x3x352xbf16> to vector<3x352xbf16>
    %c25_137 = arith.constant 25 : index
    %c0_138 = arith.constant 0 : index
    %c0_139 = arith.constant 0 : index
    %153 = vector.load %arg1[%c25_137, %c0_138, %c0_139] : memref<49x8x3xbf16, #tpu.memory_space<vmem>>, vector<1x8x3xbf16>
    %154 = vector.shape_cast %153 : vector<1x8x3xbf16> to vector<8x3xbf16>
    %cst_140 = arith.constant dense<0.000000e+00> : vector<8x352xf32>
    %155 = tpu.matmul %154, %152, %cst_140 {dimension_numbers = #tpu.dot_dimension_numbers<[1], [0], [0], [1], [0, 0, 1, 1], [], []>} : vector<8x3xbf16>, vector<3x352xbf16>, vector<8x352xf32> -> vector<8x352xf32>
    %156 = arith.addf %150, %155 : vector<8x352xf32>
    %c0_141 = arith.constant 0 : index
    %c0_142 = arith.constant 0 : index
    %c71 = arith.constant 71 : index
    %157 = vector.load %arg3[%c0_141, %c0_142, %c71] : memref<1x3x506xbf16, #tpu.memory_space<vmem>>, vector<1x3x352xbf16>
    %158 = vector.shape_cast %157 : vector<1x3x352xbf16> to vector<3x352xbf16>
    %c26_143 = arith.constant 26 : index
    %c0_144 = arith.constant 0 : index
    %c0_145 = arith.constant 0 : index
    %159 = vector.load %arg1[%c26_143, %c0_144, %c0_145] : memref<49x8x3xbf16, #tpu.memory_space<vmem>>, vector<1x8x3xbf16>
    %160 = vector.shape_cast %159 : vector<1x8x3xbf16> to vector<8x3xbf16>
    %cst_146 = arith.constant dense<0.000000e+00> : vector<8x352xf32>
    %161 = tpu.matmul %160, %158, %cst_146 {dimension_numbers = #tpu.dot_dimension_numbers<[1], [0], [0], [1], [0, 0, 1, 1], [], []>} : vector<8x3xbf16>, vector<3x352xbf16>, vector<8x352xf32> -> vector<8x352xf32>
    %162 = arith.addf %156, %161 : vector<8x352xf32>
    %c0_147 = arith.constant 0 : index
    %c0_148 = arith.constant 0 : index
    %c72 = arith.constant 72 : index
    %163 = vector.load %arg3[%c0_147, %c0_148, %c72] : memref<1x3x506xbf16, #tpu.memory_space<vmem>>, vector<1x3x352xbf16>
    %164 = vector.shape_cast %163 : vector<1x3x352xbf16> to vector<3x352xbf16>
    %c27_149 = arith.constant 27 : index
    %c0_150 = arith.constant 0 : index
    %c0_151 = arith.constant 0 : index
    %165 = vector.load %arg1[%c27_149, %c0_150, %c0_151] : memref<49x8x3xbf16, #tpu.memory_space<vmem>>, vector<1x8x3xbf16>
    %166 = vector.shape_cast %165 : vector<1x8x3xbf16> to vector<8x3xbf16>
    %cst_152 = arith.constant dense<0.000000e+00> : vector<8x352xf32>
    %167 = tpu.matmul %166, %164, %cst_152 {dimension_numbers = #tpu.dot_dimension_numbers<[1], [0], [0], [1], [0, 0, 1, 1], [], []>} : vector<8x3xbf16>, vector<3x352xbf16>, vector<8x352xf32> -> vector<8x352xf32>
    %168 = arith.addf %162, %167 : vector<8x352xf32>
    %c0_153 = arith.constant 0 : index
    %c0_154 = arith.constant 0 : index
    %c88 = arith.constant 88 : index
    %169 = vector.load %arg3[%c0_153, %c0_154, %c88] : memref<1x3x506xbf16, #tpu.memory_space<vmem>>, vector<1x3x352xbf16>
    %170 = vector.shape_cast %169 : vector<1x3x352xbf16> to vector<3x352xbf16>
    %c28_155 = arith.constant 28 : index
    %c0_156 = arith.constant 0 : index
    %c0_157 = arith.constant 0 : index
    %171 = vector.load %arg1[%c28_155, %c0_156, %c0_157] : memref<49x8x3xbf16, #tpu.memory_space<vmem>>, vector<1x8x3xbf16>
    %172 = vector.shape_cast %171 : vector<1x8x3xbf16> to vector<8x3xbf16>
    %cst_158 = arith.constant dense<0.000000e+00> : vector<8x352xf32>
    %173 = tpu.matmul %172, %170, %cst_158 {dimension_numbers = #tpu.dot_dimension_numbers<[1], [0], [0], [1], [0, 0, 1, 1], [], []>} : vector<8x3xbf16>, vector<3x352xbf16>, vector<8x352xf32> -> vector<8x352xf32>
    %174 = arith.addf %168, %173 : vector<8x352xf32>
    %c0_159 = arith.constant 0 : index
    %c0_160 = arith.constant 0 : index
    %c89 = arith.constant 89 : index
    %175 = vector.load %arg3[%c0_159, %c0_160, %c89] : memref<1x3x506xbf16, #tpu.memory_space<vmem>>, vector<1x3x352xbf16>
    %176 = vector.shape_cast %175 : vector<1x3x352xbf16> to vector<3x352xbf16>
    %c29 = arith.constant 29 : index
    %c0_161 = arith.constant 0 : index
    %c0_162 = arith.constant 0 : index
    %177 = vector.load %arg1[%c29, %c0_161, %c0_162] : memref<49x8x3xbf16, #tpu.memory_space<vmem>>, vector<1x8x3xbf16>
    %178 = vector.shape_cast %177 : vector<1x8x3xbf16> to vector<8x3xbf16>
    %cst_163 = arith.constant dense<0.000000e+00> : vector<8x352xf32>
    %179 = tpu.matmul %178, %176, %cst_163 {dimension_numbers = #tpu.dot_dimension_numbers<[1], [0], [0], [1], [0, 0, 1, 1], [], []>} : vector<8x3xbf16>, vector<3x352xbf16>, vector<8x352xf32> -> vector<8x352xf32>
    %180 = arith.addf %174, %179 : vector<8x352xf32>
    %c0_164 = arith.constant 0 : index
    %c0_165 = arith.constant 0 : index
    %c90 = arith.constant 90 : index
    %181 = vector.load %arg3[%c0_164, %c0_165, %c90] : memref<1x3x506xbf16, #tpu.memory_space<vmem>>, vector<1x3x352xbf16>
    %182 = vector.shape_cast %181 : vector<1x3x352xbf16> to vector<3x352xbf16>
    %c30 = arith.constant 30 : index
    %c0_166 = arith.constant 0 : index
    %c0_167 = arith.constant 0 : index
    %183 = vector.load %arg1[%c30, %c0_166, %c0_167] : memref<49x8x3xbf16, #tpu.memory_space<vmem>>, vector<1x8x3xbf16>
    %184 = vector.shape_cast %183 : vector<1x8x3xbf16> to vector<8x3xbf16>
    %cst_168 = arith.constant dense<0.000000e+00> : vector<8x352xf32>
    %185 = tpu.matmul %184, %182, %cst_168 {dimension_numbers = #tpu.dot_dimension_numbers<[1], [0], [0], [1], [0, 0, 1, 1], [], []>} : vector<8x3xbf16>, vector<3x352xbf16>, vector<8x352xf32> -> vector<8x352xf32>
    %186 = arith.addf %180, %185 : vector<8x352xf32>
    %c0_169 = arith.constant 0 : index
    %c0_170 = arith.constant 0 : index
    %c91 = arith.constant 91 : index
    %187 = vector.load %arg3[%c0_169, %c0_170, %c91] : memref<1x3x506xbf16, #tpu.memory_space<vmem>>, vector<1x3x352xbf16>
    %188 = vector.shape_cast %187 : vector<1x3x352xbf16> to vector<3x352xbf16>
    %c31 = arith.constant 31 : index
    %c0_171 = arith.constant 0 : index
    %c0_172 = arith.constant 0 : index
    %189 = vector.load %arg1[%c31, %c0_171, %c0_172] : memref<49x8x3xbf16, #tpu.memory_space<vmem>>, vector<1x8x3xbf16>
    %190 = vector.shape_cast %189 : vector<1x8x3xbf16> to vector<8x3xbf16>
    %cst_173 = arith.constant dense<0.000000e+00> : vector<8x352xf32>
    %191 = tpu.matmul %190, %188, %cst_173 {dimension_numbers = #tpu.dot_dimension_numbers<[1], [0], [0], [1], [0, 0, 1, 1], [], []>} : vector<8x3xbf16>, vector<3x352xbf16>, vector<8x352xf32> -> vector<8x352xf32>
    %192 = arith.addf %186, %191 : vector<8x352xf32>
    %c0_174 = arith.constant 0 : index
    %c0_175 = arith.constant 0 : index
    %c92 = arith.constant 92 : index
    %193 = vector.load %arg3[%c0_174, %c0_175, %c92] : memref<1x3x506xbf16, #tpu.memory_space<vmem>>, vector<1x3x352xbf16>
    %194 = vector.shape_cast %193 : vector<1x3x352xbf16> to vector<3x352xbf16>
    %c32 = arith.constant 32 : index
    %c0_176 = arith.constant 0 : index
    %c0_177 = arith.constant 0 : index
    %195 = vector.load %arg1[%c32, %c0_176, %c0_177] : memref<49x8x3xbf16, #tpu.memory_space<vmem>>, vector<1x8x3xbf16>
    %196 = vector.shape_cast %195 : vector<1x8x3xbf16> to vector<8x3xbf16>
    %cst_178 = arith.constant dense<0.000000e+00> : vector<8x352xf32>
    %197 = tpu.matmul %196, %194, %cst_178 {dimension_numbers = #tpu.dot_dimension_numbers<[1], [0], [0], [1], [0, 0, 1, 1], [], []>} : vector<8x3xbf16>, vector<3x352xbf16>, vector<8x352xf32> -> vector<8x352xf32>
    %198 = arith.addf %192, %197 : vector<8x352xf32>
    %c0_179 = arith.constant 0 : index
    %c0_180 = arith.constant 0 : index
    %c93 = arith.constant 93 : index
    %199 = vector.load %arg3[%c0_179, %c0_180, %c93] : memref<1x3x506xbf16, #tpu.memory_space<vmem>>, vector<1x3x352xbf16>
    %200 = vector.shape_cast %199 : vector<1x3x352xbf16> to vector<3x352xbf16>
    %c33 = arith.constant 33 : index
    %c0_181 = arith.constant 0 : index
    %c0_182 = arith.constant 0 : index
    %201 = vector.load %arg1[%c33, %c0_181, %c0_182] : memref<49x8x3xbf16, #tpu.memory_space<vmem>>, vector<1x8x3xbf16>
    %202 = vector.shape_cast %201 : vector<1x8x3xbf16> to vector<8x3xbf16>
    %cst_183 = arith.constant dense<0.000000e+00> : vector<8x352xf32>
    %203 = tpu.matmul %202, %200, %cst_183 {dimension_numbers = #tpu.dot_dimension_numbers<[1], [0], [0], [1], [0, 0, 1, 1], [], []>} : vector<8x3xbf16>, vector<3x352xbf16>, vector<8x352xf32> -> vector<8x352xf32>
    %204 = arith.addf %198, %203 : vector<8x352xf32>
    %c0_184 = arith.constant 0 : index
    %c0_185 = arith.constant 0 : index
    %c94 = arith.constant 94 : index
    %205 = vector.load %arg3[%c0_184, %c0_185, %c94] : memref<1x3x506xbf16, #tpu.memory_space<vmem>>, vector<1x3x352xbf16>
    %206 = vector.shape_cast %205 : vector<1x3x352xbf16> to vector<3x352xbf16>
    %c34 = arith.constant 34 : index
    %c0_186 = arith.constant 0 : index
    %c0_187 = arith.constant 0 : index
    %207 = vector.load %arg1[%c34, %c0_186, %c0_187] : memref<49x8x3xbf16, #tpu.memory_space<vmem>>, vector<1x8x3xbf16>
    %208 = vector.shape_cast %207 : vector<1x8x3xbf16> to vector<8x3xbf16>
    %cst_188 = arith.constant dense<0.000000e+00> : vector<8x352xf32>
    %209 = tpu.matmul %208, %206, %cst_188 {dimension_numbers = #tpu.dot_dimension_numbers<[1], [0], [0], [1], [0, 0, 1, 1], [], []>} : vector<8x3xbf16>, vector<3x352xbf16>, vector<8x352xf32> -> vector<8x352xf32>
    %210 = arith.addf %204, %209 : vector<8x352xf32>
    %c0_189 = arith.constant 0 : index
    %c0_190 = arith.constant 0 : index
    %c110 = arith.constant 110 : index
    %211 = vector.load %arg3[%c0_189, %c0_190, %c110] : memref<1x3x506xbf16, #tpu.memory_space<vmem>>, vector<1x3x352xbf16>
    %212 = vector.shape_cast %211 : vector<1x3x352xbf16> to vector<3x352xbf16>
    %c35 = arith.constant 35 : index
    %c0_191 = arith.constant 0 : index
    %c0_192 = arith.constant 0 : index
    %213 = vector.load %arg1[%c35, %c0_191, %c0_192] : memref<49x8x3xbf16, #tpu.memory_space<vmem>>, vector<1x8x3xbf16>
    %214 = vector.shape_cast %213 : vector<1x8x3xbf16> to vector<8x3xbf16>
    %cst_193 = arith.constant dense<0.000000e+00> : vector<8x352xf32>
    %215 = tpu.matmul %214, %212, %cst_193 {dimension_numbers = #tpu.dot_dimension_numbers<[1], [0], [0], [1], [0, 0, 1, 1], [], []>} : vector<8x3xbf16>, vector<3x352xbf16>, vector<8x352xf32> -> vector<8x352xf32>
    %216 = arith.addf %210, %215 : vector<8x352xf32>
    %c0_194 = arith.constant 0 : index
    %c0_195 = arith.constant 0 : index
    %c111 = arith.constant 111 : index
    %217 = vector.load %arg3[%c0_194, %c0_195, %c111] : memref<1x3x506xbf16, #tpu.memory_space<vmem>>, vector<1x3x352xbf16>
    %218 = vector.shape_cast %217 : vector<1x3x352xbf16> to vector<3x352xbf16>
    %c36 = arith.constant 36 : index
    %c0_196 = arith.constant 0 : index
    %c0_197 = arith.constant 0 : index
    %219 = vector.load %arg1[%c36, %c0_196, %c0_197] : memref<49x8x3xbf16, #tpu.memory_space<vmem>>, vector<1x8x3xbf16>
    %220 = vector.shape_cast %219 : vector<1x8x3xbf16> to vector<8x3xbf16>
    %cst_198 = arith.constant dense<0.000000e+00> : vector<8x352xf32>
    %221 = tpu.matmul %220, %218, %cst_198 {dimension_numbers = #tpu.dot_dimension_numbers<[1], [0], [0], [1], [0, 0, 1, 1], [], []>} : vector<8x3xbf16>, vector<3x352xbf16>, vector<8x352xf32> -> vector<8x352xf32>
    %222 = arith.addf %216, %221 : vector<8x352xf32>
    %c0_199 = arith.constant 0 : index
    %c0_200 = arith.constant 0 : index
    %c112 = arith.constant 112 : index
    %223 = vector.load %arg3[%c0_199, %c0_200, %c112] : memref<1x3x506xbf16, #tpu.memory_space<vmem>>, vector<1x3x352xbf16>
    %224 = vector.shape_cast %223 : vector<1x3x352xbf16> to vector<3x352xbf16>
    %c37 = arith.constant 37 : index
    %c0_201 = arith.constant 0 : index
    %c0_202 = arith.constant 0 : index
    %225 = vector.load %arg1[%c37, %c0_201, %c0_202] : memref<49x8x3xbf16, #tpu.memory_space<vmem>>, vector<1x8x3xbf16>
    %226 = vector.shape_cast %225 : vector<1x8x3xbf16> to vector<8x3xbf16>
    %cst_203 = arith.constant dense<0.000000e+00> : vector<8x352xf32>
    %227 = tpu.matmul %226, %224, %cst_203 {dimension_numbers = #tpu.dot_dimension_numbers<[1], [0], [0], [1], [0, 0, 1, 1], [], []>} : vector<8x3xbf16>, vector<3x352xbf16>, vector<8x352xf32> -> vector<8x352xf32>
    %228 = arith.addf %222, %227 : vector<8x352xf32>
    %c0_204 = arith.constant 0 : index
    %c0_205 = arith.constant 0 : index
    %c113 = arith.constant 113 : index
    %229 = vector.load %arg3[%c0_204, %c0_205, %c113] : memref<1x3x506xbf16, #tpu.memory_space<vmem>>, vector<1x3x352xbf16>
    %230 = vector.shape_cast %229 : vector<1x3x352xbf16> to vector<3x352xbf16>
    %c38 = arith.constant 38 : index
    %c0_206 = arith.constant 0 : index
    %c0_207 = arith.constant 0 : index
    %231 = vector.load %arg1[%c38, %c0_206, %c0_207] : memref<49x8x3xbf16, #tpu.memory_space<vmem>>, vector<1x8x3xbf16>
    %232 = vector.shape_cast %231 : vector<1x8x3xbf16> to vector<8x3xbf16>
    %cst_208 = arith.constant dense<0.000000e+00> : vector<8x352xf32>
    %233 = tpu.matmul %232, %230, %cst_208 {dimension_numbers = #tpu.dot_dimension_numbers<[1], [0], [0], [1], [0, 0, 1, 1], [], []>} : vector<8x3xbf16>, vector<3x352xbf16>, vector<8x352xf32> -> vector<8x352xf32>
    %234 = arith.addf %228, %233 : vector<8x352xf32>
    %c0_209 = arith.constant 0 : index
    %c0_210 = arith.constant 0 : index
    %c114 = arith.constant 114 : index
    %235 = vector.load %arg3[%c0_209, %c0_210, %c114] : memref<1x3x506xbf16, #tpu.memory_space<vmem>>, vector<1x3x352xbf16>
    %236 = vector.shape_cast %235 : vector<1x3x352xbf16> to vector<3x352xbf16>
    %c39 = arith.constant 39 : index
    %c0_211 = arith.constant 0 : index
    %c0_212 = arith.constant 0 : index
    %237 = vector.load %arg1[%c39, %c0_211, %c0_212] : memref<49x8x3xbf16, #tpu.memory_space<vmem>>, vector<1x8x3xbf16>
    %238 = vector.shape_cast %237 : vector<1x8x3xbf16> to vector<8x3xbf16>
    %cst_213 = arith.constant dense<0.000000e+00> : vector<8x352xf32>
    %239 = tpu.matmul %238, %236, %cst_213 {dimension_numbers = #tpu.dot_dimension_numbers<[1], [0], [0], [1], [0, 0, 1, 1], [], []>} : vector<8x3xbf16>, vector<3x352xbf16>, vector<8x352xf32> -> vector<8x352xf32>
    %240 = arith.addf %234, %239 : vector<8x352xf32>
    %c0_214 = arith.constant 0 : index
    %c0_215 = arith.constant 0 : index
    %c115 = arith.constant 115 : index
    %241 = vector.load %arg3[%c0_214, %c0_215, %c115] : memref<1x3x506xbf16, #tpu.memory_space<vmem>>, vector<1x3x352xbf16>
    %242 = vector.shape_cast %241 : vector<1x3x352xbf16> to vector<3x352xbf16>
    %c40 = arith.constant 40 : index
    %c0_216 = arith.constant 0 : index
    %c0_217 = arith.constant 0 : index
    %243 = vector.load %arg1[%c40, %c0_216, %c0_217] : memref<49x8x3xbf16, #tpu.memory_space<vmem>>, vector<1x8x3xbf16>
    %244 = vector.shape_cast %243 : vector<1x8x3xbf16> to vector<8x3xbf16>
    %cst_218 = arith.constant dense<0.000000e+00> : vector<8x352xf32>
    %245 = tpu.matmul %244, %242, %cst_218 {dimension_numbers = #tpu.dot_dimension_numbers<[1], [0], [0], [1], [0, 0, 1, 1], [], []>} : vector<8x3xbf16>, vector<3x352xbf16>, vector<8x352xf32> -> vector<8x352xf32>
    %246 = arith.addf %240, %245 : vector<8x352xf32>
    %c0_219 = arith.constant 0 : index
    %c0_220 = arith.constant 0 : index
    %c116 = arith.constant 116 : index
    %247 = vector.load %arg3[%c0_219, %c0_220, %c116] : memref<1x3x506xbf16, #tpu.memory_space<vmem>>, vector<1x3x352xbf16>
    %248 = vector.shape_cast %247 : vector<1x3x352xbf16> to vector<3x352xbf16>
    %c41 = arith.constant 41 : index
    %c0_221 = arith.constant 0 : index
    %c0_222 = arith.constant 0 : index
    %249 = vector.load %arg1[%c41, %c0_221, %c0_222] : memref<49x8x3xbf16, #tpu.memory_space<vmem>>, vector<1x8x3xbf16>
    %250 = vector.shape_cast %249 : vector<1x8x3xbf16> to vector<8x3xbf16>
    %cst_223 = arith.constant dense<0.000000e+00> : vector<8x352xf32>
    %251 = tpu.matmul %250, %248, %cst_223 {dimension_numbers = #tpu.dot_dimension_numbers<[1], [0], [0], [1], [0, 0, 1, 1], [], []>} : vector<8x3xbf16>, vector<3x352xbf16>, vector<8x352xf32> -> vector<8x352xf32>
    %252 = arith.addf %246, %251 : vector<8x352xf32>
    %c0_224 = arith.constant 0 : index
    %c0_225 = arith.constant 0 : index
    %c132 = arith.constant 132 : index
    %253 = vector.load %arg3[%c0_224, %c0_225, %c132] : memref<1x3x506xbf16, #tpu.memory_space<vmem>>, vector<1x3x352xbf16>
    %254 = vector.shape_cast %253 : vector<1x3x352xbf16> to vector<3x352xbf16>
    %c42 = arith.constant 42 : index
    %c0_226 = arith.constant 0 : index
    %c0_227 = arith.constant 0 : index
    %255 = vector.load %arg1[%c42, %c0_226, %c0_227] : memref<49x8x3xbf16, #tpu.memory_space<vmem>>, vector<1x8x3xbf16>
    %256 = vector.shape_cast %255 : vector<1x8x3xbf16> to vector<8x3xbf16>
    %cst_228 = arith.constant dense<0.000000e+00> : vector<8x352xf32>
    %257 = tpu.matmul %256, %254, %cst_228 {dimension_numbers = #tpu.dot_dimension_numbers<[1], [0], [0], [1], [0, 0, 1, 1], [], []>} : vector<8x3xbf16>, vector<3x352xbf16>, vector<8x352xf32> -> vector<8x352xf32>
    %258 = arith.addf %252, %257 : vector<8x352xf32>
    %c0_229 = arith.constant 0 : index
    %c0_230 = arith.constant 0 : index
    %c133 = arith.constant 133 : index
    %259 = vector.load %arg3[%c0_229, %c0_230, %c133] : memref<1x3x506xbf16, #tpu.memory_space<vmem>>, vector<1x3x352xbf16>
    %260 = vector.shape_cast %259 : vector<1x3x352xbf16> to vector<3x352xbf16>
    %c43 = arith.constant 43 : index
    %c0_231 = arith.constant 0 : index
    %c0_232 = arith.constant 0 : index
    %261 = vector.load %arg1[%c43, %c0_231, %c0_232] : memref<49x8x3xbf16, #tpu.memory_space<vmem>>, vector<1x8x3xbf16>
    %262 = vector.shape_cast %261 : vector<1x8x3xbf16> to vector<8x3xbf16>
    %cst_233 = arith.constant dense<0.000000e+00> : vector<8x352xf32>
    %263 = tpu.matmul %262, %260, %cst_233 {dimension_numbers = #tpu.dot_dimension_numbers<[1], [0], [0], [1], [0, 0, 1, 1], [], []>} : vector<8x3xbf16>, vector<3x352xbf16>, vector<8x352xf32> -> vector<8x352xf32>
    %264 = arith.addf %258, %263 : vector<8x352xf32>
    %c0_234 = arith.constant 0 : index
    %c0_235 = arith.constant 0 : index
    %c134 = arith.constant 134 : index
    %265 = vector.load %arg3[%c0_234, %c0_235, %c134] : memref<1x3x506xbf16, #tpu.memory_space<vmem>>, vector<1x3x352xbf16>
    %266 = vector.shape_cast %265 : vector<1x3x352xbf16> to vector<3x352xbf16>
    %c44_236 = arith.constant 44 : index
    %c0_237 = arith.constant 0 : index
    %c0_238 = arith.constant 0 : index
    %267 = vector.load %arg1[%c44_236, %c0_237, %c0_238] : memref<49x8x3xbf16, #tpu.memory_space<vmem>>, vector<1x8x3xbf16>
    %268 = vector.shape_cast %267 : vector<1x8x3xbf16> to vector<8x3xbf16>
    %cst_239 = arith.constant dense<0.000000e+00> : vector<8x352xf32>
    %269 = tpu.matmul %268, %266, %cst_239 {dimension_numbers = #tpu.dot_dimension_numbers<[1], [0], [0], [1], [0, 0, 1, 1], [], []>} : vector<8x3xbf16>, vector<3x352xbf16>, vector<8x352xf32> -> vector<8x352xf32>
    %270 = arith.addf %264, %269 : vector<8x352xf32>
    %c0_240 = arith.constant 0 : index
    %c0_241 = arith.constant 0 : index
    %c135 = arith.constant 135 : index
    %271 = vector.load %arg3[%c0_240, %c0_241, %c135] : memref<1x3x506xbf16, #tpu.memory_space<vmem>>, vector<1x3x352xbf16>
    %272 = vector.shape_cast %271 : vector<1x3x352xbf16> to vector<3x352xbf16>
    %c45_242 = arith.constant 45 : index
    %c0_243 = arith.constant 0 : index
    %c0_244 = arith.constant 0 : index
    %273 = vector.load %arg1[%c45_242, %c0_243, %c0_244] : memref<49x8x3xbf16, #tpu.memory_space<vmem>>, vector<1x8x3xbf16>
    %274 = vector.shape_cast %273 : vector<1x8x3xbf16> to vector<8x3xbf16>
    %cst_245 = arith.constant dense<0.000000e+00> : vector<8x352xf32>
    %275 = tpu.matmul %274, %272, %cst_245 {dimension_numbers = #tpu.dot_dimension_numbers<[1], [0], [0], [1], [0, 0, 1, 1], [], []>} : vector<8x3xbf16>, vector<3x352xbf16>, vector<8x352xf32> -> vector<8x352xf32>
    %276 = arith.addf %270, %275 : vector<8x352xf32>
    %c0_246 = arith.constant 0 : index
    %c0_247 = arith.constant 0 : index
    %c136 = arith.constant 136 : index
    %277 = vector.load %arg3[%c0_246, %c0_247, %c136] : memref<1x3x506xbf16, #tpu.memory_space<vmem>>, vector<1x3x352xbf16>
    %278 = vector.shape_cast %277 : vector<1x3x352xbf16> to vector<3x352xbf16>
    %c46_248 = arith.constant 46 : index
    %c0_249 = arith.constant 0 : index
    %c0_250 = arith.constant 0 : index
    %279 = vector.load %arg1[%c46_248, %c0_249, %c0_250] : memref<49x8x3xbf16, #tpu.memory_space<vmem>>, vector<1x8x3xbf16>
    %280 = vector.shape_cast %279 : vector<1x8x3xbf16> to vector<8x3xbf16>
    %cst_251 = arith.constant dense<0.000000e+00> : vector<8x352xf32>
    %281 = tpu.matmul %280, %278, %cst_251 {dimension_numbers = #tpu.dot_dimension_numbers<[1], [0], [0], [1], [0, 0, 1, 1], [], []>} : vector<8x3xbf16>, vector<3x352xbf16>, vector<8x352xf32> -> vector<8x352xf32>
    %282 = arith.addf %276, %281 : vector<8x352xf32>
    %c0_252 = arith.constant 0 : index
    %c0_253 = arith.constant 0 : index
    %c137 = arith.constant 137 : index
    %283 = vector.load %arg3[%c0_252, %c0_253, %c137] : memref<1x3x506xbf16, #tpu.memory_space<vmem>>, vector<1x3x352xbf16>
    %284 = vector.shape_cast %283 : vector<1x3x352xbf16> to vector<3x352xbf16>
    %c47_254 = arith.constant 47 : index
    %c0_255 = arith.constant 0 : index
    %c0_256 = arith.constant 0 : index
    %285 = vector.load %arg1[%c47_254, %c0_255, %c0_256] : memref<49x8x3xbf16, #tpu.memory_space<vmem>>, vector<1x8x3xbf16>
    %286 = vector.shape_cast %285 : vector<1x8x3xbf16> to vector<8x3xbf16>
    %cst_257 = arith.constant dense<0.000000e+00> : vector<8x352xf32>
    %287 = tpu.matmul %286, %284, %cst_257 {dimension_numbers = #tpu.dot_dimension_numbers<[1], [0], [0], [1], [0, 0, 1, 1], [], []>} : vector<8x3xbf16>, vector<3x352xbf16>, vector<8x352xf32> -> vector<8x352xf32>
    %288 = arith.addf %282, %287 : vector<8x352xf32>
    %c0_258 = arith.constant 0 : index
    %c0_259 = arith.constant 0 : index
    %c138 = arith.constant 138 : index
    %289 = vector.load %arg3[%c0_258, %c0_259, %c138] : memref<1x3x506xbf16, #tpu.memory_space<vmem>>, vector<1x3x352xbf16>
    %290 = vector.shape_cast %289 : vector<1x3x352xbf16> to vector<3x352xbf16>
    %c48_260 = arith.constant 48 : index
    %c0_261 = arith.constant 0 : index
    %c0_262 = arith.constant 0 : index
    %291 = vector.load %arg1[%c48_260, %c0_261, %c0_262] : memref<49x8x3xbf16, #tpu.memory_space<vmem>>, vector<1x8x3xbf16>
    %292 = vector.shape_cast %291 : vector<1x8x3xbf16> to vector<8x3xbf16>
    %cst_263 = arith.constant dense<0.000000e+00> : vector<8x352xf32>
    %293 = tpu.matmul %292, %290, %cst_263 {dimension_numbers = #tpu.dot_dimension_numbers<[1], [0], [0], [1], [0, 0, 1, 1], [], []>} : vector<8x3xbf16>, vector<3x352xbf16>, vector<8x352xf32> -> vector<8x352xf32>
    %294 = arith.addf %288, %293 : vector<8x352xf32>
    %c0_264 = arith.constant 0 : index
    %c0_265 = arith.constant 0 : index
    %295 = vector.load %arg2[%c0_264, %c0_265] : memref<8x1xf32, #tpu.memory_space<vmem>>, vector<8x1xf32>
    %296 = vector.broadcast %295 : vector<8x1xf32> to vector<8x352xf32>
    %297 = arith.addf %294, %296 : vector<8x352xf32>
    %298 = arith.truncf %297 : vector<8x352xf32> to vector<8x352xbf16>
    %c0_266 = arith.constant 0 : index
    %c0_267 = arith.constant 0 : index
    %c0_268 = arith.constant 0 : index
    %299 = vector.load %arg4[%c0_266, %c0_267, %c0_268] : memref<1x8x352xbf16, #tpu.memory_space<vmem>>, vector<1x8x352xbf16>
    %300 = vector.shape_cast %299 : vector<1x8x352xbf16> to vector<8x352xbf16>
    %301 = vector.shape_cast %298 : vector<8x352xbf16> to vector<1x8x352xbf16>
    tpu.vector_store %arg4[%c0_266, %c0_267, %c0_268], %301 {strides = array<i32>} : memref<1x8x352xbf16, #tpu.memory_space<vmem>>, vector<1x8x352xbf16>,
    return
  }
  func.func @transform_0(%arg0: i32) -> (i32, i32, i32) {
    %c0_i32 = arith.constant 0 : i32
    %c0_i32_0 = arith.constant 0 : i32
    %c0_i32_1 = arith.constant 0 : i32
    %c0_i32_2 = arith.constant 0 : i32
    return %c0_i32, %c0_i32_0, %c0_i32_1 : i32, i32, i32
  }
  func.func @transform_1(%arg0: i32) -> (i32, i32) {
    %c0_i32 = arith.constant 0 : i32
    %c0_i32_0 = arith.constant 0 : i32
    %c0_i32_1 = arith.constant 0 : i32
    return %c0_i32, %c0_i32_0 : i32, i32
  }
  func.func @transform_2(%arg0: i32) -> (i32, i32, i32) {
    %c0_i32 = arith.constant 0 : i32
    %c0_i32_0 = arith.constant 0 : i32
    %c0_i32_1 = arith.constant 0 : i32
    return %arg0, %c0_i32, %c0_i32_0 : i32, i32, i32
  }
  func.func @transform_3(%arg0: i32) -> (i32, i32, i32) {
    %c0_i32 = arith.constant 0 : i32
    %c0_i32_0 = arith.constant 0 : i32
    %c0_i32_1 = arith.constant 0 : i32
    return %arg0, %c0_i32, %c0_i32_0 : i32, i32, i32
  }
}

module attributes {stable_mosaic.version = 11 : i64} {
  func.func @_instnorm_act_kernel(%arg0: i32, %arg1: memref<16x256xbf16, #tpu.memory_space<vmem>>, %arg2: memref<16x256xbf16, #tpu.memory_space<vmem>>) attributes {dimension_semantics = [#tpu.dimension_semantics<parallel>], iteration_bounds = array<i64: 1>, scalar_prefetch = 0 : i64, scratch_operands = 0 : i64, tpu.core_type = #tpu.core_type<tc>, window_params = [{transform_indices = @transform_0, window_bounds = array<i64: 16, 256>}, {transform_indices = @transform_1, window_bounds = array<i64: 16, 256>}]} {
    %c0 = arith.constant 0 : index
    %c0_0 = arith.constant 0 : index
    %0 = vector.load %arg1[%c0, %c0_0] : memref<16x256xbf16, #tpu.memory_space<vmem>>, vector<16x256xbf16>
    %1 = arith.extf %0 : vector<16x256xbf16> to vector<16x256xf32>
    %cst = arith.constant dense<0.000000e+00> : vector<16xf32>
    %2 = vector.multi_reduction <add>, %1, %cst [1] : vector<16x256xf32> to vector<16xf32>
    %3 = vector.shape_cast %2 : vector<16xf32> to vector<16x1xf32>
    %cst_1 = arith.constant 2.560000e+02 : f32
    %4 = vector.broadcast %cst_1 : f32 to vector<16x1xf32>
    %5 = arith.divf %3, %4 : vector<16x1xf32>
    %6 = vector.broadcast %5 : vector<16x1xf32> to vector<16x256xf32>
    %7 = arith.subf %1, %6 : vector<16x256xf32>
    %8 = arith.mulf %7, %7 : vector<16x256xf32>
    %cst_2 = arith.constant dense<0.000000e+00> : vector<16xf32>
    %9 = vector.multi_reduction <add>, %8, %cst_2 [1] : vector<16x256xf32> to vector<16xf32>
    %10 = vector.shape_cast %9 : vector<16xf32> to vector<16x1xf32>
    %cst_3 = arith.constant 2.560000e+02 : f32
    %11 = vector.broadcast %cst_3 : f32 to vector<16x1xf32>
    %12 = arith.divf %10, %11 : vector<16x1xf32>
    %13 = vector.broadcast %5 : vector<16x1xf32> to vector<16x256xf32>
    %14 = arith.subf %1, %13 : vector<16x256xf32>
    %cst_4 = arith.constant 9.99999974E-6 : f32
    %15 = vector.broadcast %cst_4 : f32 to vector<16x1xf32>
    %16 = arith.addf %12, %15 : vector<16x1xf32>
    %17 = math.rsqrt %16 : vector<16x1xf32>
    %18 = vector.broadcast %17 : vector<16x1xf32> to vector<16x256xf32>
    %19 = arith.mulf %14, %18 : vector<16x256xf32>
    %cst_5 = arith.constant 0.000000e+00 : f32
    %20 = vector.broadcast %cst_5 : f32 to vector<16x256xf32>
    %21 = arith.maximumf %19, %20 : vector<16x256xf32>
    %22 = arith.truncf %21 : vector<16x256xf32> to vector<16x256xbf16>
    %c0_6 = arith.constant 0 : index
    %c0_7 = arith.constant 0 : index
    %23 = vector.load %arg2[%c0_6, %c0_7] : memref<16x256xbf16, #tpu.memory_space<vmem>>, vector<16x256xbf16>
    tpu.vector_store %arg2[%c0_6, %c0_7], %22 {strides = array<i32>} : memref<16x256xbf16, #tpu.memory_space<vmem>>, vector<16x256xbf16>,
    return
  }
  func.func @transform_0(%arg0: i32) -> (i32, i32) {
    %c0_i32 = arith.constant 0 : i32
    %c0_i32_0 = arith.constant 0 : i32
    return %arg0, %c0_i32 : i32, i32
  }
  func.func @transform_1(%arg0: i32) -> (i32, i32) {
    %c0_i32 = arith.constant 0 : i32
    %c0_i32_0 = arith.constant 0 : i32
    return %arg0, %c0_i32 : i32, i32
  }
}

module attributes {stable_mosaic.version = 11 : i64} {
  func.func @_direct_conv_kernel(%arg0: i32, %arg1: memref<4x16x32xbf16, #tpu.memory_space<vmem>>, %arg2: memref<16x1xf32, #tpu.memory_space<vmem>>, %arg3: memref<1x32x90xbf16, #tpu.memory_space<vmem>>, %arg4: memref<1x16x72xbf16, #tpu.memory_space<vmem>>) attributes {dimension_semantics = [#tpu.dimension_semantics<parallel>], iteration_bounds = array<i64: 2>, scalar_prefetch = 0 : i64, scratch_operands = 0 : i64, tpu.core_type = #tpu.core_type<tc>, window_params = [{pipeline_mode = #tpu.pipeline_mode<synchronous>, transform_indices = @transform_0, window_bounds = array<i64: 4, 16, 32>}, {pipeline_mode = #tpu.pipeline_mode<synchronous>, transform_indices = @transform_1, window_bounds = array<i64: 16, 1>}, {transform_indices = @transform_2, window_bounds = array<i64: 1, 32, 90>}, {transform_indices = @transform_3, window_bounds = array<i64: 1, 16, 72>}]} {
    %cst = arith.constant 0.000000e+00 : f32
    %0 = vector.broadcast %cst : f32 to vector<16x72xf32>
    %c0 = arith.constant 0 : index
    %c0_0 = arith.constant 0 : index
    %c0_1 = arith.constant 0 : index
    %1 = vector.load %arg3[%c0, %c0_0, %c0_1] : memref<1x32x90xbf16, #tpu.memory_space<vmem>>, vector<1x32x72xbf16>
    %2 = vector.shape_cast %1 : vector<1x32x72xbf16> to vector<32x72xbf16>
    %c0_2 = arith.constant 0 : index
    %c0_3 = arith.constant 0 : index
    %c0_4 = arith.constant 0 : index
    %3 = vector.load %arg1[%c0_2, %c0_3, %c0_4] : memref<4x16x32xbf16, #tpu.memory_space<vmem>>, vector<1x16x32xbf16>
    %4 = vector.shape_cast %3 : vector<1x16x32xbf16> to vector<16x32xbf16>
    %cst_5 = arith.constant dense<0.000000e+00> : vector<16x72xf32>
    %5 = tpu.matmul %4, %2, %cst_5 {dimension_numbers = #tpu.dot_dimension_numbers<[1], [0], [0], [1], [0, 0, 1, 1], [], []>} : vector<16x32xbf16>, vector<32x72xbf16>, vector<16x72xf32> -> vector<16x72xf32>
    %6 = arith.addf %0, %5 : vector<16x72xf32>
    %c0_6 = arith.constant 0 : index
    %c0_7 = arith.constant 0 : index
    %c1 = arith.constant 1 : index
    %7 = vector.load %arg3[%c0_6, %c0_7, %c1] : memref<1x32x90xbf16, #tpu.memory_space<vmem>>, vector<1x32x72xbf16>
    %8 = vector.shape_cast %7 : vector<1x32x72xbf16> to vector<32x72xbf16>
    %c1_8 = arith.constant 1 : index
    %c0_9 = arith.constant 0 : index
    %c0_10 = arith.constant 0 : index
    %9 = vector.load %arg1[%c1_8, %c0_9, %c0_10] : memref<4x16x32xbf16, #tpu.memory_space<vmem>>, vector<1x16x32xbf16>
    %10 = vector.shape_cast %9 : vector<1x16x32xbf16> to vector<16x32xbf16>
    %cst_11 = arith.constant dense<0.000000e+00> : vector<16x72xf32>
    %11 = tpu.matmul %10, %8, %cst_11 {dimension_numbers = #tpu.dot_dimension_numbers<[1], [0], [0], [1], [0, 0, 1, 1], [], []>} : vector<16x32xbf16>, vector<32x72xbf16>, vector<16x72xf32> -> vector<16x72xf32>
    %12 = arith.addf %6, %11 : vector<16x72xf32>
    %c0_12 = arith.constant 0 : index
    %c0_13 = arith.constant 0 : index
    %c9 = arith.constant 9 : index
    %13 = vector.load %arg3[%c0_12, %c0_13, %c9] : memref<1x32x90xbf16, #tpu.memory_space<vmem>>, vector<1x32x72xbf16>
    %14 = vector.shape_cast %13 : vector<1x32x72xbf16> to vector<32x72xbf16>
    %c2 = arith.constant 2 : index
    %c0_14 = arith.constant 0 : index
    %c0_15 = arith.constant 0 : index
    %15 = vector.load %arg1[%c2, %c0_14, %c0_15] : memref<4x16x32xbf16, #tpu.memory_space<vmem>>, vector<1x16x32xbf16>
    %16 = vector.shape_cast %15 : vector<1x16x32xbf16> to vector<16x32xbf16>
    %cst_16 = arith.constant dense<0.000000e+00> : vector<16x72xf32>
    %17 = tpu.matmul %16, %14, %cst_16 {dimension_numbers = #tpu.dot_dimension_numbers<[1], [0], [0], [1], [0, 0, 1, 1], [], []>} : vector<16x32xbf16>, vector<32x72xbf16>, vector<16x72xf32> -> vector<16x72xf32>
    %18 = arith.addf %12, %17 : vector<16x72xf32>
    %c0_17 = arith.constant 0 : index
    %c0_18 = arith.constant 0 : index
    %c10 = arith.constant 10 : index
    %19 = vector.load %arg3[%c0_17, %c0_18, %c10] : memref<1x32x90xbf16, #tpu.memory_space<vmem>>, vector<1x32x72xbf16>
    %20 = vector.shape_cast %19 : vector<1x32x72xbf16> to vector<32x72xbf16>
    %c3 = arith.constant 3 : index
    %c0_19 = arith.constant 0 : index
    %c0_20 = arith.constant 0 : index
    %21 = vector.load %arg1[%c3, %c0_19, %c0_20] : memref<4x16x32xbf16, #tpu.memory_space<vmem>>, vector<1x16x32xbf16>
    %22 = vector.shape_cast %21 : vector<1x16x32xbf16> to vector<16x32xbf16>
    %cst_21 = arith.constant dense<0.000000e+00> : vector<16x72xf32>
    %23 = tpu.matmul %22, %20, %cst_21 {dimension_numbers = #tpu.dot_dimension_numbers<[1], [0], [0], [1], [0, 0, 1, 1], [], []>} : vector<16x32xbf16>, vector<32x72xbf16>, vector<16x72xf32> -> vector<16x72xf32>
    %24 = arith.addf %18, %23 : vector<16x72xf32>
    %c0_22 = arith.constant 0 : index
    %c0_23 = arith.constant 0 : index
    %25 = vector.load %arg2[%c0_22, %c0_23] : memref<16x1xf32, #tpu.memory_space<vmem>>, vector<16x1xf32>
    %26 = vector.broadcast %25 : vector<16x1xf32> to vector<16x72xf32>
    %27 = arith.addf %24, %26 : vector<16x72xf32>
    %28 = arith.truncf %27 : vector<16x72xf32> to vector<16x72xbf16>
    %c0_24 = arith.constant 0 : index
    %c0_25 = arith.constant 0 : index
    %c0_26 = arith.constant 0 : index
    %29 = vector.load %arg4[%c0_24, %c0_25, %c0_26] : memref<1x16x72xbf16, #tpu.memory_space<vmem>>, vector<1x16x72xbf16>
    %30 = vector.shape_cast %29 : vector<1x16x72xbf16> to vector<16x72xbf16>
    %31 = vector.shape_cast %28 : vector<16x72xbf16> to vector<1x16x72xbf16>
    tpu.vector_store %arg4[%c0_24, %c0_25, %c0_26], %31 {strides = array<i32>} : memref<1x16x72xbf16, #tpu.memory_space<vmem>>, vector<1x16x72xbf16>,
    return
  }
  func.func @transform_0(%arg0: i32) -> (i32, i32, i32) {
    %c0_i32 = arith.constant 0 : i32
    %c0_i32_0 = arith.constant 0 : i32
    %c0_i32_1 = arith.constant 0 : i32
    %c0_i32_2 = arith.constant 0 : i32
    return %c0_i32, %c0_i32_0, %c0_i32_1 : i32, i32, i32
  }
  func.func @transform_1(%arg0: i32) -> (i32, i32) {
    %c0_i32 = arith.constant 0 : i32
    %c0_i32_0 = arith.constant 0 : i32
    %c0_i32_1 = arith.constant 0 : i32
    return %c0_i32, %c0_i32_0 : i32, i32
  }
  func.func @transform_2(%arg0: i32) -> (i32, i32, i32) {
    %c0_i32 = arith.constant 0 : i32
    %c0_i32_0 = arith.constant 0 : i32
    %c0_i32_1 = arith.constant 0 : i32
    return %arg0, %c0_i32, %c0_i32_0 : i32, i32, i32
  }
  func.func @transform_3(%arg0: i32) -> (i32, i32, i32) {
    %c0_i32 = arith.constant 0 : i32
    %c0_i32_0 = arith.constant 0 : i32
    %c0_i32_1 = arith.constant 0 : i32
    return %arg0, %c0_i32, %c0_i32_0 : i32, i32, i32
  }
}

module attributes {stable_mosaic.version = 11 : i64} {
  func.func @_instnorm_act_kernel(%arg0: i32, %arg1: memref<32x64xbf16, #tpu.memory_space<vmem>>, %arg2: memref<32x64xbf16, #tpu.memory_space<vmem>>) attributes {dimension_semantics = [#tpu.dimension_semantics<parallel>], iteration_bounds = array<i64: 1>, scalar_prefetch = 0 : i64, scratch_operands = 0 : i64, tpu.core_type = #tpu.core_type<tc>, window_params = [{transform_indices = @transform_0, window_bounds = array<i64: 32, 64>}, {transform_indices = @transform_1, window_bounds = array<i64: 32, 64>}]} {
    %c0 = arith.constant 0 : index
    %c0_0 = arith.constant 0 : index
    %0 = vector.load %arg1[%c0, %c0_0] : memref<32x64xbf16, #tpu.memory_space<vmem>>, vector<32x64xbf16>
    %1 = arith.extf %0 : vector<32x64xbf16> to vector<32x64xf32>
    %cst = arith.constant dense<0.000000e+00> : vector<32xf32>
    %2 = vector.multi_reduction <add>, %1, %cst [1] : vector<32x64xf32> to vector<32xf32>
    %3 = vector.shape_cast %2 : vector<32xf32> to vector<32x1xf32>
    %cst_1 = arith.constant 6.400000e+01 : f32
    %4 = vector.broadcast %cst_1 : f32 to vector<32x1xf32>
    %5 = arith.divf %3, %4 : vector<32x1xf32>
    %6 = vector.broadcast %5 : vector<32x1xf32> to vector<32x64xf32>
    %7 = arith.subf %1, %6 : vector<32x64xf32>
    %8 = arith.mulf %7, %7 : vector<32x64xf32>
    %cst_2 = arith.constant dense<0.000000e+00> : vector<32xf32>
    %9 = vector.multi_reduction <add>, %8, %cst_2 [1] : vector<32x64xf32> to vector<32xf32>
    %10 = vector.shape_cast %9 : vector<32xf32> to vector<32x1xf32>
    %cst_3 = arith.constant 6.400000e+01 : f32
    %11 = vector.broadcast %cst_3 : f32 to vector<32x1xf32>
    %12 = arith.divf %10, %11 : vector<32x1xf32>
    %13 = vector.broadcast %5 : vector<32x1xf32> to vector<32x64xf32>
    %14 = arith.subf %1, %13 : vector<32x64xf32>
    %cst_4 = arith.constant 9.99999974E-6 : f32
    %15 = vector.broadcast %cst_4 : f32 to vector<32x1xf32>
    %16 = arith.addf %12, %15 : vector<32x1xf32>
    %17 = math.rsqrt %16 : vector<32x1xf32>
    %18 = vector.broadcast %17 : vector<32x1xf32> to vector<32x64xf32>
    %19 = arith.mulf %14, %18 : vector<32x64xf32>
    %cst_5 = arith.constant 0.000000e+00 : f32
    %20 = vector.broadcast %cst_5 : f32 to vector<32x64xf32>
    %21 = arith.maximumf %19, %20 : vector<32x64xf32>
    %22 = arith.truncf %21 : vector<32x64xf32> to vector<32x64xbf16>
    %c0_6 = arith.constant 0 : index
    %c0_7 = arith.constant 0 : index
    %23 = vector.load %arg2[%c0_6, %c0_7] : memref<32x64xbf16, #tpu.memory_space<vmem>>, vector<32x64xbf16>
    tpu.vector_store %arg2[%c0_6, %c0_7], %22 {strides = array<i32>} : memref<32x64xbf16, #tpu.memory_space<vmem>>, vector<32x64xbf16>,
    return
  }
  func.func @transform_0(%arg0: i32) -> (i32, i32) {
    %c0_i32 = arith.constant 0 : i32
    %c0_i32_0 = arith.constant 0 : i32
    return %arg0, %c0_i32 : i32, i32
  }
  func.func @transform_1(%arg0: i32) -> (i32, i32) {
    %c0_i32 = arith.constant 0 : i32
    %c0_i32_0 = arith.constant 0 : i32
    return %arg0, %c0_i32 : i32, i32
  }
}

module attributes {stable_mosaic.version = 11 : i64} {
  func.func @_direct_conv_kernel(%arg0: i32, %arg1: memref<9x16x16xbf16, #tpu.memory_space<vmem>>, %arg2: memref<16x1xf32, #tpu.memory_space<vmem>>, %arg3: memref<1x16x110xbf16, #tpu.memory_space<vmem>>, %arg4: memref<1x16x80xbf16, #tpu.memory_space<vmem>>) attributes {dimension_semantics = [#tpu.dimension_semantics<parallel>], iteration_bounds = array<i64: 2>, scalar_prefetch = 0 : i64, scratch_operands = 0 : i64, tpu.core_type = #tpu.core_type<tc>, window_params = [{pipeline_mode = #tpu.pipeline_mode<synchronous>, transform_indices = @transform_0, window_bounds = array<i64: 9, 16, 16>}, {pipeline_mode = #tpu.pipeline_mode<synchronous>, transform_indices = @transform_1, window_bounds = array<i64: 16, 1>}, {transform_indices = @transform_2, window_bounds = array<i64: 1, 16, 110>}, {transform_indices = @transform_3, window_bounds = array<i64: 1, 16, 80>}]} {
    %cst = arith.constant 0.000000e+00 : f32
    %0 = vector.broadcast %cst : f32 to vector<16x80xf32>
    %c0 = arith.constant 0 : index
    %c0_0 = arith.constant 0 : index
    %c0_1 = arith.constant 0 : index
    %1 = vector.load %arg3[%c0, %c0_0, %c0_1] : memref<1x16x110xbf16, #tpu.memory_space<vmem>>, vector<1x16x80xbf16>
    %2 = vector.shape_cast %1 : vector<1x16x80xbf16> to vector<16x80xbf16>
    %c0_2 = arith.constant 0 : index
    %c0_3 = arith.constant 0 : index
    %c0_4 = arith.constant 0 : index
    %3 = vector.load %arg1[%c0_2, %c0_3, %c0_4] : memref<9x16x16xbf16, #tpu.memory_space<vmem>>, vector<1x16x16xbf16>
    %4 = vector.shape_cast %3 : vector<1x16x16xbf16> to vector<16x16xbf16>
    %cst_5 = arith.constant dense<0.000000e+00> : vector<16x80xf32>
    %5 = tpu.matmul %4, %2, %cst_5 {dimension_numbers = #tpu.dot_dimension_numbers<[1], [0], [0], [1], [0, 0, 1, 1], [], []>} : vector<16x16xbf16>, vector<16x80xbf16>, vector<16x80xf32> -> vector<16x80xf32>
    %6 = arith.addf %0, %5 : vector<16x80xf32>
    %c0_6 = arith.constant 0 : index
    %c0_7 = arith.constant 0 : index
    %c1 = arith.constant 1 : index
    %7 = vector.load %arg3[%c0_6, %c0_7, %c1] : memref<1x16x110xbf16, #tpu.memory_space<vmem>>, vector<1x16x80xbf16>
    %8 = vector.shape_cast %7 : vector<1x16x80xbf16> to vector<16x80xbf16>
    %c1_8 = arith.constant 1 : index
    %c0_9 = arith.constant 0 : index
    %c0_10 = arith.constant 0 : index
    %9 = vector.load %arg1[%c1_8, %c0_9, %c0_10] : memref<9x16x16xbf16, #tpu.memory_space<vmem>>, vector<1x16x16xbf16>
    %10 = vector.shape_cast %9 : vector<1x16x16xbf16> to vector<16x16xbf16>
    %cst_11 = arith.constant dense<0.000000e+00> : vector<16x80xf32>
    %11 = tpu.matmul %10, %8, %cst_11 {dimension_numbers = #tpu.dot_dimension_numbers<[1], [0], [0], [1], [0, 0, 1, 1], [], []>} : vector<16x16xbf16>, vector<16x80xbf16>, vector<16x80xf32> -> vector<16x80xf32>
    %12 = arith.addf %6, %11 : vector<16x80xf32>
    %c0_12 = arith.constant 0 : index
    %c0_13 = arith.constant 0 : index
    %c2 = arith.constant 2 : index
    %13 = vector.load %arg3[%c0_12, %c0_13, %c2] : memref<1x16x110xbf16, #tpu.memory_space<vmem>>, vector<1x16x80xbf16>
    %14 = vector.shape_cast %13 : vector<1x16x80xbf16> to vector<16x80xbf16>
    %c2_14 = arith.constant 2 : index
    %c0_15 = arith.constant 0 : index
    %c0_16 = arith.constant 0 : index
    %15 = vector.load %arg1[%c2_14, %c0_15, %c0_16] : memref<9x16x16xbf16, #tpu.memory_space<vmem>>, vector<1x16x16xbf16>
    %16 = vector.shape_cast %15 : vector<1x16x16xbf16> to vector<16x16xbf16>
    %cst_17 = arith.constant dense<0.000000e+00> : vector<16x80xf32>
    %17 = tpu.matmul %16, %14, %cst_17 {dimension_numbers = #tpu.dot_dimension_numbers<[1], [0], [0], [1], [0, 0, 1, 1], [], []>} : vector<16x16xbf16>, vector<16x80xbf16>, vector<16x80xf32> -> vector<16x80xf32>
    %18 = arith.addf %12, %17 : vector<16x80xf32>
    %c0_18 = arith.constant 0 : index
    %c0_19 = arith.constant 0 : index
    %c10 = arith.constant 10 : index
    %19 = vector.load %arg3[%c0_18, %c0_19, %c10] : memref<1x16x110xbf16, #tpu.memory_space<vmem>>, vector<1x16x80xbf16>
    %20 = vector.shape_cast %19 : vector<1x16x80xbf16> to vector<16x80xbf16>
    %c3 = arith.constant 3 : index
    %c0_20 = arith.constant 0 : index
    %c0_21 = arith.constant 0 : index
    %21 = vector.load %arg1[%c3, %c0_20, %c0_21] : memref<9x16x16xbf16, #tpu.memory_space<vmem>>, vector<1x16x16xbf16>
    %22 = vector.shape_cast %21 : vector<1x16x16xbf16> to vector<16x16xbf16>
    %cst_22 = arith.constant dense<0.000000e+00> : vector<16x80xf32>
    %23 = tpu.matmul %22, %20, %cst_22 {dimension_numbers = #tpu.dot_dimension_numbers<[1], [0], [0], [1], [0, 0, 1, 1], [], []>} : vector<16x16xbf16>, vector<16x80xbf16>, vector<16x80xf32> -> vector<16x80xf32>
    %24 = arith.addf %18, %23 : vector<16x80xf32>
    %c0_23 = arith.constant 0 : index
    %c0_24 = arith.constant 0 : index
    %c11 = arith.constant 11 : index
    %25 = vector.load %arg3[%c0_23, %c0_24, %c11] : memref<1x16x110xbf16, #tpu.memory_space<vmem>>, vector<1x16x80xbf16>
    %26 = vector.shape_cast %25 : vector<1x16x80xbf16> to vector<16x80xbf16>
    %c4 = arith.constant 4 : index
    %c0_25 = arith.constant 0 : index
    %c0_26 = arith.constant 0 : index
    %27 = vector.load %arg1[%c4, %c0_25, %c0_26] : memref<9x16x16xbf16, #tpu.memory_space<vmem>>, vector<1x16x16xbf16>
    %28 = vector.shape_cast %27 : vector<1x16x16xbf16> to vector<16x16xbf16>
    %cst_27 = arith.constant dense<0.000000e+00> : vector<16x80xf32>
    %29 = tpu.matmul %28, %26, %cst_27 {dimension_numbers = #tpu.dot_dimension_numbers<[1], [0], [0], [1], [0, 0, 1, 1], [], []>} : vector<16x16xbf16>, vector<16x80xbf16>, vector<16x80xf32> -> vector<16x80xf32>
    %30 = arith.addf %24, %29 : vector<16x80xf32>
    %c0_28 = arith.constant 0 : index
    %c0_29 = arith.constant 0 : index
    %c12 = arith.constant 12 : index
    %31 = vector.load %arg3[%c0_28, %c0_29, %c12] : memref<1x16x110xbf16, #tpu.memory_space<vmem>>, vector<1x16x80xbf16>
    %32 = vector.shape_cast %31 : vector<1x16x80xbf16> to vector<16x80xbf16>
    %c5 = arith.constant 5 : index
    %c0_30 = arith.constant 0 : index
    %c0_31 = arith.constant 0 : index
    %33 = vector.load %arg1[%c5, %c0_30, %c0_31] : memref<9x16x16xbf16, #tpu.memory_space<vmem>>, vector<1x16x16xbf16>
    %34 = vector.shape_cast %33 : vector<1x16x16xbf16> to vector<16x16xbf16>
    %cst_32 = arith.constant dense<0.000000e+00> : vector<16x80xf32>
    %35 = tpu.matmul %34, %32, %cst_32 {dimension_numbers = #tpu.dot_dimension_numbers<[1], [0], [0], [1], [0, 0, 1, 1], [], []>} : vector<16x16xbf16>, vector<16x80xbf16>, vector<16x80xf32> -> vector<16x80xf32>
    %36 = arith.addf %30, %35 : vector<16x80xf32>
    %c0_33 = arith.constant 0 : index
    %c0_34 = arith.constant 0 : index
    %c20 = arith.constant 20 : index
    %37 = vector.load %arg3[%c0_33, %c0_34, %c20] : memref<1x16x110xbf16, #tpu.memory_space<vmem>>, vector<1x16x80xbf16>
    %38 = vector.shape_cast %37 : vector<1x16x80xbf16> to vector<16x80xbf16>
    %c6 = arith.constant 6 : index
    %c0_35 = arith.constant 0 : index
    %c0_36 = arith.constant 0 : index
    %39 = vector.load %arg1[%c6, %c0_35, %c0_36] : memref<9x16x16xbf16, #tpu.memory_space<vmem>>, vector<1x16x16xbf16>
    %40 = vector.shape_cast %39 : vector<1x16x16xbf16> to vector<16x16xbf16>
    %cst_37 = arith.constant dense<0.000000e+00> : vector<16x80xf32>
    %41 = tpu.matmul %40, %38, %cst_37 {dimension_numbers = #tpu.dot_dimension_numbers<[1], [0], [0], [1], [0, 0, 1, 1], [], []>} : vector<16x16xbf16>, vector<16x80xbf16>, vector<16x80xf32> -> vector<16x80xf32>
    %42 = arith.addf %36, %41 : vector<16x80xf32>
    %c0_38 = arith.constant 0 : index
    %c0_39 = arith.constant 0 : index
    %c21 = arith.constant 21 : index
    %43 = vector.load %arg3[%c0_38, %c0_39, %c21] : memref<1x16x110xbf16, #tpu.memory_space<vmem>>, vector<1x16x80xbf16>
    %44 = vector.shape_cast %43 : vector<1x16x80xbf16> to vector<16x80xbf16>
    %c7 = arith.constant 7 : index
    %c0_40 = arith.constant 0 : index
    %c0_41 = arith.constant 0 : index
    %45 = vector.load %arg1[%c7, %c0_40, %c0_41] : memref<9x16x16xbf16, #tpu.memory_space<vmem>>, vector<1x16x16xbf16>
    %46 = vector.shape_cast %45 : vector<1x16x16xbf16> to vector<16x16xbf16>
    %cst_42 = arith.constant dense<0.000000e+00> : vector<16x80xf32>
    %47 = tpu.matmul %46, %44, %cst_42 {dimension_numbers = #tpu.dot_dimension_numbers<[1], [0], [0], [1], [0, 0, 1, 1], [], []>} : vector<16x16xbf16>, vector<16x80xbf16>, vector<16x80xf32> -> vector<16x80xf32>
    %48 = arith.addf %42, %47 : vector<16x80xf32>
    %c0_43 = arith.constant 0 : index
    %c0_44 = arith.constant 0 : index
    %c22 = arith.constant 22 : index
    %49 = vector.load %arg3[%c0_43, %c0_44, %c22] : memref<1x16x110xbf16, #tpu.memory_space<vmem>>, vector<1x16x80xbf16>
    %50 = vector.shape_cast %49 : vector<1x16x80xbf16> to vector<16x80xbf16>
    %c8 = arith.constant 8 : index
    %c0_45 = arith.constant 0 : index
    %c0_46 = arith.constant 0 : index
    %51 = vector.load %arg1[%c8, %c0_45, %c0_46] : memref<9x16x16xbf16, #tpu.memory_space<vmem>>, vector<1x16x16xbf16>
    %52 = vector.shape_cast %51 : vector<1x16x16xbf16> to vector<16x16xbf16>
    %cst_47 = arith.constant dense<0.000000e+00> : vector<16x80xf32>
    %53 = tpu.matmul %52, %50, %cst_47 {dimension_numbers = #tpu.dot_dimension_numbers<[1], [0], [0], [1], [0, 0, 1, 1], [], []>} : vector<16x16xbf16>, vector<16x80xbf16>, vector<16x80xf32> -> vector<16x80xf32>
    %54 = arith.addf %48, %53 : vector<16x80xf32>
    %c0_48 = arith.constant 0 : index
    %c0_49 = arith.constant 0 : index
    %55 = vector.load %arg2[%c0_48, %c0_49] : memref<16x1xf32, #tpu.memory_space<vmem>>, vector<16x1xf32>
    %56 = vector.broadcast %55 : vector<16x1xf32> to vector<16x80xf32>
    %57 = arith.addf %54, %56 : vector<16x80xf32>
    %58 = arith.truncf %57 : vector<16x80xf32> to vector<16x80xbf16>
    %c0_50 = arith.constant 0 : index
    %c0_51 = arith.constant 0 : index
    %c0_52 = arith.constant 0 : index
    %59 = vector.load %arg4[%c0_50, %c0_51, %c0_52] : memref<1x16x80xbf16, #tpu.memory_space<vmem>>, vector<1x16x80xbf16>
    %60 = vector.shape_cast %59 : vector<1x16x80xbf16> to vector<16x80xbf16>
    %61 = vector.shape_cast %58 : vector<16x80xbf16> to vector<1x16x80xbf16>
    tpu.vector_store %arg4[%c0_50, %c0_51, %c0_52], %61 {strides = array<i32>} : memref<1x16x80xbf16, #tpu.memory_space<vmem>>, vector<1x16x80xbf16>,
    return
  }
  func.func @transform_0(%arg0: i32) -> (i32, i32, i32) {
    %c0_i32 = arith.constant 0 : i32
    %c0_i32_0 = arith.constant 0 : i32
    %c0_i32_1 = arith.constant 0 : i32
    %c0_i32_2 = arith.constant 0 : i32
    return %c0_i32, %c0_i32_0, %c0_i32_1 : i32, i32, i32
  }
  func.func @transform_1(%arg0: i32) -> (i32, i32) {
    %c0_i32 = arith.constant 0 : i32
    %c0_i32_0 = arith.constant 0 : i32
    %c0_i32_1 = arith.constant 0 : i32
    return %c0_i32, %c0_i32_0 : i32, i32
  }
  func.func @transform_2(%arg0: i32) -> (i32, i32, i32) {
    %c0_i32 = arith.constant 0 : i32
    %c0_i32_0 = arith.constant 0 : i32
    %c0_i32_1 = arith.constant 0 : i32
    return %arg0, %c0_i32, %c0_i32_0 : i32, i32, i32
  }
  func.func @transform_3(%arg0: i32) -> (i32, i32, i32) {
    %c0_i32 = arith.constant 0 : i32
    %c0_i32_0 = arith.constant 0 : i32
    %c0_i32_1 = arith.constant 0 : i32
    return %arg0, %c0_i32, %c0_i32_0 : i32, i32, i32
  }
}

module attributes {stable_mosaic.version = 11 : i64} {
  func.func @_instnorm_act_kernel(%arg0: i32, %arg1: memref<32x64xbf16, #tpu.memory_space<vmem>>, %arg2: memref<32x64xbf16, #tpu.memory_space<vmem>>, %arg3: memref<32x64xbf16, #tpu.memory_space<vmem>>) attributes {dimension_semantics = [#tpu.dimension_semantics<parallel>], iteration_bounds = array<i64: 1>, scalar_prefetch = 0 : i64, scratch_operands = 0 : i64, tpu.core_type = #tpu.core_type<tc>, window_params = [{transform_indices = @transform_0, window_bounds = array<i64: 32, 64>}, {transform_indices = @transform_1, window_bounds = array<i64: 32, 64>}, {transform_indices = @transform_2, window_bounds = array<i64: 32, 64>}]} {
    %c0 = arith.constant 0 : index
    %c0_0 = arith.constant 0 : index
    %0 = vector.load %arg1[%c0, %c0_0] : memref<32x64xbf16, #tpu.memory_space<vmem>>, vector<32x64xbf16>
    %1 = arith.extf %0 : vector<32x64xbf16> to vector<32x64xf32>
    %cst = arith.constant dense<0.000000e+00> : vector<32xf32>
    %2 = vector.multi_reduction <add>, %1, %cst [1] : vector<32x64xf32> to vector<32xf32>
    %3 = vector.shape_cast %2 : vector<32xf32> to vector<32x1xf32>
    %cst_1 = arith.constant 6.400000e+01 : f32
    %4 = vector.broadcast %cst_1 : f32 to vector<32x1xf32>
    %5 = arith.divf %3, %4 : vector<32x1xf32>
    %6 = vector.broadcast %5 : vector<32x1xf32> to vector<32x64xf32>
    %7 = arith.subf %1, %6 : vector<32x64xf32>
    %8 = arith.mulf %7, %7 : vector<32x64xf32>
    %cst_2 = arith.constant dense<0.000000e+00> : vector<32xf32>
    %9 = vector.multi_reduction <add>, %8, %cst_2 [1] : vector<32x64xf32> to vector<32xf32>
    %10 = vector.shape_cast %9 : vector<32xf32> to vector<32x1xf32>
    %cst_3 = arith.constant 6.400000e+01 : f32
    %11 = vector.broadcast %cst_3 : f32 to vector<32x1xf32>
    %12 = arith.divf %10, %11 : vector<32x1xf32>
    %13 = vector.broadcast %5 : vector<32x1xf32> to vector<32x64xf32>
    %14 = arith.subf %1, %13 : vector<32x64xf32>
    %cst_4 = arith.constant 9.99999974E-6 : f32
    %15 = vector.broadcast %cst_4 : f32 to vector<32x1xf32>
    %16 = arith.addf %12, %15 : vector<32x1xf32>
    %17 = math.rsqrt %16 : vector<32x1xf32>
    %18 = vector.broadcast %17 : vector<32x1xf32> to vector<32x64xf32>
    %19 = arith.mulf %14, %18 : vector<32x64xf32>
    %c0_5 = arith.constant 0 : index
    %c0_6 = arith.constant 0 : index
    %20 = vector.load %arg2[%c0_5, %c0_6] : memref<32x64xbf16, #tpu.memory_space<vmem>>, vector<32x64xbf16>
    %21 = arith.extf %20 : vector<32x64xbf16> to vector<32x64xf32>
    %22 = arith.addf %19, %21 : vector<32x64xf32>
    %23 = arith.truncf %22 : vector<32x64xf32> to vector<32x64xbf16>
    %c0_7 = arith.constant 0 : index
    %c0_8 = arith.constant 0 : index
    %24 = vector.load %arg3[%c0_7, %c0_8] : memref<32x64xbf16, #tpu.memory_space<vmem>>, vector<32x64xbf16>
    tpu.vector_store %arg3[%c0_7, %c0_8], %23 {strides = array<i32>} : memref<32x64xbf16, #tpu.memory_space<vmem>>, vector<32x64xbf16>,
    return
  }
  func.func @transform_0(%arg0: i32) -> (i32, i32) {
    %c0_i32 = arith.constant 0 : i32
    %c0_i32_0 = arith.constant 0 : i32
    return %arg0, %c0_i32 : i32, i32
  }
  func.func @transform_1(%arg0: i32) -> (i32, i32) {
    %c0_i32 = arith.constant 0 : i32
    %c0_i32_0 = arith.constant 0 : i32
    return %arg0, %c0_i32 : i32, i32
  }
  func.func @transform_2(%arg0: i32) -> (i32, i32) {
    %c0_i32 = arith.constant 0 : i32
    %c0_i32_0 = arith.constant 0 : i32
    return %arg0, %c0_i32 : i32, i32
  }
}

module attributes {stable_mosaic.version = 11 : i64} {
  func.func @_direct_conv_kernel(%arg0: i32, %arg1: memref<9x4x16xbf16, #tpu.memory_space<vmem>>, %arg2: memref<4x1xf32, #tpu.memory_space<vmem>>, %arg3: memref<1x16x110xbf16, #tpu.memory_space<vmem>>, %arg4: memref<1x4x80xbf16, #tpu.memory_space<vmem>>) attributes {dimension_semantics = [#tpu.dimension_semantics<parallel>], iteration_bounds = array<i64: 2>, scalar_prefetch = 0 : i64, scratch_operands = 0 : i64, tpu.core_type = #tpu.core_type<tc>, window_params = [{pipeline_mode = #tpu.pipeline_mode<synchronous>, transform_indices = @transform_0, window_bounds = array<i64: 9, 4, 16>}, {pipeline_mode = #tpu.pipeline_mode<synchronous>, transform_indices = @transform_1, window_bounds = array<i64: 4, 1>}, {transform_indices = @transform_2, window_bounds = array<i64: 1, 16, 110>}, {transform_indices = @transform_3, window_bounds = array<i64: 1, 4, 80>}]} {
    %cst = arith.constant 0.000000e+00 : f32
    %0 = vector.broadcast %cst : f32 to vector<4x80xf32>
    %c0 = arith.constant 0 : index
    %c0_0 = arith.constant 0 : index
    %c0_1 = arith.constant 0 : index
    %1 = vector.load %arg3[%c0, %c0_0, %c0_1] : memref<1x16x110xbf16, #tpu.memory_space<vmem>>, vector<1x16x80xbf16>
    %2 = vector.shape_cast %1 : vector<1x16x80xbf16> to vector<16x80xbf16>
    %c0_2 = arith.constant 0 : index
    %c0_3 = arith.constant 0 : index
    %c0_4 = arith.constant 0 : index
    %3 = vector.load %arg1[%c0_2, %c0_3, %c0_4] : memref<9x4x16xbf16, #tpu.memory_space<vmem>>, vector<1x4x16xbf16>
    %4 = vector.shape_cast %3 : vector<1x4x16xbf16> to vector<4x16xbf16>
    %cst_5 = arith.constant dense<0.000000e+00> : vector<4x80xf32>
    %5 = tpu.matmul %4, %2, %cst_5 {dimension_numbers = #tpu.dot_dimension_numbers<[1], [0], [0], [1], [0, 0, 1, 1], [], []>} : vector<4x16xbf16>, vector<16x80xbf16>, vector<4x80xf32> -> vector<4x80xf32>
    %6 = arith.addf %0, %5 : vector<4x80xf32>
    %c0_6 = arith.constant 0 : index
    %c0_7 = arith.constant 0 : index
    %c1 = arith.constant 1 : index
    %7 = vector.load %arg3[%c0_6, %c0_7, %c1] : memref<1x16x110xbf16, #tpu.memory_space<vmem>>, vector<1x16x80xbf16>
    %8 = vector.shape_cast %7 : vector<1x16x80xbf16> to vector<16x80xbf16>
    %c1_8 = arith.constant 1 : index
    %c0_9 = arith.constant 0 : index
    %c0_10 = arith.constant 0 : index
    %9 = vector.load %arg1[%c1_8, %c0_9, %c0_10] : memref<9x4x16xbf16, #tpu.memory_space<vmem>>, vector<1x4x16xbf16>
    %10 = vector.shape_cast %9 : vector<1x4x16xbf16> to vector<4x16xbf16>
    %cst_11 = arith.constant dense<0.000000e+00> : vector<4x80xf32>
    %11 = tpu.matmul %10, %8, %cst_11 {dimension_numbers = #tpu.dot_dimension_numbers<[1], [0], [0], [1], [0, 0, 1, 1], [], []>} : vector<4x16xbf16>, vector<16x80xbf16>, vector<4x80xf32> -> vector<4x80xf32>
    %12 = arith.addf %6, %11 : vector<4x80xf32>
    %c0_12 = arith.constant 0 : index
    %c0_13 = arith.constant 0 : index
    %c2 = arith.constant 2 : index
    %13 = vector.load %arg3[%c0_12, %c0_13, %c2] : memref<1x16x110xbf16, #tpu.memory_space<vmem>>, vector<1x16x80xbf16>
    %14 = vector.shape_cast %13 : vector<1x16x80xbf16> to vector<16x80xbf16>
    %c2_14 = arith.constant 2 : index
    %c0_15 = arith.constant 0 : index
    %c0_16 = arith.constant 0 : index
    %15 = vector.load %arg1[%c2_14, %c0_15, %c0_16] : memref<9x4x16xbf16, #tpu.memory_space<vmem>>, vector<1x4x16xbf16>
    %16 = vector.shape_cast %15 : vector<1x4x16xbf16> to vector<4x16xbf16>
    %cst_17 = arith.constant dense<0.000000e+00> : vector<4x80xf32>
    %17 = tpu.matmul %16, %14, %cst_17 {dimension_numbers = #tpu.dot_dimension_numbers<[1], [0], [0], [1], [0, 0, 1, 1], [], []>} : vector<4x16xbf16>, vector<16x80xbf16>, vector<4x80xf32> -> vector<4x80xf32>
    %18 = arith.addf %12, %17 : vector<4x80xf32>
    %c0_18 = arith.constant 0 : index
    %c0_19 = arith.constant 0 : index
    %c10 = arith.constant 10 : index
    %19 = vector.load %arg3[%c0_18, %c0_19, %c10] : memref<1x16x110xbf16, #tpu.memory_space<vmem>>, vector<1x16x80xbf16>
    %20 = vector.shape_cast %19 : vector<1x16x80xbf16> to vector<16x80xbf16>
    %c3 = arith.constant 3 : index
    %c0_20 = arith.constant 0 : index
    %c0_21 = arith.constant 0 : index
    %21 = vector.load %arg1[%c3, %c0_20, %c0_21] : memref<9x4x16xbf16, #tpu.memory_space<vmem>>, vector<1x4x16xbf16>
    %22 = vector.shape_cast %21 : vector<1x4x16xbf16> to vector<4x16xbf16>
    %cst_22 = arith.constant dense<0.000000e+00> : vector<4x80xf32>
    %23 = tpu.matmul %22, %20, %cst_22 {dimension_numbers = #tpu.dot_dimension_numbers<[1], [0], [0], [1], [0, 0, 1, 1], [], []>} : vector<4x16xbf16>, vector<16x80xbf16>, vector<4x80xf32> -> vector<4x80xf32>
    %24 = arith.addf %18, %23 : vector<4x80xf32>
    %c0_23 = arith.constant 0 : index
    %c0_24 = arith.constant 0 : index
    %c11 = arith.constant 11 : index
    %25 = vector.load %arg3[%c0_23, %c0_24, %c11] : memref<1x16x110xbf16, #tpu.memory_space<vmem>>, vector<1x16x80xbf16>
    %26 = vector.shape_cast %25 : vector<1x16x80xbf16> to vector<16x80xbf16>
    %c4 = arith.constant 4 : index
    %c0_25 = arith.constant 0 : index
    %c0_26 = arith.constant 0 : index
    %27 = vector.load %arg1[%c4, %c0_25, %c0_26] : memref<9x4x16xbf16, #tpu.memory_space<vmem>>, vector<1x4x16xbf16>
    %28 = vector.shape_cast %27 : vector<1x4x16xbf16> to vector<4x16xbf16>
    %cst_27 = arith.constant dense<0.000000e+00> : vector<4x80xf32>
    %29 = tpu.matmul %28, %26, %cst_27 {dimension_numbers = #tpu.dot_dimension_numbers<[1], [0], [0], [1], [0, 0, 1, 1], [], []>} : vector<4x16xbf16>, vector<16x80xbf16>, vector<4x80xf32> -> vector<4x80xf32>
    %30 = arith.addf %24, %29 : vector<4x80xf32>
    %c0_28 = arith.constant 0 : index
    %c0_29 = arith.constant 0 : index
    %c12 = arith.constant 12 : index
    %31 = vector.load %arg3[%c0_28, %c0_29, %c12] : memref<1x16x110xbf16, #tpu.memory_space<vmem>>, vector<1x16x80xbf16>
    %32 = vector.shape_cast %31 : vector<1x16x80xbf16> to vector<16x80xbf16>
    %c5 = arith.constant 5 : index
    %c0_30 = arith.constant 0 : index
    %c0_31 = arith.constant 0 : index
    %33 = vector.load %arg1[%c5, %c0_30, %c0_31] : memref<9x4x16xbf16, #tpu.memory_space<vmem>>, vector<1x4x16xbf16>
    %34 = vector.shape_cast %33 : vector<1x4x16xbf16> to vector<4x16xbf16>
    %cst_32 = arith.constant dense<0.000000e+00> : vector<4x80xf32>
    %35 = tpu.matmul %34, %32, %cst_32 {dimension_numbers = #tpu.dot_dimension_numbers<[1], [0], [0], [1], [0, 0, 1, 1], [], []>} : vector<4x16xbf16>, vector<16x80xbf16>, vector<4x80xf32> -> vector<4x80xf32>
    %36 = arith.addf %30, %35 : vector<4x80xf32>
    %c0_33 = arith.constant 0 : index
    %c0_34 = arith.constant 0 : index
    %c20 = arith.constant 20 : index
    %37 = vector.load %arg3[%c0_33, %c0_34, %c20] : memref<1x16x110xbf16, #tpu.memory_space<vmem>>, vector<1x16x80xbf16>
    %38 = vector.shape_cast %37 : vector<1x16x80xbf16> to vector<16x80xbf16>
    %c6 = arith.constant 6 : index
    %c0_35 = arith.constant 0 : index
    %c0_36 = arith.constant 0 : index
    %39 = vector.load %arg1[%c6, %c0_35, %c0_36] : memref<9x4x16xbf16, #tpu.memory_space<vmem>>, vector<1x4x16xbf16>
    %40 = vector.shape_cast %39 : vector<1x4x16xbf16> to vector<4x16xbf16>
    %cst_37 = arith.constant dense<0.000000e+00> : vector<4x80xf32>
    %41 = tpu.matmul %40, %38, %cst_37 {dimension_numbers = #tpu.dot_dimension_numbers<[1], [0], [0], [1], [0, 0, 1, 1], [], []>} : vector<4x16xbf16>, vector<16x80xbf16>, vector<4x80xf32> -> vector<4x80xf32>
    %42 = arith.addf %36, %41 : vector<4x80xf32>
    %c0_38 = arith.constant 0 : index
    %c0_39 = arith.constant 0 : index
    %c21 = arith.constant 21 : index
    %43 = vector.load %arg3[%c0_38, %c0_39, %c21] : memref<1x16x110xbf16, #tpu.memory_space<vmem>>, vector<1x16x80xbf16>
    %44 = vector.shape_cast %43 : vector<1x16x80xbf16> to vector<16x80xbf16>
    %c7 = arith.constant 7 : index
    %c0_40 = arith.constant 0 : index
    %c0_41 = arith.constant 0 : index
    %45 = vector.load %arg1[%c7, %c0_40, %c0_41] : memref<9x4x16xbf16, #tpu.memory_space<vmem>>, vector<1x4x16xbf16>
    %46 = vector.shape_cast %45 : vector<1x4x16xbf16> to vector<4x16xbf16>
    %cst_42 = arith.constant dense<0.000000e+00> : vector<4x80xf32>
    %47 = tpu.matmul %46, %44, %cst_42 {dimension_numbers = #tpu.dot_dimension_numbers<[1], [0], [0], [1], [0, 0, 1, 1], [], []>} : vector<4x16xbf16>, vector<16x80xbf16>, vector<4x80xf32> -> vector<4x80xf32>
    %48 = arith.addf %42, %47 : vector<4x80xf32>
    %c0_43 = arith.constant 0 : index
    %c0_44 = arith.constant 0 : index
    %c22 = arith.constant 22 : index
    %49 = vector.load %arg3[%c0_43, %c0_44, %c22] : memref<1x16x110xbf16, #tpu.memory_space<vmem>>, vector<1x16x80xbf16>
    %50 = vector.shape_cast %49 : vector<1x16x80xbf16> to vector<16x80xbf16>
    %c8 = arith.constant 8 : index
    %c0_45 = arith.constant 0 : index
    %c0_46 = arith.constant 0 : index
    %51 = vector.load %arg1[%c8, %c0_45, %c0_46] : memref<9x4x16xbf16, #tpu.memory_space<vmem>>, vector<1x4x16xbf16>
    %52 = vector.shape_cast %51 : vector<1x4x16xbf16> to vector<4x16xbf16>
    %cst_47 = arith.constant dense<0.000000e+00> : vector<4x80xf32>
    %53 = tpu.matmul %52, %50, %cst_47 {dimension_numbers = #tpu.dot_dimension_numbers<[1], [0], [0], [1], [0, 0, 1, 1], [], []>} : vector<4x16xbf16>, vector<16x80xbf16>, vector<4x80xf32> -> vector<4x80xf32>
    %54 = arith.addf %48, %53 : vector<4x80xf32>
    %c0_48 = arith.constant 0 : index
    %c0_49 = arith.constant 0 : index
    %55 = vector.load %arg2[%c0_48, %c0_49] : memref<4x1xf32, #tpu.memory_space<vmem>>, vector<4x1xf32>
    %56 = vector.broadcast %55 : vector<4x1xf32> to vector<4x80xf32>
    %57 = arith.addf %54, %56 : vector<4x80xf32>
    %58 = math.tanh %57 : vector<4x80xf32>
    %59 = arith.truncf %58 : vector<4x80xf32> to vector<4x80xbf16>
    %c0_50 = arith.constant 0 : index
    %c0_51 = arith.constant 0 : index
    %c0_52 = arith.constant 0 : index
    %60 = vector.load %arg4[%c0_50, %c0_51, %c0_52] : memref<1x4x80xbf16, #tpu.memory_space<vmem>>, vector<1x4x80xbf16>
    %61 = vector.shape_cast %60 : vector<1x4x80xbf16> to vector<4x80xbf16>
    %62 = vector.shape_cast %59 : vector<4x80xbf16> to vector<1x4x80xbf16>
    tpu.vector_store %arg4[%c0_50, %c0_51, %c0_52], %62 {strides = array<i32>} : memref<1x4x80xbf16, #tpu.memory_space<vmem>>, vector<1x4x80xbf16>,
    return
  }
  func.func @transform_0(%arg0: i32) -> (i32, i32, i32) {
    %c0_i32 = arith.constant 0 : i32
    %c0_i32_0 = arith.constant 0 : i32
    %c0_i32_1 = arith.constant 0 : i32
    %c0_i32_2 = arith.constant 0 : i32
    return %c0_i32, %c0_i32_0, %c0_i32_1 : i32, i32, i32
  }
  func.func @transform_1(%arg0: i32) -> (i32, i32) {
    %c0_i32 = arith.constant 0 : i32
    %c0_i32_0 = arith.constant 0 : i32
    %c0_i32_1 = arith.constant 0 : i32
    return %c0_i32, %c0_i32_0 : i32, i32
  }
  func.func @transform_2(%arg0: i32) -> (i32, i32, i32) {
    %c0_i32 = arith.constant 0 : i32
    %c0_i32_0 = arith.constant 0 : i32
    %c0_i32_1 = arith.constant 0 : i32
    return %arg0, %c0_i32, %c0_i32_0 : i32, i32, i32
  }
  func.func @transform_3(%arg0: i32) -> (i32, i32, i32) {
    %c0_i32 = arith.constant 0 : i32
    %c0_i32_0 = arith.constant 0 : i32
    %c0_i32_1 = arith.constant 0 : i32
    return %arg0, %c0_i32, %c0_i32_0 : i32, i32, i32
  }
}

module attributes {stable_mosaic.version = 11 : i64} {
  func.func @_ca_center_kernel(%arg0: i32, %arg1: memref<1x4x64xbf16, #tpu.memory_space<vmem>>, %arg2: memref<1x4x64xbf16, #tpu.memory_space<vmem>>, %arg3: memref<1x1x64xf32, #tpu.memory_space<vmem>>) attributes {dimension_semantics = [#tpu.dimension_semantics<parallel>], iteration_bounds = array<i64: 2>, scalar_prefetch = 0 : i64, scratch_operands = 0 : i64, tpu.core_type = #tpu.core_type<tc>, window_params = [{transform_indices = @transform_0, window_bounds = array<i64: 1, 4, 64>}, {transform_indices = @transform_1, window_bounds = array<i64: 1, 4, 64>}, {transform_indices = @transform_2, window_bounds = array<i64: 1, 1, 64>}]} {
    %c0 = arith.constant 0 : index
    %c0_0 = arith.constant 0 : index
    %c0_1 = arith.constant 0 : index
    %0 = vector.load %arg1[%c0, %c0_0, %c0_1] : memref<1x4x64xbf16, #tpu.memory_space<vmem>>, vector<1x4x64xbf16>
    %1 = vector.shape_cast %0 : vector<1x4x64xbf16> to vector<4x64xbf16>
    %2 = arith.extf %1 : vector<4x64xbf16> to vector<4x64xf32>
    %cst = arith.constant dense<0.000000e+00> : vector<64xf32>
    %3 = vector.multi_reduction <add>, %2, %cst [0] : vector<4x64xf32> to vector<64xf32>
    %4 = vector.shape_cast %3 : vector<64xf32> to vector<1x64xf32>
    %cst_2 = arith.constant 4.000000e+00 : f32
    %5 = vector.broadcast %cst_2 : f32 to vector<1x64xf32>
    %6 = arith.divf %4, %5 : vector<1x64xf32>
    %7 = vector.broadcast %6 : vector<1x64xf32> to vector<4x64xf32>
    %8 = arith.subf %2, %7 : vector<4x64xf32>
    %9 = arith.truncf %8 : vector<4x64xf32> to vector<4x64xbf16>
    %c0_3 = arith.constant 0 : index
    %c0_4 = arith.constant 0 : index
    %c0_5 = arith.constant 0 : index
    %10 = vector.load %arg2[%c0_3, %c0_4, %c0_5] : memref<1x4x64xbf16, #tpu.memory_space<vmem>>, vector<1x4x64xbf16>
    %11 = vector.shape_cast %10 : vector<1x4x64xbf16> to vector<4x64xbf16>
    %12 = vector.shape_cast %9 : vector<4x64xbf16> to vector<1x4x64xbf16>
    tpu.vector_store %arg2[%c0_3, %c0_4, %c0_5], %12 {strides = array<i32>} : memref<1x4x64xbf16, #tpu.memory_space<vmem>>, vector<1x4x64xbf16>,
    %c0_6 = arith.constant 0 : index
    %c0_7 = arith.constant 0 : index
    %c0_8 = arith.constant 0 : index
    %13 = vector.load %arg3[%c0_6, %c0_7, %c0_8] : memref<1x1x64xf32, #tpu.memory_space<vmem>>, vector<1x1x64xf32>
    %14 = vector.shape_cast %13 : vector<1x1x64xf32> to vector<1x64xf32>
    %15 = vector.shape_cast %6 : vector<1x64xf32> to vector<1x1x64xf32>
    tpu.vector_store %arg3[%c0_6, %c0_7, %c0_8], %15 {strides = array<i32>} : memref<1x1x64xf32, #tpu.memory_space<vmem>>, vector<1x1x64xf32>,
    return
  }
  func.func @transform_0(%arg0: i32) -> (i32, i32, i32) {
    %c0_i32 = arith.constant 0 : i32
    %c0_i32_0 = arith.constant 0 : i32
    %c0_i32_1 = arith.constant 0 : i32
    return %arg0, %c0_i32, %c0_i32_0 : i32, i32, i32
  }
  func.func @transform_1(%arg0: i32) -> (i32, i32, i32) {
    %c0_i32 = arith.constant 0 : i32
    %c0_i32_0 = arith.constant 0 : i32
    %c0_i32_1 = arith.constant 0 : i32
    return %arg0, %c0_i32, %c0_i32_0 : i32, i32, i32
  }
  func.func @transform_2(%arg0: i32) -> (i32, i32, i32) {
    %c0_i32 = arith.constant 0 : i32
    %c0_i32_0 = arith.constant 0 : i32
    %c0_i32_1 = arith.constant 0 : i32
    return %arg0, %c0_i32, %c0_i32_0 : i32, i32, i32
  }
}

module attributes {stable_mosaic.version = 11 : i64} {
  func.func @_ca_scores_kernel(%arg0: i32, %arg1: i32, %arg2: memref<1x4x64xbf16, #tpu.memory_space<vmem>>, %arg3: memref<1x4x64xbf16, #tpu.memory_space<vmem>>, %arg4: memref<1x64x64xf32, #tpu.memory_space<vmem>>) attributes {dimension_semantics = [#tpu.dimension_semantics<parallel>, #tpu.dimension_semantics<parallel>], iteration_bounds = array<i64: 2, 1>, scalar_prefetch = 0 : i64, scratch_operands = 0 : i64, tpu.core_type = #tpu.core_type<tc>, window_params = [{transform_indices = @transform_0, window_bounds = array<i64: 1, 4, 64>}, {transform_indices = @transform_1, window_bounds = array<i64: 1, 4, 64>}, {transform_indices = @transform_2, window_bounds = array<i64: 1, 64, 64>}]} {
    %c0 = arith.constant 0 : index
    %c0_0 = arith.constant 0 : index
    %c0_1 = arith.constant 0 : index
    %0 = vector.load %arg2[%c0, %c0_0, %c0_1] : memref<1x4x64xbf16, #tpu.memory_space<vmem>>, vector<1x4x64xbf16>
    %1 = vector.shape_cast %0 : vector<1x4x64xbf16> to vector<4x64xbf16>
    %c0_2 = arith.constant 0 : index
    %c0_3 = arith.constant 0 : index
    %c0_4 = arith.constant 0 : index
    %2 = vector.load %arg3[%c0_2, %c0_3, %c0_4] : memref<1x4x64xbf16, #tpu.memory_space<vmem>>, vector<1x4x64xbf16>
    %3 = vector.shape_cast %2 : vector<1x4x64xbf16> to vector<4x64xbf16>
    %cst = arith.constant 3.328130e+00 : bf16
    %4 = vector.broadcast %cst : bf16 to vector<4x64xbf16>
    %5 = arith.mulf %3, %4 : vector<4x64xbf16>
    %cst_5 = arith.constant dense<0.000000e+00> : vector<64x64xf32>
    %6 = tpu.matmul %1, %5, %cst_5 {dimension_numbers = #tpu.dot_dimension_numbers<[0], [0], [1], [1], [0, 1, 1, 1], [], []>} : vector<4x64xbf16>, vector<4x64xbf16>, vector<64x64xf32> -> vector<64x64xf32>
    %cst_6 = arith.constant dense<0xFF800000> : vector<64xf32>
    %7 = vector.multi_reduction <maximumf>, %6, %cst_6 [0] : vector<64x64xf32> to vector<64xf32>
    %8 = vector.shape_cast %7 : vector<64xf32> to vector<1x64xf32>
    %9 = vector.broadcast %8 : vector<1x64xf32> to vector<64x64xf32>
    %10 = arith.subf %6, %9 : vector<64x64xf32>
    %11 = math.exp %10 : vector<64x64xf32>
    %cst_7 = arith.constant dense<0.000000e+00> : vector<64xf32>
    %12 = vector.multi_reduction <add>, %11, %cst_7 [0] : vector<64x64xf32> to vector<64xf32>
    %13 = vector.shape_cast %12 : vector<64xf32> to vector<1x64xf32>
    %14 = tpu.reciprocal %13 {approx = true} : vector<1x64xf32> -> vector<1x64xf32>
    %15 = vector.broadcast %14 : vector<1x64xf32> to vector<64x64xf32>
    %16 = arith.mulf %11, %15 : vector<64x64xf32>
    %c0_8 = arith.constant 0 : index
    %c0_9 = arith.constant 0 : index
    %c0_10 = arith.constant 0 : index
    %17 = vector.load %arg4[%c0_8, %c0_9, %c0_10] : memref<1x64x64xf32, #tpu.memory_space<vmem>>, vector<1x64x64xf32>
    %18 = vector.shape_cast %17 : vector<1x64x64xf32> to vector<64x64xf32>
    %19 = vector.shape_cast %16 : vector<64x64xf32> to vector<1x64x64xf32>
    tpu.vector_store %arg4[%c0_8, %c0_9, %c0_10], %19 {strides = array<i32>} : memref<1x64x64xf32, #tpu.memory_space<vmem>>, vector<1x64x64xf32>,
    return
  }
  func.func @transform_0(%arg0: i32, %arg1: i32) -> (i32, i32, i32) {
    %c0_i32 = arith.constant 0 : i32
    %c0_i32_0 = arith.constant 0 : i32
    %c0_i32_1 = arith.constant 0 : i32
    return %arg0, %c0_i32, %c0_i32_0 : i32, i32, i32
  }
  func.func @transform_1(%arg0: i32, %arg1: i32) -> (i32, i32, i32) {
    %c0_i32 = arith.constant 0 : i32
    %c0_i32_0 = arith.constant 0 : i32
    return %arg0, %c0_i32, %arg1 : i32, i32, i32
  }
  func.func @transform_2(%arg0: i32, %arg1: i32) -> (i32, i32, i32) {
    %c0_i32 = arith.constant 0 : i32
    %c0_i32_0 = arith.constant 0 : i32
    return %arg0, %c0_i32, %arg1 : i32, i32, i32
  }
}

</mosaic_0001>

<llo_original>
// kernel: _lambda_.12
$region0: #{_lambda_.12}
  #allocation0 [shape = 'u32[]', space=smem, size = 0x4, offset = 0x4, fixed_abs, tag = 'smem constant byte address 0x4 - core index']
  #allocation1 [shape = 'u32[144,128]{1,0:T(1,128)}', space=vmem, size = 0x12000, scoped, tag = 'internal scratch']
  %s0 = inlined_call_operand.vmem [shape: bf16[16,256], index: 0, kind: input, shape index: {}]
  %s1 = inlined_call_operand.vmem [shape: bf16[16,256], index: 1, kind: output, shape index: {}]
  %s2 = sld [smem:[#allocation0]]
  $region14: #{_lambda_.12} parent=0
    _
  %s4 = ssub.s32 1, %s2
  %s5 = scalar_select 0, %s4, %s2
  // Predicated region
  $region2: #{_lambda_.12} parent=0 // pred_check
    _
  $region3: #{_lambda_.12} parent=0 // pred_check_branch
    %7 = sbr.rel (0) target = $region5
  $region4: #{_lambda_.12} parent=0 // pred_region
    _
  $region5: #{_lambda_.12} parent=0 // pred_fallthru
    _
  %v8 = vld [vmem:[%s0] sm:$0xff]
  %v9 = vld [vmem:[%s0 + $0x8] sm:$0xff]
  %v10 = vunpack.c.l.bf16 %v8
  %v11 = vunpack.c.h.bf16 %v8
  %v12 = vunpack.c.l.bf16 %v9
  %v13 = vunpack.c.h.bf16 %v9
  %v14 = vadd.f32 %v10, %v11
  %15 = vadd.xlane.f32.xlu0 %v14
  %v16 = vpop.xlane.xlu0 %15
  %v17 = vadd.f32 %v12, %v13
  %18 = vadd.xlane.f32.xlu0 %v17
  %v19 = vpop.xlane.xlu0 %18
  %v20 = vrcp.pop 256.0
  %v21 = vmul.f32 %v16, %v20
  %v22 = vmul.f32 %v19, %v20
  %v23 = vsub.f32 %v10, %v21
  %v24 = vsub.f32 %v11, %v21
  %v25 = vsub.f32 %v12, %v22
  %v26 = vsub.f32 %v13, %v22
  %v27 = vmul.f32 %v23, %v23
  %v28 = vmul.f32 %v24, %v24
  %v29 = vmul.f32 %v25, %v25
  %v30 = vmul.f32 %v26, %v26
  %v31 = vadd.f32 %v27, %v28
  %32 = vadd.xlane.f32.xlu0 %v31
  %v33 = vpop.xlane.xlu0 %32
  %v34 = vadd.f32 %v29, %v30
  %35 = vadd.xlane.f32.xlu0 %v34
  %v36 = vpop.xlane.xlu0 %35
  %v37 = vmul.f32 %v33, %v20
  %v38 = vmul.f32 %v36, %v20
  %v39 = vadd.f32 %v37, 1e-05
  %v40 = vadd.f32 %v38, 1e-05
  %v41 = vrsqrt.pop %v39
  %v42 = vrsqrt.pop %v40
  %v43 = vmul.f32 %v23, %v41
  %v44 = vmul.f32 %v24, %v41
  %v45 = vmul.f32 %v25, %v42
  %v46 = vmul.f32 %v26, %v42
  %v47 = vmax.f32 %v43, 0.0
  %v48 = vmax.f32 %v44, 0.0
  %v49 = vmax.f32 %v45, 0.0
  %v50 = vmax.f32 %v46, 0.0
  %v51 = vpack.c.bf16 %v49, %v47
  %v52 = vpack.c.bf16 %v50, %v48
  %v55 = vunpack.c.l.b16 %v51
  %v56 = vunpack.c.l.b16 %v52
  %v57 = vunpack.c.h.b16 %v51
  %v58 = vunpack.c.h.b16 %v52
  %v59 = vpack.c.b16 %v56, %v55
  %v60 = vpack.c.b16 %v58, %v57
  %63 = vst [vmem:[%s1] sm:$0xff] %v59
  %64 = vst [vmem:[%s1 + $0x8] sm:$0xff] %v60
  // Predicated region
  $region6: #{_lambda_.12} parent=0 // pred_check
    _
  $region7: #{_lambda_.12} parent=0 // pred_check_branch
    %66 = sbr.rel (0) target = $region9
  $region8: #{_lambda_.12} parent=0 // pred_region
    _
  $region9: #{_lambda_.12} parent=0 // pred_fallthru
    _
  // Predicated region
  $region10: #{_lambda_.12} parent=0 // pred_check
    _
  $region11: #{_lambda_.12} parent=0 // pred_check_branch
    %68 = sbr.rel (0) target = $region13
  $region12: #{_lambda_.12} parent=0 // pred_region
    _
  $region13: #{_lambda_.12} parent=0 // pred_fallthru
    _

// kernel: _lambda_.13
$region0: #{_lambda_.13}
  #allocation0 [shape = 'u32[]', space=smem, size = 0x4, offset = 0x4, fixed_abs, tag = 'smem constant byte address 0x4 - core index']
  #allocation1 [shape = 'u32[144,128]{1,0:T(1,128)}', space=vmem, size = 0x12000, scoped, tag = 'internal scratch']
  %s0 = inlined_call_operand.vmem [shape: bf16[4,16,32], index: 0, kind: input, shape index: {}]
  %s1 = inlined_call_operand.vmem [shape: f32[16,1], index: 1, kind: input, shape index: {}]
  %s2 = inlined_call_operand.vmem [shape: bf16[2,32,90], index: 2, kind: input, shape index: {}]
  %s3 = inlined_call_operand.vmem [shape: bf16[2,16,72], index: 3, kind: output, shape index: {}]
  %s4 = sld [smem:[#allocation0]]
  $region45: #{_lambda_.13} parent=0
    _
  %s6 = ssub.s32 1, %s4
  %s7 = scalar_select 0, %s6, %s4
  loop: start=0, step=1, limit=4
  $region2: #{_lambda_.13} parent=0 // loop_pre_header
    _
  $region3: #{_lambda_.13} parent=0 // loop_header
    %s9 = sphi 0, %s13
    %p10 = scmp.ge.s32.totalorder %s9, 4
    %s17 = sphi 0, %s17
    %s19 = sphi 0, %s17
    %s20 = sphi 0, %s19
    %s34 = sphi 0, %s20
    %s38 = sphi 0, %s38
    %s40 = sphi 0, %s38
    %s41 = sphi 0, %s40
    %s55 = sphi 0, %s41
    %s61 = sphi 0, %s63
    %s64 = sphi 0, %s61
    %s65 = sphi 0, %s64
    %s81 = sphi 0, %s65
    %s87 = sphi 0, %s89
    %s90 = sphi 0, %s87
    %s91 = sphi 0, %s90
    %s107 = sphi 0, %s91
  $region4: #{_lambda_.13} parent=0 // loop_header_branch
    %12 = sbr.rel (%p10) target = $region8
  $region5: #{_lambda_.13} parent=0 // loop_body
    %s14 = ssub.s32 %s9, 1
    %s15 = ssub.s32 %s9, 2
    %s16 = sadd.s32 %s9, 1
    %s18 = sadd.s32 %s17, 1
    %p21 = scmp.eq.s32.totalorder %s9, 1
    %p22 = scmp.ne.s32.totalorder %s17, %s19
    %p23 = scmp.eq.s32.totalorder %s9, 0
    %p24 = por %p22, %p23
    %p25 = scmp.ne.s32.totalorder %s17, %s19
    %p26 = scmp.eq.s32.totalorder %s14, 1
    %p27 = por %p25, %p26
    %p28 = scmp.ne.s32.totalorder %s19, %s20
    %p29 = scmp.eq.s32.totalorder %s14, 0
    %p30 = por %p28, %p29
    %p31 = scmp.ne.s32.totalorder %s19, %s20
    %p32 = scmp.eq.s32.totalorder %s15, 1
    %p33 = por %p31, %p32
    %p35 = scmp.ne.s32.totalorder %s20, %s34
    %p36 = scmp.eq.s32.totalorder %s15, 0
    %p37 = por %p35, %p36
    %s39 = sadd.s32 %s38, 1
    %p42 = scmp.eq.s32.totalorder %s9, 1
    %p43 = scmp.ne.s32.totalorder %s38, %s40
    %p44 = scmp.eq.s32.totalorder %s9, 0
    %p45 = por %p43, %p44
    %p46 = scmp.ne.s32.totalorder %s38, %s40
    %p47 = scmp.eq.s32.totalorder %s14, 1
    %p48 = por %p46, %p47
    %p49 = scmp.ne.s32.totalorder %s40, %s41
    %p50 = scmp.eq.s32.totalorder %s14, 0
    %p51 = por %p49, %p50
    %p52 = scmp.ne.s32.totalorder %s40, %s41
    %p53 = scmp.eq.s32.totalorder %s15, 1
    %p54 = por %p52, %p53
    %p56 = scmp.ne.s32.totalorder %s41, %s55
    %p57 = scmp.eq.s32.totalorder %s15, 0
    %p58 = por %p56, %p57
    %s59 = ssub.s32 %s9, %s16
    %p60 = scmp.eq.s32.totalorder %s59, 0
    %s62 = sadd.s32 %s61, 1
    %s63 = scalar_select %p60, %s61, %s62
    %p66 = pneg %p60
    %p67 = scmp.eq.s32.totalorder %s9, 1
    %p68 = por %p66, %p67
    %p69 = scmp.ne.s32.totalorder %s61, %s64
    %p70 = scmp.eq.s32.totalorder %s9, 0
    %p71 = por %p69, %p70
    %p72 = scmp.ne.s32.totalorder %s61, %s64
    %p73 = scmp.eq.s32.totalorder %s14, 1
    %p74 = por %p72, %p73
    %p75 = scmp.ne.s32.totalorder %s64, %s65
    %p76 = scmp.eq.s32.totalorder %s14, 0
    %p77 = por %p75, %p76
    %p78 = scmp.ne.s32.totalorder %s64, %s65
    %p79 = scmp.eq.s32.totalorder %s15, 1
    %p80 = por %p78, %p79
    %p82 = scmp.ne.s32.totalorder %s65, %s81
    %p83 = scmp.eq.s32.totalorder %s15, 0
    %p84 = por %p82, %p83
    %s85 = ssub.s32 %s9, %s16
    %p86 = scmp.eq.s32.totalorder %s85, 0
    %s88 = sadd.s32 %s87, 1
    %s89 = scalar_select %p86, %s87, %s88
    %p92 = pneg %p86
    %p93 = scmp.eq.s32.totalorder %s9, 1
    %p94 = por %p92, %p93
    %p95 = scmp.ne.s32.totalorder %s87, %s90
    %p96 = scmp.eq.s32.totalorder %s9, 0
    %p97 = por %p95, %p96
    %p98 = scmp.ne.s32.totalorder %s87, %s90
    %p99 = scmp.eq.s32.totalorder %s14, 1
    %p100 = por %p98, %p99
    %p101 = scmp.ne.s32.totalorder %s90, %s91
    %p102 = scmp.eq.s32.totalorder %s14, 0
    %p103 = por %p101, %p102
    %p104 = scmp.ne.s32.totalorder %s90, %s91
    %p105 = scmp.eq.s32.totalorder %s15, 1
    %p106 = por %p104, %p105
    %p108 = scmp.ne.s32.totalorder %s91, %s107
    %p109 = scmp.eq.s32.totalorder %s15, 0
    %p110 = por %p108, %p109
    %p111 = scmp.le.s32.totalorder 1, %s9
    %p112 = scmp.lt.s32.totalorder %s9, 3
    %p113 = pnand %p111, %p112
    %p114 = pneg %p113
    // Predicated region
    $region9: #{_lambda_.13} parent=5 // pred_check
      _
    $region10: #{_lambda_.13} parent=5 // pred_check_branch
      %116 = sbr.rel (%p113) target = $region12
    $region11: #{_lambda_.13} parent=5 // pred_region
      %s117 = ssub.s32 %s9, 1
      // Predicated region
      $region13: #{_lambda_.13} parent=11 // pred_check
        %p118 = pneg %p30
      $region14: #{_lambda_.13} parent=11 // pred_check_branch
        %120 = sbr.rel (%p118) target = $region16
      $region15: #{_lambda_.13} parent=11 // pred_region
        _
      $region16: #{_lambda_.13} parent=11 // pred_fallthru
        _
      // Predicated region
      $region17: #{_lambda_.13} parent=11 // pred_check
        %p121 = pneg %p51
      $region18: #{_lambda_.13} parent=11 // pred_check_branch
        %123 = sbr.rel (%p121) target = $region20
      $region19: #{_lambda_.13} parent=11 // pred_region
        _
      $region20: #{_lambda_.13} parent=11 // pred_fallthru
        _
    $region12: #{_lambda_.13} parent=5 // pred_fallthru
      _
    %p124 = scmp.lt.s32.totalorder %s9, 2
    // Predicated region
    $region21: #{_lambda_.13} parent=5 // pred_check
      %p125 = pneg %p124
    $region22: #{_lambda_.13} parent=5 // pred_check_branch
      %127 = sbr.rel (%p125) target = $region24
    $region23: #{_lambda_.13} parent=5 // pred_region
      // Predicated region
      $region25: #{_lambda_.13} parent=23 // pred_check
        %p128 = pneg %p71
      $region26: #{_lambda_.13} parent=23 // pred_check_branch
        %130 = sbr.rel (%p128) target = $region28
      $region27: #{_lambda_.13} parent=23 // pred_region
        %p131 = scmp.lt.s32.totalorder %s9, 1
        %s132 = scalar_select %p131, %s9, 1
        %s133 = smul.addr %s132, 4
        %s134 = smul.addr %s133, 4
        %s135 = scalar_lea.vmem %s2, %s134
      $region28: #{_lambda_.13} parent=23 // pred_fallthru
        _
    $region24: #{_lambda_.13} parent=5 // pred_fallthru
      _
    %p136 = scmp.le.s32.totalorder 1, %s9
    %p137 = scmp.lt.s32.totalorder %s9, 3
    %p138 = pnand %p136, %p137
    %p139 = pneg %p138
    // Predicated region
    $region29: #{_lambda_.13} parent=5 // pred_check
      _
    $region30: #{_lambda_.13} parent=5 // pred_check_branch
      %141 = sbr.rel (%p138) target = $region32
    $region31: #{_lambda_.13} parent=5 // pred_region
      %s142 = ssub.s32 %s9, 1
      %p143 = pneg %p30
      %p144 = pneg %p27
      %p145 = pneg %p51
      %p146 = pneg %p48
      %p147 = scmp.lt.s32.totalorder %s14, 1
      %s148 = scalar_select %p147, %s14, 1
      %s149 = smul.addr %s148, 4
      %s150 = smul.addr %s149, 4
      %s151 = scalar_lea.vmem %s2, %s150
      %p152 = pneg %p77
      %p153 = pneg %p74
      %p154 = pneg %p103
      %p155 = pneg %p100
      %p156 = scmp.lt.s32.totalorder %s14, 1
      %s157 = scalar_select %p156, %s14, 1
      %s158 = smul.addr %s157, 2
      %s159 = smul.addr %s158, 4
      %s160 = scalar_lea.vmem %s3, %s159
      %p161 = scmp.lt.s32.totalorder %s14, 1
      %s162 = scalar_select %p161, %s14, 1
      %s163 = smul.addr %s162, 4
      %s164 = smul.addr %s163, 4
      %s165 = scalar_lea.vmem %s2, %s164
      %p166 = scmp.lt.s32.totalorder %s14, 1
      %s167 = scalar_select %p166, %s14, 1
      %s168 = smul.addr %s167, 2
      %s169 = smul.addr %s168, 4
      %s170 = scalar_lea.vmem %s3, %s169
      %v172 = vld [vmem:[%s165] sm:$0xf]
      %v173 = vld [vmem:[%s165 + $0x4] sm:$0xf]
      %v174 = vld [vmem:[%s165 + $0x8] sm:$0xf]
      %v175 = vld [vmem:[%s165 + $0xc] sm:$0xf]
      %v176 = vld [vmem:[%s0] sm:$0xf]
      %v177 = vld [vmem:[%s0 + $0x4] sm:$0xf]
      %s178 = scalar_lea.vmem %s0, 8
      %v179 = vld [vmem:[%s178] sm:$0xf]
      %v180 = vld [vmem:[%s178 + $0x4] sm:$0xf]
      %v183 = vunpack.c.l.b16 %v179
      %v184 = vunpack.c.l.b16 %v180
      %v185 = vpack.c.b16 %v184, %v183
      %v190 = vunpack.c.l.b16 %v172
      %v191 = vunpack.c.l.b16 %v173
      %v192 = vunpack.c.l.b16 %v174
      %v193 = vunpack.c.l.b16 %v175
      %v194 = vpack.c.b16 %v191, %v190
      %v195 = vpack.c.b16 %v193, %v192
      %196 = vrot.lane.b32.xlu0 %v194, 127
      %v197 = vpop.permute.xlu0 %196
      %198 = vrot.lane.b32.xlu0 %v195, 127
      %v199 = vpop.permute.xlu0 %198
      %vm202 = vcmask 261120
      %v204 = vsel %vm202, %v185, 0
      %206 = vmatprep.subr.bf16.mxu0 0
      %207 = vmatpush1.bf16.msra.mxu0 0
      %208 = vmatprep.subr.bf16.mxu0 0
      %209 = vmatpush1.bf16.msra.mxu0 0
      %210 = vmatprep.subr.bf16.mxu0 0
      %211 = vmatpush1.bf16.msra.mxu0 0
      %212 = vmatprep.subr.bf16.mxu0 0
      %213 = vmatpush1.bf16.msra.mxu0 0
      %214 = vmatprep.subr.bf16.mxu0 0
      %215 = vmatpush1.bf16.msra.mxu0 0
      %216 = vmatprep.subr.bf16.mxu0 0
      %217 = vmatpush1.bf16.msra.mxu0 0
      %218 = vmatprep.subr.bf16.mxu0 0
      %219 = vmatpush1.bf16.msra.mxu0 %v199
      %220 = vmatprep.subr.bf16.mxu0 0
      %221 = vmatpush1.bf16.msra.mxu0 %v197
      %222 = vmatprep.subr.bf16.mxu0 0
      %223 = vmatpush2.bf16.msra.mxu0 0
      %224 = vmatprep.subr.bf16.mxu0 0
      %225 = vmatpush2.bf16.msra.mxu0 0
      %226 = vmatprep.subr.bf16.mxu0 0
      %227 = vmatpush2.bf16.msra.mxu0 0
      %228 = vmatprep.subr.bf16.mxu0 0
      %229 = vmatpush2.bf16.msra.mxu0 0
      %230 = vmatprep.subr.bf16.mxu0 0
      %231 = vmatpush2.bf16.msra.mxu0 0
      %232 = vmatprep.subr.bf16.mxu0 0
      %233 = vmatpush2.bf16.msra.mxu0 0
      %234 = vmatprep.subr.bf16.mxu0 0
      %235 = vmatpush2.bf16.msra.mxu0 0
      %236 = vmatprep.subr.bf16.mxu0 0
      %237 = vmatpush2.bf16.msra.mxu0 0
      %238 = vmatprep.mubr.bf16.mxu0 0
      %239 = vmatmul.mubr.bf16.gmra.mxu0 %v204
      %v240 = vpop.f32.mrf.mxu0
      %v241 = vadd.f32 0.0, %v240
      %v242 = vpop.f32.mrf.mxu0
      %v243 = vpop.f32.mrf.mxu0
      %v244 = vadd.f32 0.0, %v243
      %v245 = vpop.f32.mrf.mxu0
      %246 = vdwg.mxu0
      %v249 = vunpack.c.l.b16 %v176
      %v250 = vunpack.c.l.b16 %v177
      %v251 = vpack.c.b16 %v250, %v249
      %v255 = vsel %vm202, %v251, 0
      %257 = vmatprep.subr.bf16.mxu0 0
      %258 = vmatpush1.bf16.msra.mxu0 0
      %259 = vmatprep.subr.bf16.mxu0 0
      %260 = vmatpush1.bf16.msra.mxu0 0
      %261 = vmatprep.subr.bf16.mxu0 0
      %262 = vmatpush1.bf16.msra.mxu0 0
      %263 = vmatprep.subr.bf16.mxu0 0
      %264 = vmatpush1.bf16.msra.mxu0 0
      %265 = vmatprep.subr.bf16.mxu0 0
      %266 = vmatpush1.bf16.msra.mxu0 0
      %267 = vmatprep.subr.bf16.mxu0 0
      %268 = vmatpush1.bf16.msra.mxu0 0
      %269 = vmatprep.subr.bf16.mxu0 0
      %270 = vmatpush1.bf16.msra.mxu0 %v195
      %271 = vmatprep.subr.bf16.mxu0 0
      %272 = vmatpush1.bf16.msra.mxu0 %v194
      %273 = vmatprep.subr.bf16.mxu0 0
      %274 = vmatpush2.bf16.msra.mxu0 0
      %275 = vmatprep.subr.bf16.mxu0 0
      %276 = vmatpush2.bf16.msra.mxu0 0
      %277 = vmatprep.subr.bf16.mxu0 0
      %278 = vmatpush2.bf16.msra.mxu0 0
      %279 = vmatprep.subr.bf16.mxu0 0
      %280 = vmatpush2.bf16.msra.mxu0 0
      %281 = vmatprep.subr.bf16.mxu0 0
      %282 = vmatpush2.bf16.msra.mxu0 0
      %283 = vmatprep.subr.bf16.mxu0 0
      %284 = vmatpush2.bf16.msra.mxu0 0
      %285 = vmatprep.subr.bf16.mxu0 0
      %286 = vmatpush2.bf16.msra.mxu0 0
      %287 = vmatprep.subr.bf16.mxu0 0
      %288 = vmatpush2.bf16.msra.mxu0 0
      %289 = vmatprep.mubr.bf16.mxu0 0
      %290 = vmatmul.mubr.bf16.gmra.mxu0 %v255
      %v291 = vpop.f32.mrf.mxu0
      %v292 = vadd.f32 %v241, %v291
      %v293 = vpop.f32.mrf.mxu0
      %v294 = vpop.f32.mrf.mxu0
      %v295 = vadd.f32 %v244, %v294
      %v296 = vpop.f32.mrf.mxu0
      %297 = vdwg.mxu0
      %s298 = scalar_lea.vmem %s0, 16
      %v299 = vld [vmem:[%s298] sm:$0xf]
      %v300 = vld [vmem:[%s298 + $0x4] sm:$0xf]
      %v303 = vunpack.c.l.b16 %v299
      %v304 = vunpack.c.l.b16 %v300
      %v305 = vpack.c.b16 %v304, %v303
      %306 = vrot.lane.b32.xlu0 %v194, 119
      %v307 = vpop.permute.xlu0 %306
      %308 = vrot.lane.b32.xlu0 %v195, 119
      %v309 = vpop.permute.xlu0 %308
      %v313 = vsel %vm202, %v305, 0
      %315 = vmatprep.subr.bf16.mxu0 0
      %316 = vmatpush1.bf16.msra.mxu0 0
      %317 = vmatprep.subr.bf16.mxu0 0
      %318 = vmatpush1.bf16.msra.mxu0 0
      %319 = vmatprep.subr.bf16.mxu0 0
      %320 = vmatpush1.bf16.msra.mxu0 0
      %321 = vmatprep.subr.bf16.mxu0 0
      %322 = vmatpush1.bf16.msra.mxu0 0
      %323 = vmatprep.subr.bf16.mxu0 0
      %324 = vmatpush1.bf16.msra.mxu0 0
      %325 = vmatprep.subr.bf16.mxu0 0
      %326 = vmatpush1.bf16.msra.mxu0 0
      %327 = vmatprep.subr.bf16.mxu0 0
      %328 = vmatpush1.bf16.msra.mxu0 %v309
      %329 = vmatprep.subr.bf16.mxu0 0
      %330 = vmatpush1.bf16.msra.mxu0 %v307
      %331 = vmatprep.subr.bf16.mxu0 0
      %332 = vmatpush2.bf16.msra.mxu0 0
      %333 = vmatprep.subr.bf16.mxu0 0
      %334 = vmatpush2.bf16.msra.mxu0 0
      %335 = vmatprep.subr.bf16.mxu0 0
      %336 = vmatpush2.bf16.msra.mxu0 0
      %337 = vmatprep.subr.bf16.mxu0 0
      %338 = vmatpush2.bf16.msra.mxu0 0
      %339 = vmatprep.subr.bf16.mxu0 0
      %340 = vmatpush2.bf16.msra.mxu0 0
      %341 = vmatprep.subr.bf16.mxu0 0
      %342 = vmatpush2.bf16.msra.mxu0 0
      %343 = vmatprep.subr.bf16.mxu0 0
      %344 = vmatpush2.bf16.msra.mxu0 0
      %345 = vmatprep.subr.bf16.mxu0 0
      %346 = vmatpush2.bf16.msra.mxu0 0
      %347 = vmatprep.mubr.bf16.mxu0 0
      %348 = vmatmul.mubr.bf16.gmra.mxu0 %v313
      %v349 = vpop.f32.mrf.mxu0
      %v350 = vadd.f32 0.0, %v349
      %v351 = vpop.f32.mrf.mxu0
      %v352 = vpop.f32.mrf.mxu0
      %v353 = vadd.f32 0.0, %v352
      %v354 = vpop.f32.mrf.mxu0
      %355 = vdwg.mxu0
      %v356 = vadd.f32 %v292, %v350
      %v357 = vadd.f32 %v295, %v353
      %s358 = scalar_lea.vmem %s0, 24
      %v359 = vld [vmem:[%s358] sm:$0xf]
      %v360 = vld [vmem:[%s358 + $0x4] sm:$0xf]
      %v363 = vunpack.c.l.b16 %v359
      %v364 = vunpack.c.l.b16 %v360
      %v365 = vpack.c.b16 %v364, %v363
      %366 = vrot.lane.b32.xlu0 %v194, 118
      %v367 = vpop.permute.xlu0 %366
      %368 = vrot.lane.b32.xlu0 %v195, 118
      %v369 = vpop.permute.xlu0 %368
      %v373 = vsel %vm202, %v365, 0
      %375 = vmatprep.subr.bf16.mxu0 0
      %376 = vmatpush1.bf16.msra.mxu0 0
      %377 = vmatprep.subr.bf16.mxu0 0
      %378 = vmatpush1.bf16.msra.mxu0 0
      %379 = vmatprep.subr.bf16.mxu0 0
      %380 = vmatpush1.bf16.msra.mxu0 0
      %381 = vmatprep.subr.bf16.mxu0 0
      %382 = vmatpush1.bf16.msra.mxu0 0
      %383 = vmatprep.subr.bf16.mxu0 0
      %384 = vmatpush1.bf16.msra.mxu0 0
      %385 = vmatprep.subr.bf16.mxu0 0
      %386 = vmatpush1.bf16.msra.mxu0 0
      %387 = vmatprep.subr.bf16.mxu0 0
      %388 = vmatpush1.bf16.msra.mxu0 %v369
      %389 = vmatprep.subr.bf16.mxu0 0
      %390 = vmatpush1.bf16.msra.mxu0 %v367
      %391 = vmatprep.subr.bf16.mxu0 0
      %392 = vmatpush2.bf16.msra.mxu0 0
      %393 = vmatprep.subr.bf16.mxu0 0
      %394 = vmatpush2.bf16.msra.mxu0 0
      %395 = vmatprep.subr.bf16.mxu0 0
      %396 = vmatpush2.bf16.msra.mxu0 0
      %397 = vmatprep.subr.bf16.mxu0 0
      %398 = vmatpush2.bf16.msra.mxu0 0
      %399 = vmatprep.subr.bf16.mxu0 0
      %400 = vmatpush2.bf16.msra.mxu0 0
      %401 = vmatprep.subr.bf16.mxu0 0
      %402 = vmatpush2.bf16.msra.mxu0 0
      %403 = vmatprep.subr.bf16.mxu0 0
      %404 = vmatpush2.bf16.msra.mxu0 0
      %405 = vmatprep.subr.bf16.mxu0 0
      %406 = vmatpush2.bf16.msra.mxu0 0
      %407 = vmatprep.mubr.bf16.mxu0 0
      %408 = vmatmul.mubr.bf16.gmra.mxu0 %v373
      %v409 = vpop.f32.mrf.mxu0
      %v410 = vadd.f32 0.0, %v409
      %v411 = vpop.f32.mrf.mxu0
      %v412 = vpop.f32.mrf.mxu0
      %v413 = vadd.f32 0.0, %v412
      %v414 = vpop.f32.mrf.mxu0
      %415 = vdwg.mxu0
      %v416 = vadd.f32 %v356, %v410
      %v417 = vadd.f32 %v357, %v413
      %v418 = vld [vmem:[%s1] sm:$0xff]
      %v419 = vld [vmem:[%s1 + $0x8] sm:$0xff]
      %421 = vset.pattern.permute.xlu0 0
      %422 = vperm.xlu0 %421, %v418
      %v423 = vpop.permute.xlu0 %422
      %426 = vset.pattern.permute.xlu0 0
      %427 = vperm.xlu0 %426, %v419
      %v428 = vpop.permute.xlu0 %427
      %v430 = vadd.f32 %v416, %v423
      %v431 = vadd.f32 %v417, %v428
      %v432 = vpack.c.bf16 %v431, %v430
      %v434 = vunpack.c.l.b16 %v432
      %v435 = vunpack.c.h.b16 %v432
      %v436 = vpack.c.b16 %v434, %v434
      %v437 = vpack.c.b16 %v435, %v435
      %vm440 = vcmask 584704
      %441 = vst.msk [vmem:[%s170] sm:$0xf] %vm440, %v436
      %442 = vst.msk [vmem:[%s170 + $0x4] sm:$0xf] %vm440, %v437
      %p443 = scmp.lt.s32.totalorder %s14, 1
      %s444 = scalar_select %p443, %s14, 1
      %s445 = smul.addr %s444, 2
      %s446 = smul.addr %s445, 4
      %s447 = scalar_lea.vmem %s3, %s446
      // Predicated region
      $region33: #{_lambda_.13} parent=31 // pred_check
        %p448 = pneg %p100
      $region34: #{_lambda_.13} parent=31 // pred_check_branch
        %450 = sbr.rel (%p448) target = $region36
      $region35: #{_lambda_.13} parent=31 // pred_region
        _
      $region36: #{_lambda_.13} parent=31 // pred_fallthru
        _
    $region32: #{_lambda_.13} parent=5 // pred_fallthru
      _
    %p451 = scmp.le.s32.totalorder 2, %s9
    // Predicated region
    $region37: #{_lambda_.13} parent=5 // pred_check
      %p452 = pneg %p451
    $region38: #{_lambda_.13} parent=5 // pred_check_branch
      %454 = sbr.rel (%p452) target = $region40
    $region39: #{_lambda_.13} parent=5 // pred_region
      %s455 = ssub.s32 %s9, 2
      // Predicated region
      $region41: #{_lambda_.13} parent=39 // pred_check
        %p456 = pneg %p106
      $region42: #{_lambda_.13} parent=39 // pred_check_branch
        %458 = sbr.rel (%p456) target = $region44
      $region43: #{_lambda_.13} parent=39 // pred_region
        %p459 = scmp.lt.s32.totalorder %s15, 1
        %s460 = scalar_select %p459, %s15, 1
        %s461 = smul.addr %s460, 2
        %s462 = smul.addr %s461, 4
        %s463 = scalar_lea.vmem %s3, %s462
      $region44: #{_lambda_.13} parent=39 // pred_fallthru
        _
    $region40: #{_lambda_.13} parent=5 // pred_fallthru
      _
  $region6: #{_lambda_.13} parent=0 // loop_footer
    %s13 = sadd.s32 1, %s9
  $region7: #{_lambda_.13} parent=0 // loop_footer_branch
    %8 = sbr.rel target = $region3
  $region8: #{_lambda_.13} parent=0 // loop_exit
    _

// kernel: _lambda_.14
$region0: #{_lambda_.14}
  #allocation0 [shape = 'u32[]', space=smem, size = 0x4, offset = 0x4, fixed_abs, tag = 'smem constant byte address 0x4 - core index']
  #allocation1 [shape = 'u32[144,128]{1,0:T(1,128)}', space=vmem, size = 0x12000, scoped, tag = 'internal scratch']
  %s0 = inlined_call_operand.vmem [shape: bf16[32,64], index: 0, kind: input, shape index: {}]
  %s1 = inlined_call_operand.vmem [shape: bf16[32,64], index: 1, kind: output, shape index: {}]
  %s2 = sld [smem:[#allocation0]]
  $region14: #{_lambda_.14} parent=0
    _
  %s4 = ssub.s32 1, %s2
  %s5 = scalar_select 0, %s4, %s2
  // Predicated region
  $region2: #{_lambda_.14} parent=0 // pred_check
    _
  $region3: #{_lambda_.14} parent=0 // pred_check_branch
    %7 = sbr.rel (0) target = $region5
  $region4: #{_lambda_.14} parent=0 // pred_region
    _
  $region5: #{_lambda_.14} parent=0 // pred_fallthru
    _
  %v8 = vld [vmem:[%s0] sm:$0xf]
  %v9 = vld [vmem:[%s0 + $0x4] sm:$0xf]
  %v10 = vld [vmem:[%s0 + $0x8] sm:$0xf]
  %v11 = vld [vmem:[%s0 + $0xc] sm:$0xf]
  %v12 = vunpack.c.l.bf16 %v8
  %v13 = vunpack.c.l.bf16 %v9
  %v14 = vunpack.c.l.bf16 %v10
  %v15 = vunpack.c.l.bf16 %v11
  %vm16 = vcmask 523264
  %v17 = vsel %vm16, %v12, 0.0
  %18 = vadd.xlane.f32.xlu0 %v17
  %v19 = vpop.xlane.xlu0 %18
  %v20 = vsel %vm16, %v13, 0.0
  %21 = vadd.xlane.f32.xlu0 %v20
  %v22 = vpop.xlane.xlu0 %21
  %v23 = vsel %vm16, %v14, 0.0
  %24 = vadd.xlane.f32.xlu0 %v23
  %v25 = vpop.xlane.xlu0 %24
  %v26 = vsel %vm16, %v15, 0.0
  %27 = vadd.xlane.f32.xlu0 %v26
  %v28 = vpop.xlane.xlu0 %27
  %v29 = vrcp.pop 64.0
  %v30 = vmul.f32 %v19, %v29
  %v31 = vmul.f32 %v22, %v29
  %v32 = vmul.f32 %v25, %v29
  %v33 = vmul.f32 %v28, %v29
  %v34 = vsub.f32 %v12, %v30
  %v35 = vsub.f32 %v13, %v31
  %v36 = vsub.f32 %v14, %v32
  %v37 = vsub.f32 %v15, %v33
  %v38 = vmul.f32 %v34, %v34
  %v39 = vmul.f32 %v35, %v35
  %v40 = vmul.f32 %v36, %v36
  %v41 = vmul.f32 %v37, %v37
  %v42 = vsel %vm16, %v38, 0.0
  %43 = vadd.xlane.f32.xlu0 %v42
  %v44 = vpop.xlane.xlu0 %43
  %v45 = vsel %vm16, %v39, 0.0
  %46 = vadd.xlane.f32.xlu0 %v45
  %v47 = vpop.xlane.xlu0 %46
  %v48 = vsel %vm16, %v40, 0.0
  %49 = vadd.xlane.f32.xlu0 %v48
  %v50 = vpop.xlane.xlu0 %49
  %v51 = vsel %vm16, %v41, 0.0
  %52 = vadd.xlane.f32.xlu0 %v51
  %v53 = vpop.xlane.xlu0 %52
  %v54 = vmul.f32 %v44, %v29
  %v55 = vmul.f32 %v47, %v29
  %v56 = vmul.f32 %v50, %v29
  %v57 = vmul.f32 %v53, %v29
  %v58 = vadd.f32 %v54, 1e-05
  %v59 = vadd.f32 %v55, 1e-05
  %v60 = vadd.f32 %v56, 1e-05
  %v61 = vadd.f32 %v57, 1e-05
  %v62 = vrsqrt.pop %v58
  %v63 = vrsqrt.pop %v59
  %v64 = vrsqrt.pop %v60
  %v65 = vrsqrt.pop %v61
  %v66 = vmul.f32 %v34, %v62
  %v67 = vmul.f32 %v35, %v63
  %v68 = vmul.f32 %v36, %v64
  %v69 = vmul.f32 %v37, %v65
  %v70 = vmax.f32 %v66, 0.0
  %v71 = vmax.f32 %v67, 0.0
  %v72 = vmax.f32 %v68, 0.0
  %v73 = vmax.f32 %v69, 0.0
  %v74 = vpack.c.bf16 %v71, %v70
  %v75 = vpack.c.bf16 %v73, %v72
  %v78 = vunpack.c.l.b16 %v74
  %v79 = vunpack.c.h.b16 %v74
  %v80 = vunpack.c.l.b16 %v75
  %v81 = vunpack.c.h.b16 %v75
  %v82 = vpack.c.b16 %v78, %v78
  %v83 = vpack.c.b16 %v79, %v79
  %v84 = vpack.c.b16 %v80, %v80
  %v85 = vpack.c.b16 %v81, %v81
  %vm90 = vcmask 519168
  %91 = vst.msk [vmem:[%s1] sm:$0xf] %vm90, %v82
  %92 = vst.msk [vmem:[%s1 + $0x4] sm:$0xf] %vm90, %v83
  %93 = vst.msk [vmem:[%s1 + $0x8] sm:$0xf] %vm90, %v84
  %94 = vst.msk [vmem:[%s1 + $0xc] sm:$0xf] %vm90, %v85
  // Predicated region
  $region6: #{_lambda_.14} parent=0 // pred_check
    _
  $region7: #{_lambda_.14} parent=0 // pred_check_branch
    %96 = sbr.rel (0) target = $region9
  $region8: #{_lambda_.14} parent=0 // pred_region
    _
  $region9: #{_lambda_.14} parent=0 // pred_fallthru
    _
  // Predicated region
  $region10: #{_lambda_.14} parent=0 // pred_check
    _
  $region11: #{_lambda_.14} parent=0 // pred_check_branch
    %98 = sbr.rel (0) target = $region13
  $region12: #{_lambda_.14} parent=0 // pred_region
    _
  $region13: #{_lambda_.14} parent=0 // pred_fallthru
    _

// kernel: _lambda_.11
$region0: #{_lambda_.11}
  #allocation0 [shape = 'u32[]', space=smem, size = 0x4, offset = 0x4, fixed_abs, tag = 'smem constant byte address 0x4 - core index']
  #allocation1 [shape = 'u32[144,128]{1,0:T(1,128)}', space=vmem, size = 0x12000, scoped, tag = 'internal scratch']
  %s0 = inlined_call_operand.vmem [shape: bf16[49,8,3], index: 0, kind: input, shape index: {}]
  %s1 = inlined_call_operand.vmem [shape: f32[8,1], index: 1, kind: input, shape index: {}]
  %s2 = inlined_call_operand.vmem [shape: bf16[2,3,506], index: 2, kind: input, shape index: {}]
  %s3 = inlined_call_operand.vmem [shape: bf16[2,8,352], index: 3, kind: output, shape index: {}]
  %s4 = sld [smem:[#allocation0]]
  $region45: #{_lambda_.11} parent=0
    _
  %s6 = ssub.s32 1, %s4
  %s7 = scalar_select 0, %s6, %s4
  loop: start=0, step=1, limit=4
  $region2: #{_lambda_.11} parent=0 // loop_pre_header
    _
  $region3: #{_lambda_.11} parent=0 // loop_header
    %s9 = sphi 0, %s13
    %p10 = scmp.ge.s32.totalorder %s9, 4
    %s17 = sphi 0, %s17
    %s19 = sphi 0, %s17
    %s20 = sphi 0, %s19
    %s34 = sphi 0, %s20
    %s38 = sphi 0, %s38
    %s40 = sphi 0, %s38
    %s41 = sphi 0, %s40
    %s55 = sphi 0, %s41
    %s61 = sphi 0, %s63
    %s64 = sphi 0, %s61
    %s65 = sphi 0, %s64
    %s81 = sphi 0, %s65
    %s87 = sphi 0, %s89
    %s90 = sphi 0, %s87
    %s91 = sphi 0, %s90
    %s107 = sphi 0, %s91
  $region4: #{_lambda_.11} parent=0 // loop_header_branch
    %12 = sbr.rel (%p10) target = $region8
  $region5: #{_lambda_.11} parent=0 // loop_body
    %s14 = ssub.s32 %s9, 1
    %s15 = ssub.s32 %s9, 2
    %s16 = sadd.s32 %s9, 1
    %s18 = sadd.s32 %s17, 1
    %p21 = scmp.eq.s32.totalorder %s9, 1
    %p22 = scmp.ne.s32.totalorder %s17, %s19
    %p23 = scmp.eq.s32.totalorder %s9, 0
    %p24 = por %p22, %p23
    %p25 = scmp.ne.s32.totalorder %s17, %s19
    %p26 = scmp.eq.s32.totalorder %s14, 1
    %p27 = por %p25, %p26
    %p28 = scmp.ne.s32.totalorder %s19, %s20
    %p29 = scmp.eq.s32.totalorder %s14, 0
    %p30 = por %p28, %p29
    %p31 = scmp.ne.s32.totalorder %s19, %s20
    %p32 = scmp.eq.s32.totalorder %s15, 1
    %p33 = por %p31, %p32
    %p35 = scmp.ne.s32.totalorder %s20, %s34
    %p36 = scmp.eq.s32.totalorder %s15, 0
    %p37 = por %p35, %p36
    %s39 = sadd.s32 %s38, 1
    %p42 = scmp.eq.s32.totalorder %s9, 1
    %p43 = scmp.ne.s32.totalorder %s38, %s40
    %p44 = scmp.eq.s32.totalorder %s9, 0
    %p45 = por %p43, %p44
    %p46 = scmp.ne.s32.totalorder %s38, %s40
    %p47 = scmp.eq.s32.totalorder %s14, 1
    %p48 = por %p46, %p47
    %p49 = scmp.ne.s32.totalorder %s40, %s41
    %p50 = scmp.eq.s32.totalorder %s14, 0
    %p51 = por %p49, %p50
    %p52 = scmp.ne.s32.totalorder %s40, %s41
    %p53 = scmp.eq.s32.totalorder %s15, 1
    %p54 = por %p52, %p53
    %p56 = scmp.ne.s32.totalorder %s41, %s55
    %p57 = scmp.eq.s32.totalorder %s15, 0
    %p58 = por %p56, %p57
    %s59 = ssub.s32 %s9, %s16
    %p60 = scmp.eq.s32.totalorder %s59, 0
    %s62 = sadd.s32 %s61, 1
    %s63 = scalar_select %p60, %s61, %s62
    %p66 = pneg %p60
    %p67 = scmp.eq.s32.totalorder %s9, 1
    %p68 = por %p66, %p67
    %p69 = scmp.ne.s32.totalorder %s61, %s64
    %p70 = scmp.eq.s32.totalorder %s9, 0
    %p71 = por %p69, %p70
    %p72 = scmp.ne.s32.totalorder %s61, %s64
    %p73 = scmp.eq.s32.totalorder %s14, 1
    %p74 = por %p72, %p73
    %p75 = scmp.ne.s32.totalorder %s64, %s65
    %p76 = scmp.eq.s32.totalorder %s14, 0
    %p77 = por %p75, %p76
    %p78 = scmp.ne.s32.totalorder %s64, %s65
    %p79 = scmp.eq.s32.totalorder %s15, 1
    %p80 = por %p78, %p79
    %p82 = scmp.ne.s32.totalorder %s65, %s81
    %p83 = scmp.eq.s32.totalorder %s15, 0
    %p84 = por %p82, %p83
    %s85 = ssub.s32 %s9, %s16
    %p86 = scmp.eq.s32.totalorder %s85, 0
    %s88 = sadd.s32 %s87, 1
    %s89 = scalar_select %p86, %s87, %s88
    %p92 = pneg %p86
    %p93 = scmp.eq.s32.totalorder %s9, 1
    %p94 = por %p92, %p93
    %p95 = scmp.ne.s32.totalorder %s87, %s90
    %p96 = scmp.eq.s32.totalorder %s9, 0
    %p97 = por %p95, %p96
    %p98 = scmp.ne.s32.totalorder %s87, %s90
    %p99 = scmp.eq.s32.totalorder %s14, 1
    %p100 = por %p98, %p99
    %p101 = scmp.ne.s32.totalorder %s90, %s91
    %p102 = scmp.eq.s32.totalorder %s14, 0
    %p103 = por %p101, %p102
    %p104 = scmp.ne.s32.totalorder %s90, %s91
    %p105 = scmp.eq.s32.totalorder %s15, 1
    %p106 = por %p104, %p105
    %p108 = scmp.ne.s32.totalorder %s91, %s107
    %p109 = scmp.eq.s32.totalorder %s15, 0
    %p110 = por %p108, %p109
    %p111 = scmp.le.s32.totalorder 1, %s9
    %p112 = scmp.lt.s32.totalorder %s9, 3
    %p113 = pnand %p111, %p112
    %p114 = pneg %p113
    // Predicated region
    $region9: #{_lambda_.11} parent=5 // pred_check
      _
    $region10: #{_lambda_.11} parent=5 // pred_check_branch
      %116 = sbr.rel (%p113) target = $region12
    $region11: #{_lambda_.11} parent=5 // pred_region
      %s117 = ssub.s32 %s9, 1
      // Predicated region
      $region13: #{_lambda_.11} parent=11 // pred_check
        %p118 = pneg %p30
      $region14: #{_lambda_.11} parent=11 // pred_check_branch
        %120 = sbr.rel (%p118) target = $region16
      $region15: #{_lambda_.11} parent=11 // pred_region
        _
      $region16: #{_lambda_.11} parent=11 // pred_fallthru
        _
      // Predicated region
      $region17: #{_lambda_.11} parent=11 // pred_check
        %p121 = pneg %p51
      $region18: #{_lambda_.11} parent=11 // pred_check_branch
        %123 = sbr.rel (%p121) target = $region20
      $region19: #{_lambda_.11} parent=11 // pred_region
        _
      $region20: #{_lambda_.11} parent=11 // pred_fallthru
        _
    $region12: #{_lambda_.11} parent=5 // pred_fallthru
      _
    %p124 = scmp.lt.s32.totalorder %s9, 2
    // Predicated region
    $region21: #{_lambda_.11} parent=5 // pred_check
      %p125 = pneg %p124
    $region22: #{_lambda_.11} parent=5 // pred_check_branch
      %127 = sbr.rel (%p125) target = $region24
    $region23: #{_lambda_.11} parent=5 // pred_region
      // Predicated region
      $region25: #{_lambda_.11} parent=23 // pred_check
        %p128 = pneg %p71
      $region26: #{_lambda_.11} parent=23 // pred_check_branch
        %130 = sbr.rel (%p128) target = $region28
      $region27: #{_lambda_.11} parent=23 // pred_region
        %p131 = scmp.lt.s32.totalorder %s9, 1
        %s132 = scalar_select %p131, %s9, 1
        %s133 = smul.addr %s132, 4
        %s134 = smul.addr %s133, 2
        %s135 = scalar_lea.vmem %s2, %s134
      $region28: #{_lambda_.11} parent=23 // pred_fallthru
        _
    $region24: #{_lambda_.11} parent=5 // pred_fallthru
      _
    %p136 = scmp.le.s32.totalorder 1, %s9
    %p137 = scmp.lt.s32.totalorder %s9, 3
    %p138 = pnand %p136, %p137
    %p139 = pneg %p138
    // Predicated region
    $region29: #{_lambda_.11} parent=5 // pred_check
      _
    $region30: #{_lambda_.11} parent=5 // pred_check_branch
      %141 = sbr.rel (%p138) target = $region32
    $region31: #{_lambda_.11} parent=5 // pred_region
      %s142 = ssub.s32 %s9, 1
      %p143 = pneg %p30
      %p144 = pneg %p27
      %p145 = pneg %p51
      %p146 = pneg %p48
      %p147 = scmp.lt.s32.totalorder %s14, 1
      %s148 = scalar_select %p147, %s14, 1
      %s149 = smul.addr %s148, 4
      %s150 = smul.addr %s149, 2
      %s151 = scalar_lea.vmem %s2, %s150
      %p152 = pneg %p77
      %p153 = pneg %p74
      %p154 = pneg %p103
      %p155 = pneg %p100
      %p156 = scmp.lt.s32.totalorder %s14, 1
      %s157 = scalar_select %p156, %s14, 1
      %s158 = smul.addr %s157, 3
      %s159 = smul.addr %s158, 4
      %s160 = scalar_lea.vmem %s3, %s159
      %p161 = scmp.lt.s32.totalorder %s14, 1
      %s162 = scalar_select %p161, %s14, 1
      %s163 = smul.addr %s162, 4
      %s164 = smul.addr %s163, 2
      %s165 = scalar_lea.vmem %s2, %s164
      %p166 = scmp.lt.s32.totalorder %s14, 1
      %s167 = scalar_select %p166, %s14, 1
      %s168 = smul.addr %s167, 3
      %s169 = smul.addr %s168, 4
      %s170 = scalar_lea.vmem %s3, %s169
      %v172 = vld [vmem:[%s165] sm:$0x3f]
      %v173 = vld [vmem:[%s0] sm:$0xf]
      %s174 = scalar_lea.vmem %s0, 4
      %v175 = vld [vmem:[%s174] sm:$0xf]
      %v177 = vcombine.high %v172, %v172
      %v179 = vunpack.c.l.s4 1983009808
      %v180 = vunpack.c.0.s8 %v179
      %v181 = vlaneseq
      %v182 = vshrl.u32 %v181, 7
      %v183 = vsub.s32 %v180, %v182
      %v184 = vrot.slane %v172, %v183
      %v186 = vunpack.c.l.s4 1983009808
      %v187 = vunpack.c.0.s8 %v186
      %v188 = vlaneseq
      %v189 = vshrl.u32 %v188, 7
      %v190 = vsub.s32 %v187, %v189
      %v191 = vrot.slane %v177, %v190
      %v192 = vcombine.high %v184, %v184
      %193 = vrot.lane.b32.xlu0 %v184, 127
      %v194 = vpop.permute.xlu0 %193
      %195 = vrot.lane.b32.xlu0 %v192, 127
      %v196 = vpop.permute.xlu0 %195
      %197 = vrot.lane.b32.xlu0 %v191, 127
      %v198 = vpop.permute.xlu0 %197
      %vm199 = vcmask 1039360
      %v200 = vsel %vm199, %v194, %v196
      %v201 = vsel %vm199, %v196, %v198
      %vm202 = vcmask 23552
      %v204 = vsel %vm202, %v175, 0
      %vm206 = vcmask 1040384
      %vm207 = vcmask 1041408
      %v208 = vsel %vm206, 4294967295, 65535
      %v209 = vsel %vm207, %v208, 0
      %v211 = vand.u32 %v200, %v209
      %v214 = vand.u32 %v201, %v209
      %v217 = vand.u32 %v198, %v209
      %219 = vmatprep.subr.bf16.mxu0 0
      %220 = vmatpush1.bf16.msra.mxu0 0
      %221 = vmatprep.subr.bf16.mxu0 0
      %222 = vmatpush1.bf16.msra.mxu0 0
      %223 = vmatprep.subr.bf16.mxu0 0
      %224 = vmatpush1.bf16.msra.mxu0 0
      %225 = vmatprep.subr.bf16.mxu0 0
      %226 = vmatpush1.bf16.msra.mxu0 0
      %227 = vmatprep.subr.bf16.mxu0 0
      %228 = vmatpush1.bf16.msra.mxu0 0
      %229 = vmatprep.subr.bf16.mxu0 0
      %230 = vmatpush1.bf16.msra.mxu0 0
      %231 = vmatprep.subr.bf16.mxu0 0
      %232 = vmatpush1.bf16.msra.mxu0 0
      %233 = vmatprep.subr.bf16.mxu0 %v214
      %234 = vmatpush1.bf16.msra.mxu0 %v211
      %235 = vmatprep.subr.bf16.mxu0 0
      %236 = vmatpush2.bf16.msra.mxu0 0
      %237 = vmatprep.subr.bf16.mxu0 0
      %238 = vmatpush2.bf16.msra.mxu0 0
      %239 = vmatprep.subr.bf16.mxu0 0
      %240 = vmatpush2.bf16.msra.mxu0 0
      %241 = vmatprep.subr.bf16.mxu0 0
      %242 = vmatpush2.bf16.msra.mxu0 0
      %243 = vmatprep.subr.bf16.mxu0 0
      %244 = vmatpush2.bf16.msra.mxu0 0
      %245 = vmatprep.subr.bf16.mxu0 0
      %246 = vmatpush2.bf16.msra.mxu0 0
      %247 = vmatprep.subr.bf16.mxu0 0
      %248 = vmatpush2.bf16.msra.mxu0 0
      %249 = vmatprep.subr.bf16.mxu0 0
      %250 = vmatpush2.bf16.msra.mxu0 0
      %251 = vmatprep.mubr.bf16.mxu0 0
      %252 = vmatmul.mubr.bf16.gmra.mxu0 %v204
      %v253 = vpop.f32.mrf.mxu0
      %v254 = vadd.f32 0.0, %v253
      %v255 = vpop.f32.mrf.mxu0
      %v256 = vadd.f32 0.0, %v255
      %v257 = vpop.f32.mrf.mxu0
      %v258 = vpop.f32.mrf.mxu0
      %259 = vdwg.mxu0
      %260 = vmatprep.subr.bf16.mxu0 0
      %261 = vmatpush1.bf16.msra.mxu0 0
      %262 = vmatprep.subr.bf16.mxu0 0
      %263 = vmatpush1.bf16.msra.mxu0 0
      %264 = vmatprep.subr.bf16.mxu0 0
      %265 = vmatpush1.bf16.msra.mxu0 0
      %266 = vmatprep.subr.bf16.mxu0 0
      %267 = vmatpush1.bf16.msra.mxu0 0
      %268 = vmatprep.subr.bf16.mxu0 0
      %269 = vmatpush1.bf16.msra.mxu0 0
      %270 = vmatprep.subr.bf16.mxu0 0
      %271 = vmatpush1.bf16.msra.mxu0 0
      %272 = vmatprep.subr.bf16.mxu0 0
      %273 = vmatpush1.bf16.msra.mxu0 0
      %274 = vmatprep.subr.bf16.mxu0 0
      %275 = vmatpush1.bf16.msra.mxu0 %v217
      %276 = vmatprep.subr.bf16.mxu0 0
      %277 = vmatpush2.bf16.msra.mxu0 0
      %278 = vmatprep.subr.bf16.mxu0 0
      %279 = vmatpush2.bf16.msra.mxu0 0
      %280 = vmatprep.subr.bf16.mxu0 0
      %281 = vmatpush2.bf16.msra.mxu0 0
      %282 = vmatprep.subr.bf16.mxu0 0
      %283 = vmatpush2.bf16.msra.mxu0 0
      %284 = vmatprep.subr.bf16.mxu0 0
      %285 = vmatpush2.bf16.msra.mxu0 0
      %286 = vmatprep.subr.bf16.mxu0 0
      %287 = vmatpush2.bf16.msra.mxu0 0
      %288 = vmatprep.subr.bf16.mxu0 0
      %289 = vmatpush2.bf16.msra.mxu0 0
      %290 = vmatprep.subr.bf16.mxu0 0
      %291 = vmatpush2.bf16.msra.mxu0 0
      %292 = vmatprep.mubr.bf16.mxu0 0
      %293 = vmatmul.mubr.bf16.gmra.mxu0 %v204
      %v294 = vpop.f32.mrf.mxu0
      %v295 = vadd.f32 0.0, %v294
      %v296 = vpop.f32.mrf.mxu0
      %v297 = vpop.f32.mrf.mxu0
      %v298 = vpop.f32.mrf.mxu0
      %299 = vdwg.mxu0
      %v301 = vsel %vm202, %v173, 0
      %v304 = vand.u32 %v184, %v209
      %v307 = vand.u32 %v192, %v209
      %v310 = vand.u32 %v191, %v209
      %312 = vmatprep.subr.bf16.mxu0 0
      %313 = vmatpush1.bf16.msra.mxu0 0
      %314 = vmatprep.subr.bf16.mxu0 0
      %315 = vmatpush1.bf16.msra.mxu0 0
      %316 = vmatprep.subr.bf16.mxu0 0
      %317 = vmatpush1.bf16.msra.mxu0 0
      %318 = vmatprep.subr.bf16.mxu0 0
      %319 = vmatpush1.bf16.msra.mxu0 0
      %320 = vmatprep.subr.bf16.mxu0 0
      %321 = vmatpush1.bf16.msra.mxu0 0
      %322 = vmatprep.subr.bf16.mxu0 0
      %323 = vmatpush1.bf16.msra.mxu0 0
      %324 = vmatprep.subr.bf16.mxu0 0
      %325 = vmatpush1.bf16.msra.mxu0 0
      %326 = vmatprep.subr.bf16.mxu0 %v307
      %327 = vmatpush1.bf16.msra.mxu0 %v304
      %328 = vmatprep.subr.bf16.mxu0 0
      %329 = vmatpush2.bf16.msra.mxu0 0
      %330 = vmatprep.subr.bf16.mxu0 0
      %331 = vmatpush2.bf16.msra.mxu0 0
      %332 = vmatprep.subr.bf16.mxu0 0
      %333 = vmatpush2.bf16.msra.mxu0 0
      %334 = vmatprep.subr.bf16.mxu0 0
      %335 = vmatpush2.bf16.msra.mxu0 0
      %336 = vmatprep.subr.bf16.mxu0 0
      %337 = vmatpush2.bf16.msra.mxu0 0
      %338 = vmatprep.subr.bf16.mxu0 0
      %339 = vmatpush2.bf16.msra.mxu0 0
      %340 = vmatprep.subr.bf16.mxu0 0
      %341 = vmatpush2.bf16.msra.mxu0 0
      %342 = vmatprep.subr.bf16.mxu0 0
      %343 = vmatpush2.bf16.msra.mxu0 0
      %344 = vmatprep.mubr.bf16.mxu0 0
      %345 = vmatmul.mubr.bf16.gmra.mxu0 %v301
      %v346 = vpop.f32.mrf.mxu0
      %v347 = vadd.f32 %v254, %v346
      %v348 = vpop.f32.mrf.mxu0
      %v349 = vadd.f32 %v256, %v348
      %v350 = vpop.f32.mrf.mxu0
      %v351 = vpop.f32.mrf.mxu0
      %352 = vdwg.mxu0
      %353 = vmatprep.subr.bf16.mxu0 0
      %354 = vmatpush1.bf16.msra.mxu0 0
      %355 = vmatprep.subr.bf16.mxu0 0
      %356 = vmatpush1.bf16.msra.mxu0 0
      %357 = vmatprep.subr.bf16.mxu0 0
      %358 = vmatpush1.bf16.msra.mxu0 0
      %359 = vmatprep.subr.bf16.mxu0 0
      %360 = vmatpush1.bf16.msra.mxu0 0
      %361 = vmatprep.subr.bf16.mxu0 0
      %362 = vmatpush1.bf16.msra.mxu0 0
      %363 = vmatprep.subr.bf16.mxu0 0
      %364 = vmatpush1.bf16.msra.mxu0 0
      %365 = vmatprep.subr.bf16.mxu0 0
      %366 = vmatpush1.bf16.msra.mxu0 0
      %367 = vmatprep.subr.bf16.mxu0 0
      %368 = vmatpush1.bf16.msra.mxu0 %v310
      %369 = vmatprep.subr.bf16.mxu0 0
      %370 = vmatpush2.bf16.msra.mxu0 0
      %371 = vmatprep.subr.bf16.mxu0 0
      %372 = vmatpush2.bf16.msra.mxu0 0
      %373 = vmatprep.subr.bf16.mxu0 0
      %374 = vmatpush2.bf16.msra.mxu0 0
      %375 = vmatprep.subr.bf16.mxu0 0
      %376 = vmatpush2.bf16.msra.mxu0 0
      %377 = vmatprep.subr.bf16.mxu0 0
      %378 = vmatpush2.bf16.msra.mxu0 0
      %379 = vmatprep.subr.bf16.mxu0 0
      %380 = vmatpush2.bf16.msra.mxu0 0
      %381 = vmatprep.subr.bf16.mxu0 0
      %382 = vmatpush2.bf16.msra.mxu0 0
      %383 = vmatprep.subr.bf16.mxu0 0
      %384 = vmatpush2.bf16.msra.mxu0 0
      %385 = vmatprep.mubr.bf16.mxu0 0
      %386 = vmatmul.mubr.bf16.gmra.mxu0 %v301
      %v387 = vpop.f32.mrf.mxu0
      %v388 = vadd.f32 %v295, %v387
      %v389 = vpop.f32.mrf.mxu0
      %v390 = vpop.f32.mrf.mxu0
      %v391 = vpop.f32.mrf.mxu0
      %392 = vdwg.mxu0
      %v393 = vld [vmem:[%s165] sm:$0x3f]
      %s394 = scalar_lea.vmem %s0, 8
      %v395 = vld [vmem:[%s394] sm:$0xf]
      %v397 = vcombine.high %v393, %v393
      %v399 = vunpack.c.l.s4 1983009808
      %v400 = vunpack.c.0.s8 %v399
      %v401 = vlaneseq
      %v402 = vshrl.u32 %v401, 7
      %v403 = vsub.s32 %v400, %v402
      %v404 = vrot.slane %v393, %v403
      %v406 = vunpack.c.l.s4 1983009808
      %v407 = vunpack.c.0.s8 %v406
      %v408 = vlaneseq
      %v409 = vshrl.u32 %v408, 7
      %v410 = vsub.s32 %v407, %v409
      %v411 = vrot.slane %v397, %v410
      %v412 = vcombine.high %v404, %v404
      %413 = vrot.lane.b32.xlu0 %v404, 126
      %v414 = vpop.permute.xlu0 %413
      %415 = vrot.lane.b32.xlu0 %v412, 126
      %v416 = vpop.permute.xlu0 %415
      %417 = vrot.lane.b32.xlu0 %v411, 126
      %v418 = vpop.permute.xlu0 %417
      %vm419 = vcmask 1031168
      %v420 = vsel %vm419, %v414, %v416
      %v421 = vsel %vm419, %v416, %v418
      %v423 = vsel %vm202, %v395, 0
      %v426 = vand.u32 %v420, %v209
      %v429 = vand.u32 %v421, %v209
      %v432 = vand.u32 %v418, %v209
      %434 = vmatprep.subr.bf16.mxu0 0
      %435 = vmatpush1.bf16.msra.mxu0 0
      %436 = vmatprep.subr.bf16.mxu0 0
      %437 = vmatpush1.bf16.msra.mxu0 0
      %438 = vmatprep.subr.bf16.mxu0 0
      %439 = vmatpush1.bf16.msra.mxu0 0
      %440 = vmatprep.subr.bf16.mxu0 0
      %441 = vmatpush1.bf16.msra.mxu0 0
      %442 = vmatprep.subr.bf16.mxu0 0
      %443 = vmatpush1.bf16.msra.mxu0 0
      %444 = vmatprep.subr.bf16.mxu0 0
      %445 = vmatpush1.bf16.msra.mxu0 0
      %446 = vmatprep.subr.bf16.mxu0 0
      %447 = vmatpush1.bf16.msra.mxu0 0
      %448 = vmatprep.subr.bf16.mxu0 %v429
      %449 = vmatpush1.bf16.msra.mxu0 %v426
      %450 = vmatprep.subr.bf16.mxu0 0
      %451 = vmatpush2.bf16.msra.mxu0 0
      %452 = vmatprep.subr.bf16.mxu0 0
      %453 = vmatpush2.bf16.msra.mxu0 0
      %454 = vmatprep.subr.bf16.mxu0 0
      %455 = vmatpush2.bf16.msra.mxu0 0
      %456 = vmatprep.subr.bf16.mxu0 0
      %457 = vmatpush2.bf16.msra.mxu0 0
      %458 = vmatprep.subr.bf16.mxu0 0
      %459 = vmatpush2.bf16.msra.mxu0 0
      %460 = vmatprep.subr.bf16.mxu0 0
      %461 = vmatpush2.bf16.msra.mxu0 0
      %462 = vmatprep.subr.bf16.mxu0 0
      %463 = vmatpush2.bf16.msra.mxu0 0
      %464 = vmatprep.subr.bf16.mxu0 0
      %465 = vmatpush2.bf16.msra.mxu0 0
      %466 = vmatprep.mubr.bf16.mxu0 0
      %467 = vmatmul.mubr.bf16.gmra.mxu0 %v423
      %v468 = vpop.f32.mrf.mxu0
      %v469 = vadd.f32 0.0, %v468
      %v470 = vpop.f32.mrf.mxu0
      %v471 = vadd.f32 0.0, %v470
      %v472 = vpop.f32.mrf.mxu0
      %v473 = vpop.f32.mrf.mxu0
      %474 = vdwg.mxu0
      %475 = vmatprep.subr.bf16.mxu0 0
      %476 = vmatpush1.bf16.msra.mxu0 0
      %477 = vmatprep.subr.bf16.mxu0 0
      %478 = vmatpush1.bf16.msra.mxu0 0
      %479 = vmatprep.subr.bf16.mxu0 0
      %480 = vmatpush1.bf16.msra.mxu0 0
      %481 = vmatprep.subr.bf16.mxu0 0
      %482 = vmatpush1.bf16.msra.mxu0 0
      %483 = vmatprep.subr.bf16.mxu0 0
      %484 = vmatpush1.bf16.msra.mxu0 0
      %485 = vmatprep.subr.bf16.mxu0 0
      %486 = vmatpush1.bf16.msra.mxu0 0
      %487 = vmatprep.subr.bf16.mxu0 0
      %488 = vmatpush1.bf16.msra.mxu0 0
      %489 = vmatprep.subr.bf16.mxu0 0
      %490 = vmatpush1.bf16.msra.mxu0 %v432
      %491 = vmatprep.subr.bf16.mxu0 0
      %492 = vmatpush2.bf16.msra.mxu0 0
      %493 = vmatprep.subr.bf16.mxu0 0
      %494 = vmatpush2.bf16.msra.mxu0 0
      %495 = vmatprep.subr.bf16.mxu0 0
      %496 = vmatpush2.bf16.msra.mxu0 0
      %497 = vmatprep.subr.bf16.mxu0 0
      %498 = vmatpush2.bf16.msra.mxu0 0
      %499 = vmatprep.subr.bf16.mxu0 0
      %500 = vmatpush2.bf16.msra.mxu0 0
      %501 = vmatprep.subr.bf16.mxu0 0
      %502 = vmatpush2.bf16.msra.mxu0 0
      %503 = vmatprep.subr.bf16.mxu0 0
      %504 = vmatpush2.bf16.msra.mxu0 0
      %505 = vmatprep.subr.bf16.mxu0 0
      %506 = vmatpush2.bf16.msra.mxu0 0
      %507 = vmatprep.mubr.bf16.mxu0 0
      %508 = vmatmul.mubr.bf16.gmra.mxu0 %v423
      %v509 = vpop.f32.mrf.mxu0
      %v510 = vadd.f32 0.0, %v509
      %v511 = vpop.f32.mrf.mxu0
      %v512 = vpop.f32.mrf.mxu0
      %v513 = vpop.f32.mrf.mxu0
      %514 = vdwg.mxu0
      %v515 = vadd.f32 %v347, %v469
      %v516 = vadd.f32 %v349, %v471
      %v517 = vadd.f32 %v388, %v510
      %v518 = vld [vmem:[%s165] sm:$0x3f]
      %s519 = scalar_lea.vmem %s0, 12
      %v520 = vld [vmem:[%s519] sm:$0xf]
      %v522 = vcombine.high %v518, %v518
      %v524 = vunpack.c.l.s4 1983009808
      %v525 = vunpack.c.0.s8 %v524
      %v526 = vlaneseq
      %v527 = vshrl.u32 %v526, 7
      %v528 = vsub.s32 %v525, %v527
      %v529 = vrot.slane %v518, %v528
      %v531 = vunpack.c.l.s4 1983009808
      %v532 = vunpack.c.0.s8 %v531
      %v533 = vlaneseq
      %v534 = vshrl.u32 %v533, 7
      %v535 = vsub.s32 %v532, %v534
      %v536 = vrot.slane %v522, %v535
      %v537 = vcombine.high %v529, %v529
      %538 = vrot.lane.b32.xlu0 %v529, 125
      %v539 = vpop.permute.xlu0 %538
      %540 = vrot.lane.b32.xlu0 %v537, 125
      %v541 = vpop.permute.xlu0 %540
      %542 = vrot.lane.b32.xlu0 %v536, 125
      %v543 = vpop.permute.xlu0 %542
      %vm544 = vcmask 1022976
      %v545 = vsel %vm544, %v539, %v541
      %v546 = vsel %vm544, %v541, %v543
      %v548 = vsel %vm202, %v520, 0
      %v551 = vand.u32 %v545, %v209
      %v554 = vand.u32 %v546, %v209
      %v557 = vand.u32 %v543, %v209
      %559 = vmatprep.subr.bf16.mxu0 0
      %560 = vmatpush1.bf16.msra.mxu0 0
      %561 = vmatprep.subr.bf16.mxu0 0
      %562 = vmatpush1.bf16.msra.mxu0 0
      %563 = vmatprep.subr.bf16.mxu0 0
      %564 = vmatpush1.bf16.msra.mxu0 0
      %565 = vmatprep.subr.bf16.mxu0 0
      %566 = vmatpush1.bf16.msra.mxu0 0
      %567 = vmatprep.subr.bf16.mxu0 0
      %568 = vmatpush1.bf16.msra.mxu0 0
      %569 = vmatprep.subr.bf16.mxu0 0
      %570 = vmatpush1.bf16.msra.mxu0 0
      %571 = vmatprep.subr.bf16.mxu0 0
      %572 = vmatpush1.bf16.msra.mxu0 0
      %573 = vmatprep.subr.bf16.mxu0 %v554
      %574 = vmatpush1.bf16.msra.mxu0 %v551
      %575 = vmatprep.subr.bf16.mxu0 0
      %576 = vmatpush2.bf16.msra.mxu0 0
      %577 = vmatprep.subr.bf16.mxu0 0
      %578 = vmatpush2.bf16.msra.mxu0 0
      %579 = vmatprep.subr.bf16.mxu0 0
      %580 = vmatpush2.bf16.msra.mxu0 0
      %581 = vmatprep.subr.bf16.mxu0 0
      %582 = vmatpush2.bf16.msra.mxu0 0
      %583 = vmatprep.subr.bf16.mxu0 0
      %584 = vmatpush2.bf16.msra.mxu0 0
      %585 = vmatprep.subr.bf16.mxu0 0
      %586 = vmatpush2.bf16.msra.mxu0 0
      %587 = vmatprep.subr.bf16.mxu0 0
      %588 = vmatpush2.bf16.msra.mxu0 0
      %589 = vmatprep.subr.bf16.mxu0 0
      %590 = vmatpush2.bf16.msra.mxu0 0
      %591 = vmatprep.mubr.bf16.mxu0 0
      %592 = vmatmul.mubr.bf16.gmra.mxu0 %v548
      %v593 = vpop.f32.mrf.mxu0
      %v594 = vadd.f32 0.0, %v593
      %v595 = vpop.f32.mrf.mxu0
      %v596 = vadd.f32 0.0, %v595
      %v597 = vpop.f32.mrf.mxu0
      %v598 = vpop.f32.mrf.mxu0
      %599 = vdwg.mxu0
      %600 = vmatprep.subr.bf16.mxu0 0
      %601 = vmatpush1.bf16.msra.mxu0 0
      %602 = vmatprep.subr.bf16.mxu0 0
      %603 = vmatpush1.bf16.msra.mxu0 0
      %604 = vmatprep.subr.bf16.mxu0 0
      %605 = vmatpush1.bf16.msra.mxu0 0
      %606 = vmatprep.subr.bf16.mxu0 0
      %607 = vmatpush1.bf16.msra.mxu0 0
      %608 = vmatprep.subr.bf16.mxu0 0
      %609 = vmatpush1.bf16.msra.mxu0 0
      %610 = vmatprep.subr.bf16.mxu0 0
      %611 = vmatpush1.bf16.msra.mxu0 0
      %612 = vmatprep.subr.bf16.mxu0 0
      %613 = vmatpush1.bf16.msra.mxu0 0
      %614 = vmatprep.subr.bf16.mxu0 0
      %615 = vmatpush1.bf16.msra.mxu0 %v557
      %616 = vmatprep.subr.bf16.mxu0 0
      %617 = vmatpush2.bf16.msra.mxu0 0
      %618 = vmatprep.subr.bf16.mxu0 0
      %619 = vmatpush2.bf16.msra.mxu0 0
      %620 = vmatprep.subr.bf16.mxu0 0
      %621 = vmatpush2.bf16.msra.mxu0 0
      %622 = vmatprep.subr.bf16.mxu0 0
      %623 = vmatpush2.bf16.msra.mxu0 0
      %624 = vmatprep.subr.bf16.mxu0 0
      %625 = vmatpush2.bf16.msra.mxu0 0
      %626 = vmatprep.subr.bf16.mxu0 0
      %627 = vmatpush2.bf16.msra.mxu0 0
      %628 = vmatprep.subr.bf16.mxu0 0
      %629 = vmatpush2.bf16.msra.mxu0 0
      %630 = vmatprep.subr.bf16.mxu0 0
      %631 = vmatpush2.bf16.msra.mxu0 0
      %632 = vmatprep.mubr.bf16.mxu0 0
      %633 = vmatmul.mubr.bf16.gmra.mxu0 %v548
      %v634 = vpop.f32.mrf.mxu0
      %v635 = vadd.f32 0.0, %v634
      %v636 = vpop.f32.mrf.mxu0
      %v637 = vpop.f32.mrf.mxu0
      %v638 = vpop.f32.mrf.mxu0
      %639 = vdwg.mxu0
      %v640 = vadd.f32 %v515, %v594
      %v641 = vadd.f32 %v516, %v596
      %v642 = vadd.f32 %v517, %v635
      %v643 = vld [vmem:[%s165] sm:$0x3f]
      %s644 = scalar_lea.vmem %s0, 16
      %v645 = vld [vmem:[%s644] sm:$0xf]
      %v647 = vcombine.high %v643, %v643
      %v649 = vunpack.c.l.s4 1983009808
      %v650 = vunpack.c.0.s8 %v649
      %v651 = vlaneseq
      %v652 = vshrl.u32 %v651, 7
      %v653 = vsub.s32 %v650, %v652
      %v654 = vrot.slane %v643, %v653
      %v656 = vunpack.c.l.s4 1983009808
      %v657 = vunpack.c.0.s8 %v656
      %v658 = vlaneseq
      %v659 = vshrl.u32 %v658, 7
      %v660 = vsub.s32 %v657, %v659
      %v661 = vrot.slane %v647, %v660
      %v662 = vcombine.high %v654, %v654
      %663 = vrot.lane.b32.xlu0 %v654, 124
      %v664 = vpop.permute.xlu0 %663
      %665 = vrot.lane.b32.xlu0 %v662, 124
      %v666 = vpop.permute.xlu0 %665
      %667 = vrot.lane.b32.xlu0 %v661, 124
      %v668 = vpop.permute.xlu0 %667
      %vm669 = vcmask 1014784
      %v670 = vsel %vm669, %v664, %v666
      %v671 = vsel %vm669, %v666, %v668
      %v673 = vsel %vm202, %v645, 0
      %v676 = vand.u32 %v670, %v209
      %v679 = vand.u32 %v671, %v209
      %v682 = vand.u32 %v668, %v209
      %684 = vmatprep.subr.bf16.mxu0 0
      %685 = vmatpush1.bf16.msra.mxu0 0
      %686 = vmatprep.subr.bf16.mxu0 0
      %687 = vmatpush1.bf16.msra.mxu0 0
      %688 = vmatprep.subr.bf16.mxu0 0
      %689 = vmatpush1.bf16.msra.mxu0 0
      %690 = vmatprep.subr.bf16.mxu0 0
      %691 = vmatpush1.bf16.msra.mxu0 0
      %692 = vmatprep.subr.bf16.mxu0 0
      %693 = vmatpush1.bf16.msra.mxu0 0
      %694 = vmatprep.subr.bf16.mxu0 0
      %695 = vmatpush1.bf16.msra.mxu0 0
      %696 = vmatprep.subr.bf16.mxu0 0
      %697 = vmatpush1.bf16.msra.mxu0 0
      %698 = vmatprep.subr.bf16.mxu0 %v679
      %699 = vmatpush1.bf16.msra.mxu0 %v676
      %700 = vmatprep.subr.bf16.mxu0 0
      %701 = vmatpush2.bf16.msra.mxu0 0
      %702 = vmatprep.subr.bf16.mxu0 0
      %703 = vmatpush2.bf16.msra.mxu0 0
      %704 = vmatprep.subr.bf16.mxu0 0
      %705 = vmatpush2.bf16.msra.mxu0 0
      %706 = vmatprep.subr.bf16.mxu0 0
      %707 = vmatpush2.bf16.msra.mxu0 0
      %708 = vmatprep.subr.bf16.mxu0 0
      %709 = vmatpush2.bf16.msra.mxu0 0
      %710 = vmatprep.subr.bf16.mxu0 0
      %711 = vmatpush2.bf16.msra.mxu0 0
      %712 = vmatprep.subr.bf16.mxu0 0
      %713 = vmatpush2.bf16.msra.mxu0 0
      %714 = vmatprep.subr.bf16.mxu0 0
      %715 = vmatpush2.bf16.msra.mxu0 0
      %716 = vmatprep.mubr.bf16.mxu0 0
      %717 = vmatmul.mubr.bf16.gmra.mxu0 %v673
      %v718 = vpop.f32.mrf.mxu0
      %v719 = vadd.f32 0.0, %v718
      %v720 = vpop.f32.mrf.mxu0
      %v721 = vadd.f32 0.0, %v720
      %v722 = vpop.f32.mrf.mxu0
      %v723 = vpop.f32.mrf.mxu0
      %724 = vdwg.mxu0
      %725 = vmatprep.subr.bf16.mxu0 0
      %726 = vmatpush1.bf16.msra.mxu0 0
      %727 = vmatprep.subr.bf16.mxu0 0
      %728 = vmatpush1.bf16.msra.mxu0 0
      %729 = vmatprep.subr.bf16.mxu0 0
      %730 = vmatpush1.bf16.msra.mxu0 0
      %731 = vmatprep.subr.bf16.mxu0 0
      %732 = vmatpush1.bf16.msra.mxu0 0
      %733 = vmatprep.subr.bf16.mxu0 0
      %734 = vmatpush1.bf16.msra.mxu0 0
      %735 = vmatprep.subr.bf16.mxu0 0
      %736 = vmatpush1.bf16.msra.mxu0 0
      %737 = vmatprep.subr.bf16.mxu0 0
      %738 = vmatpush1.bf16.msra.mxu0 0
      %739 = vmatprep.subr.bf16.mxu0 0
      %740 = vmatpush1.bf16.msra.mxu0 %v682
      %741 = vmatprep.subr.bf16.mxu0 0
      %742 = vmatpush2.bf16.msra.mxu0 0
      %743 = vmatprep.subr.bf16.mxu0 0
      %744 = vmatpush2.bf16.msra.mxu0 0
      %745 = vmatprep.subr.bf16.mxu0 0
      %746 = vmatpush2.bf16.msra.mxu0 0
      %747 = vmatprep.subr.bf16.mxu0 0
      %748 = vmatpush2.bf16.msra.mxu0 0
      %749 = vmatprep.subr.bf16.mxu0 0
      %750 = vmatpush2.bf16.msra.mxu0 0
      %751 = vmatprep.subr.bf16.mxu0 0
      %752 = vmatpush2.bf16.msra.mxu0 0
      %753 = vmatprep.subr.bf16.mxu0 0
      %754 = vmatpush2.bf16.msra.mxu0 0
      %755 = vmatprep.subr.bf16.mxu0 0
      %756 = vmatpush2.bf16.msra.mxu0 0
      %757 = vmatprep.mubr.bf16.mxu0 0
      %758 = vmatmul.mubr.bf16.gmra.mxu0 %v673
      %v759 = vpop.f32.mrf.mxu0
      %v760 = vadd.f32 0.0, %v759
      %v761 = vpop.f32.mrf.mxu0
      %v762 = vpop.f32.mrf.mxu0
      %v763 = vpop.f32.mrf.mxu0
      %764 = vdwg.mxu0
      %v765 = vadd.f32 %v640, %v719
      %v766 = vadd.f32 %v641, %v721
      %v767 = vadd.f32 %v642, %v760
      %v768 = vld [vmem:[%s165] sm:$0x3f]
      %s769 = scalar_lea.vmem %s0, 20
      %v770 = vld [vmem:[%s769] sm:$0xf]
      %v772 = vcombine.high %v768, %v768
      %v774 = vunpack.c.l.s4 1983009808
      %v775 = vunpack.c.0.s8 %v774
      %v776 = vlaneseq
      %v777 = vshrl.u32 %v776, 7
      %v778 = vsub.s32 %v775, %v777
      %v779 = vrot.slane %v768, %v778
      %v781 = vunpack.c.l.s4 1983009808
      %v782 = vunpack.c.0.s8 %v781
      %v783 = vlaneseq
      %v784 = vshrl.u32 %v783, 7
      %v785 = vsub.s32 %v782, %v784
      %v786 = vrot.slane %v772, %v785
      %v787 = vcombine.high %v779, %v779
      %788 = vrot.lane.b32.xlu0 %v779, 123
      %v789 = vpop.permute.xlu0 %788
      %790 = vrot.lane.b32.xlu0 %v787, 123
      %v791 = vpop.permute.xlu0 %790
      %792 = vrot.lane.b32.xlu0 %v786, 123
      %v793 = vpop.permute.xlu0 %792
      %vm794 = vcmask 1006592
      %v795 = vsel %vm794, %v789, %v791
      %v796 = vsel %vm794, %v791, %v793
      %v798 = vsel %vm202, %v770, 0
      %v801 = vand.u32 %v795, %v209
      %v804 = vand.u32 %v796, %v209
      %v807 = vand.u32 %v793, %v209
      %809 = vmatprep.subr.bf16.mxu0 0
      %810 = vmatpush1.bf16.msra.mxu0 0
      %811 = vmatprep.subr.bf16.mxu0 0
      %812 = vmatpush1.bf16.msra.mxu0 0
      %813 = vmatprep.subr.bf16.mxu0 0
      %814 = vmatpush1.bf16.msra.mxu0 0
      %815 = vmatprep.subr.bf16.mxu0 0
      %816 = vmatpush1.bf16.msra.mxu0 0
      %817 = vmatprep.subr.bf16.mxu0 0
      %818 = vmatpush1.bf16.msra.mxu0 0
      %819 = vmatprep.subr.bf16.mxu0 0
      %820 = vmatpush1.bf16.msra.mxu0 0
      %821 = vmatprep.subr.bf16.mxu0 0
      %822 = vmatpush1.bf16.msra.mxu0 0
      %823 = vmatprep.subr.bf16.mxu0 %v804
      %824 = vmatpush1.bf16.msra.mxu0 %v801
      %825 = vmatprep.subr.bf16.mxu0 0
      %826 = vmatpush2.bf16.msra.mxu0 0
      %827 = vmatprep.subr.bf16.mxu0 0
      %828 = vmatpush2.bf16.msra.mxu0 0
      %829 = vmatprep.subr.bf16.mxu0 0
      %830 = vmatpush2.bf16.msra.mxu0 0
      %831 = vmatprep.subr.bf16.mxu0 0
      %832 = vmatpush2.bf16.msra.mxu0 0
      %833 = vmatprep.subr.bf16.mxu0 0
      %834 = vmatpush2.bf16.msra.mxu0 0
      %835 = vmatprep.subr.bf16.mxu0 0
      %836 = vmatpush2.bf16.msra.mxu0 0
      %837 = vmatprep.subr.bf16.mxu0 0
      %838 = vmatpush2.bf16.msra.mxu0 0
      %839 = vmatprep.subr.bf16.mxu0 0
      %840 = vmatpush2.bf16.msra.mxu0 0
      %841 = vmatprep.mubr.bf16.mxu0 0
      %842 = vmatmul.mubr.bf16.gmra.mxu0 %v798
      %v843 = vpop.f32.mrf.mxu0
      %v844 = vadd.f32 0.0, %v843
      %v845 = vpop.f32.mrf.mxu0
      %v846 = vadd.f32 0.0, %v845
      %v847 = vpop.f32.mrf.mxu0
      %v848 = vpop.f32.mrf.mxu0
      %849 = vdwg.mxu0
      %850 = vmatprep.subr.bf16.mxu0 0
      %851 = vmatpush1.bf16.msra.mxu0 0
      %852 = vmatprep.subr.bf16.mxu0 0
      %853 = vmatpush1.bf16.msra.mxu0 0
      %854 = vmatprep.subr.bf16.mxu0 0
      %855 = vmatpush1.bf16.msra.mxu0 0
      %856 = vmatprep.subr.bf16.mxu0 0
      %857 = vmatpush1.bf16.msra.mxu0 0
      %858 = vmatprep.subr.bf16.mxu0 0
      %859 = vmatpush1.bf16.msra.mxu0 0
      %860 = vmatprep.subr.bf16.mxu0 0
      %861 = vmatpush1.bf16.msra.mxu0 0
      %862 = vmatprep.subr.bf16.mxu0 0
      %863 = vmatpush1.bf16.msra.mxu0 0
      %864 = vmatprep.subr.bf16.mxu0 0
      %865 = vmatpush1.bf16.msra.mxu0 %v807
      %866 = vmatprep.subr.bf16.mxu0 0
      %867 = vmatpush2.bf16.msra.mxu0 0
      %868 = vmatprep.subr.bf16.mxu0 0
      %869 = vmatpush2.bf16.msra.mxu0 0
      %870 = vmatprep.subr.bf16.mxu0 0
      %871 = vmatpush2.bf16.msra.mxu0 0
      %872 = vmatprep.subr.bf16.mxu0 0
      %873 = vmatpush2.bf16.msra.mxu0 0
      %874 = vmatprep.subr.bf16.mxu0 0
      %875 = vmatpush2.bf16.msra.mxu0 0
      %876 = vmatprep.subr.bf16.mxu0 0
      %877 = vmatpush2.bf16.msra.mxu0 0
      %878 = vmatprep.subr.bf16.mxu0 0
      %879 = vmatpush2.bf16.msra.mxu0 0
      %880 = vmatprep.subr.bf16.mxu0 0
      %881 = vmatpush2.bf16.msra.mxu0 0
      %882 = vmatprep.mubr.bf16.mxu0 0
      %883 = vmatmul.mubr.bf16.gmra.mxu0 %v798
      %v884 = vpop.f32.mrf.mxu0
      %v885 = vadd.f32 0.0, %v884
      %v886 = vpop.f32.mrf.mxu0
      %v887 = vpop.f32.mrf.mxu0
      %v888 = vpop.f32.mrf.mxu0
      %889 = vdwg.mxu0
      %v890 = vadd.f32 %v765, %v844
      %v891 = vadd.f32 %v766, %v846
      %v892 = vadd.f32 %v767, %v885
      %v893 = vld [vmem:[%s165] sm:$0x3f]
      %s894 = scalar_lea.vmem %s0, 24
      %v895 = vld [vmem:[%s894] sm:$0xf]
      %v897 = vcombine.high %v893, %v893
      %v899 = vunpack.c.l.s4 1983009808
      %v900 = vunpack.c.0.s8 %v899
      %v901 = vlaneseq
      %v902 = vshrl.u32 %v901, 7
      %v903 = vsub.s32 %v900, %v902
      %v904 = vrot.slane %v893, %v903
      %v906 = vunpack.c.l.s4 1983009808
      %v907 = vunpack.c.0.s8 %v906
      %v908 = vlaneseq
      %v909 = vshrl.u32 %v908, 7
      %v910 = vsub.s32 %v907, %v909
      %v911 = vrot.slane %v897, %v910
      %v912 = vcombine.high %v904, %v904
      %913 = vrot.lane.b32.xlu0 %v904, 122
      %v914 = vpop.permute.xlu0 %913
      %915 = vrot.lane.b32.xlu0 %v912, 122
      %v916 = vpop.permute.xlu0 %915
      %917 = vrot.lane.b32.xlu0 %v911, 122
      %v918 = vpop.permute.xlu0 %917
      %vm919 = vcmask 998400
      %v920 = vsel %vm919, %v914, %v916
      %v921 = vsel %vm919, %v916, %v918
      %v923 = vsel %vm202, %v895, 0
      %v926 = vand.u32 %v920, %v209
      %v929 = vand.u32 %v921, %v209
      %v932 = vand.u32 %v918, %v209
      %934 = vmatprep.subr.bf16.mxu0 0
      %935 = vmatpush1.bf16.msra.mxu0 0
      %936 = vmatprep.subr.bf16.mxu0 0
      %937 = vmatpush1.bf16.msra.mxu0 0
      %938 = vmatprep.subr.bf16.mxu0 0
      %939 = vmatpush1.bf16.msra.mxu0 0
      %940 = vmatprep.subr.bf16.mxu0 0
      %941 = vmatpush1.bf16.msra.mxu0 0
      %942 = vmatprep.subr.bf16.mxu0 0
      %943 = vmatpush1.bf16.msra.mxu0 0
      %944 = vmatprep.subr.bf16.mxu0 0
      %945 = vmatpush1.bf16.msra.mxu0 0
      %946 = vmatprep.subr.bf16.mxu0 0
      %947 = vmatpush1.bf16.msra.mxu0 0
      %948 = vmatprep.subr.bf16.mxu0 %v929
      %949 = vmatpush1.bf16.msra.mxu0 %v926
      %950 = vmatprep.subr.bf16.mxu0 0
      %951 = vmatpush2.bf16.msra.mxu0 0
      %952 = vmatprep.subr.bf16.mxu0 0
      %953 = vmatpush2.bf16.msra.mxu0 0
      %954 = vmatprep.subr.bf16.mxu0 0
      %955 = vmatpush2.bf16.msra.mxu0 0
      %956 = vmatprep.subr.bf16.mxu0 0
      %957 = vmatpush2.bf16.msra.mxu0 0
      %958 = vmatprep.subr.bf16.mxu0 0
      %959 = vmatpush2.bf16.msra.mxu0 0
      %960 = vmatprep.subr.bf16.mxu0 0
      %961 = vmatpush2.bf16.msra.mxu0 0
      %962 = vmatprep.subr.bf16.mxu0 0
      %963 = vmatpush2.bf16.msra.mxu0 0
      %964 = vmatprep.subr.bf16.mxu0 0
      %965 = vmatpush2.bf16.msra.mxu0 0
      %966 = vmatprep.mubr.bf16.mxu0 0
      %967 = vmatmul.mubr.bf16.gmra.mxu0 %v923
      %v968 = vpop.f32.mrf.mxu0
      %v969 = vadd.f32 0.0, %v968
      %v970 = vpop.f32.mrf.mxu0
      %v971 = vadd.f32 0.0, %v970
      %v972 = vpop.f32.mrf.mxu0
      %v973 = vpop.f32.mrf.mxu0
      %974 = vdwg.mxu0
      %975 = vmatprep.subr.bf16.mxu0 0
      %976 = vmatpush1.bf16.msra.mxu0 0
      %977 = vmatprep.subr.bf16.mxu0 0
      %978 = vmatpush1.bf16.msra.mxu0 0
      %979 = vmatprep.subr.bf16.mxu0 0
      %980 = vmatpush1.bf16.msra.mxu0 0
      %981 = vmatprep.subr.bf16.mxu0 0
      %982 = vmatpush1.bf16.msra.mxu0 0
      %983 = vmatprep.subr.bf16.mxu0 0
      %984 = vmatpush1.bf16.msra.mxu0 0
      %985 = vmatprep.subr.bf16.mxu0 0
      %986 = vmatpush1.bf16.msra.mxu0 0
      %987 = vmatprep.subr.bf16.mxu0 0
      %988 = vmatpush1.bf16.msra.mxu0 0
      %989 = vmatprep.subr.bf16.mxu0 0
      %990 = vmatpush1.bf16.msra.mxu0 %v932
      %991 = vmatprep.subr.bf16.mxu0 0
      %992 = vmatpush2.bf16.msra.mxu0 0
      %993 = vmatprep.subr.bf16.mxu0 0
      %994 = vmatpush2.bf16.msra.mxu0 0
      %995 = vmatprep.subr.bf16.mxu0 0
      %996 = vmatpush2.bf16.msra.mxu0 0
      %997 = vmatprep.subr.bf16.mxu0 0
      %998 = vmatpush2.bf16.msra.mxu0 0
      %999 = vmatprep.subr.bf16.mxu0 0
      %1000 = vmatpush2.bf16.msra.mxu0 0
      %1001 = vmatprep.subr.bf16.mxu0 0
      %1002 = vmatpush2.bf16.msra.mxu0 0
      %1003 = vmatprep.subr.bf16.mxu0 0
      %1004 = vmatpush2.bf16.msra.mxu0 0
      %1005 = vmatprep.subr.bf16.mxu0 0
      %1006 = vmatpush2.bf16.msra.mxu0 0
      %1007 = vmatprep.mubr.bf16.mxu0 0
      %1008 = vmatmul.mubr.bf16.gmra.mxu0 %v923
      %v1009 = vpop.f32.mrf.mxu0
      %v1010 = vadd.f32 0.0, %v1009
      %v1011 = vpop.f32.mrf.mxu0
      %v1012 = vpop.f32.mrf.mxu0
      %v1013 = vpop.f32.mrf.mxu0
      %1014 = vdwg.mxu0
      %v1015 = vadd.f32 %v890, %v969
      %v1016 = vadd.f32 %v891, %v971
      %v1017 = vadd.f32 %v892, %v1010
      %v1018 = vld [vmem:[%s165] sm:$0x3f]
      %s1019 = scalar_lea.vmem %s0, 28
      %v1020 = vld [vmem:[%s1019] sm:$0xf]
      %v1022 = vcombine.high %v1018, %v1018
      %v1024 = vunpack.c.l.s4 1983009808
      %v1025 = vunpack.c.0.s8 %v1024
      %v1026 = vlaneseq
      %v1027 = vshrl.u32 %v1026, 7
      %v1028 = vsub.s32 %v1025, %v1027
      %v1029 = vrot.slane %v1018, %v1028
      %v1031 = vunpack.c.l.s4 1983009808
      %v1032 = vunpack.c.0.s8 %v1031
      %v1033 = vlaneseq
      %v1034 = vshrl.u32 %v1033, 7
      %v1035 = vsub.s32 %v1032, %v1034
      %v1036 = vrot.slane %v1022, %v1035
      %v1037 = vcombine.high %v1029, %v1029
      %1038 = vrot.lane.b32.xlu0 %v1029, 106
      %v1039 = vpop.permute.xlu0 %1038
      %1040 = vrot.lane.b32.xlu0 %v1037, 106
      %v1041 = vpop.permute.xlu0 %1040
      %1042 = vrot.lane.b32.xlu0 %v1036, 106
      %v1043 = vpop.permute.xlu0 %1042
      %vm1044 = vcmask 867328
      %v1045 = vsel %vm1044, %v1039, %v1041
      %v1046 = vsel %vm1044, %v1041, %v1043
      %v1048 = vsel %vm202, %v1020, 0
      %v1051 = vand.u32 %v1045, %v209
      %v1054 = vand.u32 %v1046, %v209
      %v1057 = vand.u32 %v1043, %v209
      %1059 = vmatprep.subr.bf16.mxu0 0
      %1060 = vmatpush1.bf16.msra.mxu0 0
      %1061 = vmatprep.subr.bf16.mxu0 0
      %1062 = vmatpush1.bf16.msra.mxu0 0
      %1063 = vmatprep.subr.bf16.mxu0 0
      %1064 = vmatpush1.bf16.msra.mxu0 0
      %1065 = vmatprep.subr.bf16.mxu0 0
      %1066 = vmatpush1.bf16.msra.mxu0 0
      %1067 = vmatprep.subr.bf16.mxu0 0
      %1068 = vmatpush1.bf16.msra.mxu0 0
      %1069 = vmatprep.subr.bf16.mxu0 0
      %1070 = vmatpush1.bf16.msra.mxu0 0
      %1071 = vmatprep.subr.bf16.mxu0 0
      %1072 = vmatpush1.bf16.msra.mxu0 0
      %1073 = vmatprep.subr.bf16.mxu0 %v1054
      %1074 = vmatpush1.bf16.msra.mxu0 %v1051
      %1075 = vmatprep.subr.bf16.mxu0 0
      %1076 = vmatpush2.bf16.msra.mxu0 0
      %1077 = vmatprep.subr.bf16.mxu0 0
      %1078 = vmatpush2.bf16.msra.mxu0 0
      %1079 = vmatprep.subr.bf16.mxu0 0
      %1080 = vmatpush2.bf16.msra.mxu0 0
      %1081 = vmatprep.subr.bf16.mxu0 0
      %1082 = vmatpush2.bf16.msra.mxu0 0
      %1083 = vmatprep.subr.bf16.mxu0 0
      %1084 = vmatpush2.bf16.msra.mxu0 0
      %1085 = vmatprep.subr.bf16.mxu0 0
      %1086 = vmatpush2.bf16.msra.mxu0 0
      %1087 = vmatprep.subr.bf16.mxu0 0
      %1088 = vmatpush2.bf16.msra.mxu0 0
      %1089 = vmatprep.subr.bf16.mxu0 0
      %1090 = vmatpush2.bf16.msra.mxu0 0
      %1091 = vmatprep.mubr.bf16.mxu0 0
      %1092 = vmatmul.mubr.bf16.gmra.mxu0 %v1048
      %v1093 = vpop.f32.mrf.mxu0
      %v1094 = vadd.f32 0.0, %v1093
      %v1095 = vpop.f32.mrf.mxu0
      %v1096 = vadd.f32 0.0, %v1095
      %v1097 = vpop.f32.mrf.mxu0
      %v1098 = vpop.f32.mrf.mxu0
      %1099 = vdwg.mxu0
      %1100 = vmatprep.subr.bf16.mxu0 0
      %1101 = vmatpush1.bf16.msra.mxu0 0
      %1102 = vmatprep.subr.bf16.mxu0 0
      %1103 = vmatpush1.bf16.msra.mxu0 0
      %1104 = vmatprep.subr.bf16.mxu0 0
      %1105 = vmatpush1.bf16.msra.mxu0 0
      %1106 = vmatprep.subr.bf16.mxu0 0
      %1107 = vmatpush1.bf16.msra.mxu0 0
      %1108 = vmatprep.subr.bf16.mxu0 0
      %1109 = vmatpush1.bf16.msra.mxu0 0
      %1110 = vmatprep.subr.bf16.mxu0 0
      %1111 = vmatpush1.bf16.msra.mxu0 0
      %1112 = vmatprep.subr.bf16.mxu0 0
      %1113 = vmatpush1.bf16.msra.mxu0 0
      %1114 = vmatprep.subr.bf16.mxu0 0
      %1115 = vmatpush1.bf16.msra.mxu0 %v1057
      %1116 = vmatprep.subr.bf16.mxu0 0
      %1117 = vmatpush2.bf16.msra.mxu0 0
      %1118 = vmatprep.subr.bf16.mxu0 0
      %1119 = vmatpush2.bf16.msra.mxu0 0
      %1120 = vmatprep.subr.bf16.mxu0 0
      %1121 = vmatpush2.bf16.msra.mxu0 0
      %1122 = vmatprep.subr.bf16.mxu0 0
      %1123 = vmatpush2.bf16.msra.mxu0 0
      %1124 = vmatprep.subr.bf16.mxu0 0
      %1125 = vmatpush2.bf16.msra.mxu0 0
      %1126 = vmatprep.subr.bf16.mxu0 0
      %1127 = vmatpush2.bf16.msra.mxu0 0
      %1128 = vmatprep.subr.bf16.mxu0 0
      %1129 = vmatpush2.bf16.msra.mxu0 0
      %1130 = vmatprep.subr.bf16.mxu0 0
      %1131 = vmatpush2.bf16.msra.mxu0 0
      %1132 = vmatprep.mubr.bf16.mxu0 0
      %1133 = vmatmul.mubr.bf16.gmra.mxu0 %v1048
      %v1134 = vpop.f32.mrf.mxu0
      %v1135 = vadd.f32 0.0, %v1134
      %v1136 = vpop.f32.mrf.mxu0
      %v1137 = vpop.f32.mrf.mxu0
      %v1138 = vpop.f32.mrf.mxu0
      %1139 = vdwg.mxu0
      %v1140 = vadd.f32 %v1015, %v1094
      %v1141 = vadd.f32 %v1016, %v1096
      %v1142 = vadd.f32 %v1017, %v1135
      %v1143 = vld [vmem:[%s165] sm:$0x3f]
      %s1144 = scalar_lea.vmem %s0, 32
      %v1145 = vld [vmem:[%s1144] sm:$0xf]
      %v1147 = vcombine.high %v1143, %v1143
      %v1149 = vunpack.c.l.s4 1983009808
      %v1150 = vunpack.c.0.s8 %v1149
      %v1151 = vlaneseq
      %v1152 = vshrl.u32 %v1151, 7
      %v1153 = vsub.s32 %v1150, %v1152
      %v1154 = vrot.slane %v1143, %v1153
      %v1156 = vunpack.c.l.s4 1983009808
      %v1157 = vunpack.c.0.s8 %v1156
      %v1158 = vlaneseq
      %v1159 = vshrl.u32 %v1158, 7
      %v1160 = vsub.s32 %v1157, %v1159
      %v1161 = vrot.slane %v1147, %v1160
      %v1162 = vcombine.high %v1154, %v1154
      %1163 = vrot.lane.b32.xlu0 %v1154, 105
      %v1164 = vpop.permute.xlu0 %1163
      %1165 = vrot.lane.b32.xlu0 %v1162, 105
      %v1166 = vpop.permute.xlu0 %1165
      %1167 = vrot.lane.b32.xlu0 %v1161, 105
      %v1168 = vpop.permute.xlu0 %1167
      %vm1169 = vcmask 859136
      %v1170 = vsel %vm1169, %v1164, %v1166
      %v1171 = vsel %vm1169, %v1166, %v1168
      %v1173 = vsel %vm202, %v1145, 0
      %v1176 = vand.u32 %v1170, %v209
      %v1179 = vand.u32 %v1171, %v209
      %v1182 = vand.u32 %v1168, %v209
      %1184 = vmatprep.subr.bf16.mxu0 0
      %1185 = vmatpush1.bf16.msra.mxu0 0
      %1186 = vmatprep.subr.bf16.mxu0 0
      %1187 = vmatpush1.bf16.msra.mxu0 0
      %1188 = vmatprep.subr.bf16.mxu0 0
      %1189 = vmatpush1.bf16.msra.mxu0 0
      %1190 = vmatprep.subr.bf16.mxu0 0
      %1191 = vmatpush1.bf16.msra.mxu0 0
      %1192 = vmatprep.subr.bf16.mxu0 0
      %1193 = vmatpush1.bf16.msra.mxu0 0
      %1194 = vmatprep.subr.bf16.mxu0 0
      %1195 = vmatpush1.bf16.msra.mxu0 0
      %1196 = vmatprep.subr.bf16.mxu0 0
      %1197 = vmatpush1.bf16.msra.mxu0 0
      %1198 = vmatprep.subr.bf16.mxu0 %v1179
      %1199 = vmatpush1.bf16.msra.mxu0 %v1176
      %1200 = vmatprep.subr.bf16.mxu0 0
      %1201 = vmatpush2.bf16.msra.mxu0 0
      %1202 = vmatprep.subr.bf16.mxu0 0
      %1203 = vmatpush2.bf16.msra.mxu0 0
      %1204 = vmatprep.subr.bf16.mxu0 0
      %1205 = vmatpush2.bf16.msra.mxu0 0
      %1206 = vmatprep.subr.bf16.mxu0 0
      %1207 = vmatpush2.bf16.msra.mxu0 0
      %1208 = vmatprep.subr.bf16.mxu0 0
      %1209 = vmatpush2.bf16.msra.mxu0 0
      %1210 = vmatprep.subr.bf16.mxu0 0
      %1211 = vmatpush2.bf16.msra.mxu0 0
      %1212 = vmatprep.subr.bf16.mxu0 0
      %1213 = vmatpush2.bf16.msra.mxu0 0
      %1214 = vmatprep.subr.bf16.mxu0 0
      %1215 = vmatpush2.bf16.msra.mxu0 0
      %1216 = vmatprep.mubr.bf16.mxu0 0
      %1217 = vmatmul.mubr.bf16.gmra.mxu0 %v1173
      %v1218 = vpop.f32.mrf.mxu0
      %v1219 = vadd.f32 0.0, %v1218
      %v1220 = vpop.f32.mrf.mxu0
      %v1221 = vadd.f32 0.0, %v1220
      %v1222 = vpop.f32.mrf.mxu0
      %v1223 = vpop.f32.mrf.mxu0
      %1224 = vdwg.mxu0
      %1225 = vmatprep.subr.bf16.mxu0 0
      %1226 = vmatpush1.bf16.msra.mxu0 0
      %1227 = vmatprep.subr.bf16.mxu0 0
      %1228 = vmatpush1.bf16.msra.mxu0 0
      %1229 = vmatprep.subr.bf16.mxu0 0
      %1230 = vmatpush1.bf16.msra.mxu0 0
      %1231 = vmatprep.subr.bf16.mxu0 0
      %1232 = vmatpush1.bf16.msra.mxu0 0
      %1233 = vmatprep.subr.bf16.mxu0 0
      %1234 = vmatpush1.bf16.msra.mxu0 0
      %1235 = vmatprep.subr.bf16.mxu0 0
      %1236 = vmatpush1.bf16.msra.mxu0 0
      %1237 = vmatprep.subr.bf16.mxu0 0
      %1238 = vmatpush1.bf16.msra.mxu0 0
      %1239 = vmatprep.subr.bf16.mxu0 0
      %1240 = vmatpush1.bf16.msra.mxu0 %v1182
      %1241 = vmatprep.subr.bf16.mxu0 0
      %1242 = vmatpush2.bf16.msra.mxu0 0
      %1243 = vmatprep.subr.bf16.mxu0 0
      %1244 = vmatpush2.bf16.msra.mxu0 0
      %1245 = vmatprep.subr.bf16.mxu0 0
      %1246 = vmatpush2.bf16.msra.mxu0 0
      %1247 = vmatprep.subr.bf16.mxu0 0
      %1248 = vmatpush2.bf16.msra.mxu0 0
      %1249 = vmatprep.subr.bf16.mxu0 0
      %1250 = vmatpush2.bf16.msra.mxu0 0
      %1251 = vmatprep.subr.bf16.mxu0 0
      %1252 = vmatpush2.bf16.msra.mxu0 0
      %1253 = vmatprep.subr.bf16.mxu0 0
      %1254 = vmatpush2.bf16.msra.mxu0 0
      %1255 = vmatprep.subr.bf16.mxu0 0
      %1256 = vmatpush2.bf16.msra.mxu0 0
      %1257 = vmatprep.mubr.bf16.mxu0 0
      %1258 = vmatmul.mubr.bf16.gmra.mxu0 %v1173
      %v1259 = vpop.f32.mrf.mxu0
      %v1260 = vadd.f32 0.0, %v1259
      %v1261 = vpop.f32.mrf.mxu0
      %v1262 = vpop.f32.mrf.mxu0
      %v1263 = vpop.f32.mrf.mxu0
      %1264 = vdwg.mxu0
      %v1265 = vadd.f32 %v1140, %v1219
      %v1266 = vadd.f32 %v1141, %v1221
      %v1267 = vadd.f32 %v1142, %v1260
      %v1268 = vld [vmem:[%s165] sm:$0x3f]
      %s1269 = scalar_lea.vmem %s0, 36
      %v1270 = vld [vmem:[%s1269] sm:$0xf]
      %v1272 = vcombine.high %v1268, %v1268
      %v1274 = vunpack.c.l.s4 1983009808
      %v1275 = vunpack.c.0.s8 %v1274
      %v1276 = vlaneseq
      %v1277 = vshrl.u32 %v1276, 7
      %v1278 = vsub.s32 %v1275, %v1277
      %v1279 = vrot.slane %v1268, %v1278
      %v1281 = vunpack.c.l.s4 1983009808
      %v1282 = vunpack.c.0.s8 %v1281
      %v1283 = vlaneseq
      %v1284 = vshrl.u32 %v1283, 7
      %v1285 = vsub.s32 %v1282, %v1284
      %v1286 = vrot.slane %v1272, %v1285
      %v1287 = vcombine.high %v1279, %v1279
      %1288 = vrot.lane.b32.xlu0 %v1279, 104
      %v1289 = vpop.permute.xlu0 %1288
      %1290 = vrot.lane.b32.xlu0 %v1287, 104
      %v1291 = vpop.permute.xlu0 %1290
      %1292 = vrot.lane.b32.xlu0 %v1286, 104
      %v1293 = vpop.permute.xlu0 %1292
      %vm1294 = vcmask 850944
      %v1295 = vsel %vm1294, %v1289, %v1291
      %v1296 = vsel %vm1294, %v1291, %v1293
      %v1298 = vsel %vm202, %v1270, 0
      %v1301 = vand.u32 %v1295, %v209
      %v1304 = vand.u32 %v1296, %v209
      %v1307 = vand.u32 %v1293, %v209
      %1309 = vmatprep.subr.bf16.mxu0 0
      %1310 = vmatpush1.bf16.msra.mxu0 0
      %1311 = vmatprep.subr.bf16.mxu0 0
      %1312 = vmatpush1.bf16.msra.mxu0 0
      %1313 = vmatprep.subr.bf16.mxu0 0
      %1314 = vmatpush1.bf16.msra.mxu0 0
      %1315 = vmatprep.subr.bf16.mxu0 0
      %1316 = vmatpush1.bf16.msra.mxu0 0
      %1317 = vmatprep.subr.bf16.mxu0 0
      %1318 = vmatpush1.bf16.msra.mxu0 0
      %1319 = vmatprep.subr.bf16.mxu0 0
      %1320 = vmatpush1.bf16.msra.mxu0 0
      %1321 = vmatprep.subr.bf16.mxu0 0
      %1322 = vmatpush1.bf16.msra.mxu0 0
      %1323 = vmatprep.subr.bf16.mxu0 %v1304
      %1324 = vmatpush1.bf16.msra.mxu0 %v1301
      %1325 = vmatprep.subr.bf16.mxu0 0
      %1326 = vmatpush2.bf16.msra.mxu0 0
      %1327 = vmatprep.subr.bf16.mxu0 0
      %1328 = vmatpush2.bf16.msra.mxu0 0
      %1329 = vmatprep.subr.bf16.mxu0 0
      %1330 = vmatpush2.bf16.msra.mxu0 0
      %1331 = vmatprep.subr.bf16.mxu0 0
      %1332 = vmatpush2.bf16.msra.mxu0 0
      %1333 = vmatprep.subr.bf16.mxu0 0
      %1334 = vmatpush2.bf16.msra.mxu0 0
      %1335 = vmatprep.subr.bf16.mxu0 0
      %1336 = vmatpush2.bf16.msra.mxu0 0
      %1337 = vmatprep.subr.bf16.mxu0 0
      %1338 = vmatpush2.bf16.msra.mxu0 0
      %1339 = vmatprep.subr.bf16.mxu0 0
      %1340 = vmatpush2.bf16.msra.mxu0 0
      %1341 = vmatprep.mubr.bf16.mxu0 0
      %1342 = vmatmul.mubr.bf16.gmra.mxu0 %v1298
      %v1343 = vpop.f32.mrf.mxu0
      %v1344 = vadd.f32 0.0, %v1343
      %v1345 = vpop.f32.mrf.mxu0
      %v1346 = vadd.f32 0.0, %v1345
      %v1347 = vpop.f32.mrf.mxu0
      %v1348 = vpop.f32.mrf.mxu0
      %1349 = vdwg.mxu0
      %1350 = vmatprep.subr.bf16.mxu0 0
      %1351 = vmatpush1.bf16.msra.mxu0 0
      %1352 = vmatprep.subr.bf16.mxu0 0
      %1353 = vmatpush1.bf16.msra.mxu0 0
      %1354 = vmatprep.subr.bf16.mxu0 0
      %1355 = vmatpush1.bf16.msra.mxu0 0
      %1356 = vmatprep.subr.bf16.mxu0 0
      %1357 = vmatpush1.bf16.msra.mxu0 0
      %1358 = vmatprep.subr.bf16.mxu0 0
      %1359 = vmatpush1.bf16.msra.mxu0 0
      %1360 = vmatprep.subr.bf16.mxu0 0
      %1361 = vmatpush1.bf16.msra.mxu0 0
      %1362 = vmatprep.subr.bf16.mxu0 0
      %1363 = vmatpush1.bf16.msra.mxu0 0
      %1364 = vmatprep.subr.bf16.mxu0 0
      %1365 = vmatpush1.bf16.msra.mxu0 %v1307
      %1366 = vmatprep.subr.bf16.mxu0 0
      %1367 = vmatpush2.bf16.msra.mxu0 0
      %1368 = vmatprep.subr.bf16.mxu0 0
      %1369 = vmatpush2.bf16.msra.mxu0 0
      %1370 = vmatprep.subr.bf16.mxu0 0
      %1371 = vmatpush2.bf16.msra.mxu0 0
      %1372 = vmatprep.subr.bf16.mxu0 0
      %1373 = vmatpush2.bf16.msra.mxu0 0
      %1374 = vmatprep.subr.bf16.mxu0 0
      %1375 = vmatpush2.bf16.msra.mxu0 0
      %1376 = vmatprep.subr.bf16.mxu0 0
      %1377 = vmatpush2.bf16.msra.mxu0 0
      %1378 = vmatprep.subr.bf16.mxu0 0
      %1379 = vmatpush2.bf16.msra.mxu0 0
      %1380 = vmatprep.subr.bf16.mxu0 0
      %1381 = vmatpush2.bf16.msra.mxu0 0
      %1382 = vmatprep.mubr.bf16.mxu0 0
      %1383 = vmatmul.mubr.bf16.gmra.mxu0 %v1298
      %v1384 = vpop.f32.mrf.mxu0
      %v1385 = vadd.f32 0.0, %v1384
      %v1386 = vpop.f32.mrf.mxu0
      %v1387 = vpop.f32.mrf.mxu0
      %v1388 = vpop.f32.mrf.mxu0
      %1389 = vdwg.mxu0
      %v1390 = vadd.f32 %v1265, %v1344
      %v1391 = vadd.f32 %v1266, %v1346
      %v1392 = vadd.f32 %v1267, %v1385
      %v1393 = vld [vmem:[%s165] sm:$0x3f]
      %s1394 = scalar_lea.vmem %s0, 40
      %v1395 = vld [vmem:[%s1394] sm:$0xf]
      %v1397 = vcombine.high %v1393, %v1393
      %v1399 = vunpack.c.l.s4 1983009808
      %v1400 = vunpack.c.0.s8 %v1399
      %v1401 = vlaneseq
      %v1402 = vshrl.u32 %v1401, 7
      %v1403 = vsub.s32 %v1400, %v1402
      %v1404 = vrot.slane %v1393, %v1403
      %v1406 = vunpack.c.l.s4 1983009808
      %v1407 = vunpack.c.0.s8 %v1406
      %v1408 = vlaneseq
      %v1409 = vshrl.u32 %v1408, 7
      %v1410 = vsub.s32 %v1407, %v1409
      %v1411 = vrot.slane %v1397, %v1410
      %v1412 = vcombine.high %v1404, %v1404
      %1413 = vrot.lane.b32.xlu0 %v1404, 103
      %v1414 = vpop.permute.xlu0 %1413
      %1415 = vrot.lane.b32.xlu0 %v1412, 103
      %v1416 = vpop.permute.xlu0 %1415
      %1417 = vrot.lane.b32.xlu0 %v1411, 103
      %v1418 = vpop.permute.xlu0 %1417
      %vm1419 = vcmask 842752
      %v1420 = vsel %vm1419, %v1414, %v1416
      %v1421 = vsel %vm1419, %v1416, %v1418
      %v1423 = vsel %vm202, %v1395, 0
      %v1426 = vand.u32 %v1420, %v209
      %v1429 = vand.u32 %v1421, %v209
      %v1432 = vand.u32 %v1418, %v209
      %1434 = vmatprep.subr.bf16.mxu0 0
      %1435 = vmatpush1.bf16.msra.mxu0 0
      %1436 = vmatprep.subr.bf16.mxu0 0
      %1437 = vmatpush1.bf16.msra.mxu0 0
      %1438 = vmatprep.subr.bf16.mxu0 0
      %1439 = vmatpush1.bf16.msra.mxu0 0
      %1440 = vmatprep.subr.bf16.mxu0 0
      %1441 = vmatpush1.bf16.msra.mxu0 0
      %1442 = vmatprep.subr.bf16.mxu0 0
      %1443 = vmatpush1.bf16.msra.mxu0 0
      %1444 = vmatprep.subr.bf16.mxu0 0
      %1445 = vmatpush1.bf16.msra.mxu0 0
      %1446 = vmatprep.subr.bf16.mxu0 0
      %1447 = vmatpush1.bf16.msra.mxu0 0
      %1448 = vmatprep.subr.bf16.mxu0 %v1429
      %1449 = vmatpush1.bf16.msra.mxu0 %v1426
      %1450 = vmatprep.subr.bf16.mxu0 0
      %1451 = vmatpush2.bf16.msra.mxu0 0
      %1452 = vmatprep.subr.bf16.mxu0 0
      %1453 = vmatpush2.bf16.msra.mxu0 0
      %1454 = vmatprep.subr.bf16.mxu0 0
      %1455 = vmatpush2.bf16.msra.mxu0 0
      %1456 = vmatprep.subr.bf16.mxu0 0
      %1457 = vmatpush2.bf16.msra.mxu0 0
      %1458 = vmatprep.subr.bf16.mxu0 0
      %1459 = vmatpush2.bf16.msra.mxu0 0
      %1460 = vmatprep.subr.bf16.mxu0 0
      %1461 = vmatpush2.bf16.msra.mxu0 0
      %1462 = vmatprep.subr.bf16.mxu0 0
      %1463 = vmatpush2.bf16.msra.mxu0 0
      %1464 = vmatprep.subr.bf16.mxu0 0
      %1465 = vmatpush2.bf16.msra.mxu0 0
      %1466 = vmatprep.mubr.bf16.mxu0 0
      %1467 = vmatmul.mubr.bf16.gmra.mxu0 %v1423
      %v1468 = vpop.f32.mrf.mxu0
      %v1469 = vadd.f32 0.0, %v1468
      %v1470 = vpop.f32.mrf.mxu0
      %v1471 = vadd.f32 0.0, %v1470
      %v1472 = vpop.f32.mrf.mxu0
      %v1473 = vpop.f32.mrf.mxu0
      %1474 = vdwg.mxu0
      %1475 = vmatprep.subr.bf16.mxu0 0
      %1476 = vmatpush1.bf16.msra.mxu0 0
      %1477 = vmatprep.subr.bf16.mxu0 0
      %1478 = vmatpush1.bf16.msra.mxu0 0
      %1479 = vmatprep.subr.bf16.mxu0 0
      %1480 = vmatpush1.bf16.msra.mxu0 0
      %1481 = vmatprep.subr.bf16.mxu0 0
      %1482 = vmatpush1.bf16.msra.mxu0 0
      %1483 = vmatprep.subr.bf16.mxu0 0
      %1484 = vmatpush1.bf16.msra.mxu0 0
      %1485 = vmatprep.subr.bf16.mxu0 0
      %1486 = vmatpush1.bf16.msra.mxu0 0
      %1487 = vmatprep.subr.bf16.mxu0 0
      %1488 = vmatpush1.bf16.msra.mxu0 0
      %1489 = vmatprep.subr.bf16.mxu0 0
      %1490 = vmatpush1.bf16.msra.mxu0 %v1432
      %1491 = vmatprep.subr.bf16.mxu0 0
      %1492 = vmatpush2.bf16.msra.mxu0 0
      %1493 = vmatprep.subr.bf16.mxu0 0
      %1494 = vmatpush2.bf16.msra.mxu0 0
      %1495 = vmatprep.subr.bf16.mxu0 0
      %1496 = vmatpush2.bf16.msra.mxu0 0
      %1497 = vmatprep.subr.bf16.mxu0 0
      %1498 = vmatpush2.bf16.msra.mxu0 0
      %1499 = vmatprep.subr.bf16.mxu0 0
      %1500 = vmatpush2.bf16.msra.mxu0 0
      %1501 = vmatprep.subr.bf16.mxu0 0
      %1502 = vmatpush2.bf16.msra.mxu0 0
      %1503 = vmatprep.subr.bf16.mxu0 0
      %1504 = vmatpush2.bf16.msra.mxu0 0
      %1505 = vmatprep.subr.bf16.mxu0 0
      %1506 = vmatpush2.bf16.msra.mxu0 0
      %1507 = vmatprep.mubr.bf16.mxu0 0
      %1508 = vmatmul.mubr.bf16.gmra.mxu0 %v1423
      %v1509 = vpop.f32.mrf.mxu0
      %v1510 = vadd.f32 0.0, %v1509
      %v1511 = vpop.f32.mrf.mxu0
      %v1512 = vpop.f32.mrf.mxu0
      %v1513 = vpop.f32.mrf.mxu0
      %1514 = vdwg.mxu0
      %v1515 = vadd.f32 %v1390, %v1469
      %v1516 = vadd.f32 %v1391, %v1471
      %v1517 = vadd.f32 %v1392, %v1510
      %v1518 = vld [vmem:[%s165] sm:$0x3f]
      %s1519 = scalar_lea.vmem %s0, 44
      %v1520 = vld [vmem:[%s1519] sm:$0xf]
      %v1522 = vcombine.high %v1518, %v1518
      %v1524 = vunpack.c.l.s4 1983009808
      %v1525 = vunpack.c.0.s8 %v1524
      %v1526 = vlaneseq
      %v1527 = vshrl.u32 %v1526, 7
      %v1528 = vsub.s32 %v1525, %v1527
      %v1529 = vrot.slane %v1518, %v1528
      %v1531 = vunpack.c.l.s4 1983009808
      %v1532 = vunpack.c.0.s8 %v1531
      %v1533 = vlaneseq
      %v1534 = vshrl.u32 %v1533, 7
      %v1535 = vsub.s32 %v1532, %v1534
      %v1536 = vrot.slane %v1522, %v1535
      %v1537 = vcombine.high %v1529, %v1529
      %1538 = vrot.lane.b32.xlu0 %v1529, 102
      %v1539 = vpop.permute.xlu0 %1538
      %1540 = vrot.lane.b32.xlu0 %v1537, 102
      %v1541 = vpop.permute.xlu0 %1540
      %1542 = vrot.lane.b32.xlu0 %v1536, 102
      %v1543 = vpop.permute.xlu0 %1542
      %vm1544 = vcmask 834560
      %v1545 = vsel %vm1544, %v1539, %v1541
      %v1546 = vsel %vm1544, %v1541, %v1543
      %v1548 = vsel %vm202, %v1520, 0
      %v1551 = vand.u32 %v1545, %v209
      %v1554 = vand.u32 %v1546, %v209
      %v1557 = vand.u32 %v1543, %v209
      %1559 = vmatprep.subr.bf16.mxu0 0
      %1560 = vmatpush1.bf16.msra.mxu0 0
      %1561 = vmatprep.subr.bf16.mxu0 0
      %1562 = vmatpush1.bf16.msra.mxu0 0
      %1563 = vmatprep.subr.bf16.mxu0 0
      %1564 = vmatpush1.bf16.msra.mxu0 0
      %1565 = vmatprep.subr.bf16.mxu0 0
      %1566 = vmatpush1.bf16.msra.mxu0 0
      %1567 = vmatprep.subr.bf16.mxu0 0
      %1568 = vmatpush1.bf16.msra.mxu0 0
      %1569 = vmatprep.subr.bf16.mxu0 0
      %1570 = vmatpush1.bf16.msra.mxu0 0
      %1571 = vmatprep.subr.bf16.mxu0 0
      %1572 = vmatpush1.bf16.msra.mxu0 0
      %1573 = vmatprep.subr.bf16.mxu0 %v1554
      %1574 = vmatpush1.bf16.msra.mxu0 %v1551
      %1575 = vmatprep.subr.bf16.mxu0 0
      %1576 = vmatpush2.bf16.msra.mxu0 0
      %1577 = vmatprep.subr.bf16.mxu0 0
      %1578 = vmatpush2.bf16.msra.mxu0 0
      %1579 = vmatprep.subr.bf16.mxu0 0
      %1580 = vmatpush2.bf16.msra.mxu0 0
      %1581 = vmatprep.subr.bf16.mxu0 0
      %1582 = vmatpush2.bf16.msra.mxu0 0
      %1583 = vmatprep.subr.bf16.mxu0 0
      %1584 = vmatpush2.bf16.msra.mxu0 0
      %1585 = vmatprep.subr.bf16.mxu0 0
      %1586 = vmatpush2.bf16.msra.mxu0 0
      %1587 = vmatprep.subr.bf16.mxu0 0
      %1588 = vmatpush2.bf16.msra.mxu0 0
      %1589 = vmatprep.subr.bf16.mxu0 0
      %1590 = vmatpush2.bf16.msra.mxu0 0
      %1591 = vmatprep.mubr.bf16.mxu0 0
      %1592 = vmatmul.mubr.bf16.gmra.mxu0 %v1548
      %v1593 = vpop.f32.mrf.mxu0
      %v1594 = vadd.f32 0.0, %v1593
      %v1595 = vpop.f32.mrf.mxu0
      %v1596 = vadd.f32 0.0, %v1595
      %v1597 = vpop.f32.mrf.mxu0
      %v1598 = vpop.f32.mrf.mxu0
      %1599 = vdwg.mxu0
      %1600 = vmatprep.subr.bf16.mxu0 0
      %1601 = vmatpush1.bf16.msra.mxu0 0
      %1602 = vmatprep.subr.bf16.mxu0 0
      %1603 = vmatpush1.bf16.msra.mxu0 0
      %1604 = vmatprep.subr.bf16.mxu0 0
      %1605 = vmatpush1.bf16.msra.mxu0 0
      %1606 = vmatprep.subr.bf16.mxu0 0
      %1607 = vmatpush1.bf16.msra.mxu0 0
      %1608 = vmatprep.subr.bf16.mxu0 0
      %1609 = vmatpush1.bf16.msra.mxu0 0
      %1610 = vmatprep.subr.bf16.mxu0 0
      %1611 = vmatpush1.bf16.msra.mxu0 0
      %1612 = vmatprep.subr.bf16.mxu0 0
      %1613 = vmatpush1.bf16.msra.mxu0 0
      %1614 = vmatprep.subr.bf16.mxu0 0
      %1615 = vmatpush1.bf16.msra.mxu0 %v1557
      %1616 = vmatprep.subr.bf16.mxu0 0
      %1617 = vmatpush2.bf16.msra.mxu0 0
      %1618 = vmatprep.subr.bf16.mxu0 0
      %1619 = vmatpush2.bf16.msra.mxu0 0
      %1620 = vmatprep.subr.bf16.mxu0 0
      %1621 = vmatpush2.bf16.msra.mxu0 0
      %1622 = vmatprep.subr.bf16.mxu0 0
      %1623 = vmatpush2.bf16.msra.mxu0 0
      %1624 = vmatprep.subr.bf16.mxu0 0
      %1625 = vmatpush2.bf16.msra.mxu0 0
      %1626 = vmatprep.subr.bf16.mxu0 0
      %1627 = vmatpush2.bf16.msra.mxu0 0
      %1628 = vmatprep.subr.bf16.mxu0 0
      %1629 = vmatpush2.bf16.msra.mxu0 0
      %1630 = vmatprep.subr.bf16.mxu0 0
      %1631 = vmatpush2.bf16.msra.mxu0 0
      %1632 = vmatprep.mubr.bf16.mxu0 0
      %1633 = vmatmul.mubr.bf16.gmra.mxu0 %v1548
      %v1634 = vpop.f32.mrf.mxu0
      %v1635 = vadd.f32 0.0, %v1634
      %v1636 = vpop.f32.mrf.mxu0
      %v1637 = vpop.f32.mrf.mxu0
      %v1638 = vpop.f32.mrf.mxu0
      %1639 = vdwg.mxu0
      %v1640 = vadd.f32 %v1515, %v1594
      %v1641 = vadd.f32 %v1516, %v1596
      %v1642 = vadd.f32 %v1517, %v1635
      %v1643 = vld [vmem:[%s165] sm:$0x3f]
      %s1644 = scalar_lea.vmem %s0, 48
      %v1645 = vld [vmem:[%s1644] sm:$0xf]
      %v1647 = vcombine.high %v1643, %v1643
      %v1649 = vunpack.c.l.s4 1983009808
      %v1650 = vunpack.c.0.s8 %v1649
      %v1651 = vlaneseq
      %v1652 = vshrl.u32 %v1651, 7
      %v1653 = vsub.s32 %v1650, %v1652
      %v1654 = vrot.slane %v1643, %v1653
      %v1656 = vunpack.c.l.s4 1983009808
      %v1657 = vunpack.c.0.s8 %v1656
      %v1658 = vlaneseq
      %v1659 = vshrl.u32 %v1658, 7
      %v1660 = vsub.s32 %v1657, %v1659
      %v1661 = vrot.slane %v1647, %v1660
      %v1662 = vcombine.high %v1654, %v1654
      %1663 = vrot.lane.b32.xlu0 %v1654, 101
      %v1664 = vpop.permute.xlu0 %1663
      %1665 = vrot.lane.b32.xlu0 %v1662, 101
      %v1666 = vpop.permute.xlu0 %1665
      %1667 = vrot.lane.b32.xlu0 %v1661, 101
      %v1668 = vpop.permute.xlu0 %1667
      %vm1669 = vcmask 826368
      %v1670 = vsel %vm1669, %v1664, %v1666
      %v1671 = vsel %vm1669, %v1666, %v1668
      %v1673 = vsel %vm202, %v1645, 0
      %v1676 = vand.u32 %v1670, %v209
      %v1679 = vand.u32 %v1671, %v209
      %v1682 = vand.u32 %v1668, %v209
      %1684 = vmatprep.subr.bf16.mxu0 0
      %1685 = vmatpush1.bf16.msra.mxu0 0
      %1686 = vmatprep.subr.bf16.mxu0 0
      %1687 = vmatpush1.bf16.msra.mxu0 0
      %1688 = vmatprep.subr.bf16.mxu0 0
      %1689 = vmatpush1.bf16.msra.mxu0 0
      %1690 = vmatprep.subr.bf16.mxu0 0
      %1691 = vmatpush1.bf16.msra.mxu0 0
      %1692 = vmatprep.subr.bf16.mxu0 0
      %1693 = vmatpush1.bf16.msra.mxu0 0
      %1694 = vmatprep.subr.bf16.mxu0 0
      %1695 = vmatpush1.bf16.msra.mxu0 0
      %1696 = vmatprep.subr.bf16.mxu0 0
      %1697 = vmatpush1.bf16.msra.mxu0 0
      %1698 = vmatprep.subr.bf16.mxu0 %v1679
      %1699 = vmatpush1.bf16.msra.mxu0 %v1676
      %1700 = vmatprep.subr.bf16.mxu0 0
      %1701 = vmatpush2.bf16.msra.mxu0 0
      %1702 = vmatprep.subr.bf16.mxu0 0
      %1703 = vmatpush2.bf16.msra.mxu0 0
      %1704 = vmatprep.subr.bf16.mxu0 0
      %1705 = vmatpush2.bf16.msra.mxu0 0
      %1706 = vmatprep.subr.bf16.mxu0 0
      %1707 = vmatpush2.bf16.msra.mxu0 0
      %1708 = vmatprep.subr.bf16.mxu0 0
      %1709 = vmatpush2.bf16.msra.mxu0 0
      %1710 = vmatprep.subr.bf16.mxu0 0
      %1711 = vmatpush2.bf16.msra.mxu0 0
      %1712 = vmatprep.subr.bf16.mxu0 0
      %1713 = vmatpush2.bf16.msra.mxu0 0
      %1714 = vmatprep.subr.bf16.mxu0 0
      %1715 = vmatpush2.bf16.msra.mxu0 0
      %1716 = vmatprep.mubr.bf16.mxu0 0
      %1717 = vmatmul.mubr.bf16.gmra.mxu0 %v1673
      %v1718 = vpop.f32.mrf.mxu0
      %v1719 = vadd.f32 0.0, %v1718
      %v1720 = vpop.f32.mrf.mxu0
      %v1721 = vadd.f32 0.0, %v1720
      %v1722 = vpop.f32.mrf.mxu0
      %v1723 = vpop.f32.mrf.mxu0
      %1724 = vdwg.mxu0
      %1725 = vmatprep.subr.bf16.mxu0 0
      %1726 = vmatpush1.bf16.msra.mxu0 0
      %1727 = vmatprep.subr.bf16.mxu0 0
      %1728 = vmatpush1.bf16.msra.mxu0 0
      %1729 = vmatprep.subr.bf16.mxu0 0
      %1730 = vmatpush1.bf16.msra.mxu0 0
      %1731 = vmatprep.subr.bf16.mxu0 0
      %1732 = vmatpush1.bf16.msra.mxu0 0
      %1733 = vmatprep.subr.bf16.mxu0 0
      %1734 = vmatpush1.bf16.msra.mxu0 0
      %1735 = vmatprep.subr.bf16.mxu0 0
      %1736 = vmatpush1.bf16.msra.mxu0 0
      %1737 = vmatprep.subr.bf16.mxu0 0
      %1738 = vmatpush1.bf16.msra.mxu0 0
      %1739 = vmatprep.subr.bf16.mxu0 0
      %1740 = vmatpush1.bf16.msra.mxu0 %v1682
      %1741 = vmatprep.subr.bf16.mxu0 0
      %1742 = vmatpush2.bf16.msra.mxu0 0
      %1743 = vmatprep.subr.bf16.mxu0 0
      %1744 = vmatpush2.bf16.msra.mxu0 0
      %1745 = vmatprep.subr.bf16.mxu0 0
      %1746 = vmatpush2.bf16.msra.mxu0 0
      %1747 = vmatprep.subr.bf16.mxu0 0
      %1748 = vmatpush2.bf16.msra.mxu0 0
      %1749 = vmatprep.subr.bf16.mxu0 0
      %1750 = vmatpush2.bf16.msra.mxu0 0
      %1751 = vmatprep.subr.bf16.mxu0 0
      %1752 = vmatpush2.bf16.msra.mxu0 0
      %1753 = vmatprep.subr.bf16.mxu0 0
      %1754 = vmatpush2.bf16.msra.mxu0 0
      %1755 = vmatprep.subr.bf16.mxu0 0
      %1756 = vmatpush2.bf16.msra.mxu0 0
      %1757 = vmatprep.mubr.bf16.mxu0 0
      %1758 = vmatmul.mubr.bf16.gmra.mxu0 %v1673
      %v1759 = vpop.f32.mrf.mxu0
      %v1760 = vadd.f32 0.0, %v1759
      %v1761 = vpop.f32.mrf.mxu0
      %v1762 = vpop.f32.mrf.mxu0
      %v1763 = vpop.f32.mrf.mxu0
      %1764 = vdwg.mxu0
      %v1765 = vadd.f32 %v1640, %v1719
      %v1766 = vadd.f32 %v1641, %v1721
      %v1767 = vadd.f32 %v1642, %v1760
      %v1768 = vld [vmem:[%s165] sm:$0x3f]
      %s1769 = scalar_lea.vmem %s0, 52
      %v1770 = vld [vmem:[%s1769] sm:$0xf]
      %v1772 = vcombine.high %v1768, %v1768
      %v1774 = vunpack.c.l.s4 1983009808
      %v1775 = vunpack.c.0.s8 %v1774
      %v1776 = vlaneseq
      %v1777 = vshrl.u32 %v1776, 7
      %v1778 = vsub.s32 %v1775, %v1777
      %v1779 = vrot.slane %v1768, %v1778
      %v1781 = vunpack.c.l.s4 1983009808
      %v1782 = vunpack.c.0.s8 %v1781
      %v1783 = vlaneseq
      %v1784 = vshrl.u32 %v1783, 7
      %v1785 = vsub.s32 %v1782, %v1784
      %v1786 = vrot.slane %v1772, %v1785
      %v1787 = vcombine.high %v1779, %v1779
      %1788 = vrot.lane.b32.xlu0 %v1779, 100
      %v1789 = vpop.permute.xlu0 %1788
      %1790 = vrot.lane.b32.xlu0 %v1787, 100
      %v1791 = vpop.permute.xlu0 %1790
      %1792 = vrot.lane.b32.xlu0 %v1786, 100
      %v1793 = vpop.permute.xlu0 %1792
      %vm1794 = vcmask 818176
      %v1795 = vsel %vm1794, %v1789, %v1791
      %v1796 = vsel %vm1794, %v1791, %v1793
      %v1798 = vsel %vm202, %v1770, 0
      %v1801 = vand.u32 %v1795, %v209
      %v1804 = vand.u32 %v1796, %v209
      %v1807 = vand.u32 %v1793, %v209
      %1809 = vmatprep.subr.bf16.mxu0 0
      %1810 = vmatpush1.bf16.msra.mxu0 0
      %1811 = vmatprep.subr.bf16.mxu0 0
      %1812 = vmatpush1.bf16.msra.mxu0 0
      %1813 = vmatprep.subr.bf16.mxu0 0
      %1814 = vmatpush1.bf16.msra.mxu0 0
      %1815 = vmatprep.subr.bf16.mxu0 0
      %1816 = vmatpush1.bf16.msra.mxu0 0
      %1817 = vmatprep.subr.bf16.mxu0 0
      %1818 = vmatpush1.bf16.msra.mxu0 0
      %1819 = vmatprep.subr.bf16.mxu0 0
      %1820 = vmatpush1.bf16.msra.mxu0 0
      %1821 = vmatprep.subr.bf16.mxu0 0
      %1822 = vmatpush1.bf16.msra.mxu0 0
      %1823 = vmatprep.subr.bf16.mxu0 %v1804
      %1824 = vmatpush1.bf16.msra.mxu0 %v1801
      %1825 = vmatprep.subr.bf16.mxu0 0
      %1826 = vmatpush2.bf16.msra.mxu0 0
      %1827 = vmatprep.subr.bf16.mxu0 0
      %1828 = vmatpush2.bf16.msra.mxu0 0
      %1829 = vmatprep.subr.bf16.mxu0 0
      %1830 = vmatpush2.bf16.msra.mxu0 0
      %1831 = vmatprep.subr.bf16.mxu0 0
      %1832 = vmatpush2.bf16.msra.mxu0 0
      %1833 = vmatprep.subr.bf16.mxu0 0
      %1834 = vmatpush2.bf16.msra.mxu0 0
      %1835 = vmatprep.subr.bf16.mxu0 0
      %1836 = vmatpush2.bf16.msra.mxu0 0
      %1837 = vmatprep.subr.bf16.mxu0 0
      %1838 = vmatpush2.bf16.msra.mxu0 0
      %1839 = vmatprep.subr.bf16.mxu0 0
      %1840 = vmatpush2.bf16.msra.mxu0 0
      %1841 = vmatprep.mubr.bf16.mxu0 0
      %1842 = vmatmul.mubr.bf16.gmra.mxu0 %v1798
      %v1843 = vpop.f32.mrf.mxu0
      %v1844 = vadd.f32 0.0, %v1843
      %v1845 = vpop.f32.mrf.mxu0
      %v1846 = vadd.f32 0.0, %v1845
      %v1847 = vpop.f32.mrf.mxu0
      %v1848 = vpop.f32.mrf.mxu0
      %1849 = vdwg.mxu0
      %1850 = vmatprep.subr.bf16.mxu0 0
      %1851 = vmatpush1.bf16.msra.mxu0 0
      %1852 = vmatprep.subr.bf16.mxu0 0
      %1853 = vmatpush1.bf16.msra.mxu0 0
      %1854 = vmatprep.subr.bf16.mxu0 0
      %1855 = vmatpush1.bf16.msra.mxu0 0
      %1856 = vmatprep.subr.bf16.mxu0 0
      %1857 = vmatpush1.bf16.msra.mxu0 0
      %1858 = vmatprep.subr.bf16.mxu0 0
      %1859 = vmatpush1.bf16.msra.mxu0 0
      %1860 = vmatprep.subr.bf16.mxu0 0
      %1861 = vmatpush1.bf16.msra.mxu0 0
      %1862 = vmatprep.subr.bf16.mxu0 0
      %1863 = vmatpush1.bf16.msra.mxu0 0
      %1864 = vmatprep.subr.bf16.mxu0 0
      %1865 = vmatpush1.bf16.msra.mxu0 %v1807
      %1866 = vmatprep.subr.bf16.mxu0 0
      %1867 = vmatpush2.bf16.msra.mxu0 0
      %1868 = vmatprep.subr.bf16.mxu0 0
      %1869 = vmatpush2.bf16.msra.mxu0 0
      %1870 = vmatprep.subr.bf16.mxu0 0
      %1871 = vmatpush2.bf16.msra.mxu0 0
      %1872 = vmatprep.subr.bf16.mxu0 0
      %1873 = vmatpush2.bf16.msra.mxu0 0
      %1874 = vmatprep.subr.bf16.mxu0 0
      %1875 = vmatpush2.bf16.msra.mxu0 0
      %1876 = vmatprep.subr.bf16.mxu0 0
      %1877 = vmatpush2.bf16.msra.mxu0 0
      %1878 = vmatprep.subr.bf16.mxu0 0
      %1879 = vmatpush2.bf16.msra.mxu0 0
      %1880 = vmatprep.subr.bf16.mxu0 0
      %1881 = vmatpush2.bf16.msra.mxu0 0
      %1882 = vmatprep.mubr.bf16.mxu0 0
      %1883 = vmatmul.mubr.bf16.gmra.mxu0 %v1798
      %v1884 = vpop.f32.mrf.mxu0
      %v1885 = vadd.f32 0.0, %v1884
      %v1886 = vpop.f32.mrf.mxu0
      %v1887 = vpop.f32.mrf.mxu0
      %v1888 = vpop.f32.mrf.mxu0
      %1889 = vdwg.mxu0
      %v1890 = vadd.f32 %v1765, %v1844
      %v1891 = vadd.f32 %v1766, %v1846
      %v1892 = vadd.f32 %v1767, %v1885
      %v1893 = vld [vmem:[%s165] sm:$0xff]
      %s1894 = scalar_lea.vmem %s0, 56
      %v1895 = vld [vmem:[%s1894] sm:$0xf]
      %v1897 = vcombine.high %v1893, %v1893
      %v1899 = vunpack.c.l.s4 1983009808
      %v1900 = vunpack.c.0.s8 %v1899
      %v1901 = vlaneseq
      %v1902 = vshrl.u32 %v1901, 7
      %v1903 = vsub.s32 %v1900, %v1902
      %v1904 = vrot.slane %v1893, %v1903
      %v1906 = vunpack.c.l.s4 1983009808
      %v1907 = vunpack.c.0.s8 %v1906
      %v1908 = vlaneseq
      %v1909 = vshrl.u32 %v1908, 7
      %v1910 = vsub.s32 %v1907, %v1909
      %v1911 = vrot.slane %v1897, %v1910
      %v1912 = vcombine.high %v1904, %v1904
      %v1913 = vcombine.high %v1911, %v1911
      %1914 = vrot.lane.b32.xlu0 %v1904, 84
      %v1915 = vpop.permute.xlu0 %1914
      %1916 = vrot.lane.b32.xlu0 %v1912, 84
      %v1917 = vpop.permute.xlu0 %1916
      %1918 = vrot.lane.b32.xlu0 %v1911, 84
      %v1919 = vpop.permute.xlu0 %1918
      %1920 = vrot.lane.b32.xlu0 %v1913, 84
      %v1921 = vpop.permute.xlu0 %1920
      %vm1922 = vcmask 687104
      %v1923 = vsel %vm1922, %v1915, %v1917
      %v1924 = vsel %vm1922, %v1917, %v1919
      %v1925 = vsel %vm1922, %v1919, %v1921
      %v1927 = vsel %vm202, %v1895, 0
      %v1930 = vand.u32 %v1923, %v209
      %v1933 = vand.u32 %v1924, %v209
      %v1936 = vand.u32 %v1925, %v209
      %1938 = vmatprep.subr.bf16.mxu0 0
      %1939 = vmatpush1.bf16.msra.mxu0 0
      %1940 = vmatprep.subr.bf16.mxu0 0
      %1941 = vmatpush1.bf16.msra.mxu0 0
      %1942 = vmatprep.subr.bf16.mxu0 0
      %1943 = vmatpush1.bf16.msra.mxu0 0
      %1944 = vmatprep.subr.bf16.mxu0 0
      %1945 = vmatpush1.bf16.msra.mxu0 0
      %1946 = vmatprep.subr.bf16.mxu0 0
      %1947 = vmatpush1.bf16.msra.mxu0 0
      %1948 = vmatprep.subr.bf16.mxu0 0
      %1949 = vmatpush1.bf16.msra.mxu0 0
      %1950 = vmatprep.subr.bf16.mxu0 0
      %1951 = vmatpush1.bf16.msra.mxu0 0
      %1952 = vmatprep.subr.bf16.mxu0 %v1933
      %1953 = vmatpush1.bf16.msra.mxu0 %v1930
      %1954 = vmatprep.subr.bf16.mxu0 0
      %1955 = vmatpush2.bf16.msra.mxu0 0
      %1956 = vmatprep.subr.bf16.mxu0 0
      %1957 = vmatpush2.bf16.msra.mxu0 0
      %1958 = vmatprep.subr.bf16.mxu0 0
      %1959 = vmatpush2.bf16.msra.mxu0 0
      %1960 = vmatprep.subr.bf16.mxu0 0
      %1961 = vmatpush2.bf16.msra.mxu0 0
      %1962 = vmatprep.subr.bf16.mxu0 0
      %1963 = vmatpush2.bf16.msra.mxu0 0
      %1964 = vmatprep.subr.bf16.mxu0 0
      %1965 = vmatpush2.bf16.msra.mxu0 0
      %1966 = vmatprep.subr.bf16.mxu0 0
      %1967 = vmatpush2.bf16.msra.mxu0 0
      %1968 = vmatprep.subr.bf16.mxu0 0
      %1969 = vmatpush2.bf16.msra.mxu0 0
      %1970 = vmatprep.mubr.bf16.mxu0 0
      %1971 = vmatmul.mubr.bf16.gmra.mxu0 %v1927
      %v1972 = vpop.f32.mrf.mxu0
      %v1973 = vadd.f32 0.0, %v1972
      %v1974 = vpop.f32.mrf.mxu0
      %v1975 = vadd.f32 0.0, %v1974
      %v1976 = vpop.f32.mrf.mxu0
      %v1977 = vpop.f32.mrf.mxu0
      %1978 = vdwg.mxu0
      %1979 = vmatprep.subr.bf16.mxu0 0
      %1980 = vmatpush1.bf16.msra.mxu0 0
      %1981 = vmatprep.subr.bf16.mxu0 0
      %1982 = vmatpush1.bf16.msra.mxu0 0
      %1983 = vmatprep.subr.bf16.mxu0 0
      %1984 = vmatpush1.bf16.msra.mxu0 0
      %1985 = vmatprep.subr.bf16.mxu0 0
      %1986 = vmatpush1.bf16.msra.mxu0 0
      %1987 = vmatprep.subr.bf16.mxu0 0
      %1988 = vmatpush1.bf16.msra.mxu0 0
      %1989 = vmatprep.subr.bf16.mxu0 0
      %1990 = vmatpush1.bf16.msra.mxu0 0
      %1991 = vmatprep.subr.bf16.mxu0 0
      %1992 = vmatpush1.bf16.msra.mxu0 0
      %1993 = vmatprep.subr.bf16.mxu0 0
      %1994 = vmatpush1.bf16.msra.mxu0 %v1936
      %1995 = vmatprep.subr.bf16.mxu0 0
      %1996 = vmatpush2.bf16.msra.mxu0 0
      %1997 = vmatprep.subr.bf16.mxu0 0
      %1998 = vmatpush2.bf16.msra.mxu0 0
      %1999 = vmatprep.subr.bf16.mxu0 0
      %2000 = vmatpush2.bf16.msra.mxu0 0
      %2001 = vmatprep.subr.bf16.mxu0 0
      %2002 = vmatpush2.bf16.msra.mxu0 0
      %2003 = vmatprep.subr.bf16.mxu0 0
      %2004 = vmatpush2.bf16.msra.mxu0 0
      %2005 = vmatprep.subr.bf16.mxu0 0
      %2006 = vmatpush2.bf16.msra.mxu0 0
      %2007 = vmatprep.subr.bf16.mxu0 0
      %2008 = vmatpush2.bf16.msra.mxu0 0
      %2009 = vmatprep.subr.bf16.mxu0 0
      %2010 = vmatpush2.bf16.msra.mxu0 0
      %2011 = vmatprep.mubr.bf16.mxu0 0
      %2012 = vmatmul.mubr.bf16.gmra.mxu0 %v1927
      %v2013 = vpop.f32.mrf.mxu0
      %v2014 = vadd.f32 0.0, %v2013
      %v2015 = vpop.f32.mrf.mxu0
      %v2016 = vpop.f32.mrf.mxu0
      %v2017 = vpop.f32.mrf.mxu0
      %2018 = vdwg.mxu0
      %v2019 = vadd.f32 %v1890, %v1973
      %v2020 = vadd.f32 %v1891, %v1975
      %v2021 = vadd.f32 %v1892, %v2014
      %v2022 = vld [vmem:[%s165] sm:$0xff]
      %s2023 = scalar_lea.vmem %s0, 60
      %v2024 = vld [vmem:[%s2023] sm:$0xf]
      %v2026 = vcombine.high %v2022, %v2022
      %v2028 = vunpack.c.l.s4 1983009808
      %v2029 = vunpack.c.0.s8 %v2028
      %v2030 = vlaneseq
      %v2031 = vshrl.u32 %v2030, 7
      %v2032 = vsub.s32 %v2029, %v2031
      %v2033 = vrot.slane %v2022, %v2032
      %v2035 = vunpack.c.l.s4 1983009808
      %v2036 = vunpack.c.0.s8 %v2035
      %v2037 = vlaneseq
      %v2038 = vshrl.u32 %v2037, 7
      %v2039 = vsub.s32 %v2036, %v2038
      %v2040 = vrot.slane %v2026, %v2039
      %v2041 = vcombine.high %v2033, %v2033
      %v2042 = vcombine.high %v2040, %v2040
      %2043 = vrot.lane.b32.xlu0 %v2033, 83
      %v2044 = vpop.permute.xlu0 %2043
      %2045 = vrot.lane.b32.xlu0 %v2041, 83
      %v2046 = vpop.permute.xlu0 %2045
      %2047 = vrot.lane.b32.xlu0 %v2040, 83
      %v2048 = vpop.permute.xlu0 %2047
      %2049 = vrot.lane.b32.xlu0 %v2042, 83
      %v2050 = vpop.permute.xlu0 %2049
      %vm2051 = vcmask 678912
      %v2052 = vsel %vm2051, %v2044, %v2046
      %v2053 = vsel %vm2051, %v2046, %v2048
      %v2054 = vsel %vm2051, %v2048, %v2050
      %v2056 = vsel %vm202, %v2024, 0
      %v2059 = vand.u32 %v2052, %v209
      %v2062 = vand.u32 %v2053, %v209
      %v2065 = vand.u32 %v2054, %v209
      %2067 = vmatprep.subr.bf16.mxu0 0
      %2068 = vmatpush1.bf16.msra.mxu0 0
      %2069 = vmatprep.subr.bf16.mxu0 0
      %2070 = vmatpush1.bf16.msra.mxu0 0
      %2071 = vmatprep.subr.bf16.mxu0 0
      %2072 = vmatpush1.bf16.msra.mxu0 0
      %2073 = vmatprep.subr.bf16.mxu0 0
      %2074 = vmatpush1.bf16.msra.mxu0 0
      %2075 = vmatprep.subr.bf16.mxu0 0
      %2076 = vmatpush1.bf16.msra.mxu0 0
      %2077 = vmatprep.subr.bf16.mxu0 0
      %2078 = vmatpush1.bf16.msra.mxu0 0
      %2079 = vmatprep.subr.bf16.mxu0 0
      %2080 = vmatpush1.bf16.msra.mxu0 0
      %2081 = vmatprep.subr.bf16.mxu0 %v2062
      %2082 = vmatpush1.bf16.msra.mxu0 %v2059
      %2083 = vmatprep.subr.bf16.mxu0 0
      %2084 = vmatpush2.bf16.msra.mxu0 0
      %2085 = vmatprep.subr.bf16.mxu0 0
      %2086 = vmatpush2.bf16.msra.mxu0 0
      %2087 = vmatprep.subr.bf16.mxu0 0
      %2088 = vmatpush2.bf16.msra.mxu0 0
      %2089 = vmatprep.subr.bf16.mxu0 0
      %2090 = vmatpush2.bf16.msra.mxu0 0
      %2091 = vmatprep.subr.bf16.mxu0 0
      %2092 = vmatpush2.bf16.msra.mxu0 0
      %2093 = vmatprep.subr.bf16.mxu0 0
      %2094 = vmatpush2.bf16.msra.mxu0 0
      %2095 = vmatprep.subr.bf16.mxu0 0
      %2096 = vmatpush2.bf16.msra.mxu0 0
      %2097 = vmatprep.subr.bf16.mxu0 0
      %2098 = vmatpush2.bf16.msra.mxu0 0
      %2099 = vmatprep.mubr.bf16.mxu0 0
      %2100 = vmatmul.mubr.bf16.gmra.mxu0 %v2056
      %v2101 = vpop.f32.mrf.mxu0
      %v2102 = vadd.f32 0.0, %v2101
      %v2103 = vpop.f32.mrf.mxu0
      %v2104 = vadd.f32 0.0, %v2103
      %v2105 = vpop.f32.mrf.mxu0
      %v2106 = vpop.f32.mrf.mxu0
      %2107 = vdwg.mxu0
      %2108 = vmatprep.subr.bf16.mxu0 0
      %2109 = vmatpush1.bf16.msra.mxu0 0
      %2110 = vmatprep.subr.bf16.mxu0 0
      %2111 = vmatpush1.bf16.msra.mxu0 0
      %2112 = vmatprep.subr.bf16.mxu0 0
      %2113 = vmatpush1.bf16.msra.mxu0 0
      %2114 = vmatprep.subr.bf16.mxu0 0
      %2115 = vmatpush1.bf16.msra.mxu0 0
      %2116 = vmatprep.subr.bf16.mxu0 0
      %2117 = vmatpush1.bf16.msra.mxu0 0
      %2118 = vmatprep.subr.bf16.mxu0 0
      %2119 = vmatpush1.bf16.msra.mxu0 0
      %2120 = vmatprep.subr.bf16.mxu0 0
      %2121 = vmatpush1.bf16.msra.mxu0 0
      %2122 = vmatprep.subr.bf16.mxu0 0
      %2123 = vmatpush1.bf16.msra.mxu0 %v2065
      %2124 = vmatprep.subr.bf16.mxu0 0
      %2125 = vmatpush2.bf16.msra.mxu0 0
      %2126 = vmatprep.subr.bf16.mxu0 0
      %2127 = vmatpush2.bf16.msra.mxu0 0
      %2128 = vmatprep.subr.bf16.mxu0 0
      %2129 = vmatpush2.bf16.msra.mxu0 0
      %2130 = vmatprep.subr.bf16.mxu0 0
      %2131 = vmatpush2.bf16.msra.mxu0 0
      %2132 = vmatprep.subr.bf16.mxu0 0
      %2133 = vmatpush2.bf16.msra.mxu0 0
      %2134 = vmatprep.subr.bf16.mxu0 0
      %2135 = vmatpush2.bf16.msra.mxu0 0
      %2136 = vmatprep.subr.bf16.mxu0 0
      %2137 = vmatpush2.bf16.msra.mxu0 0
      %2138 = vmatprep.subr.bf16.mxu0 0
      %2139 = vmatpush2.bf16.msra.mxu0 0
      %2140 = vmatprep.mubr.bf16.mxu0 0
      %2141 = vmatmul.mubr.bf16.gmra.mxu0 %v2056
      %v2142 = vpop.f32.mrf.mxu0
      %v2143 = vadd.f32 0.0, %v2142
      %v2144 = vpop.f32.mrf.mxu0
      %v2145 = vpop.f32.mrf.mxu0
      %v2146 = vpop.f32.mrf.mxu0
      %2147 = vdwg.mxu0
      %v2148 = vadd.f32 %v2019, %v2102
      %v2149 = vadd.f32 %v2020, %v2104
      %v2150 = vadd.f32 %v2021, %v2143
      %v2151 = vld [vmem:[%s165] sm:$0xff]
      %s2152 = scalar_lea.vmem %s0, 64
      %v2153 = vld [vmem:[%s2152] sm:$0xf]
      %v2155 = vcombine.high %v2151, %v2151
      %v2157 = vunpack.c.l.s4 1983009808
      %v2158 = vunpack.c.0.s8 %v2157
      %v2159 = vlaneseq
      %v2160 = vshrl.u32 %v2159, 7
      %v2161 = vsub.s32 %v2158, %v2160
      %v2162 = vrot.slane %v2151, %v2161
      %v2164 = vunpack.c.l.s4 1983009808
      %v2165 = vunpack.c.0.s8 %v2164
      %v2166 = vlaneseq
      %v2167 = vshrl.u32 %v2166, 7
      %v2168 = vsub.s32 %v2165, %v2167
      %v2169 = vrot.slane %v2155, %v2168
      %v2170 = vcombine.high %v2162, %v2162
      %v2171 = vcombine.high %v2169, %v2169
      %2172 = vrot.lane.b32.xlu0 %v2162, 82
      %v2173 = vpop.permute.xlu0 %2172
      %2174 = vrot.lane.b32.xlu0 %v2170, 82
      %v2175 = vpop.permute.xlu0 %2174
      %2176 = vrot.lane.b32.xlu0 %v2169, 82
      %v2177 = vpop.permute.xlu0 %2176
      %2178 = vrot.lane.b32.xlu0 %v2171, 82
      %v2179 = vpop.permute.xlu0 %2178
      %vm2180 = vcmask 670720
      %v2181 = vsel %vm2180, %v2173, %v2175
      %v2182 = vsel %vm2180, %v2175, %v2177
      %v2183 = vsel %vm2180, %v2177, %v2179
      %v2185 = vsel %vm202, %v2153, 0
      %v2188 = vand.u32 %v2181, %v209
      %v2191 = vand.u32 %v2182, %v209
      %v2194 = vand.u32 %v2183, %v209
      %2196 = vmatprep.subr.bf16.mxu0 0
      %2197 = vmatpush1.bf16.msra.mxu0 0
      %2198 = vmatprep.subr.bf16.mxu0 0
      %2199 = vmatpush1.bf16.msra.mxu0 0
      %2200 = vmatprep.subr.bf16.mxu0 0
      %2201 = vmatpush1.bf16.msra.mxu0 0
      %2202 = vmatprep.subr.bf16.mxu0 0
      %2203 = vmatpush1.bf16.msra.mxu0 0
      %2204 = vmatprep.subr.bf16.mxu0 0
      %2205 = vmatpush1.bf16.msra.mxu0 0
      %2206 = vmatprep.subr.bf16.mxu0 0
      %2207 = vmatpush1.bf16.msra.mxu0 0
      %2208 = vmatprep.subr.bf16.mxu0 0
      %2209 = vmatpush1.bf16.msra.mxu0 0
      %2210 = vmatprep.subr.bf16.mxu0 %v2191
      %2211 = vmatpush1.bf16.msra.mxu0 %v2188
      %2212 = vmatprep.subr.bf16.mxu0 0
      %2213 = vmatpush2.bf16.msra.mxu0 0
      %2214 = vmatprep.subr.bf16.mxu0 0
      %2215 = vmatpush2.bf16.msra.mxu0 0
      %2216 = vmatprep.subr.bf16.mxu0 0
      %2217 = vmatpush2.bf16.msra.mxu0 0
      %2218 = vmatprep.subr.bf16.mxu0 0
      %2219 = vmatpush2.bf16.msra.mxu0 0
      %2220 = vmatprep.subr.bf16.mxu0 0
      %2221 = vmatpush2.bf16.msra.mxu0 0
      %2222 = vmatprep.subr.bf16.mxu0 0
      %2223 = vmatpush2.bf16.msra.mxu0 0
      %2224 = vmatprep.subr.bf16.mxu0 0
      %2225 = vmatpush2.bf16.msra.mxu0 0
      %2226 = vmatprep.subr.bf16.mxu0 0
      %2227 = vmatpush2.bf16.msra.mxu0 0
      %2228 = vmatprep.mubr.bf16.mxu0 0
      %2229 = vmatmul.mubr.bf16.gmra.mxu0 %v2185
      %v2230 = vpop.f32.mrf.mxu0
      %v2231 = vadd.f32 0.0, %v2230
      %v2232 = vpop.f32.mrf.mxu0
      %v2233 = vadd.f32 0.0, %v2232
      %v2234 = vpop.f32.mrf.mxu0
      %v2235 = vpop.f32.mrf.mxu0
      %2236 = vdwg.mxu0
      %2237 = vmatprep.subr.bf16.mxu0 0
      %2238 = vmatpush1.bf16.msra.mxu0 0
      %2239 = vmatprep.subr.bf16.mxu0 0
      %2240 = vmatpush1.bf16.msra.mxu0 0
      %2241 = vmatprep.subr.bf16.mxu0 0
      %2242 = vmatpush1.bf16.msra.mxu0 0
      %2243 = vmatprep.subr.bf16.mxu0 0
      %2244 = vmatpush1.bf16.msra.mxu0 0
      %2245 = vmatprep.subr.bf16.mxu0 0
      %2246 = vmatpush1.bf16.msra.mxu0 0
      %2247 = vmatprep.subr.bf16.mxu0 0
      %2248 = vmatpush1.bf16.msra.mxu0 0
      %2249 = vmatprep.subr.bf16.mxu0 0
      %2250 = vmatpush1.bf16.msra.mxu0 0
      %2251 = vmatprep.subr.bf16.mxu0 0
      %2252 = vmatpush1.bf16.msra.mxu0 %v2194
      %2253 = vmatprep.subr.bf16.mxu0 0
      %2254 = vmatpush2.bf16.msra.mxu0 0
      %2255 = vmatprep.subr.bf16.mxu0 0
      %2256 = vmatpush2.bf16.msra.mxu0 0
      %2257 = vmatprep.subr.bf16.mxu0 0
      %2258 = vmatpush2.bf16.msra.mxu0 0
      %2259 = vmatprep.subr.bf16.mxu0 0
      %2260 = vmatpush2.bf16.msra.mxu0 0
      %2261 = vmatprep.subr.bf16.mxu0 0
      %2262 = vmatpush2.bf16.msra.mxu0 0
      %2263 = vmatprep.subr.bf16.mxu0 0
      %2264 = vmatpush2.bf16.msra.mxu0 0
      %2265 = vmatprep.subr.bf16.mxu0 0
      %2266 = vmatpush2.bf16.msra.mxu0 0
      %2267 = vmatprep.subr.bf16.mxu0 0
      %2268 = vmatpush2.bf16.msra.mxu0 0
      %2269 = vmatprep.mubr.bf16.mxu0 0
      %2270 = vmatmul.mubr.bf16.gmra.mxu0 %v2185
      %v2271 = vpop.f32.mrf.mxu0
      %v2272 = vadd.f32 0.0, %v2271
      %v2273 = vpop.f32.mrf.mxu0
      %v2274 = vpop.f32.mrf.mxu0
      %v2275 = vpop.f32.mrf.mxu0
      %2276 = vdwg.mxu0
      %v2277 = vadd.f32 %v2148, %v2231
      %v2278 = vadd.f32 %v2149, %v2233
      %v2279 = vadd.f32 %v2150, %v2272
      %v2280 = vld [vmem:[%s165] sm:$0xff]
      %s2281 = scalar_lea.vmem %s0, 68
      %v2282 = vld [vmem:[%s2281] sm:$0xf]
      %v2284 = vcombine.high %v2280, %v2280
      %v2286 = vunpack.c.l.s4 1983009808
      %v2287 = vunpack.c.0.s8 %v2286
      %v2288 = vlaneseq
      %v2289 = vshrl.u32 %v2288, 7
      %v2290 = vsub.s32 %v2287, %v2289
      %v2291 = vrot.slane %v2280, %v2290
      %v2293 = vunpack.c.l.s4 1983009808
      %v2294 = vunpack.c.0.s8 %v2293
      %v2295 = vlaneseq
      %v2296 = vshrl.u32 %v2295, 7
      %v2297 = vsub.s32 %v2294, %v2296
      %v2298 = vrot.slane %v2284, %v2297
      %v2299 = vcombine.high %v2291, %v2291
      %v2300 = vcombine.high %v2298, %v2298
      %2301 = vrot.lane.b32.xlu0 %v2291, 81
      %v2302 = vpop.permute.xlu0 %2301
      %2303 = vrot.lane.b32.xlu0 %v2299, 81
      %v2304 = vpop.permute.xlu0 %2303
      %2305 = vrot.lane.b32.xlu0 %v2298, 81
      %v2306 = vpop.permute.xlu0 %2305
      %2307 = vrot.lane.b32.xlu0 %v2300, 81
      %v2308 = vpop.permute.xlu0 %2307
      %vm2309 = vcmask 662528
      %v2310 = vsel %vm2309, %v2302, %v2304
      %v2311 = vsel %vm2309, %v2304, %v2306
      %v2312 = vsel %vm2309, %v2306, %v2308
      %v2314 = vsel %vm202, %v2282, 0
      %v2317 = vand.u32 %v2310, %v209
      %v2320 = vand.u32 %v2311, %v209
      %v2323 = vand.u32 %v2312, %v209
      %2325 = vmatprep.subr.bf16.mxu0 0
      %2326 = vmatpush1.bf16.msra.mxu0 0
      %2327 = vmatprep.subr.bf16.mxu0 0
      %2328 = vmatpush1.bf16.msra.mxu0 0
      %2329 = vmatprep.subr.bf16.mxu0 0
      %2330 = vmatpush1.bf16.msra.mxu0 0
      %2331 = vmatprep.subr.bf16.mxu0 0
      %2332 = vmatpush1.bf16.msra.mxu0 0
      %2333 = vmatprep.subr.bf16.mxu0 0
      %2334 = vmatpush1.bf16.msra.mxu0 0
      %2335 = vmatprep.subr.bf16.mxu0 0
      %2336 = vmatpush1.bf16.msra.mxu0 0
      %2337 = vmatprep.subr.bf16.mxu0 0
      %2338 = vmatpush1.bf16.msra.mxu0 0
      %2339 = vmatprep.subr.bf16.mxu0 %v2320
      %2340 = vmatpush1.bf16.msra.mxu0 %v2317
      %2341 = vmatprep.subr.bf16.mxu0 0
      %2342 = vmatpush2.bf16.msra.mxu0 0
      %2343 = vmatprep.subr.bf16.mxu0 0
      %2344 = vmatpush2.bf16.msra.mxu0 0
      %2345 = vmatprep.subr.bf16.mxu0 0
      %2346 = vmatpush2.bf16.msra.mxu0 0
      %2347 = vmatprep.subr.bf16.mxu0 0
      %2348 = vmatpush2.bf16.msra.mxu0 0
      %2349 = vmatprep.subr.bf16.mxu0 0
      %2350 = vmatpush2.bf16.msra.mxu0 0
      %2351 = vmatprep.subr.bf16.mxu0 0
      %2352 = vmatpush2.bf16.msra.mxu0 0
      %2353 = vmatprep.subr.bf16.mxu0 0
      %2354 = vmatpush2.bf16.msra.mxu0 0
      %2355 = vmatprep.subr.bf16.mxu0 0
      %2356 = vmatpush2.bf16.msra.mxu0 0
      %2357 = vmatprep.mubr.bf16.mxu0 0
      %2358 = vmatmul.mubr.bf16.gmra.mxu0 %v2314
      %v2359 = vpop.f32.mrf.mxu0
      %v2360 = vadd.f32 0.0, %v2359
      %v2361 = vpop.f32.mrf.mxu0
      %v2362 = vadd.f32 0.0, %v2361
      %v2363 = vpop.f32.mrf.mxu0
      %v2364 = vpop.f32.mrf.mxu0
      %2365 = vdwg.mxu0
      %2366 = vmatprep.subr.bf16.mxu0 0
      %2367 = vmatpush1.bf16.msra.mxu0 0
      %2368 = vmatprep.subr.bf16.mxu0 0
      %2369 = vmatpush1.bf16.msra.mxu0 0
      %2370 = vmatprep.subr.bf16.mxu0 0
      %2371 = vmatpush1.bf16.msra.mxu0 0
      %2372 = vmatprep.subr.bf16.mxu0 0
      %2373 = vmatpush1.bf16.msra.mxu0 0
      %2374 = vmatprep.subr.bf16.mxu0 0
      %2375 = vmatpush1.bf16.msra.mxu0 0
      %2376 = vmatprep.subr.bf16.mxu0 0
      %2377 = vmatpush1.bf16.msra.mxu0 0
      %2378 = vmatprep.subr.bf16.mxu0 0
      %2379 = vmatpush1.bf16.msra.mxu0 0
      %2380 = vmatprep.subr.bf16.mxu0 0
      %2381 = vmatpush1.bf16.msra.mxu0 %v2323
      %2382 = vmatprep.subr.bf16.mxu0 0
      %2383 = vmatpush2.bf16.msra.mxu0 0
      %2384 = vmatprep.subr.bf16.mxu0 0
      %2385 = vmatpush2.bf16.msra.mxu0 0
      %2386 = vmatprep.subr.bf16.mxu0 0
      %2387 = vmatpush2.bf16.msra.mxu0 0
      %2388 = vmatprep.subr.bf16.mxu0 0
      %2389 = vmatpush2.bf16.msra.mxu0 0
      %2390 = vmatprep.subr.bf16.mxu0 0
      %2391 = vmatpush2.bf16.msra.mxu0 0
      %2392 = vmatprep.subr.bf16.mxu0 0
      %2393 = vmatpush2.bf16.msra.mxu0 0
      %2394 = vmatprep.subr.bf16.mxu0 0
      %2395 = vmatpush2.bf16.msra.mxu0 0
      %2396 = vmatprep.subr.bf16.mxu0 0
      %2397 = vmatpush2.bf16.msra.mxu0 0
      %2398 = vmatprep.mubr.bf16.mxu0 0
      %2399 = vmatmul.mubr.bf16.gmra.mxu0 %v2314
      %v2400 = vpop.f32.mrf.mxu0
      %v2401 = vadd.f32 0.0, %v2400
      %v2402 = vpop.f32.mrf.mxu0
      %v2403 = vpop.f32.mrf.mxu0
      %v2404 = vpop.f32.mrf.mxu0
      %2405 = vdwg.mxu0
      %v2406 = vadd.f32 %v2277, %v2360
      %v2407 = vadd.f32 %v2278, %v2362
      %v2408 = vadd.f32 %v2279, %v2401
      %v2409 = vld [vmem:[%s165] sm:$0xff]
      %s2410 = scalar_lea.vmem %s0, 72
      %v2411 = vld [vmem:[%s2410] sm:$0xf]
      %v2413 = vcombine.high %v2409, %v2409
      %v2415 = vunpack.c.l.s4 1983009808
      %v2416 = vunpack.c.0.s8 %v2415
      %v2417 = vlaneseq
      %v2418 = vshrl.u32 %v2417, 7
      %v2419 = vsub.s32 %v2416, %v2418
      %v2420 = vrot.slane %v2409, %v2419
      %v2422 = vunpack.c.l.s4 1983009808
      %v2423 = vunpack.c.0.s8 %v2422
      %v2424 = vlaneseq
      %v2425 = vshrl.u32 %v2424, 7
      %v2426 = vsub.s32 %v2423, %v2425
      %v2427 = vrot.slane %v2413, %v2426
      %v2428 = vcombine.high %v2420, %v2420
      %v2429 = vcombine.high %v2427, %v2427
      %2430 = vrot.lane.b32.xlu0 %v2420, 80
      %v2431 = vpop.permute.xlu0 %2430
      %2432 = vrot.lane.b32.xlu0 %v2428, 80
      %v2433 = vpop.permute.xlu0 %2432
      %2434 = vrot.lane.b32.xlu0 %v2427, 80
      %v2435 = vpop.permute.xlu0 %2434
      %2436 = vrot.lane.b32.xlu0 %v2429, 80
      %v2437 = vpop.permute.xlu0 %2436
      %vm2438 = vcmask 654336
      %v2439 = vsel %vm2438, %v2431, %v2433
      %v2440 = vsel %vm2438, %v2433, %v2435
      %v2441 = vsel %vm2438, %v2435, %v2437
      %v2443 = vsel %vm202, %v2411, 0
      %v2446 = vand.u32 %v2439, %v209
      %v2449 = vand.u32 %v2440, %v209
      %v2452 = vand.u32 %v2441, %v209
      %2454 = vmatprep.subr.bf16.mxu0 0
      %2455 = vmatpush1.bf16.msra.mxu0 0
      %2456 = vmatprep.subr.bf16.mxu0 0
      %2457 = vmatpush1.bf16.msra.mxu0 0
      %2458 = vmatprep.subr.bf16.mxu0 0
      %2459 = vmatpush1.bf16.msra.mxu0 0
      %2460 = vmatprep.subr.bf16.mxu0 0
      %2461 = vmatpush1.bf16.msra.mxu0 0
      %2462 = vmatprep.subr.bf16.mxu0 0
      %2463 = vmatpush1.bf16.msra.mxu0 0
      %2464 = vmatprep.subr.bf16.mxu0 0
      %2465 = vmatpush1.bf16.msra.mxu0 0
      %2466 = vmatprep.subr.bf16.mxu0 0
      %2467 = vmatpush1.bf16.msra.mxu0 0
      %2468 = vmatprep.subr.bf16.mxu0 %v2449
      %2469 = vmatpush1.bf16.msra.mxu0 %v2446
      %2470 = vmatprep.subr.bf16.mxu0 0
      %2471 = vmatpush2.bf16.msra.mxu0 0
      %2472 = vmatprep.subr.bf16.mxu0 0
      %2473 = vmatpush2.bf16.msra.mxu0 0
      %2474 = vmatprep.subr.bf16.mxu0 0
      %2475 = vmatpush2.bf16.msra.mxu0 0
      %2476 = vmatprep.subr.bf16.mxu0 0
      %2477 = vmatpush2.bf16.msra.mxu0 0
      %2478 = vmatprep.subr.bf16.mxu0 0
      %2479 = vmatpush2.bf16.msra.mxu0 0
      %2480 = vmatprep.subr.bf16.mxu0 0
      %2481 = vmatpush2.bf16.msra.mxu0 0
      %2482 = vmatprep.subr.bf16.mxu0 0
      %2483 = vmatpush2.bf16.msra.mxu0 0
      %2484 = vmatprep.subr.bf16.mxu0 0
      %2485 = vmatpush2.bf16.msra.mxu0 0
      %2486 = vmatprep.mubr.bf16.mxu0 0
      %2487 = vmatmul.mubr.bf16.gmra.mxu0 %v2443
      %v2488 = vpop.f32.mrf.mxu0
      %v2489 = vadd.f32 0.0, %v2488
      %v2490 = vpop.f32.mrf.mxu0
      %v2491 = vadd.f32 0.0, %v2490
      %v2492 = vpop.f32.mrf.mxu0
      %v2493 = vpop.f32.mrf.mxu0
      %2494 = vdwg.mxu0
      %2495 = vmatprep.subr.bf16.mxu0 0
      %2496 = vmatpush1.bf16.msra.mxu0 0
      %2497 = vmatprep.subr.bf16.mxu0 0
      %2498 = vmatpush1.bf16.msra.mxu0 0
      %2499 = vmatprep.subr.bf16.mxu0 0
      %2500 = vmatpush1.bf16.msra.mxu0 0
      %2501 = vmatprep.subr.bf16.mxu0 0
      %2502 = vmatpush1.bf16.msra.mxu0 0
      %2503 = vmatprep.subr.bf16.mxu0 0
      %2504 = vmatpush1.bf16.msra.mxu0 0
      %2505 = vmatprep.subr.bf16.mxu0 0
      %2506 = vmatpush1.bf16.msra.mxu0 0
      %2507 = vmatprep.subr.bf16.mxu0 0
      %2508 = vmatpush1.bf16.msra.mxu0 0
      %2509 = vmatprep.subr.bf16.mxu0 0
      %2510 = vmatpush1.bf16.msra.mxu0 %v2452
      %2511 = vmatprep.subr.bf16.mxu0 0
      %2512 = vmatpush2.bf16.msra.mxu0 0
      %2513 = vmatprep.subr.bf16.mxu0 0
      %2514 = vmatpush2.bf16.msra.mxu0 0
      %2515 = vmatprep.subr.bf16.mxu0 0
      %2516 = vmatpush2.bf16.msra.mxu0 0
      %2517 = vmatprep.subr.bf16.mxu0 0
      %2518 = vmatpush2.bf16.msra.mxu0 0
      %2519 = vmatprep.subr.bf16.mxu0 0
      %2520 = vmatpush2.bf16.msra.mxu0 0
      %2521 = vmatprep.subr.bf16.mxu0 0
      %2522 = vmatpush2.bf16.msra.mxu0 0
      %2523 = vmatprep.subr.bf16.mxu0 0
      %2524 = vmatpush2.bf16.msra.mxu0 0
      %2525 = vmatprep.subr.bf16.mxu0 0
      %2526 = vmatpush2.bf16.msra.mxu0 0
      %2527 = vmatprep.mubr.bf16.mxu0 0
      %2528 = vmatmul.mubr.bf16.gmra.mxu0 %v2443
      %v2529 = vpop.f32.mrf.mxu0
      %v2530 = vadd.f32 0.0, %v2529
      %v2531 = vpop.f32.mrf.mxu0
      %v2532 = vpop.f32.mrf.mxu0
      %v2533 = vpop.f32.mrf.mxu0
      %2534 = vdwg.mxu0
      %v2535 = vadd.f32 %v2406, %v2489
      %v2536 = vadd.f32 %v2407, %v2491
      %v2537 = vadd.f32 %v2408, %v2530
      %v2538 = vld [vmem:[%s165] sm:$0xff]
      %s2539 = scalar_lea.vmem %s0, 76
      %v2540 = vld [vmem:[%s2539] sm:$0xf]
      %v2542 = vcombine.high %v2538, %v2538
      %v2544 = vunpack.c.l.s4 1983009808
      %v2545 = vunpack.c.0.s8 %v2544
      %v2546 = vlaneseq
      %v2547 = vshrl.u32 %v2546, 7
      %v2548 = vsub.s32 %v2545, %v2547
      %v2549 = vrot.slane %v2538, %v2548
      %v2551 = vunpack.c.l.s4 1983009808
      %v2552 = vunpack.c.0.s8 %v2551
      %v2553 = vlaneseq
      %v2554 = vshrl.u32 %v2553, 7
      %v2555 = vsub.s32 %v2552, %v2554
      %v2556 = vrot.slane %v2542, %v2555
      %v2557 = vcombine.high %v2549, %v2549
      %v2558 = vcombine.high %v2556, %v2556
      %2559 = vrot.lane.b32.xlu0 %v2549, 79
      %v2560 = vpop.permute.xlu0 %2559
      %2561 = vrot.lane.b32.xlu0 %v2557, 79
      %v2562 = vpop.permute.xlu0 %2561
      %2563 = vrot.lane.b32.xlu0 %v2556, 79
      %v2564 = vpop.permute.xlu0 %2563
      %2565 = vrot.lane.b32.xlu0 %v2558, 79
      %v2566 = vpop.permute.xlu0 %2565
      %vm2567 = vcmask 646144
      %v2568 = vsel %vm2567, %v2560, %v2562
      %v2569 = vsel %vm2567, %v2562, %v2564
      %v2570 = vsel %vm2567, %v2564, %v2566
      %v2572 = vsel %vm202, %v2540, 0
      %v2575 = vand.u32 %v2568, %v209
      %v2578 = vand.u32 %v2569, %v209
      %v2581 = vand.u32 %v2570, %v209
      %2583 = vmatprep.subr.bf16.mxu0 0
      %2584 = vmatpush1.bf16.msra.mxu0 0
      %2585 = vmatprep.subr.bf16.mxu0 0
      %2586 = vmatpush1.bf16.msra.mxu0 0
      %2587 = vmatprep.subr.bf16.mxu0 0
      %2588 = vmatpush1.bf16.msra.mxu0 0
      %2589 = vmatprep.subr.bf16.mxu0 0
      %2590 = vmatpush1.bf16.msra.mxu0 0
      %2591 = vmatprep.subr.bf16.mxu0 0
      %2592 = vmatpush1.bf16.msra.mxu0 0
      %2593 = vmatprep.subr.bf16.mxu0 0
      %2594 = vmatpush1.bf16.msra.mxu0 0
      %2595 = vmatprep.subr.bf16.mxu0 0
      %2596 = vmatpush1.bf16.msra.mxu0 0
      %2597 = vmatprep.subr.bf16.mxu0 %v2578
      %2598 = vmatpush1.bf16.msra.mxu0 %v2575
      %2599 = vmatprep.subr.bf16.mxu0 0
      %2600 = vmatpush2.bf16.msra.mxu0 0
      %2601 = vmatprep.subr.bf16.mxu0 0
      %2602 = vmatpush2.bf16.msra.mxu0 0
      %2603 = vmatprep.subr.bf16.mxu0 0
      %2604 = vmatpush2.bf16.msra.mxu0 0
      %2605 = vmatprep.subr.bf16.mxu0 0
      %2606 = vmatpush2.bf16.msra.mxu0 0
      %2607 = vmatprep.subr.bf16.mxu0 0
      %2608 = vmatpush2.bf16.msra.mxu0 0
      %2609 = vmatprep.subr.bf16.mxu0 0
      %2610 = vmatpush2.bf16.msra.mxu0 0
      %2611 = vmatprep.subr.bf16.mxu0 0
      %2612 = vmatpush2.bf16.msra.mxu0 0
      %2613 = vmatprep.subr.bf16.mxu0 0
      %2614 = vmatpush2.bf16.msra.mxu0 0
      %2615 = vmatprep.mubr.bf16.mxu0 0
      %2616 = vmatmul.mubr.bf16.gmra.mxu0 %v2572
      %v2617 = vpop.f32.mrf.mxu0
      %v2618 = vadd.f32 0.0, %v2617
      %v2619 = vpop.f32.mrf.mxu0
      %v2620 = vadd.f32 0.0, %v2619
      %v2621 = vpop.f32.mrf.mxu0
      %v2622 = vpop.f32.mrf.mxu0
      %2623 = vdwg.mxu0
      %2624 = vmatprep.subr.bf16.mxu0 0
      %2625 = vmatpush1.bf16.msra.mxu0 0
      %2626 = vmatprep.subr.bf16.mxu0 0
      %2627 = vmatpush1.bf16.msra.mxu0 0
      %2628 = vmatprep.subr.bf16.mxu0 0
      %2629 = vmatpush1.bf16.msra.mxu0 0
      %2630 = vmatprep.subr.bf16.mxu0 0
      %2631 = vmatpush1.bf16.msra.mxu0 0
      %2632 = vmatprep.subr.bf16.mxu0 0
      %2633 = vmatpush1.bf16.msra.mxu0 0
      %2634 = vmatprep.subr.bf16.mxu0 0
      %2635 = vmatpush1.bf16.msra.mxu0 0
      %2636 = vmatprep.subr.bf16.mxu0 0
      %2637 = vmatpush1.bf16.msra.mxu0 0
      %2638 = vmatprep.subr.bf16.mxu0 0
      %2639 = vmatpush1.bf16.msra.mxu0 %v2581
      %2640 = vmatprep.subr.bf16.mxu0 0
      %2641 = vmatpush2.bf16.msra.mxu0 0
      %2642 = vmatprep.subr.bf16.mxu0 0
      %2643 = vmatpush2.bf16.msra.mxu0 0
      %2644 = vmatprep.subr.bf16.mxu0 0
      %2645 = vmatpush2.bf16.msra.mxu0 0
      %2646 = vmatprep.subr.bf16.mxu0 0
      %2647 = vmatpush2.bf16.msra.mxu0 0
      %2648 = vmatprep.subr.bf16.mxu0 0
      %2649 = vmatpush2.bf16.msra.mxu0 0
      %2650 = vmatprep.subr.bf16.mxu0 0
      %2651 = vmatpush2.bf16.msra.mxu0 0
      %2652 = vmatprep.subr.bf16.mxu0 0
      %2653 = vmatpush2.bf16.msra.mxu0 0
      %2654 = vmatprep.subr.bf16.mxu0 0
      %2655 = vmatpush2.bf16.msra.mxu0 0
      %2656 = vmatprep.mubr.bf16.mxu0 0
      %2657 = vmatmul.mubr.bf16.gmra.mxu0 %v2572
      %v2658 = vpop.f32.mrf.mxu0
      %v2659 = vadd.f32 0.0, %v2658
      %v2660 = vpop.f32.mrf.mxu0
      %v2661 = vpop.f32.mrf.mxu0
      %v2662 = vpop.f32.mrf.mxu0
      %2663 = vdwg.mxu0
      %v2664 = vadd.f32 %v2535, %v2618
      %v2665 = vadd.f32 %v2536, %v2620
      %v2666 = vadd.f32 %v2537, %v2659
      %v2667 = vld [vmem:[%s165] sm:$0xff]
      %s2668 = scalar_lea.vmem %s0, 80
      %v2669 = vld [vmem:[%s2668] sm:$0xf]
      %v2671 = vcombine.high %v2667, %v2667
      %v2673 = vunpack.c.l.s4 1983009808
      %v2674 = vunpack.c.0.s8 %v2673
      %v2675 = vlaneseq
      %v2676 = vshrl.u32 %v2675, 7
      %v2677 = vsub.s32 %v2674, %v2676
      %v2678 = vrot.slane %v2667, %v2677
      %v2680 = vunpack.c.l.s4 1983009808
      %v2681 = vunpack.c.0.s8 %v2680
      %v2682 = vlaneseq
      %v2683 = vshrl.u32 %v2682, 7
      %v2684 = vsub.s32 %v2681, %v2683
      %v2685 = vrot.slane %v2671, %v2684
      %v2686 = vcombine.high %v2678, %v2678
      %v2687 = vcombine.high %v2685, %v2685
      %2688 = vrot.lane.b32.xlu0 %v2678, 78
      %v2689 = vpop.permute.xlu0 %2688
      %2690 = vrot.lane.b32.xlu0 %v2686, 78
      %v2691 = vpop.permute.xlu0 %2690
      %2692 = vrot.lane.b32.xlu0 %v2685, 78
      %v2693 = vpop.permute.xlu0 %2692
      %2694 = vrot.lane.b32.xlu0 %v2687, 78
      %v2695 = vpop.permute.xlu0 %2694
      %vm2696 = vcmask 637952
      %v2697 = vsel %vm2696, %v2689, %v2691
      %v2698 = vsel %vm2696, %v2691, %v2693
      %v2699 = vsel %vm2696, %v2693, %v2695
      %v2701 = vsel %vm202, %v2669, 0
      %v2704 = vand.u32 %v2697, %v209
      %v2707 = vand.u32 %v2698, %v209
      %v2710 = vand.u32 %v2699, %v209
      %2712 = vmatprep.subr.bf16.mxu0 0
      %2713 = vmatpush1.bf16.msra.mxu0 0
      %2714 = vmatprep.subr.bf16.mxu0 0
      %2715 = vmatpush1.bf16.msra.mxu0 0
      %2716 = vmatprep.subr.bf16.mxu0 0
      %2717 = vmatpush1.bf16.msra.mxu0 0
      %2718 = vmatprep.subr.bf16.mxu0 0
      %2719 = vmatpush1.bf16.msra.mxu0 0
      %2720 = vmatprep.subr.bf16.mxu0 0
      %2721 = vmatpush1.bf16.msra.mxu0 0
      %2722 = vmatprep.subr.bf16.mxu0 0
      %2723 = vmatpush1.bf16.msra.mxu0 0
      %2724 = vmatprep.subr.bf16.mxu0 0
      %2725 = vmatpush1.bf16.msra.mxu0 0
      %2726 = vmatprep.subr.bf16.mxu0 %v2707
      %2727 = vmatpush1.bf16.msra.mxu0 %v2704
      %2728 = vmatprep.subr.bf16.mxu0 0
      %2729 = vmatpush2.bf16.msra.mxu0 0
      %2730 = vmatprep.subr.bf16.mxu0 0
      %2731 = vmatpush2.bf16.msra.mxu0 0
      %2732 = vmatprep.subr.bf16.mxu0 0
      %2733 = vmatpush2.bf16.msra.mxu0 0
      %2734 = vmatprep.subr.bf16.mxu0 0
      %2735 = vmatpush2.bf16.msra.mxu0 0
      %2736 = vmatprep.subr.bf16.mxu0 0
      %2737 = vmatpush2.bf16.msra.mxu0 0
      %2738 = vmatprep.subr.bf16.mxu0 0
      %2739 = vmatpush2.bf16.msra.mxu0 0
      %2740 = vmatprep.subr.bf16.mxu0 0
      %2741 = vmatpush2.bf16.msra.mxu0 0
      %2742 = vmatprep.subr.bf16.mxu0 0
      %2743 = vmatpush2.bf16.msra.mxu0 0
      %2744 = vmatprep.mubr.bf16.mxu0 0
      %2745 = vmatmul.mubr.bf16.gmra.mxu0 %v2701
      %v2746 = vpop.f32.mrf.mxu0
      %v2747 = vadd.f32 0.0, %v2746
      %v2748 = vpop.f32.mrf.mxu0
      %v2749 = vadd.f32 0.0, %v2748
      %v2750 = vpop.f32.mrf.mxu0
      %v2751 = vpop.f32.mrf.mxu0
      %2752 = vdwg.mxu0
      %2753 = vmatprep.subr.bf16.mxu0 0
      %2754 = vmatpush1.bf16.msra.mxu0 0
      %2755 = vmatprep.subr.bf16.mxu0 0
      %2756 = vmatpush1.bf16.msra.mxu0 0
      %2757 = vmatprep.subr.bf16.mxu0 0
      %2758 = vmatpush1.bf16.msra.mxu0 0
      %2759 = vmatprep.subr.bf16.mxu0 0
      %2760 = vmatpush1.bf16.msra.mxu0 0
      %2761 = vmatprep.subr.bf16.mxu0 0
      %2762 = vmatpush1.bf16.msra.mxu0 0
      %2763 = vmatprep.subr.bf16.mxu0 0
      %2764 = vmatpush1.bf16.msra.mxu0 0
      %2765 = vmatprep.subr.bf16.mxu0 0
      %2766 = vmatpush1.bf16.msra.mxu0 0
      %2767 = vmatprep.subr.bf16.mxu0 0
      %2768 = vmatpush1.bf16.msra.mxu0 %v2710
      %2769 = vmatprep.subr.bf16.mxu0 0
      %2770 = vmatpush2.bf16.msra.mxu0 0
      %2771 = vmatprep.subr.bf16.mxu0 0
      %2772 = vmatpush2.bf16.msra.mxu0 0
      %2773 = vmatprep.subr.bf16.mxu0 0
      %2774 = vmatpush2.bf16.msra.mxu0 0
      %2775 = vmatprep.subr.bf16.mxu0 0
      %2776 = vmatpush2.bf16.msra.mxu0 0
      %2777 = vmatprep.subr.bf16.mxu0 0
      %2778 = vmatpush2.bf16.msra.mxu0 0
      %2779 = vmatprep.subr.bf16.mxu0 0
      %2780 = vmatpush2.bf16.msra.mxu0 0
      %2781 = vmatprep.subr.bf16.mxu0 0
      %2782 = vmatpush2.bf16.msra.mxu0 0
      %2783 = vmatprep.subr.bf16.mxu0 0
      %2784 = vmatpush2.bf16.msra.mxu0 0
      %2785 = vmatprep.mubr.bf16.mxu0 0
      %2786 = vmatmul.mubr.bf16.gmra.mxu0 %v2701
      %v2787 = vpop.f32.mrf.mxu0
      %v2788 = vadd.f32 0.0, %v2787
      %v2789 = vpop.f32.mrf.mxu0
      %v2790 = vpop.f32.mrf.mxu0
      %v2791 = vpop.f32.mrf.mxu0
      %2792 = vdwg.mxu0
      %v2793 = vadd.f32 %v2664, %v2747
      %v2794 = vadd.f32 %v2665, %v2749
      %v2795 = vadd.f32 %v2666, %v2788
      %v2796 = vld [vmem:[%s165] sm:$0xff]
      %s2797 = scalar_lea.vmem %s0, 84
      %v2798 = vld [vmem:[%s2797] sm:$0xf]
      %v2800 = vcombine.high %v2796, %v2796
      %v2802 = vunpack.c.l.s4 1983009808
      %v2803 = vunpack.c.0.s8 %v2802
      %v2804 = vlaneseq
      %v2805 = vshrl.u32 %v2804, 7
      %v2806 = vsub.s32 %v2803, %v2805
      %v2807 = vrot.slane %v2796, %v2806
      %v2809 = vunpack.c.l.s4 1983009808
      %v2810 = vunpack.c.0.s8 %v2809
      %v2811 = vlaneseq
      %v2812 = vshrl.u32 %v2811, 7
      %v2813 = vsub.s32 %v2810, %v2812
      %v2814 = vrot.slane %v2800, %v2813
      %v2815 = vcombine.high %v2807, %v2807
      %v2816 = vcombine.high %v2814, %v2814
      %2817 = vrot.lane.b32.xlu0 %v2807, 62
      %v2818 = vpop.permute.xlu0 %2817
      %2819 = vrot.lane.b32.xlu0 %v2815, 62
      %v2820 = vpop.permute.xlu0 %2819
      %2821 = vrot.lane.b32.xlu0 %v2814, 62
      %v2822 = vpop.permute.xlu0 %2821
      %2823 = vrot.lane.b32.xlu0 %v2816, 62
      %v2824 = vpop.permute.xlu0 %2823
      %vm2825 = vcmask 506880
      %v2826 = vsel %vm2825, %v2818, %v2820
      %v2827 = vsel %vm2825, %v2820, %v2822
      %v2828 = vsel %vm2825, %v2822, %v2824
      %v2830 = vsel %vm202, %v2798, 0
      %v2833 = vand.u32 %v2826, %v209
      %v2836 = vand.u32 %v2827, %v209
      %v2839 = vand.u32 %v2828, %v209
      %2841 = vmatprep.subr.bf16.mxu0 0
      %2842 = vmatpush1.bf16.msra.mxu0 0
      %2843 = vmatprep.subr.bf16.mxu0 0
      %2844 = vmatpush1.bf16.msra.mxu0 0
      %2845 = vmatprep.subr.bf16.mxu0 0
      %2846 = vmatpush1.bf16.msra.mxu0 0
      %2847 = vmatprep.subr.bf16.mxu0 0
      %2848 = vmatpush1.bf16.msra.mxu0 0
      %2849 = vmatprep.subr.bf16.mxu0 0
      %2850 = vmatpush1.bf16.msra.mxu0 0
      %2851 = vmatprep.subr.bf16.mxu0 0
      %2852 = vmatpush1.bf16.msra.mxu0 0
      %2853 = vmatprep.subr.bf16.mxu0 0
      %2854 = vmatpush1.bf16.msra.mxu0 0
      %2855 = vmatprep.subr.bf16.mxu0 %v2836
      %2856 = vmatpush1.bf16.msra.mxu0 %v2833
      %2857 = vmatprep.subr.bf16.mxu0 0
      %2858 = vmatpush2.bf16.msra.mxu0 0
      %2859 = vmatprep.subr.bf16.mxu0 0
      %2860 = vmatpush2.bf16.msra.mxu0 0
      %2861 = vmatprep.subr.bf16.mxu0 0
      %2862 = vmatpush2.bf16.msra.mxu0 0
      %2863 = vmatprep.subr.bf16.mxu0 0
      %2864 = vmatpush2.bf16.msra.mxu0 0
      %2865 = vmatprep.subr.bf16.mxu0 0
      %2866 = vmatpush2.bf16.msra.mxu0 0
      %2867 = vmatprep.subr.bf16.mxu0 0
      %2868 = vmatpush2.bf16.msra.mxu0 0
      %2869 = vmatprep.subr.bf16.mxu0 0
      %2870 = vmatpush2.bf16.msra.mxu0 0
      %2871 = vmatprep.subr.bf16.mxu0 0
      %2872 = vmatpush2.bf16.msra.mxu0 0
      %2873 = vmatprep.mubr.bf16.mxu0 0
      %2874 = vmatmul.mubr.bf16.gmra.mxu0 %v2830
      %v2875 = vpop.f32.mrf.mxu0
      %v2876 = vadd.f32 0.0, %v2875
      %v2877 = vpop.f32.mrf.mxu0
      %v2878 = vadd.f32 0.0, %v2877
      %v2879 = vpop.f32.mrf.mxu0
      %v2880 = vpop.f32.mrf.mxu0
      %2881 = vdwg.mxu0
      %2882 = vmatprep.subr.bf16.mxu0 0
      %2883 = vmatpush1.bf16.msra.mxu0 0
      %2884 = vmatprep.subr.bf16.mxu0 0
      %2885 = vmatpush1.bf16.msra.mxu0 0
      %2886 = vmatprep.subr.bf16.mxu0 0
      %2887 = vmatpush1.bf16.msra.mxu0 0
      %2888 = vmatprep.subr.bf16.mxu0 0
      %2889 = vmatpush1.bf16.msra.mxu0 0
      %2890 = vmatprep.subr.bf16.mxu0 0
      %2891 = vmatpush1.bf16.msra.mxu0 0
      %2892 = vmatprep.subr.bf16.mxu0 0
      %2893 = vmatpush1.bf16.msra.mxu0 0
      %2894 = vmatprep.subr.bf16.mxu0 0
      %2895 = vmatpush1.bf16.msra.mxu0 0
      %2896 = vmatprep.subr.bf16.mxu0 0
      %2897 = vmatpush1.bf16.msra.mxu0 %v2839
      %2898 = vmatprep.subr.bf16.mxu0 0
      %2899 = vmatpush2.bf16.msra.mxu0 0
      %2900 = vmatprep.subr.bf16.mxu0 0
      %2901 = vmatpush2.bf16.msra.mxu0 0
      %2902 = vmatprep.subr.bf16.mxu0 0
      %2903 = vmatpush2.bf16.msra.mxu0 0
      %2904 = vmatprep.subr.bf16.mxu0 0
      %2905 = vmatpush2.bf16.msra.mxu0 0
      %2906 = vmatprep.subr.bf16.mxu0 0
      %2907 = vmatpush2.bf16.msra.mxu0 0
      %2908 = vmatprep.subr.bf16.mxu0 0
      %2909 = vmatpush2.bf16.msra.mxu0 0
      %2910 = vmatprep.subr.bf16.mxu0 0
      %2911 = vmatpush2.bf16.msra.mxu0 0
      %2912 = vmatprep.subr.bf16.mxu0 0
      %2913 = vmatpush2.bf16.msra.mxu0 0
      %2914 = vmatprep.mubr.bf16.mxu0 0
      %2915 = vmatmul.mubr.bf16.gmra.mxu0 %v2830
      %v2916 = vpop.f32.mrf.mxu0
      %v2917 = vadd.f32 0.0, %v2916
      %v2918 = vpop.f32.mrf.mxu0
      %v2919 = vpop.f32.mrf.mxu0
      %v2920 = vpop.f32.mrf.mxu0
      %2921 = vdwg.mxu0
      %v2922 = vadd.f32 %v2793, %v2876
      %v2923 = vadd.f32 %v2794, %v2878
      %v2924 = vadd.f32 %v2795, %v2917
      %v2925 = vld [vmem:[%s165] sm:$0xff]
      %s2926 = scalar_lea.vmem %s0, 88
      %v2927 = vld [vmem:[%s2926] sm:$0xf]
      %v2929 = vcombine.high %v2925, %v2925
      %v2931 = vunpack.c.l.s4 1983009808
      %v2932 = vunpack.c.0.s8 %v2931
      %v2933 = vlaneseq
      %v2934 = vshrl.u32 %v2933, 7
      %v2935 = vsub.s32 %v2932, %v2934
      %v2936 = vrot.slane %v2925, %v2935
      %v2938 = vunpack.c.l.s4 1983009808
      %v2939 = vunpack.c.0.s8 %v2938
      %v2940 = vlaneseq
      %v2941 = vshrl.u32 %v2940, 7
      %v2942 = vsub.s32 %v2939, %v2941
      %v2943 = vrot.slane %v2929, %v2942
      %v2944 = vcombine.high %v2936, %v2936
      %v2945 = vcombine.high %v2943, %v2943
      %2946 = vrot.lane.b32.xlu0 %v2936, 61
      %v2947 = vpop.permute.xlu0 %2946
      %2948 = vrot.lane.b32.xlu0 %v2944, 61
      %v2949 = vpop.permute.xlu0 %2948
      %2950 = vrot.lane.b32.xlu0 %v2943, 61
      %v2951 = vpop.permute.xlu0 %2950
      %2952 = vrot.lane.b32.xlu0 %v2945, 61
      %v2953 = vpop.permute.xlu0 %2952
      %vm2954 = vcmask 498688
      %v2955 = vsel %vm2954, %v2947, %v2949
      %v2956 = vsel %vm2954, %v2949, %v2951
      %v2957 = vsel %vm2954, %v2951, %v2953
      %v2959 = vsel %vm202, %v2927, 0
      %v2962 = vand.u32 %v2955, %v209
      %v2965 = vand.u32 %v2956, %v209
      %v2968 = vand.u32 %v2957, %v209
      %2970 = vmatprep.subr.bf16.mxu0 0
      %2971 = vmatpush1.bf16.msra.mxu0 0
      %2972 = vmatprep.subr.bf16.mxu0 0
      %2973 = vmatpush1.bf16.msra.mxu0 0
      %2974 = vmatprep.subr.bf16.mxu0 0
      %2975 = vmatpush1.bf16.msra.mxu0 0
      %2976 = vmatprep.subr.bf16.mxu0 0
      %2977 = vmatpush1.bf16.msra.mxu0 0
      %2978 = vmatprep.subr.bf16.mxu0 0
      %2979 = vmatpush1.bf16.msra.mxu0 0
      %2980 = vmatprep.subr.bf16.mxu0 0
      %2981 = vmatpush1.bf16.msra.mxu0 0
      %2982 = vmatprep.subr.bf16.mxu0 0
      %2983 = vmatpush1.bf16.msra.mxu0 0
      %2984 = vmatprep.subr.bf16.mxu0 %v2965
      %2985 = vmatpush1.bf16.msra.mxu0 %v2962
      %2986 = vmatprep.subr.bf16.mxu0 0
      %2987 = vmatpush2.bf16.msra.mxu0 0
      %2988 = vmatprep.subr.bf16.mxu0 0
      %2989 = vmatpush2.bf16.msra.mxu0 0
      %2990 = vmatprep.subr.bf16.mxu0 0
      %2991 = vmatpush2.bf16.msra.mxu0 0
      %2992 = vmatprep.subr.bf16.mxu0 0
      %2993 = vmatpush2.bf16.msra.mxu0 0
      %2994 = vmatprep.subr.bf16.mxu0 0
      %2995 = vmatpush2.bf16.msra.mxu0 0
      %2996 = vmatprep.subr.bf16.mxu0 0
      %2997 = vmatpush2.bf16.msra.mxu0 0
      %2998 = vmatprep.subr.bf16.mxu0 0
      %2999 = vmatpush2.bf16.msra.mxu0 0
      %3000 = vmatprep.subr.bf16.mxu0 0
      %3001 = vmatpush2.bf16.msra.mxu0 0
      %3002 = vmatprep.mubr.bf16.mxu0 0
      %3003 = vmatmul.mubr.bf16.gmra.mxu0 %v2959
      %v3004 = vpop.f32.mrf.mxu0
      %v3005 = vadd.f32 0.0, %v3004
      %v3006 = vpop.f32.mrf.mxu0
      %v3007 = vadd.f32 0.0, %v3006
      %v3008 = vpop.f32.mrf.mxu0
      %v3009 = vpop.f32.mrf.mxu0
      %3010 = vdwg.mxu0
      %3011 = vmatprep.subr.bf16.mxu0 0
      %3012 = vmatpush1.bf16.msra.mxu0 0
      %3013 = vmatprep.subr.bf16.mxu0 0
      %3014 = vmatpush1.bf16.msra.mxu0 0
      %3015 = vmatprep.subr.bf16.mxu0 0
      %3016 = vmatpush1.bf16.msra.mxu0 0
      %3017 = vmatprep.subr.bf16.mxu0 0
      %3018 = vmatpush1.bf16.msra.mxu0 0
      %3019 = vmatprep.subr.bf16.mxu0 0
      %3020 = vmatpush1.bf16.msra.mxu0 0
      %3021 = vmatprep.subr.bf16.mxu0 0
      %3022 = vmatpush1.bf16.msra.mxu0 0
      %3023 = vmatprep.subr.bf16.mxu0 0
      %3024 = vmatpush1.bf16.msra.mxu0 0
      %3025 = vmatprep.subr.bf16.mxu0 0
      %3026 = vmatpush1.bf16.msra.mxu0 %v2968
      %3027 = vmatprep.subr.bf16.mxu0 0
      %3028 = vmatpush2.bf16.msra.mxu0 0
      %3029 = vmatprep.subr.bf16.mxu0 0
      %3030 = vmatpush2.bf16.msra.mxu0 0
      %3031 = vmatprep.subr.bf16.mxu0 0
      %3032 = vmatpush2.bf16.msra.mxu0 0
      %3033 = vmatprep.subr.bf16.mxu0 0
      %3034 = vmatpush2.bf16.msra.mxu0 0
      %3035 = vmatprep.subr.bf16.mxu0 0
      %3036 = vmatpush2.bf16.msra.mxu0 0
      %3037 = vmatprep.subr.bf16.mxu0 0
      %3038 = vmatpush2.bf16.msra.mxu0 0
      %3039 = vmatprep.subr.bf16.mxu0 0
      %3040 = vmatpush2.bf16.msra.mxu0 0
      %3041 = vmatprep.subr.bf16.mxu0 0
      %3042 = vmatpush2.bf16.msra.mxu0 0
      %3043 = vmatprep.mubr.bf16.mxu0 0
      %3044 = vmatmul.mubr.bf16.gmra.mxu0 %v2959
      %v3045 = vpop.f32.mrf.mxu0
      %v3046 = vadd.f32 0.0, %v3045
      %v3047 = vpop.f32.mrf.mxu0
      %v3048 = vpop.f32.mrf.mxu0
      %v3049 = vpop.f32.mrf.mxu0
      %3050 = vdwg.mxu0
      %v3051 = vadd.f32 %v2922, %v3005
      %v3052 = vadd.f32 %v2923, %v3007
      %v3053 = vadd.f32 %v2924, %v3046
      %v3054 = vld [vmem:[%s165] sm:$0xff]
      %s3055 = scalar_lea.vmem %s0, 92
      %v3056 = vld [vmem:[%s3055] sm:$0xf]
      %v3058 = vcombine.high %v3054, %v3054
      %v3060 = vunpack.c.l.s4 1983009808
      %v3061 = vunpack.c.0.s8 %v3060
      %v3062 = vlaneseq
      %v3063 = vshrl.u32 %v3062, 7
      %v3064 = vsub.s32 %v3061, %v3063
      %v3065 = vrot.slane %v3054, %v3064
      %v3067 = vunpack.c.l.s4 1983009808
      %v3068 = vunpack.c.0.s8 %v3067
      %v3069 = vlaneseq
      %v3070 = vshrl.u32 %v3069, 7
      %v3071 = vsub.s32 %v3068, %v3070
      %v3072 = vrot.slane %v3058, %v3071
      %v3073 = vcombine.high %v3065, %v3065
      %v3074 = vcombine.high %v3072, %v3072
      %3075 = vrot.lane.b32.xlu0 %v3065, 60
      %v3076 = vpop.permute.xlu0 %3075
      %3077 = vrot.lane.b32.xlu0 %v3073, 60
      %v3078 = vpop.permute.xlu0 %3077
      %3079 = vrot.lane.b32.xlu0 %v3072, 60
      %v3080 = vpop.permute.xlu0 %3079
      %3081 = vrot.lane.b32.xlu0 %v3074, 60
      %v3082 = vpop.permute.xlu0 %3081
      %vm3083 = vcmask 490496
      %v3084 = vsel %vm3083, %v3076, %v3078
      %v3085 = vsel %vm3083, %v3078, %v3080
      %v3086 = vsel %vm3083, %v3080, %v3082
      %v3088 = vsel %vm202, %v3056, 0
      %v3091 = vand.u32 %v3084, %v209
      %v3094 = vand.u32 %v3085, %v209
      %v3097 = vand.u32 %v3086, %v209
      %3099 = vmatprep.subr.bf16.mxu0 0
      %3100 = vmatpush1.bf16.msra.mxu0 0
      %3101 = vmatprep.subr.bf16.mxu0 0
      %3102 = vmatpush1.bf16.msra.mxu0 0
      %3103 = vmatprep.subr.bf16.mxu0 0
      %3104 = vmatpush1.bf16.msra.mxu0 0
      %3105 = vmatprep.subr.bf16.mxu0 0
      %3106 = vmatpush1.bf16.msra.mxu0 0
      %3107 = vmatprep.subr.bf16.mxu0 0
      %3108 = vmatpush1.bf16.msra.mxu0 0
      %3109 = vmatprep.subr.bf16.mxu0 0
      %3110 = vmatpush1.bf16.msra.mxu0 0
      %3111 = vmatprep.subr.bf16.mxu0 0
      %3112 = vmatpush1.bf16.msra.mxu0 0
      %3113 = vmatprep.subr.bf16.mxu0 %v3094
      %3114 = vmatpush1.bf16.msra.mxu0 %v3091
      %3115 = vmatprep.subr.bf16.mxu0 0
      %3116 = vmatpush2.bf16.msra.mxu0 0
      %3117 = vmatprep.subr.bf16.mxu0 0
      %3118 = vmatpush2.bf16.msra.mxu0 0
      %3119 = vmatprep.subr.bf16.mxu0 0
      %3120 = vmatpush2.bf16.msra.mxu0 0
      %3121 = vmatprep.subr.bf16.mxu0 0
      %3122 = vmatpush2.bf16.msra.mxu0 0
      %3123 = vmatprep.subr.bf16.mxu0 0
      %3124 = vmatpush2.bf16.msra.mxu0 0
      %3125 = vmatprep.subr.bf16.mxu0 0
      %3126 = vmatpush2.bf16.msra.mxu0 0
      %3127 = vmatprep.subr.bf16.mxu0 0
      %3128 = vmatpush2.bf16.msra.mxu0 0
      %3129 = vmatprep.subr.bf16.mxu0 0
      %3130 = vmatpush2.bf16.msra.mxu0 0
      %3131 = vmatprep.mubr.bf16.mxu0 0
      %3132 = vmatmul.mubr.bf16.gmra.mxu0 %v3088
      %v3133 = vpop.f32.mrf.mxu0
      %v3134 = vadd.f32 0.0, %v3133
      %v3135 = vpop.f32.mrf.mxu0
      %v3136 = vadd.f32 0.0, %v3135
      %v3137 = vpop.f32.mrf.mxu0
      %v3138 = vpop.f32.mrf.mxu0
      %3139 = vdwg.mxu0
      %3140 = vmatprep.subr.bf16.mxu0 0
      %3141 = vmatpush1.bf16.msra.mxu0 0
      %3142 = vmatprep.subr.bf16.mxu0 0
      %3143 = vmatpush1.bf16.msra.mxu0 0
      %3144 = vmatprep.subr.bf16.mxu0 0
      %3145 = vmatpush1.bf16.msra.mxu0 0
      %3146 = vmatprep.subr.bf16.mxu0 0
      %3147 = vmatpush1.bf16.msra.mxu0 0
      %3148 = vmatprep.subr.bf16.mxu0 0
      %3149 = vmatpush1.bf16.msra.mxu0 0
      %3150 = vmatprep.subr.bf16.mxu0 0
      %3151 = vmatpush1.bf16.msra.mxu0 0
      %3152 = vmatprep.subr.bf16.mxu0 0
      %3153 = vmatpush1.bf16.msra.mxu0 0
      %3154 = vmatprep.subr.bf16.mxu0 0
      %3155 = vmatpush1.bf16.msra.mxu0 %v3097
      %3156 = vmatprep.subr.bf16.mxu0 0
      %3157 = vmatpush2.bf16.msra.mxu0 0
      %3158 = vmatprep.subr.bf16.mxu0 0
      %3159 = vmatpush2.bf16.msra.mxu0 0
      %3160 = vmatprep.subr.bf16.mxu0 0
      %3161 = vmatpush2.bf16.msra.mxu0 0
      %3162 = vmatprep.subr.bf16.mxu0 0
      %3163 = vmatpush2.bf16.msra.mxu0 0
      %3164 = vmatprep.subr.bf16.mxu0 0
      %3165 = vmatpush2.bf16.msra.mxu0 0
      %3166 = vmatprep.subr.bf16.mxu0 0
      %3167 = vmatpush2.bf16.msra.mxu0 0
      %3168 = vmatprep.subr.bf16.mxu0 0
      %3169 = vmatpush2.bf16.msra.mxu0 0
      %3170 = vmatprep.subr.bf16.mxu0 0
      %3171 = vmatpush2.bf16.msra.mxu0 0
      %3172 = vmatprep.mubr.bf16.mxu0 0
      %3173 = vmatmul.mubr.bf16.gmra.mxu0 %v3088
      %v3174 = vpop.f32.mrf.mxu0
      %v3175 = vadd.f32 0.0, %v3174
      %v3176 = vpop.f32.mrf.mxu0
      %v3177 = vpop.f32.mrf.mxu0
      %v3178 = vpop.f32.mrf.mxu0
      %3179 = vdwg.mxu0
      %v3180 = vadd.f32 %v3051, %v3134
      %v3181 = vadd.f32 %v3052, %v3136
      %v3182 = vadd.f32 %v3053, %v3175
      %v3183 = vld [vmem:[%s165] sm:$0xff]
      %s3184 = scalar_lea.vmem %s0, 96
      %v3185 = vld [vmem:[%s3184] sm:$0xf]
      %v3187 = vcombine.high %v3183, %v3183
      %v3189 = vunpack.c.l.s4 1983009808
      %v3190 = vunpack.c.0.s8 %v3189
      %v3191 = vlaneseq
      %v3192 = vshrl.u32 %v3191, 7
      %v3193 = vsub.s32 %v3190, %v3192
      %v3194 = vrot.slane %v3183, %v3193
      %v3196 = vunpack.c.l.s4 1983009808
      %v3197 = vunpack.c.0.s8 %v3196
      %v3198 = vlaneseq
      %v3199 = vshrl.u32 %v3198, 7
      %v3200 = vsub.s32 %v3197, %v3199
      %v3201 = vrot.slane %v3187, %v3200
      %v3202 = vcombine.high %v3194, %v3194
      %v3203 = vcombine.high %v3201, %v3201
      %3204 = vrot.lane.b32.xlu0 %v3194, 59
      %v3205 = vpop.permute.xlu0 %3204
      %3206 = vrot.lane.b32.xlu0 %v3202, 59
      %v3207 = vpop.permute.xlu0 %3206
      %3208 = vrot.lane.b32.xlu0 %v3201, 59
      %v3209 = vpop.permute.xlu0 %3208
      %3210 = vrot.lane.b32.xlu0 %v3203, 59
      %v3211 = vpop.permute.xlu0 %3210
      %vm3212 = vcmask 482304
      %v3213 = vsel %vm3212, %v3205, %v3207
      %v3214 = vsel %vm3212, %v3207, %v3209
      %v3215 = vsel %vm3212, %v3209, %v3211
      %v3217 = vsel %vm202, %v3185, 0
      %v3220 = vand.u32 %v3213, %v209
      %v3223 = vand.u32 %v3214, %v209
      %v3226 = vand.u32 %v3215, %v209
      %3228 = vmatprep.subr.bf16.mxu0 0
      %3229 = vmatpush1.bf16.msra.mxu0 0
      %3230 = vmatprep.subr.bf16.mxu0 0
      %3231 = vmatpush1.bf16.msra.mxu0 0
      %3232 = vmatprep.subr.bf16.mxu0 0
      %3233 = vmatpush1.bf16.msra.mxu0 0
      %3234 = vmatprep.subr.bf16.mxu0 0
      %3235 = vmatpush1.bf16.msra.mxu0 0
      %3236 = vmatprep.subr.bf16.mxu0 0
      %3237 = vmatpush1.bf16.msra.mxu0 0
      %3238 = vmatprep.subr.bf16.mxu0 0
      %3239 = vmatpush1.bf16.msra.mxu0 0
      %3240 = vmatprep.subr.bf16.mxu0 0
      %3241 = vmatpush1.bf16.msra.mxu0 0
      %3242 = vmatprep.subr.bf16.mxu0 %v3223
      %3243 = vmatpush1.bf16.msra.mxu0 %v3220
      %3244 = vmatprep.subr.bf16.mxu0 0
      %3245 = vmatpush2.bf16.msra.mxu0 0
      %3246 = vmatprep.subr.bf16.mxu0 0
      %3247 = vmatpush2.bf16.msra.mxu0 0
      %3248 = vmatprep.subr.bf16.mxu0 0
      %3249 = vmatpush2.bf16.msra.mxu0 0
      %3250 = vmatprep.subr.bf16.mxu0 0
      %3251 = vmatpush2.bf16.msra.mxu0 0
      %3252 = vmatprep.subr.bf16.mxu0 0
      %3253 = vmatpush2.bf16.msra.mxu0 0
      %3254 = vmatprep.subr.bf16.mxu0 0
      %3255 = vmatpush2.bf16.msra.mxu0 0
      %3256 = vmatprep.subr.bf16.mxu0 0
      %3257 = vmatpush2.bf16.msra.mxu0 0
      %3258 = vmatprep.subr.bf16.mxu0 0
      %3259 = vmatpush2.bf16.msra.mxu0 0
      %3260 = vmatprep.mubr.bf16.mxu0 0
      %3261 = vmatmul.mubr.bf16.gmra.mxu0 %v3217
      %v3262 = vpop.f32.mrf.mxu0
      %v3263 = vadd.f32 0.0, %v3262
      %v3264 = vpop.f32.mrf.mxu0
      %v3265 = vadd.f32 0.0, %v3264
      %v3266 = vpop.f32.mrf.mxu0
      %v3267 = vpop.f32.mrf.mxu0
      %3268 = vdwg.mxu0
      %3269 = vmatprep.subr.bf16.mxu0 0
      %3270 = vmatpush1.bf16.msra.mxu0 0
      %3271 = vmatprep.subr.bf16.mxu0 0
      %3272 = vmatpush1.bf16.msra.mxu0 0
      %3273 = vmatprep.subr.bf16.mxu0 0
      %3274 = vmatpush1.bf16.msra.mxu0 0
      %3275 = vmatprep.subr.bf16.mxu0 0
      %3276 = vmatpush1.bf16.msra.mxu0 0
      %3277 = vmatprep.subr.bf16.mxu0 0
      %3278 = vmatpush1.bf16.msra.mxu0 0
      %3279 = vmatprep.subr.bf16.mxu0 0
      %3280 = vmatpush1.bf16.msra.mxu0 0
      %3281 = vmatprep.subr.bf16.mxu0 0
      %3282 = vmatpush1.bf16.msra.mxu0 0
      %3283 = vmatprep.subr.bf16.mxu0 0
      %3284 = vmatpush1.bf16.msra.mxu0 %v3226
      %3285 = vmatprep.subr.bf16.mxu0 0
      %3286 = vmatpush2.bf16.msra.mxu0 0
      %3287 = vmatprep.subr.bf16.mxu0 0
      %3288 = vmatpush2.bf16.msra.mxu0 0
      %3289 = vmatprep.subr.bf16.mxu0 0
      %3290 = vmatpush2.bf16.msra.mxu0 0
      %3291 = vmatprep.subr.bf16.mxu0 0
      %3292 = vmatpush2.bf16.msra.mxu0 0
      %3293 = vmatprep.subr.bf16.mxu0 0
      %3294 = vmatpush2.bf16.msra.mxu0 0
      %3295 = vmatprep.subr.bf16.mxu0 0
      %3296 = vmatpush2.bf16.msra.mxu0 0
      %3297 = vmatprep.subr.bf16.mxu0 0
      %3298 = vmatpush2.bf16.msra.mxu0 0
      %3299 = vmatprep.subr.bf16.mxu0 0
      %3300 = vmatpush2.bf16.msra.mxu0 0
      %3301 = vmatprep.mubr.bf16.mxu0 0
      %3302 = vmatmul.mubr.bf16.gmra.mxu0 %v3217
      %v3303 = vpop.f32.mrf.mxu0
      %v3304 = vadd.f32 0.0, %v3303
      %v3305 = vpop.f32.mrf.mxu0
      %v3306 = vpop.f32.mrf.mxu0
      %v3307 = vpop.f32.mrf.mxu0
      %3308 = vdwg.mxu0
      %v3309 = vadd.f32 %v3180, %v3263
      %v3310 = vadd.f32 %v3181, %v3265
      %v3311 = vadd.f32 %v3182, %v3304
      %v3312 = vld [vmem:[%s165] sm:$0xff]
      %s3313 = scalar_lea.vmem %s0, 100
      %v3314 = vld [vmem:[%s3313] sm:$0xf]
      %v3316 = vcombine.high %v3312, %v3312
      %v3318 = vunpack.c.l.s4 1983009808
      %v3319 = vunpack.c.0.s8 %v3318
      %v3320 = vlaneseq
      %v3321 = vshrl.u32 %v3320, 7
      %v3322 = vsub.s32 %v3319, %v3321
      %v3323 = vrot.slane %v3312, %v3322
      %v3325 = vunpack.c.l.s4 1983009808
      %v3326 = vunpack.c.0.s8 %v3325
      %v3327 = vlaneseq
      %v3328 = vshrl.u32 %v3327, 7
      %v3329 = vsub.s32 %v3326, %v3328
      %v3330 = vrot.slane %v3316, %v3329
      %v3331 = vcombine.high %v3323, %v3323
      %v3332 = vcombine.high %v3330, %v3330
      %3333 = vrot.lane.b32.xlu0 %v3323, 58
      %v3334 = vpop.permute.xlu0 %3333
      %3335 = vrot.lane.b32.xlu0 %v3331, 58
      %v3336 = vpop.permute.xlu0 %3335
      %3337 = vrot.lane.b32.xlu0 %v3330, 58
      %v3338 = vpop.permute.xlu0 %3337
      %3339 = vrot.lane.b32.xlu0 %v3332, 58
      %v3340 = vpop.permute.xlu0 %3339
      %vm3341 = vcmask 474112
      %v3342 = vsel %vm3341, %v3334, %v3336
      %v3343 = vsel %vm3341, %v3336, %v3338
      %v3344 = vsel %vm3341, %v3338, %v3340
      %v3346 = vsel %vm202, %v3314, 0
      %v3349 = vand.u32 %v3342, %v209
      %v3352 = vand.u32 %v3343, %v209
      %v3355 = vand.u32 %v3344, %v209
      %3357 = vmatprep.subr.bf16.mxu0 0
      %3358 = vmatpush1.bf16.msra.mxu0 0
      %3359 = vmatprep.subr.bf16.mxu0 0
      %3360 = vmatpush1.bf16.msra.mxu0 0
      %3361 = vmatprep.subr.bf16.mxu0 0
      %3362 = vmatpush1.bf16.msra.mxu0 0
      %3363 = vmatprep.subr.bf16.mxu0 0
      %3364 = vmatpush1.bf16.msra.mxu0 0
      %3365 = vmatprep.subr.bf16.mxu0 0
      %3366 = vmatpush1.bf16.msra.mxu0 0
      %3367 = vmatprep.subr.bf16.mxu0 0
      %3368 = vmatpush1.bf16.msra.mxu0 0
      %3369 = vmatprep.subr.bf16.mxu0 0
      %3370 = vmatpush1.bf16.msra.mxu0 0
      %3371 = vmatprep.subr.bf16.mxu0 %v3352
      %3372 = vmatpush1.bf16.msra.mxu0 %v3349
      %3373 = vmatprep.subr.bf16.mxu0 0
      %3374 = vmatpush2.bf16.msra.mxu0 0
      %3375 = vmatprep.subr.bf16.mxu0 0
      %3376 = vmatpush2.bf16.msra.mxu0 0
      %3377 = vmatprep.subr.bf16.mxu0 0
      %3378 = vmatpush2.bf16.msra.mxu0 0
      %3379 = vmatprep.subr.bf16.mxu0 0
      %3380 = vmatpush2.bf16.msra.mxu0 0
      %3381 = vmatprep.subr.bf16.mxu0 0
      %3382 = vmatpush2.bf16.msra.mxu0 0
      %3383 = vmatprep.subr.bf16.mxu0 0
      %3384 = vmatpush2.bf16.msra.mxu0 0
      %3385 = vmatprep.subr.bf16.mxu0 0
      %3386 = vmatpush2.bf16.msra.mxu0 0
      %3387 = vmatprep.subr.bf16.mxu0 0
      %3388 = vmatpush2.bf16.msra.mxu0 0
      %3389 = vmatprep.mubr.bf16.mxu0 0
      %3390 = vmatmul.mubr.bf16.gmra.mxu0 %v3346
      %v3391 = vpop.f32.mrf.mxu0
      %v3392 = vadd.f32 0.0, %v3391
      %v3393 = vpop.f32.mrf.mxu0
      %v3394 = vadd.f32 0.0, %v3393
      %v3395 = vpop.f32.mrf.mxu0
      %v3396 = vpop.f32.mrf.mxu0
      %3397 = vdwg.mxu0
      %3398 = vmatprep.subr.bf16.mxu0 0
      %3399 = vmatpush1.bf16.msra.mxu0 0
      %3400 = vmatprep.subr.bf16.mxu0 0
      %3401 = vmatpush1.bf16.msra.mxu0 0
      %3402 = vmatprep.subr.bf16.mxu0 0
      %3403 = vmatpush1.bf16.msra.mxu0 0
      %3404 = vmatprep.subr.bf16.mxu0 0
      %3405 = vmatpush1.bf16.msra.mxu0 0
      %3406 = vmatprep.subr.bf16.mxu0 0
      %3407 = vmatpush1.bf16.msra.mxu0 0
      %3408 = vmatprep.subr.bf16.mxu0 0
      %3409 = vmatpush1.bf16.msra.mxu0 0
      %3410 = vmatprep.subr.bf16.mxu0 0
      %3411 = vmatpush1.bf16.msra.mxu0 0
      %3412 = vmatprep.subr.bf16.mxu0 0
      %3413 = vmatpush1.bf16.msra.mxu0 %v3355
      %3414 = vmatprep.subr.bf16.mxu0 0
      %3415 = vmatpush2.bf16.msra.mxu0 0
      %3416 = vmatprep.subr.bf16.mxu0 0
      %3417 = vmatpush2.bf16.msra.mxu0 0
      %3418 = vmatprep.subr.bf16.mxu0 0
      %3419 = vmatpush2.bf16.msra.mxu0 0
      %3420 = vmatprep.subr.bf16.mxu0 0
      %3421 = vmatpush2.bf16.msra.mxu0 0
      %3422 = vmatprep.subr.bf16.mxu0 0
      %3423 = vmatpush2.bf16.msra.mxu0 0
      %3424 = vmatprep.subr.bf16.mxu0 0
      %3425 = vmatpush2.bf16.msra.mxu0 0
      %3426 = vmatprep.subr.bf16.mxu0 0
      %3427 = vmatpush2.bf16.msra.mxu0 0
      %3428 = vmatprep.subr.bf16.mxu0 0
      %3429 = vmatpush2.bf16.msra.mxu0 0
      %3430 = vmatprep.mubr.bf16.mxu0 0
      %3431 = vmatmul.mubr.bf16.gmra.mxu0 %v3346
      %v3432 = vpop.f32.mrf.mxu0
      %v3433 = vadd.f32 0.0, %v3432
      %v3434 = vpop.f32.mrf.mxu0
      %v3435 = vpop.f32.mrf.mxu0
      %v3436 = vpop.f32.mrf.mxu0
      %3437 = vdwg.mxu0
      %v3438 = vadd.f32 %v3309, %v3392
      %v3439 = vadd.f32 %v3310, %v3394
      %v3440 = vadd.f32 %v3311, %v3433
      %v3441 = vld [vmem:[%s165] sm:$0xff]
      %s3442 = scalar_lea.vmem %s0, 104
      %v3443 = vld [vmem:[%s3442] sm:$0xf]
      %v3445 = vcombine.high %v3441, %v3441
      %v3447 = vunpack.c.l.s4 1983009808
      %v3448 = vunpack.c.0.s8 %v3447
      %v3449 = vlaneseq
      %v3450 = vshrl.u32 %v3449, 7
      %v3451 = vsub.s32 %v3448, %v3450
      %v3452 = vrot.slane %v3441, %v3451
      %v3454 = vunpack.c.l.s4 1983009808
      %v3455 = vunpack.c.0.s8 %v3454
      %v3456 = vlaneseq
      %v3457 = vshrl.u32 %v3456, 7
      %v3458 = vsub.s32 %v3455, %v3457
      %v3459 = vrot.slane %v3445, %v3458
      %v3460 = vcombine.high %v3452, %v3452
      %v3461 = vcombine.high %v3459, %v3459
      %3462 = vrot.lane.b32.xlu0 %v3452, 57
      %v3463 = vpop.permute.xlu0 %3462
      %3464 = vrot.lane.b32.xlu0 %v3460, 57
      %v3465 = vpop.permute.xlu0 %3464
      %3466 = vrot.lane.b32.xlu0 %v3459, 57
      %v3467 = vpop.permute.xlu0 %3466
      %3468 = vrot.lane.b32.xlu0 %v3461, 57
      %v3469 = vpop.permute.xlu0 %3468
      %vm3470 = vcmask 465920
      %v3471 = vsel %vm3470, %v3463, %v3465
      %v3472 = vsel %vm3470, %v3465, %v3467
      %v3473 = vsel %vm3470, %v3467, %v3469
      %v3475 = vsel %vm202, %v3443, 0
      %v3478 = vand.u32 %v3471, %v209
      %v3481 = vand.u32 %v3472, %v209
      %v3484 = vand.u32 %v3473, %v209
      %3486 = vmatprep.subr.bf16.mxu0 0
      %3487 = vmatpush1.bf16.msra.mxu0 0
      %3488 = vmatprep.subr.bf16.mxu0 0
      %3489 = vmatpush1.bf16.msra.mxu0 0
      %3490 = vmatprep.subr.bf16.mxu0 0
      %3491 = vmatpush1.bf16.msra.mxu0 0
      %3492 = vmatprep.subr.bf16.mxu0 0
      %3493 = vmatpush1.bf16.msra.mxu0 0
      %3494 = vmatprep.subr.bf16.mxu0 0
      %3495 = vmatpush1.bf16.msra.mxu0 0
      %3496 = vmatprep.subr.bf16.mxu0 0
      %3497 = vmatpush1.bf16.msra.mxu0 0
      %3498 = vmatprep.subr.bf16.mxu0 0
      %3499 = vmatpush1.bf16.msra.mxu0 0
      %3500 = vmatprep.subr.bf16.mxu0 %v3481
      %3501 = vmatpush1.bf16.msra.mxu0 %v3478
      %3502 = vmatprep.subr.bf16.mxu0 0
      %3503 = vmatpush2.bf16.msra.mxu0 0
      %3504 = vmatprep.subr.bf16.mxu0 0
      %3505 = vmatpush2.bf16.msra.mxu0 0
      %3506 = vmatprep.subr.bf16.mxu0 0
      %3507 = vmatpush2.bf16.msra.mxu0 0
      %3508 = vmatprep.subr.bf16.mxu0 0
      %3509 = vmatpush2.bf16.msra.mxu0 0
      %3510 = vmatprep.subr.bf16.mxu0 0
      %3511 = vmatpush2.bf16.msra.mxu0 0
      %3512 = vmatprep.subr.bf16.mxu0 0
      %3513 = vmatpush2.bf16.msra.mxu0 0
      %3514 = vmatprep.subr.bf16.mxu0 0
      %3515 = vmatpush2.bf16.msra.mxu0 0
      %3516 = vmatprep.subr.bf16.mxu0 0
      %3517 = vmatpush2.bf16.msra.mxu0 0
      %3518 = vmatprep.mubr.bf16.mxu0 0
      %3519 = vmatmul.mubr.bf16.gmra.mxu0 %v3475
      %v3520 = vpop.f32.mrf.mxu0
      %v3521 = vadd.f32 0.0, %v3520
      %v3522 = vpop.f32.mrf.mxu0
      %v3523 = vadd.f32 0.0, %v3522
      %v3524 = vpop.f32.mrf.mxu0
      %v3525 = vpop.f32.mrf.mxu0
      %3526 = vdwg.mxu0
      %3527 = vmatprep.subr.bf16.mxu0 0
      %3528 = vmatpush1.bf16.msra.mxu0 0
      %3529 = vmatprep.subr.bf16.mxu0 0
      %3530 = vmatpush1.bf16.msra.mxu0 0
      %3531 = vmatprep.subr.bf16.mxu0 0
      %3532 = vmatpush1.bf16.msra.mxu0 0
      %3533 = vmatprep.subr.bf16.mxu0 0
      %3534 = vmatpush1.bf16.msra.mxu0 0
      %3535 = vmatprep.subr.bf16.mxu0 0
      %3536 = vmatpush1.bf16.msra.mxu0 0
      %3537 = vmatprep.subr.bf16.mxu0 0
      %3538 = vmatpush1.bf16.msra.mxu0 0
      %3539 = vmatprep.subr.bf16.mxu0 0
      %3540 = vmatpush1.bf16.msra.mxu0 0
      %3541 = vmatprep.subr.bf16.mxu0 0
      %3542 = vmatpush1.bf16.msra.mxu0 %v3484
      %3543 = vmatprep.subr.bf16.mxu0 0
      %3544 = vmatpush2.bf16.msra.mxu0 0
      %3545 = vmatprep.subr.bf16.mxu0 0
      %3546 = vmatpush2.bf16.msra.mxu0 0
      %3547 = vmatprep.subr.bf16.mxu0 0
      %3548 = vmatpush2.bf16.msra.mxu0 0
      %3549 = vmatprep.subr.bf16.mxu0 0
      %3550 = vmatpush2.bf16.msra.mxu0 0
      %3551 = vmatprep.subr.bf16.mxu0 0
      %3552 = vmatpush2.bf16.msra.mxu0 0
      %3553 = vmatprep.subr.bf16.mxu0 0
      %3554 = vmatpush2.bf16.msra.mxu0 0
      %3555 = vmatprep.subr.bf16.mxu0 0
      %3556 = vmatpush2.bf16.msra.mxu0 0
      %3557 = vmatprep.subr.bf16.mxu0 0
      %3558 = vmatpush2.bf16.msra.mxu0 0
      %3559 = vmatprep.mubr.bf16.mxu0 0
      %3560 = vmatmul.mubr.bf16.gmra.mxu0 %v3475
      %v3561 = vpop.f32.mrf.mxu0
      %v3562 = vadd.f32 0.0, %v3561
      %v3563 = vpop.f32.mrf.mxu0
      %v3564 = vpop.f32.mrf.mxu0
      %v3565 = vpop.f32.mrf.mxu0
      %3566 = vdwg.mxu0
      %v3567 = vadd.f32 %v3438, %v3521
      %v3568 = vadd.f32 %v3439, %v3523
      %v3569 = vadd.f32 %v3440, %v3562
      %v3570 = vld [vmem:[%s165] sm:$0xff]
      %s3571 = scalar_lea.vmem %s0, 108
      %v3572 = vld [vmem:[%s3571] sm:$0xf]
      %v3574 = vcombine.high %v3570, %v3570
      %v3576 = vunpack.c.l.s4 1983009808
      %v3577 = vunpack.c.0.s8 %v3576
      %v3578 = vlaneseq
      %v3579 = vshrl.u32 %v3578, 7
      %v3580 = vsub.s32 %v3577, %v3579
      %v3581 = vrot.slane %v3570, %v3580
      %v3583 = vunpack.c.l.s4 1983009808
      %v3584 = vunpack.c.0.s8 %v3583
      %v3585 = vlaneseq
      %v3586 = vshrl.u32 %v3585, 7
      %v3587 = vsub.s32 %v3584, %v3586
      %v3588 = vrot.slane %v3574, %v3587
      %v3589 = vcombine.high %v3581, %v3581
      %v3590 = vcombine.high %v3588, %v3588
      %3591 = vrot.lane.b32.xlu0 %v3581, 56
      %v3592 = vpop.permute.xlu0 %3591
      %3593 = vrot.lane.b32.xlu0 %v3589, 56
      %v3594 = vpop.permute.xlu0 %3593
      %3595 = vrot.lane.b32.xlu0 %v3588, 56
      %v3596 = vpop.permute.xlu0 %3595
      %3597 = vrot.lane.b32.xlu0 %v3590, 56
      %v3598 = vpop.permute.xlu0 %3597
      %vm3599 = vcmask 457728
      %v3600 = vsel %vm3599, %v3592, %v3594
      %v3601 = vsel %vm3599, %v3594, %v3596
      %v3602 = vsel %vm3599, %v3596, %v3598
      %v3604 = vsel %vm202, %v3572, 0
      %v3607 = vand.u32 %v3600, %v209
      %v3610 = vand.u32 %v3601, %v209
      %v3613 = vand.u32 %v3602, %v209
      %3615 = vmatprep.subr.bf16.mxu0 0
      %3616 = vmatpush1.bf16.msra.mxu0 0
      %3617 = vmatprep.subr.bf16.mxu0 0
      %3618 = vmatpush1.bf16.msra.mxu0 0
      %3619 = vmatprep.subr.bf16.mxu0 0
      %3620 = vmatpush1.bf16.msra.mxu0 0
      %3621 = vmatprep.subr.bf16.mxu0 0
      %3622 = vmatpush1.bf16.msra.mxu0 0
      %3623 = vmatprep.subr.bf16.mxu0 0
      %3624 = vmatpush1.bf16.msra.mxu0 0
      %3625 = vmatprep.subr.bf16.mxu0 0
      %3626 = vmatpush1.bf16.msra.mxu0 0
      %3627 = vmatprep.subr.bf16.mxu0 0
      %3628 = vmatpush1.bf16.msra.mxu0 0
      %3629 = vmatprep.subr.bf16.mxu0 %v3610
      %3630 = vmatpush1.bf16.msra.mxu0 %v3607
      %3631 = vmatprep.subr.bf16.mxu0 0
      %3632 = vmatpush2.bf16.msra.mxu0 0
      %3633 = vmatprep.subr.bf16.mxu0 0
      %3634 = vmatpush2.bf16.msra.mxu0 0
      %3635 = vmatprep.subr.bf16.mxu0 0
      %3636 = vmatpush2.bf16.msra.mxu0 0
      %3637 = vmatprep.subr.bf16.mxu0 0
      %3638 = vmatpush2.bf16.msra.mxu0 0
      %3639 = vmatprep.subr.bf16.mxu0 0
      %3640 = vmatpush2.bf16.msra.mxu0 0
      %3641 = vmatprep.subr.bf16.mxu0 0
      %3642 = vmatpush2.bf16.msra.mxu0 0
      %3643 = vmatprep.subr.bf16.mxu0 0
      %3644 = vmatpush2.bf16.msra.mxu0 0
      %3645 = vmatprep.subr.bf16.mxu0 0
      %3646 = vmatpush2.bf16.msra.mxu0 0
      %3647 = vmatprep.mubr.bf16.mxu0 0
      %3648 = vmatmul.mubr.bf16.gmra.mxu0 %v3604
      %v3649 = vpop.f32.mrf.mxu0
      %v3650 = vadd.f32 0.0, %v3649
      %v3651 = vpop.f32.mrf.mxu0
      %v3652 = vadd.f32 0.0, %v3651
      %v3653 = vpop.f32.mrf.mxu0
      %v3654 = vpop.f32.mrf.mxu0
      %3655 = vdwg.mxu0
      %3656 = vmatprep.subr.bf16.mxu0 0
      %3657 = vmatpush1.bf16.msra.mxu0 0
      %3658 = vmatprep.subr.bf16.mxu0 0
      %3659 = vmatpush1.bf16.msra.mxu0 0
      %3660 = vmatprep.subr.bf16.mxu0 0
      %3661 = vmatpush1.bf16.msra.mxu0 0
      %3662 = vmatprep.subr.bf16.mxu0 0
      %3663 = vmatpush1.bf16.msra.mxu0 0
      %3664 = vmatprep.subr.bf16.mxu0 0
      %3665 = vmatpush1.bf16.msra.mxu0 0
      %3666 = vmatprep.subr.bf16.mxu0 0
      %3667 = vmatpush1.bf16.msra.mxu0 0
      %3668 = vmatprep.subr.bf16.mxu0 0
      %3669 = vmatpush1.bf16.msra.mxu0 0
      %3670 = vmatprep.subr.bf16.mxu0 0
      %3671 = vmatpush1.bf16.msra.mxu0 %v3613
      %3672 = vmatprep.subr.bf16.mxu0 0
      %3673 = vmatpush2.bf16.msra.mxu0 0
      %3674 = vmatprep.subr.bf16.mxu0 0
      %3675 = vmatpush2.bf16.msra.mxu0 0
      %3676 = vmatprep.subr.bf16.mxu0 0
      %3677 = vmatpush2.bf16.msra.mxu0 0
      %3678 = vmatprep.subr.bf16.mxu0 0
      %3679 = vmatpush2.bf16.msra.mxu0 0
      %3680 = vmatprep.subr.bf16.mxu0 0
      %3681 = vmatpush2.bf16.msra.mxu0 0
      %3682 = vmatprep.subr.bf16.mxu0 0
      %3683 = vmatpush2.bf16.msra.mxu0 0
      %3684 = vmatprep.subr.bf16.mxu0 0
      %3685 = vmatpush2.bf16.msra.mxu0 0
      %3686 = vmatprep.subr.bf16.mxu0 0
      %3687 = vmatpush2.bf16.msra.mxu0 0
      %3688 = vmatprep.mubr.bf16.mxu0 0
      %3689 = vmatmul.mubr.bf16.gmra.mxu0 %v3604
      %v3690 = vpop.f32.mrf.mxu0
      %v3691 = vadd.f32 0.0, %v3690
      %v3692 = vpop.f32.mrf.mxu0
      %v3693 = vpop.f32.mrf.mxu0
      %v3694 = vpop.f32.mrf.mxu0
      %3695 = vdwg.mxu0
      %v3696 = vadd.f32 %v3567, %v3650
      %v3697 = vadd.f32 %v3568, %v3652
      %v3698 = vadd.f32 %v3569, %v3691
      %v3699 = vld [vmem:[%s165] sm:$0xff]
      %s3700 = scalar_lea.vmem %s0, 112
      %v3701 = vld [vmem:[%s3700] sm:$0xf]
      %v3703 = vcombine.high %v3699, %v3699
      %v3705 = vunpack.c.l.s4 1983009808
      %v3706 = vunpack.c.0.s8 %v3705
      %v3707 = vlaneseq
      %v3708 = vshrl.u32 %v3707, 7
      %v3709 = vsub.s32 %v3706, %v3708
      %v3710 = vrot.slane %v3699, %v3709
      %v3712 = vunpack.c.l.s4 1983009808
      %v3713 = vunpack.c.0.s8 %v3712
      %v3714 = vlaneseq
      %v3715 = vshrl.u32 %v3714, 7
      %v3716 = vsub.s32 %v3713, %v3715
      %v3717 = vrot.slane %v3703, %v3716
      %v3718 = vcombine.high %v3710, %v3710
      %v3719 = vcombine.high %v3717, %v3717
      %3720 = vrot.lane.b32.xlu0 %v3710, 40
      %v3721 = vpop.permute.xlu0 %3720
      %3722 = vrot.lane.b32.xlu0 %v3718, 40
      %v3723 = vpop.permute.xlu0 %3722
      %3724 = vrot.lane.b32.xlu0 %v3717, 40
      %v3725 = vpop.permute.xlu0 %3724
      %3726 = vrot.lane.b32.xlu0 %v3719, 40
      %v3727 = vpop.permute.xlu0 %3726
      %vm3728 = vcmask 326656
      %v3729 = vsel %vm3728, %v3721, %v3723
      %v3730 = vsel %vm3728, %v3723, %v3725
      %v3731 = vsel %vm3728, %v3725, %v3727
      %v3733 = vsel %vm202, %v3701, 0
      %v3736 = vand.u32 %v3729, %v209
      %v3739 = vand.u32 %v3730, %v209
      %v3742 = vand.u32 %v3731, %v209
      %3744 = vmatprep.subr.bf16.mxu0 0
      %3745 = vmatpush1.bf16.msra.mxu0 0
      %3746 = vmatprep.subr.bf16.mxu0 0
      %3747 = vmatpush1.bf16.msra.mxu0 0
      %3748 = vmatprep.subr.bf16.mxu0 0
      %3749 = vmatpush1.bf16.msra.mxu0 0
      %3750 = vmatprep.subr.bf16.mxu0 0
      %3751 = vmatpush1.bf16.msra.mxu0 0
      %3752 = vmatprep.subr.bf16.mxu0 0
      %3753 = vmatpush1.bf16.msra.mxu0 0
      %3754 = vmatprep.subr.bf16.mxu0 0
      %3755 = vmatpush1.bf16.msra.mxu0 0
      %3756 = vmatprep.subr.bf16.mxu0 0
      %3757 = vmatpush1.bf16.msra.mxu0 0
      %3758 = vmatprep.subr.bf16.mxu0 %v3739
      %3759 = vmatpush1.bf16.msra.mxu0 %v3736
      %3760 = vmatprep.subr.bf16.mxu0 0
      %3761 = vmatpush2.bf16.msra.mxu0 0
      %3762 = vmatprep.subr.bf16.mxu0 0
      %3763 = vmatpush2.bf16.msra.mxu0 0
      %3764 = vmatprep.subr.bf16.mxu0 0
      %3765 = vmatpush2.bf16.msra.mxu0 0
      %3766 = vmatprep.subr.bf16.mxu0 0
      %3767 = vmatpush2.bf16.msra.mxu0 0
      %3768 = vmatprep.subr.bf16.mxu0 0
      %3769 = vmatpush2.bf16.msra.mxu0 0
      %3770 = vmatprep.subr.bf16.mxu0 0
      %3771 = vmatpush2.bf16.msra.mxu0 0
      %3772 = vmatprep.subr.bf16.mxu0 0
      %3773 = vmatpush2.bf16.msra.mxu0 0
      %3774 = vmatprep.subr.bf16.mxu0 0
      %3775 = vmatpush2.bf16.msra.mxu0 0
      %3776 = vmatprep.mubr.bf16.mxu0 0
      %3777 = vmatmul.mubr.bf16.gmra.mxu0 %v3733
      %v3778 = vpop.f32.mrf.mxu0
      %v3779 = vadd.f32 0.0, %v3778
      %v3780 = vpop.f32.mrf.mxu0
      %v3781 = vadd.f32 0.0, %v3780
      %v3782 = vpop.f32.mrf.mxu0
      %v3783 = vpop.f32.mrf.mxu0
      %3784 = vdwg.mxu0
      %3785 = vmatprep.subr.bf16.mxu0 0
      %3786 = vmatpush1.bf16.msra.mxu0 0
      %3787 = vmatprep.subr.bf16.mxu0 0
      %3788 = vmatpush1.bf16.msra.mxu0 0
      %3789 = vmatprep.subr.bf16.mxu0 0
      %3790 = vmatpush1.bf16.msra.mxu0 0
      %3791 = vmatprep.subr.bf16.mxu0 0
      %3792 = vmatpush1.bf16.msra.mxu0 0
      %3793 = vmatprep.subr.bf16.mxu0 0
      %3794 = vmatpush1.bf16.msra.mxu0 0
      %3795 = vmatprep.subr.bf16.mxu0 0
      %3796 = vmatpush1.bf16.msra.mxu0 0
      %3797 = vmatprep.subr.bf16.mxu0 0
      %3798 = vmatpush1.bf16.msra.mxu0 0
      %3799 = vmatprep.subr.bf16.mxu0 0
      %3800 = vmatpush1.bf16.msra.mxu0 %v3742
      %3801 = vmatprep.subr.bf16.mxu0 0
      %3802 = vmatpush2.bf16.msra.mxu0 0
      %3803 = vmatprep.subr.bf16.mxu0 0
      %3804 = vmatpush2.bf16.msra.mxu0 0
      %3805 = vmatprep.subr.bf16.mxu0 0
      %3806 = vmatpush2.bf16.msra.mxu0 0
      %3807 = vmatprep.subr.bf16.mxu0 0
      %3808 = vmatpush2.bf16.msra.mxu0 0
      %3809 = vmatprep.subr.bf16.mxu0 0
      %3810 = vmatpush2.bf16.msra.mxu0 0
      %3811 = vmatprep.subr.bf16.mxu0 0
      %3812 = vmatpush2.bf16.msra.mxu0 0
      %3813 = vmatprep.subr.bf16.mxu0 0
      %3814 = vmatpush2.bf16.msra.mxu0 0
      %3815 = vmatprep.subr.bf16.mxu0 0
      %3816 = vmatpush2.bf16.msra.mxu0 0
      %3817 = vmatprep.mubr.bf16.mxu0 0
      %3818 = vmatmul.mubr.bf16.gmra.mxu0 %v3733
      %v3819 = vpop.f32.mrf.mxu0
      %v3820 = vadd.f32 0.0, %v3819
      %v3821 = vpop.f32.mrf.mxu0
      %v3822 = vpop.f32.mrf.mxu0
      %v3823 = vpop.f32.mrf.mxu0
      %3824 = vdwg.mxu0
      %v3825 = vadd.f32 %v3696, %v3779
      %v3826 = vadd.f32 %v3697, %v3781
      %v3827 = vadd.f32 %v3698, %v3820
      %v3828 = vld [vmem:[%s165] sm:$0xff]
      %s3829 = scalar_lea.vmem %s0, 116
      %v3830 = vld [vmem:[%s3829] sm:$0xf]
      %v3832 = vcombine.high %v3828, %v3828
      %v3834 = vunpack.c.l.s4 1983009808
      %v3835 = vunpack.c.0.s8 %v3834
      %v3836 = vlaneseq
      %v3837 = vshrl.u32 %v3836, 7
      %v3838 = vsub.s32 %v3835, %v3837
      %v3839 = vrot.slane %v3828, %v3838
      %v3841 = vunpack.c.l.s4 1983009808
      %v3842 = vunpack.c.0.s8 %v3841
      %v3843 = vlaneseq
      %v3844 = vshrl.u32 %v3843, 7
      %v3845 = vsub.s32 %v3842, %v3844
      %v3846 = vrot.slane %v3832, %v3845
      %v3847 = vcombine.high %v3839, %v3839
      %v3848 = vcombine.high %v3846, %v3846
      %3849 = vrot.lane.b32.xlu0 %v3839, 39
      %v3850 = vpop.permute.xlu0 %3849
      %3851 = vrot.lane.b32.xlu0 %v3847, 39
      %v3852 = vpop.permute.xlu0 %3851
      %3853 = vrot.lane.b32.xlu0 %v3846, 39
      %v3854 = vpop.permute.xlu0 %3853
      %3855 = vrot.lane.b32.xlu0 %v3848, 39
      %v3856 = vpop.permute.xlu0 %3855
      %vm3857 = vcmask 318464
      %v3858 = vsel %vm3857, %v3850, %v3852
      %v3859 = vsel %vm3857, %v3852, %v3854
      %v3860 = vsel %vm3857, %v3854, %v3856
      %v3862 = vsel %vm202, %v3830, 0
      %v3865 = vand.u32 %v3858, %v209
      %v3868 = vand.u32 %v3859, %v209
      %v3871 = vand.u32 %v3860, %v209
      %3873 = vmatprep.subr.bf16.mxu0 0
      %3874 = vmatpush1.bf16.msra.mxu0 0
      %3875 = vmatprep.subr.bf16.mxu0 0
      %3876 = vmatpush1.bf16.msra.mxu0 0
      %3877 = vmatprep.subr.bf16.mxu0 0
      %3878 = vmatpush1.bf16.msra.mxu0 0
      %3879 = vmatprep.subr.bf16.mxu0 0
      %3880 = vmatpush1.bf16.msra.mxu0 0
      %3881 = vmatprep.subr.bf16.mxu0 0
      %3882 = vmatpush1.bf16.msra.mxu0 0
      %3883 = vmatprep.subr.bf16.mxu0 0
      %3884 = vmatpush1.bf16.msra.mxu0 0
      %3885 = vmatprep.subr.bf16.mxu0 0
      %3886 = vmatpush1.bf16.msra.mxu0 0
      %3887 = vmatprep.subr.bf16.mxu0 %v3868
      %3888 = vmatpush1.bf16.msra.mxu0 %v3865
      %3889 = vmatprep.subr.bf16.mxu0 0
      %3890 = vmatpush2.bf16.msra.mxu0 0
      %3891 = vmatprep.subr.bf16.mxu0 0
      %3892 = vmatpush2.bf16.msra.mxu0 0
      %3893 = vmatprep.subr.bf16.mxu0 0
      %3894 = vmatpush2.bf16.msra.mxu0 0
      %3895 = vmatprep.subr.bf16.mxu0 0
      %3896 = vmatpush2.bf16.msra.mxu0 0
      %3897 = vmatprep.subr.bf16.mxu0 0
      %3898 = vmatpush2.bf16.msra.mxu0 0
      %3899 = vmatprep.subr.bf16.mxu0 0
      %3900 = vmatpush2.bf16.msra.mxu0 0
      %3901 = vmatprep.subr.bf16.mxu0 0
      %3902 = vmatpush2.bf16.msra.mxu0 0
      %3903 = vmatprep.subr.bf16.mxu0 0
      %3904 = vmatpush2.bf16.msra.mxu0 0
      %3905 = vmatprep.mubr.bf16.mxu0 0
      %3906 = vmatmul.mubr.bf16.gmra.mxu0 %v3862
      %v3907 = vpop.f32.mrf.mxu0
      %v3908 = vadd.f32 0.0, %v3907
      %v3909 = vpop.f32.mrf.mxu0
      %v3910 = vadd.f32 0.0, %v3909
      %v3911 = vpop.f32.mrf.mxu0
      %v3912 = vpop.f32.mrf.mxu0
      %3913 = vdwg.mxu0
      %3914 = vmatprep.subr.bf16.mxu0 0
      %3915 = vmatpush1.bf16.msra.mxu0 0
      %3916 = vmatprep.subr.bf16.mxu0 0
      %3917 = vmatpush1.bf16.msra.mxu0 0
      %3918 = vmatprep.subr.bf16.mxu0 0
      %3919 = vmatpush1.bf16.msra.mxu0 0
      %3920 = vmatprep.subr.bf16.mxu0 0
      %3921 = vmatpush1.bf16.msra.mxu0 0
      %3922 = vmatprep.subr.bf16.mxu0 0
      %3923 = vmatpush1.bf16.msra.mxu0 0
      %3924 = vmatprep.subr.bf16.mxu0 0
      %3925 = vmatpush1.bf16.msra.mxu0 0
      %3926 = vmatprep.subr.bf16.mxu0 0
      %3927 = vmatpush1.bf16.msra.mxu0 0
      %3928 = vmatprep.subr.bf16.mxu0 0
      %3929 = vmatpush1.bf16.msra.mxu0 %v3871
      %3930 = vmatprep.subr.bf16.mxu0 0
      %3931 = vmatpush2.bf16.msra.mxu0 0
      %3932 = vmatprep.subr.bf16.mxu0 0
      %3933 = vmatpush2.bf16.msra.mxu0 0
      %3934 = vmatprep.subr.bf16.mxu0 0
      %3935 = vmatpush2.bf16.msra.mxu0 0
      %3936 = vmatprep.subr.bf16.mxu0 0
      %3937 = vmatpush2.bf16.msra.mxu0 0
      %3938 = vmatprep.subr.bf16.mxu0 0
      %3939 = vmatpush2.bf16.msra.mxu0 0
      %3940 = vmatprep.subr.bf16.mxu0 0
      %3941 = vmatpush2.bf16.msra.mxu0 0
      %3942 = vmatprep.subr.bf16.mxu0 0
      %3943 = vmatpush2.bf16.msra.mxu0 0
      %3944 = vmatprep.subr.bf16.mxu0 0
      %3945 = vmatpush2.bf16.msra.mxu0 0
      %3946 = vmatprep.mubr.bf16.mxu0 0
      %3947 = vmatmul.mubr.bf16.gmra.mxu0 %v3862
      %v3948 = vpop.f32.mrf.mxu0
      %v3949 = vadd.f32 0.0, %v3948
      %v3950 = vpop.f32.mrf.mxu0
      %v3951 = vpop.f32.mrf.mxu0
      %v3952 = vpop.f32.mrf.mxu0
      %3953 = vdwg.mxu0
      %v3954 = vadd.f32 %v3825, %v3908
      %v3955 = vadd.f32 %v3826, %v3910
      %v3956 = vadd.f32 %v3827, %v3949
      %v3957 = vld [vmem:[%s165] sm:$0xff]
      %s3958 = scalar_lea.vmem %s0, 120
      %v3959 = vld [vmem:[%s3958] sm:$0xf]
      %v3961 = vcombine.high %v3957, %v3957
      %v3963 = vunpack.c.l.s4 1983009808
      %v3964 = vunpack.c.0.s8 %v3963
      %v3965 = vlaneseq
      %v3966 = vshrl.u32 %v3965, 7
      %v3967 = vsub.s32 %v3964, %v3966
      %v3968 = vrot.slane %v3957, %v3967
      %v3970 = vunpack.c.l.s4 1983009808
      %v3971 = vunpack.c.0.s8 %v3970
      %v3972 = vlaneseq
      %v3973 = vshrl.u32 %v3972, 7
      %v3974 = vsub.s32 %v3971, %v3973
      %v3975 = vrot.slane %v3961, %v3974
      %v3976 = vcombine.high %v3968, %v3968
      %v3977 = vcombine.high %v3975, %v3975
      %3978 = vrot.lane.b32.xlu0 %v3968, 38
      %v3979 = vpop.permute.xlu0 %3978
      %3980 = vrot.lane.b32.xlu0 %v3976, 38
      %v3981 = vpop.permute.xlu0 %3980
      %3982 = vrot.lane.b32.xlu0 %v3975, 38
      %v3983 = vpop.permute.xlu0 %3982
      %3984 = vrot.lane.b32.xlu0 %v3977, 38
      %v3985 = vpop.permute.xlu0 %3984
      %vm3986 = vcmask 310272
      %v3987 = vsel %vm3986, %v3979, %v3981
      %v3988 = vsel %vm3986, %v3981, %v3983
      %v3989 = vsel %vm3986, %v3983, %v3985
      %v3991 = vsel %vm202, %v3959, 0
      %v3994 = vand.u32 %v3987, %v209
      %v3997 = vand.u32 %v3988, %v209
      %v4000 = vand.u32 %v3989, %v209
      %4002 = vmatprep.subr.bf16.mxu0 0
      %4003 = vmatpush1.bf16.msra.mxu0 0
      %4004 = vmatprep.subr.bf16.mxu0 0
      %4005 = vmatpush1.bf16.msra.mxu0 0
      %4006 = vmatprep.subr.bf16.mxu0 0
      %4007 = vmatpush1.bf16.msra.mxu0 0
      %4008 = vmatprep.subr.bf16.mxu0 0
      %4009 = vmatpush1.bf16.msra.mxu0 0
      %4010 = vmatprep.subr.bf16.mxu0 0
      %4011 = vmatpush1.bf16.msra.mxu0 0
      %4012 = vmatprep.subr.bf16.mxu0 0
      %4013 = vmatpush1.bf16.msra.mxu0 0
      %4014 = vmatprep.subr.bf16.mxu0 0
      %4015 = vmatpush1.bf16.msra.mxu0 0
      %4016 = vmatprep.subr.bf16.mxu0 %v3997
      %4017 = vmatpush1.bf16.msra.mxu0 %v3994
      %4018 = vmatprep.subr.bf16.mxu0 0
      %4019 = vmatpush2.bf16.msra.mxu0 0
      %4020 = vmatprep.subr.bf16.mxu0 0
      %4021 = vmatpush2.bf16.msra.mxu0 0
      %4022 = vmatprep.subr.bf16.mxu0 0
      %4023 = vmatpush2.bf16.msra.mxu0 0
      %4024 = vmatprep.subr.bf16.mxu0 0
      %4025 = vmatpush2.bf16.msra.mxu0 0
      %4026 = vmatprep.subr.bf16.mxu0 0
      %4027 = vmatpush2.bf16.msra.mxu0 0
      %4028 = vmatprep.subr.bf16.mxu0 0
      %4029 = vmatpush2.bf16.msra.mxu0 0
      %4030 = vmatprep.subr.bf16.mxu0 0
      %4031 = vmatpush2.bf16.msra.mxu0 0
      %4032 = vmatprep.subr.bf16.mxu0 0
      %4033 = vmatpush2.bf16.msra.mxu0 0
      %4034 = vmatprep.mubr.bf16.mxu0 0
      %4035 = vmatmul.mubr.bf16.gmra.mxu0 %v3991
      %v4036 = vpop.f32.mrf.mxu0
      %v4037 = vadd.f32 0.0, %v4036
      %v4038 = vpop.f32.mrf.mxu0
      %v4039 = vadd.f32 0.0, %v4038
      %v4040 = vpop.f32.mrf.mxu0
      %v4041 = vpop.f32.mrf.mxu0
      %4042 = vdwg.mxu0
      %4043 = vmatprep.subr.bf16.mxu0 0
      %4044 = vmatpush1.bf16.msra.mxu0 0
      %4045 = vmatprep.subr.bf16.mxu0 0
      %4046 = vmatpush1.bf16.msra.mxu0 0
      %4047 = vmatprep.subr.bf16.mxu0 0
      %4048 = vmatpush1.bf16.msra.mxu0 0
      %4049 = vmatprep.subr.bf16.mxu0 0
      %4050 = vmatpush1.bf16.msra.mxu0 0
      %4051 = vmatprep.subr.bf16.mxu0 0
      %4052 = vmatpush1.bf16.msra.mxu0 0
      %4053 = vmatprep.subr.bf16.mxu0 0
      %4054 = vmatpush1.bf16.msra.mxu0 0
      %4055 = vmatprep.subr.bf16.mxu0 0
      %4056 = vmatpush1.bf16.msra.mxu0 0
      %4057 = vmatprep.subr.bf16.mxu0 0
      %4058 = vmatpush1.bf16.msra.mxu0 %v4000
      %4059 = vmatprep.subr.bf16.mxu0 0
      %4060 = vmatpush2.bf16.msra.mxu0 0
      %4061 = vmatprep.subr.bf16.mxu0 0
      %4062 = vmatpush2.bf16.msra.mxu0 0
      %4063 = vmatprep.subr.bf16.mxu0 0
      %4064 = vmatpush2.bf16.msra.mxu0 0
      %4065 = vmatprep.subr.bf16.mxu0 0
      %4066 = vmatpush2.bf16.msra.mxu0 0
      %4067 = vmatprep.subr.bf16.mxu0 0
      %4068 = vmatpush2.bf16.msra.mxu0 0
      %4069 = vmatprep.subr.bf16.mxu0 0
      %4070 = vmatpush2.bf16.msra.mxu0 0
      %4071 = vmatprep.subr.bf16.mxu0 0
      %4072 = vmatpush2.bf16.msra.mxu0 0
      %4073 = vmatprep.subr.bf16.mxu0 0
      %4074 = vmatpush2.bf16.msra.mxu0 0
      %4075 = vmatprep.mubr.bf16.mxu0 0
      %4076 = vmatmul.mubr.bf16.gmra.mxu0 %v3991
      %v4077 = vpop.f32.mrf.mxu0
      %v4078 = vadd.f32 0.0, %v4077
      %v4079 = vpop.f32.mrf.mxu0
      %v4080 = vpop.f32.mrf.mxu0
      %v4081 = vpop.f32.mrf.mxu0
      %4082 = vdwg.mxu0
      %v4083 = vadd.f32 %v3954, %v4037
      %v4084 = vadd.f32 %v3955, %v4039
      %v4085 = vadd.f32 %v3956, %v4078
      %v4086 = vld [vmem:[%s165] sm:$0xff]
      %s4087 = scalar_lea.vmem %s0, 124
      %v4088 = vld [vmem:[%s4087] sm:$0xf]
      %v4090 = vcombine.high %v4086, %v4086
      %v4092 = vunpack.c.l.s4 1983009808
      %v4093 = vunpack.c.0.s8 %v4092
      %v4094 = vlaneseq
      %v4095 = vshrl.u32 %v4094, 7
      %v4096 = vsub.s32 %v4093, %v4095
      %v4097 = vrot.slane %v4086, %v4096
      %v4099 = vunpack.c.l.s4 1983009808
      %v4100 = vunpack.c.0.s8 %v4099
      %v4101 = vlaneseq
      %v4102 = vshrl.u32 %v4101, 7
      %v4103 = vsub.s32 %v4100, %v4102
      %v4104 = vrot.slane %v4090, %v4103
      %v4105 = vcombine.high %v4097, %v4097
      %v4106 = vcombine.high %v4104, %v4104
      %4107 = vrot.lane.b32.xlu0 %v4097, 37
      %v4108 = vpop.permute.xlu0 %4107
      %4109 = vrot.lane.b32.xlu0 %v4105, 37
      %v4110 = vpop.permute.xlu0 %4109
      %4111 = vrot.lane.b32.xlu0 %v4104, 37
      %v4112 = vpop.permute.xlu0 %4111
      %4113 = vrot.lane.b32.xlu0 %v4106, 37
      %v4114 = vpop.permute.xlu0 %4113
      %vm4115 = vcmask 302080
      %v4116 = vsel %vm4115, %v4108, %v4110
      %v4117 = vsel %vm4115, %v4110, %v4112
      %v4118 = vsel %vm4115, %v4112, %v4114
      %v4120 = vsel %vm202, %v4088, 0
      %v4123 = vand.u32 %v4116, %v209
      %v4126 = vand.u32 %v4117, %v209
      %v4129 = vand.u32 %v4118, %v209
      %4131 = vmatprep.subr.bf16.mxu0 0
      %4132 = vmatpush1.bf16.msra.mxu0 0
      %4133 = vmatprep.subr.bf16.mxu0 0
      %4134 = vmatpush1.bf16.msra.mxu0 0
      %4135 = vmatprep.subr.bf16.mxu0 0
      %4136 = vmatpush1.bf16.msra.mxu0 0
      %4137 = vmatprep.subr.bf16.mxu0 0
      %4138 = vmatpush1.bf16.msra.mxu0 0
      %4139 = vmatprep.subr.bf16.mxu0 0
      %4140 = vmatpush1.bf16.msra.mxu0 0
      %4141 = vmatprep.subr.bf16.mxu0 0
      %4142 = vmatpush1.bf16.msra.mxu0 0
      %4143 = vmatprep.subr.bf16.mxu0 0
      %4144 = vmatpush1.bf16.msra.mxu0 0
      %4145 = vmatprep.subr.bf16.mxu0 %v4126
      %4146 = vmatpush1.bf16.msra.mxu0 %v4123
      %4147 = vmatprep.subr.bf16.mxu0 0
      %4148 = vmatpush2.bf16.msra.mxu0 0
      %4149 = vmatprep.subr.bf16.mxu0 0
      %4150 = vmatpush2.bf16.msra.mxu0 0
      %4151 = vmatprep.subr.bf16.mxu0 0
      %4152 = vmatpush2.bf16.msra.mxu0 0
      %4153 = vmatprep.subr.bf16.mxu0 0
      %4154 = vmatpush2.bf16.msra.mxu0 0
      %4155 = vmatprep.subr.bf16.mxu0 0
      %4156 = vmatpush2.bf16.msra.mxu0 0
      %4157 = vmatprep.subr.bf16.mxu0 0
      %4158 = vmatpush2.bf16.msra.mxu0 0
      %4159 = vmatprep.subr.bf16.mxu0 0
      %4160 = vmatpush2.bf16.msra.mxu0 0
      %4161 = vmatprep.subr.bf16.mxu0 0
      %4162 = vmatpush2.bf16.msra.mxu0 0
      %4163 = vmatprep.mubr.bf16.mxu0 0
      %4164 = vmatmul.mubr.bf16.gmra.mxu0 %v4120
      %v4165 = vpop.f32.mrf.mxu0
      %v4166 = vadd.f32 0.0, %v4165
      %v4167 = vpop.f32.mrf.mxu0
      %v4168 = vadd.f32 0.0, %v4167
      %v4169 = vpop.f32.mrf.mxu0
      %v4170 = vpop.f32.mrf.mxu0
      %4171 = vdwg.mxu0
      %4172 = vmatprep.subr.bf16.mxu0 0
      %4173 = vmatpush1.bf16.msra.mxu0 0
      %4174 = vmatprep.subr.bf16.mxu0 0
      %4175 = vmatpush1.bf16.msra.mxu0 0
      %4176 = vmatprep.subr.bf16.mxu0 0
      %4177 = vmatpush1.bf16.msra.mxu0 0
      %4178 = vmatprep.subr.bf16.mxu0 0
      %4179 = vmatpush1.bf16.msra.mxu0 0
      %4180 = vmatprep.subr.bf16.mxu0 0
      %4181 = vmatpush1.bf16.msra.mxu0 0
      %4182 = vmatprep.subr.bf16.mxu0 0
      %4183 = vmatpush1.bf16.msra.mxu0 0
      %4184 = vmatprep.subr.bf16.mxu0 0
      %4185 = vmatpush1.bf16.msra.mxu0 0
      %4186 = vmatprep.subr.bf16.mxu0 0
      %4187 = vmatpush1.bf16.msra.mxu0 %v4129
      %4188 = vmatprep.subr.bf16.mxu0 0
      %4189 = vmatpush2.bf16.msra.mxu0 0
      %4190 = vmatprep.subr.bf16.mxu0 0
      %4191 = vmatpush2.bf16.msra.mxu0 0
      %4192 = vmatprep.subr.bf16.mxu0 0
      %4193 = vmatpush2.bf16.msra.mxu0 0
      %4194 = vmatprep.subr.bf16.mxu0 0
      %4195 = vmatpush2.bf16.msra.mxu0 0
      %4196 = vmatprep.subr.bf16.mxu0 0
      %4197 = vmatpush2.bf16.msra.mxu0 0
      %4198 = vmatprep.subr.bf16.mxu0 0
      %4199 = vmatpush2.bf16.msra.mxu0 0
      %4200 = vmatprep.subr.bf16.mxu0 0
      %4201 = vmatpush2.bf16.msra.mxu0 0
      %4202 = vmatprep.subr.bf16.mxu0 0
      %4203 = vmatpush2.bf16.msra.mxu0 0
      %4204 = vmatprep.mubr.bf16.mxu0 0
      %4205 = vmatmul.mubr.bf16.gmra.mxu0 %v4120
      %v4206 = vpop.f32.mrf.mxu0
      %v4207 = vadd.f32 0.0, %v4206
      %v4208 = vpop.f32.mrf.mxu0
      %v4209 = vpop.f32.mrf.mxu0
      %v4210 = vpop.f32.mrf.mxu0
      %4211 = vdwg.mxu0
      %v4212 = vadd.f32 %v4083, %v4166
      %v4213 = vadd.f32 %v4084, %v4168
      %v4214 = vadd.f32 %v4085, %v4207
      %v4215 = vld [vmem:[%s165] sm:$0xff]
      %s4216 = scalar_lea.vmem %s0, 128
      %v4217 = vld [vmem:[%s4216] sm:$0xf]
      %v4219 = vcombine.high %v4215, %v4215
      %v4221 = vunpack.c.l.s4 1983009808
      %v4222 = vunpack.c.0.s8 %v4221
      %v4223 = vlaneseq
      %v4224 = vshrl.u32 %v4223, 7
      %v4225 = vsub.s32 %v4222, %v4224
      %v4226 = vrot.slane %v4215, %v4225
      %v4228 = vunpack.c.l.s4 1983009808
      %v4229 = vunpack.c.0.s8 %v4228
      %v4230 = vlaneseq
      %v4231 = vshrl.u32 %v4230, 7
      %v4232 = vsub.s32 %v4229, %v4231
      %v4233 = vrot.slane %v4219, %v4232
      %v4234 = vcombine.high %v4226, %v4226
      %v4235 = vcombine.high %v4233, %v4233
      %4236 = vrot.lane.b32.xlu0 %v4226, 36
      %v4237 = vpop.permute.xlu0 %4236
      %4238 = vrot.lane.b32.xlu0 %v4234, 36
      %v4239 = vpop.permute.xlu0 %4238
      %4240 = vrot.lane.b32.xlu0 %v4233, 36
      %v4241 = vpop.permute.xlu0 %4240
      %4242 = vrot.lane.b32.xlu0 %v4235, 36
      %v4243 = vpop.permute.xlu0 %4242
      %vm4244 = vcmask 293888
      %v4245 = vsel %vm4244, %v4237, %v4239
      %v4246 = vsel %vm4244, %v4239, %v4241
      %v4247 = vsel %vm4244, %v4241, %v4243
      %v4249 = vsel %vm202, %v4217, 0
      %v4252 = vand.u32 %v4245, %v209
      %v4255 = vand.u32 %v4246, %v209
      %v4258 = vand.u32 %v4247, %v209
      %4260 = vmatprep.subr.bf16.mxu0 0
      %4261 = vmatpush1.bf16.msra.mxu0 0
      %4262 = vmatprep.subr.bf16.mxu0 0
      %4263 = vmatpush1.bf16.msra.mxu0 0
      %4264 = vmatprep.subr.bf16.mxu0 0
      %4265 = vmatpush1.bf16.msra.mxu0 0
      %4266 = vmatprep.subr.bf16.mxu0 0
      %4267 = vmatpush1.bf16.msra.mxu0 0
      %4268 = vmatprep.subr.bf16.mxu0 0
      %4269 = vmatpush1.bf16.msra.mxu0 0
      %4270 = vmatprep.subr.bf16.mxu0 0
      %4271 = vmatpush1.bf16.msra.mxu0 0
      %4272 = vmatprep.subr.bf16.mxu0 0
      %4273 = vmatpush1.bf16.msra.mxu0 0
      %4274 = vmatprep.subr.bf16.mxu0 %v4255
      %4275 = vmatpush1.bf16.msra.mxu0 %v4252
      %4276 = vmatprep.subr.bf16.mxu0 0
      %4277 = vmatpush2.bf16.msra.mxu0 0
      %4278 = vmatprep.subr.bf16.mxu0 0
      %4279 = vmatpush2.bf16.msra.mxu0 0
      %4280 = vmatprep.subr.bf16.mxu0 0
      %4281 = vmatpush2.bf16.msra.mxu0 0
      %4282 = vmatprep.subr.bf16.mxu0 0
      %4283 = vmatpush2.bf16.msra.mxu0 0
      %4284 = vmatprep.subr.bf16.mxu0 0
      %4285 = vmatpush2.bf16.msra.mxu0 0
      %4286 = vmatprep.subr.bf16.mxu0 0
      %4287 = vmatpush2.bf16.msra.mxu0 0
      %4288 = vmatprep.subr.bf16.mxu0 0
      %4289 = vmatpush2.bf16.msra.mxu0 0
      %4290 = vmatprep.subr.bf16.mxu0 0
      %4291 = vmatpush2.bf16.msra.mxu0 0
      %4292 = vmatprep.mubr.bf16.mxu0 0
      %4293 = vmatmul.mubr.bf16.gmra.mxu0 %v4249
      %v4294 = vpop.f32.mrf.mxu0
      %v4295 = vadd.f32 0.0, %v4294
      %v4296 = vpop.f32.mrf.mxu0
      %v4297 = vadd.f32 0.0, %v4296
      %v4298 = vpop.f32.mrf.mxu0
      %v4299 = vpop.f32.mrf.mxu0
      %4300 = vdwg.mxu0
      %4301 = vmatprep.subr.bf16.mxu0 0
      %4302 = vmatpush1.bf16.msra.mxu0 0
      %4303 = vmatprep.subr.bf16.mxu0 0
      %4304 = vmatpush1.bf16.msra.mxu0 0
      %4305 = vmatprep.subr.bf16.mxu0 0
      %4306 = vmatpush1.bf16.msra.mxu0 0
      %4307 = vmatprep.subr.bf16.mxu0 0
      %4308 = vmatpush1.bf16.msra.mxu0 0
      %4309 = vmatprep.subr.bf16.mxu0 0
      %4310 = vmatpush1.bf16.msra.mxu0 0
      %4311 = vmatprep.subr.bf16.mxu0 0
      %4312 = vmatpush1.bf16.msra.mxu0 0
      %4313 = vmatprep.subr.bf16.mxu0 0
      %4314 = vmatpush1.bf16.msra.mxu0 0
      %4315 = vmatprep.subr.bf16.mxu0 0
      %4316 = vmatpush1.bf16.msra.mxu0 %v4258
      %4317 = vmatprep.subr.bf16.mxu0 0
      %4318 = vmatpush2.bf16.msra.mxu0 0
      %4319 = vmatprep.subr.bf16.mxu0 0
      %4320 = vmatpush2.bf16.msra.mxu0 0
      %4321 = vmatprep.subr.bf16.mxu0 0
      %4322 = vmatpush2.bf16.msra.mxu0 0
      %4323 = vmatprep.subr.bf16.mxu0 0
      %4324 = vmatpush2.bf16.msra.mxu0 0
      %4325 = vmatprep.subr.bf16.mxu0 0
      %4326 = vmatpush2.bf16.msra.mxu0 0
      %4327 = vmatprep.subr.bf16.mxu0 0
      %4328 = vmatpush2.bf16.msra.mxu0 0
      %4329 = vmatprep.subr.bf16.mxu0 0
      %4330 = vmatpush2.bf16.msra.mxu0 0
      %4331 = vmatprep.subr.bf16.mxu0 0
      %4332 = vmatpush2.bf16.msra.mxu0 0
      %4333 = vmatprep.mubr.bf16.mxu0 0
      %4334 = vmatmul.mubr.bf16.gmra.mxu0 %v4249
      %v4335 = vpop.f32.mrf.mxu0
      %v4336 = vadd.f32 0.0, %v4335
      %v4337 = vpop.f32.mrf.mxu0
      %v4338 = vpop.f32.mrf.mxu0
      %v4339 = vpop.f32.mrf.mxu0
      %4340 = vdwg.mxu0
      %v4341 = vadd.f32 %v4212, %v4295
      %v4342 = vadd.f32 %v4213, %v4297
      %v4343 = vadd.f32 %v4214, %v4336
      %v4344 = vld [vmem:[%s165] sm:$0xff]
      %s4345 = scalar_lea.vmem %s0, 132
      %v4346 = vld [vmem:[%s4345] sm:$0xf]
      %v4348 = vcombine.high %v4344, %v4344
      %v4350 = vunpack.c.l.s4 1983009808
      %v4351 = vunpack.c.0.s8 %v4350
      %v4352 = vlaneseq
      %v4353 = vshrl.u32 %v4352, 7
      %v4354 = vsub.s32 %v4351, %v4353
      %v4355 = vrot.slane %v4344, %v4354
      %v4357 = vunpack.c.l.s4 1983009808
      %v4358 = vunpack.c.0.s8 %v4357
      %v4359 = vlaneseq
      %v4360 = vshrl.u32 %v4359, 7
      %v4361 = vsub.s32 %v4358, %v4360
      %v4362 = vrot.slane %v4348, %v4361
      %v4363 = vcombine.high %v4355, %v4355
      %v4364 = vcombine.high %v4362, %v4362
      %4365 = vrot.lane.b32.xlu0 %v4355, 35
      %v4366 = vpop.permute.xlu0 %4365
      %4367 = vrot.lane.b32.xlu0 %v4363, 35
      %v4368 = vpop.permute.xlu0 %4367
      %4369 = vrot.lane.b32.xlu0 %v4362, 35
      %v4370 = vpop.permute.xlu0 %4369
      %4371 = vrot.lane.b32.xlu0 %v4364, 35
      %v4372 = vpop.permute.xlu0 %4371
      %vm4373 = vcmask 285696
      %v4374 = vsel %vm4373, %v4366, %v4368
      %v4375 = vsel %vm4373, %v4368, %v4370
      %v4376 = vsel %vm4373, %v4370, %v4372
      %v4378 = vsel %vm202, %v4346, 0
      %v4381 = vand.u32 %v4374, %v209
      %v4384 = vand.u32 %v4375, %v209
      %v4387 = vand.u32 %v4376, %v209
      %4389 = vmatprep.subr.bf16.mxu0 0
      %4390 = vmatpush1.bf16.msra.mxu0 0
      %4391 = vmatprep.subr.bf16.mxu0 0
      %4392 = vmatpush1.bf16.msra.mxu0 0
      %4393 = vmatprep.subr.bf16.mxu0 0
      %4394 = vmatpush1.bf16.msra.mxu0 0
      %4395 = vmatprep.subr.bf16.mxu0 0
      %4396 = vmatpush1.bf16.msra.mxu0 0
      %4397 = vmatprep.subr.bf16.mxu0 0
      %4398 = vmatpush1.bf16.msra.mxu0 0
      %4399 = vmatprep.subr.bf16.mxu0 0
      %4400 = vmatpush1.bf16.msra.mxu0 0
      %4401 = vmatprep.subr.bf16.mxu0 0
      %4402 = vmatpush1.bf16.msra.mxu0 0
      %4403 = vmatprep.subr.bf16.mxu0 %v4384
      %4404 = vmatpush1.bf16.msra.mxu0 %v4381
      %4405 = vmatprep.subr.bf16.mxu0 0
      %4406 = vmatpush2.bf16.msra.mxu0 0
      %4407 = vmatprep.subr.bf16.mxu0 0
      %4408 = vmatpush2.bf16.msra.mxu0 0
      %4409 = vmatprep.subr.bf16.mxu0 0
      %4410 = vmatpush2.bf16.msra.mxu0 0
      %4411 = vmatprep.subr.bf16.mxu0 0
      %4412 = vmatpush2.bf16.msra.mxu0 0
      %4413 = vmatprep.subr.bf16.mxu0 0
      %4414 = vmatpush2.bf16.msra.mxu0 0
      %4415 = vmatprep.subr.bf16.mxu0 0
      %4416 = vmatpush2.bf16.msra.mxu0 0
      %4417 = vmatprep.subr.bf16.mxu0 0
      %4418 = vmatpush2.bf16.msra.mxu0 0
      %4419 = vmatprep.subr.bf16.mxu0 0
      %4420 = vmatpush2.bf16.msra.mxu0 0
      %4421 = vmatprep.mubr.bf16.mxu0 0
      %4422 = vmatmul.mubr.bf16.gmra.mxu0 %v4378
      %v4423 = vpop.f32.mrf.mxu0
      %v4424 = vadd.f32 0.0, %v4423
      %v4425 = vpop.f32.mrf.mxu0
      %v4426 = vadd.f32 0.0, %v4425
      %v4427 = vpop.f32.mrf.mxu0
      %v4428 = vpop.f32.mrf.mxu0
      %4429 = vdwg.mxu0
      %4430 = vmatprep.subr.bf16.mxu0 0
      %4431 = vmatpush1.bf16.msra.mxu0 0
      %4432 = vmatprep.subr.bf16.mxu0 0
      %4433 = vmatpush1.bf16.msra.mxu0 0
      %4434 = vmatprep.subr.bf16.mxu0 0
      %4435 = vmatpush1.bf16.msra.mxu0 0
      %4436 = vmatprep.subr.bf16.mxu0 0
      %4437 = vmatpush1.bf16.msra.mxu0 0
      %4438 = vmatprep.subr.bf16.mxu0 0
      %4439 = vmatpush1.bf16.msra.mxu0 0
      %4440 = vmatprep.subr.bf16.mxu0 0
      %4441 = vmatpush1.bf16.msra.mxu0 0
      %4442 = vmatprep.subr.bf16.mxu0 0
      %4443 = vmatpush1.bf16.msra.mxu0 0
      %4444 = vmatprep.subr.bf16.mxu0 0
      %4445 = vmatpush1.bf16.msra.mxu0 %v4387
      %4446 = vmatprep.subr.bf16.mxu0 0
      %4447 = vmatpush2.bf16.msra.mxu0 0
      %4448 = vmatprep.subr.bf16.mxu0 0
      %4449 = vmatpush2.bf16.msra.mxu0 0
      %4450 = vmatprep.subr.bf16.mxu0 0
      %4451 = vmatpush2.bf16.msra.mxu0 0
      %4452 = vmatprep.subr.bf16.mxu0 0
      %4453 = vmatpush2.bf16.msra.mxu0 0
      %4454 = vmatprep.subr.bf16.mxu0 0
      %4455 = vmatpush2.bf16.msra.mxu0 0
      %4456 = vmatprep.subr.bf16.mxu0 0
      %4457 = vmatpush2.bf16.msra.mxu0 0
      %4458 = vmatprep.subr.bf16.mxu0 0
      %4459 = vmatpush2.bf16.msra.mxu0 0
      %4460 = vmatprep.subr.bf16.mxu0 0
      %4461 = vmatpush2.bf16.msra.mxu0 0
      %4462 = vmatprep.mubr.bf16.mxu0 0
      %4463 = vmatmul.mubr.bf16.gmra.mxu0 %v4378
      %v4464 = vpop.f32.mrf.mxu0
      %v4465 = vadd.f32 0.0, %v4464
      %v4466 = vpop.f32.mrf.mxu0
      %v4467 = vpop.f32.mrf.mxu0
      %v4468 = vpop.f32.mrf.mxu0
      %4469 = vdwg.mxu0
      %v4470 = vadd.f32 %v4341, %v4424
      %v4471 = vadd.f32 %v4342, %v4426
      %v4472 = vadd.f32 %v4343, %v4465
      %v4473 = vld [vmem:[%s165] sm:$0xff]
      %s4474 = scalar_lea.vmem %s0, 136
      %v4475 = vld [vmem:[%s4474] sm:$0xf]
      %v4477 = vcombine.high %v4473, %v4473
      %v4479 = vunpack.c.l.s4 1983009808
      %v4480 = vunpack.c.0.s8 %v4479
      %v4481 = vlaneseq
      %v4482 = vshrl.u32 %v4481, 7
      %v4483 = vsub.s32 %v4480, %v4482
      %v4484 = vrot.slane %v4473, %v4483
      %v4486 = vunpack.c.l.s4 1983009808
      %v4487 = vunpack.c.0.s8 %v4486
      %v4488 = vlaneseq
      %v4489 = vshrl.u32 %v4488, 7
      %v4490 = vsub.s32 %v4487, %v4489
      %v4491 = vrot.slane %v4477, %v4490
      %v4492 = vcombine.high %v4484, %v4484
      %v4493 = vcombine.high %v4491, %v4491
      %4494 = vrot.lane.b32.xlu0 %v4484, 34
      %v4495 = vpop.permute.xlu0 %4494
      %4496 = vrot.lane.b32.xlu0 %v4492, 34
      %v4497 = vpop.permute.xlu0 %4496
      %4498 = vrot.lane.b32.xlu0 %v4491, 34
      %v4499 = vpop.permute.xlu0 %4498
      %4500 = vrot.lane.b32.xlu0 %v4493, 34
      %v4501 = vpop.permute.xlu0 %4500
      %vm4502 = vcmask 277504
      %v4503 = vsel %vm4502, %v4495, %v4497
      %v4504 = vsel %vm4502, %v4497, %v4499
      %v4505 = vsel %vm4502, %v4499, %v4501
      %v4507 = vsel %vm202, %v4475, 0
      %v4510 = vand.u32 %v4503, %v209
      %v4513 = vand.u32 %v4504, %v209
      %v4516 = vand.u32 %v4505, %v209
      %4518 = vmatprep.subr.bf16.mxu0 0
      %4519 = vmatpush1.bf16.msra.mxu0 0
      %4520 = vmatprep.subr.bf16.mxu0 0
      %4521 = vmatpush1.bf16.msra.mxu0 0
      %4522 = vmatprep.subr.bf16.mxu0 0
      %4523 = vmatpush1.bf16.msra.mxu0 0
      %4524 = vmatprep.subr.bf16.mxu0 0
      %4525 = vmatpush1.bf16.msra.mxu0 0
      %4526 = vmatprep.subr.bf16.mxu0 0
      %4527 = vmatpush1.bf16.msra.mxu0 0
      %4528 = vmatprep.subr.bf16.mxu0 0
      %4529 = vmatpush1.bf16.msra.mxu0 0
      %4530 = vmatprep.subr.bf16.mxu0 0
      %4531 = vmatpush1.bf16.msra.mxu0 0
      %4532 = vmatprep.subr.bf16.mxu0 %v4513
      %4533 = vmatpush1.bf16.msra.mxu0 %v4510
      %4534 = vmatprep.subr.bf16.mxu0 0
      %4535 = vmatpush2.bf16.msra.mxu0 0
      %4536 = vmatprep.subr.bf16.mxu0 0
      %4537 = vmatpush2.bf16.msra.mxu0 0
      %4538 = vmatprep.subr.bf16.mxu0 0
      %4539 = vmatpush2.bf16.msra.mxu0 0
      %4540 = vmatprep.subr.bf16.mxu0 0
      %4541 = vmatpush2.bf16.msra.mxu0 0
      %4542 = vmatprep.subr.bf16.mxu0 0
      %4543 = vmatpush2.bf16.msra.mxu0 0
      %4544 = vmatprep.subr.bf16.mxu0 0
      %4545 = vmatpush2.bf16.msra.mxu0 0
      %4546 = vmatprep.subr.bf16.mxu0 0
      %4547 = vmatpush2.bf16.msra.mxu0 0
      %4548 = vmatprep.subr.bf16.mxu0 0
      %4549 = vmatpush2.bf16.msra.mxu0 0
      %4550 = vmatprep.mubr.bf16.mxu0 0
      %4551 = vmatmul.mubr.bf16.gmra.mxu0 %v4507
      %v4552 = vpop.f32.mrf.mxu0
      %v4553 = vadd.f32 0.0, %v4552
      %v4554 = vpop.f32.mrf.mxu0
      %v4555 = vadd.f32 0.0, %v4554
      %v4556 = vpop.f32.mrf.mxu0
      %v4557 = vpop.f32.mrf.mxu0
      %4558 = vdwg.mxu0
      %4559 = vmatprep.subr.bf16.mxu0 0
      %4560 = vmatpush1.bf16.msra.mxu0 0
      %4561 = vmatprep.subr.bf16.mxu0 0
      %4562 = vmatpush1.bf16.msra.mxu0 0
      %4563 = vmatprep.subr.bf16.mxu0 0
      %4564 = vmatpush1.bf16.msra.mxu0 0
      %4565 = vmatprep.subr.bf16.mxu0 0
      %4566 = vmatpush1.bf16.msra.mxu0 0
      %4567 = vmatprep.subr.bf16.mxu0 0
      %4568 = vmatpush1.bf16.msra.mxu0 0
      %4569 = vmatprep.subr.bf16.mxu0 0
      %4570 = vmatpush1.bf16.msra.mxu0 0
      %4571 = vmatprep.subr.bf16.mxu0 0
      %4572 = vmatpush1.bf16.msra.mxu0 0
      %4573 = vmatprep.subr.bf16.mxu0 0
      %4574 = vmatpush1.bf16.msra.mxu0 %v4516
      %4575 = vmatprep.subr.bf16.mxu0 0
      %4576 = vmatpush2.bf16.msra.mxu0 0
      %4577 = vmatprep.subr.bf16.mxu0 0
      %4578 = vmatpush2.bf16.msra.mxu0 0
      %4579 = vmatprep.subr.bf16.mxu0 0
      %4580 = vmatpush2.bf16.msra.mxu0 0
      %4581 = vmatprep.subr.bf16.mxu0 0
      %4582 = vmatpush2.bf16.msra.mxu0 0
      %4583 = vmatprep.subr.bf16.mxu0 0
      %4584 = vmatpush2.bf16.msra.mxu0 0
      %4585 = vmatprep.subr.bf16.mxu0 0
      %4586 = vmatpush2.bf16.msra.mxu0 0
      %4587 = vmatprep.subr.bf16.mxu0 0
      %4588 = vmatpush2.bf16.msra.mxu0 0
      %4589 = vmatprep.subr.bf16.mxu0 0
      %4590 = vmatpush2.bf16.msra.mxu0 0
      %4591 = vmatprep.mubr.bf16.mxu0 0
      %4592 = vmatmul.mubr.bf16.gmra.mxu0 %v4507
      %v4593 = vpop.f32.mrf.mxu0
      %v4594 = vadd.f32 0.0, %v4593
      %v4595 = vpop.f32.mrf.mxu0
      %v4596 = vpop.f32.mrf.mxu0
      %v4597 = vpop.f32.mrf.mxu0
      %4598 = vdwg.mxu0
      %v4599 = vadd.f32 %v4470, %v4553
      %v4600 = vadd.f32 %v4471, %v4555
      %v4601 = vadd.f32 %v4472, %v4594
      %v4602 = vld [vmem:[%s165] sm:$0xff]
      %s4603 = scalar_lea.vmem %s0, 140
      %v4604 = vld [vmem:[%s4603] sm:$0xf]
      %v4606 = vcombine.high %v4602, %v4602
      %v4608 = vunpack.c.l.s4 1983009808
      %v4609 = vunpack.c.0.s8 %v4608
      %v4610 = vlaneseq
      %v4611 = vshrl.u32 %v4610, 7
      %v4612 = vsub.s32 %v4609, %v4611
      %v4613 = vrot.slane %v4602, %v4612
      %v4615 = vunpack.c.l.s4 1983009808
      %v4616 = vunpack.c.0.s8 %v4615
      %v4617 = vlaneseq
      %v4618 = vshrl.u32 %v4617, 7
      %v4619 = vsub.s32 %v4616, %v4618
      %v4620 = vrot.slane %v4606, %v4619
      %v4621 = vcombine.high %v4613, %v4613
      %v4622 = vcombine.high %v4620, %v4620
      %4623 = vrot.lane.b32.xlu0 %v4613, 18
      %v4624 = vpop.permute.xlu0 %4623
      %4625 = vrot.lane.b32.xlu0 %v4621, 18
      %v4626 = vpop.permute.xlu0 %4625
      %4627 = vrot.lane.b32.xlu0 %v4620, 18
      %v4628 = vpop.permute.xlu0 %4627
      %4629 = vrot.lane.b32.xlu0 %v4622, 18
      %v4630 = vpop.permute.xlu0 %4629
      %vm4631 = vcmask 146432
      %v4632 = vsel %vm4631, %v4624, %v4626
      %v4633 = vsel %vm4631, %v4626, %v4628
      %v4634 = vsel %vm4631, %v4628, %v4630
      %v4636 = vsel %vm202, %v4604, 0
      %v4639 = vand.u32 %v4632, %v209
      %v4642 = vand.u32 %v4633, %v209
      %v4645 = vand.u32 %v4634, %v209
      %4647 = vmatprep.subr.bf16.mxu0 0
      %4648 = vmatpush1.bf16.msra.mxu0 0
      %4649 = vmatprep.subr.bf16.mxu0 0
      %4650 = vmatpush1.bf16.msra.mxu0 0
      %4651 = vmatprep.subr.bf16.mxu0 0
      %4652 = vmatpush1.bf16.msra.mxu0 0
      %4653 = vmatprep.subr.bf16.mxu0 0
      %4654 = vmatpush1.bf16.msra.mxu0 0
      %4655 = vmatprep.subr.bf16.mxu0 0
      %4656 = vmatpush1.bf16.msra.mxu0 0
      %4657 = vmatprep.subr.bf16.mxu0 0
      %4658 = vmatpush1.bf16.msra.mxu0 0
      %4659 = vmatprep.subr.bf16.mxu0 0
      %4660 = vmatpush1.bf16.msra.mxu0 0
      %4661 = vmatprep.subr.bf16.mxu0 %v4642
      %4662 = vmatpush1.bf16.msra.mxu0 %v4639
      %4663 = vmatprep.subr.bf16.mxu0 0
      %4664 = vmatpush2.bf16.msra.mxu0 0
      %4665 = vmatprep.subr.bf16.mxu0 0
      %4666 = vmatpush2.bf16.msra.mxu0 0
      %4667 = vmatprep.subr.bf16.mxu0 0
      %4668 = vmatpush2.bf16.msra.mxu0 0
      %4669 = vmatprep.subr.bf16.mxu0 0
      %4670 = vmatpush2.bf16.msra.mxu0 0
      %4671 = vmatprep.subr.bf16.mxu0 0
      %4672 = vmatpush2.bf16.msra.mxu0 0
      %4673 = vmatprep.subr.bf16.mxu0 0
      %4674 = vmatpush2.bf16.msra.mxu0 0
      %4675 = vmatprep.subr.bf16.mxu0 0
      %4676 = vmatpush2.bf16.msra.mxu0 0
      %4677 = vmatprep.subr.bf16.mxu0 0
      %4678 = vmatpush2.bf16.msra.mxu0 0
      %4679 = vmatprep.mubr.bf16.mxu0 0
      %4680 = vmatmul.mubr.bf16.gmra.mxu0 %v4636
      %v4681 = vpop.f32.mrf.mxu0
      %v4682 = vadd.f32 0.0, %v4681
      %v4683 = vpop.f32.mrf.mxu0
      %v4684 = vadd.f32 0.0, %v4683
      %v4685 = vpop.f32.mrf.mxu0
      %v4686 = vpop.f32.mrf.mxu0
      %4687 = vdwg.mxu0
      %4688 = vmatprep.subr.bf16.mxu0 0
      %4689 = vmatpush1.bf16.msra.mxu0 0
      %4690 = vmatprep.subr.bf16.mxu0 0
      %4691 = vmatpush1.bf16.msra.mxu0 0
      %4692 = vmatprep.subr.bf16.mxu0 0
      %4693 = vmatpush1.bf16.msra.mxu0 0
      %4694 = vmatprep.subr.bf16.mxu0 0
      %4695 = vmatpush1.bf16.msra.mxu0 0
      %4696 = vmatprep.subr.bf16.mxu0 0
      %4697 = vmatpush1.bf16.msra.mxu0 0
      %4698 = vmatprep.subr.bf16.mxu0 0
      %4699 = vmatpush1.bf16.msra.mxu0 0
      %4700 = vmatprep.subr.bf16.mxu0 0
      %4701 = vmatpush1.bf16.msra.mxu0 0
      %4702 = vmatprep.subr.bf16.mxu0 0
      %4703 = vmatpush1.bf16.msra.mxu0 %v4645
      %4704 = vmatprep.subr.bf16.mxu0 0
      %4705 = vmatpush2.bf16.msra.mxu0 0
      %4706 = vmatprep.subr.bf16.mxu0 0
      %4707 = vmatpush2.bf16.msra.mxu0 0
      %4708 = vmatprep.subr.bf16.mxu0 0
      %4709 = vmatpush2.bf16.msra.mxu0 0
      %4710 = vmatprep.subr.bf16.mxu0 0
      %4711 = vmatpush2.bf16.msra.mxu0 0
      %4712 = vmatprep.subr.bf16.mxu0 0
      %4713 = vmatpush2.bf16.msra.mxu0 0
      %4714 = vmatprep.subr.bf16.mxu0 0
      %4715 = vmatpush2.bf16.msra.mxu0 0
      %4716 = vmatprep.subr.bf16.mxu0 0
      %4717 = vmatpush2.bf16.msra.mxu0 0
      %4718 = vmatprep.subr.bf16.mxu0 0
      %4719 = vmatpush2.bf16.msra.mxu0 0
      %4720 = vmatprep.mubr.bf16.mxu0 0
      %4721 = vmatmul.mubr.bf16.gmra.mxu0 %v4636
      %v4722 = vpop.f32.mrf.mxu0
      %v4723 = vadd.f32 0.0, %v4722
      %v4724 = vpop.f32.mrf.mxu0
      %v4725 = vpop.f32.mrf.mxu0
      %v4726 = vpop.f32.mrf.mxu0
      %4727 = vdwg.mxu0
      %v4728 = vadd.f32 %v4599, %v4682
      %v4729 = vadd.f32 %v4600, %v4684
      %v4730 = vadd.f32 %v4601, %v4723
      %v4731 = vld [vmem:[%s165] sm:$0xff]
      %s4732 = scalar_lea.vmem %s0, 144
      %v4733 = vld [vmem:[%s4732] sm:$0xf]
      %v4735 = vcombine.high %v4731, %v4731
      %v4737 = vunpack.c.l.s4 1983009808
      %v4738 = vunpack.c.0.s8 %v4737
      %v4739 = vlaneseq
      %v4740 = vshrl.u32 %v4739, 7
      %v4741 = vsub.s32 %v4738, %v4740
      %v4742 = vrot.slane %v4731, %v4741
      %v4744 = vunpack.c.l.s4 1983009808
      %v4745 = vunpack.c.0.s8 %v4744
      %v4746 = vlaneseq
      %v4747 = vshrl.u32 %v4746, 7
      %v4748 = vsub.s32 %v4745, %v4747
      %v4749 = vrot.slane %v4735, %v4748
      %v4750 = vcombine.high %v4742, %v4742
      %v4751 = vcombine.high %v4749, %v4749
      %4752 = vrot.lane.b32.xlu0 %v4742, 17
      %v4753 = vpop.permute.xlu0 %4752
      %4754 = vrot.lane.b32.xlu0 %v4750, 17
      %v4755 = vpop.permute.xlu0 %4754
      %4756 = vrot.lane.b32.xlu0 %v4749, 17
      %v4757 = vpop.permute.xlu0 %4756
      %4758 = vrot.lane.b32.xlu0 %v4751, 17
      %v4759 = vpop.permute.xlu0 %4758
      %vm4760 = vcmask 138240
      %v4761 = vsel %vm4760, %v4753, %v4755
      %v4762 = vsel %vm4760, %v4755, %v4757
      %v4763 = vsel %vm4760, %v4757, %v4759
      %v4765 = vsel %vm202, %v4733, 0
      %v4768 = vand.u32 %v4761, %v209
      %v4771 = vand.u32 %v4762, %v209
      %v4774 = vand.u32 %v4763, %v209
      %4776 = vmatprep.subr.bf16.mxu0 0
      %4777 = vmatpush1.bf16.msra.mxu0 0
      %4778 = vmatprep.subr.bf16.mxu0 0
      %4779 = vmatpush1.bf16.msra.mxu0 0
      %4780 = vmatprep.subr.bf16.mxu0 0
      %4781 = vmatpush1.bf16.msra.mxu0 0
      %4782 = vmatprep.subr.bf16.mxu0 0
      %4783 = vmatpush1.bf16.msra.mxu0 0
      %4784 = vmatprep.subr.bf16.mxu0 0
      %4785 = vmatpush1.bf16.msra.mxu0 0
      %4786 = vmatprep.subr.bf16.mxu0 0
      %4787 = vmatpush1.bf16.msra.mxu0 0
      %4788 = vmatprep.subr.bf16.mxu0 0
      %4789 = vmatpush1.bf16.msra.mxu0 0
      %4790 = vmatprep.subr.bf16.mxu0 %v4771
      %4791 = vmatpush1.bf16.msra.mxu0 %v4768
      %4792 = vmatprep.subr.bf16.mxu0 0
      %4793 = vmatpush2.bf16.msra.mxu0 0
      %4794 = vmatprep.subr.bf16.mxu0 0
      %4795 = vmatpush2.bf16.msra.mxu0 0
      %4796 = vmatprep.subr.bf16.mxu0 0
      %4797 = vmatpush2.bf16.msra.mxu0 0
      %4798 = vmatprep.subr.bf16.mxu0 0
      %4799 = vmatpush2.bf16.msra.mxu0 0
      %4800 = vmatprep.subr.bf16.mxu0 0
      %4801 = vmatpush2.bf16.msra.mxu0 0
      %4802 = vmatprep.subr.bf16.mxu0 0
      %4803 = vmatpush2.bf16.msra.mxu0 0
      %4804 = vmatprep.subr.bf16.mxu0 0
      %4805 = vmatpush2.bf16.msra.mxu0 0
      %4806 = vmatprep.subr.bf16.mxu0 0
      %4807 = vmatpush2.bf16.msra.mxu0 0
      %4808 = vmatprep.mubr.bf16.mxu0 0
      %4809 = vmatmul.mubr.bf16.gmra.mxu0 %v4765
      %v4810 = vpop.f32.mrf.mxu0
      %v4811 = vadd.f32 0.0, %v4810
      %v4812 = vpop.f32.mrf.mxu0
      %v4813 = vadd.f32 0.0, %v4812
      %v4814 = vpop.f32.mrf.mxu0
      %v4815 = vpop.f32.mrf.mxu0
      %4816 = vdwg.mxu0
      %4817 = vmatprep.subr.bf16.mxu0 0
      %4818 = vmatpush1.bf16.msra.mxu0 0
      %4819 = vmatprep.subr.bf16.mxu0 0
      %4820 = vmatpush1.bf16.msra.mxu0 0
      %4821 = vmatprep.subr.bf16.mxu0 0
      %4822 = vmatpush1.bf16.msra.mxu0 0
      %4823 = vmatprep.subr.bf16.mxu0 0
      %4824 = vmatpush1.bf16.msra.mxu0 0
      %4825 = vmatprep.subr.bf16.mxu0 0
      %4826 = vmatpush1.bf16.msra.mxu0 0
      %4827 = vmatprep.subr.bf16.mxu0 0
      %4828 = vmatpush1.bf16.msra.mxu0 0
      %4829 = vmatprep.subr.bf16.mxu0 0
      %4830 = vmatpush1.bf16.msra.mxu0 0
      %4831 = vmatprep.subr.bf16.mxu0 0
      %4832 = vmatpush1.bf16.msra.mxu0 %v4774
      %4833 = vmatprep.subr.bf16.mxu0 0
      %4834 = vmatpush2.bf16.msra.mxu0 0
      %4835 = vmatprep.subr.bf16.mxu0 0
      %4836 = vmatpush2.bf16.msra.mxu0 0
      %4837 = vmatprep.subr.bf16.mxu0 0
      %4838 = vmatpush2.bf16.msra.mxu0 0
      %4839 = vmatprep.subr.bf16.mxu0 0
      %4840 = vmatpush2.bf16.msra.mxu0 0
      %4841 = vmatprep.subr.bf16.mxu0 0
      %4842 = vmatpush2.bf16.msra.mxu0 0
      %4843 = vmatprep.subr.bf16.mxu0 0
      %4844 = vmatpush2.bf16.msra.mxu0 0
      %4845 = vmatprep.subr.bf16.mxu0 0
      %4846 = vmatpush2.bf16.msra.mxu0 0
      %4847 = vmatprep.subr.bf16.mxu0 0
      %4848 = vmatpush2.bf16.msra.mxu0 0
      %4849 = vmatprep.mubr.bf16.mxu0 0
      %4850 = vmatmul.mubr.bf16.gmra.mxu0 %v4765
      %v4851 = vpop.f32.mrf.mxu0
      %v4852 = vadd.f32 0.0, %v4851
      %v4853 = vpop.f32.mrf.mxu0
      %v4854 = vpop.f32.mrf.mxu0
      %v4855 = vpop.f32.mrf.mxu0
      %4856 = vdwg.mxu0
      %v4857 = vadd.f32 %v4728, %v4811
      %v4858 = vadd.f32 %v4729, %v4813
      %v4859 = vadd.f32 %v4730, %v4852
      %v4860 = vld [vmem:[%s165] sm:$0xff]
      %s4861 = scalar_lea.vmem %s0, 148
      %v4862 = vld [vmem:[%s4861] sm:$0xf]
      %v4864 = vcombine.high %v4860, %v4860
      %v4866 = vunpack.c.l.s4 1983009808
      %v4867 = vunpack.c.0.s8 %v4866
      %v4868 = vlaneseq
      %v4869 = vshrl.u32 %v4868, 7
      %v4870 = vsub.s32 %v4867, %v4869
      %v4871 = vrot.slane %v4860, %v4870
      %v4873 = vunpack.c.l.s4 1983009808
      %v4874 = vunpack.c.0.s8 %v4873
      %v4875 = vlaneseq
      %v4876 = vshrl.u32 %v4875, 7
      %v4877 = vsub.s32 %v4874, %v4876
      %v4878 = vrot.slane %v4864, %v4877
      %v4879 = vcombine.high %v4871, %v4871
      %v4880 = vcombine.high %v4878, %v4878
      %4881 = vrot.lane.b32.xlu0 %v4871, 16
      %v4882 = vpop.permute.xlu0 %4881
      %4883 = vrot.lane.b32.xlu0 %v4879, 16
      %v4884 = vpop.permute.xlu0 %4883
      %4885 = vrot.lane.b32.xlu0 %v4878, 16
      %v4886 = vpop.permute.xlu0 %4885
      %4887 = vrot.lane.b32.xlu0 %v4880, 16
      %v4888 = vpop.permute.xlu0 %4887
      %vm4889 = vcmask 130048
      %v4890 = vsel %vm4889, %v4882, %v4884
      %v4891 = vsel %vm4889, %v4884, %v4886
      %v4892 = vsel %vm4889, %v4886, %v4888
      %v4894 = vsel %vm202, %v4862, 0
      %v4897 = vand.u32 %v4890, %v209
      %v4900 = vand.u32 %v4891, %v209
      %v4903 = vand.u32 %v4892, %v209
      %4905 = vmatprep.subr.bf16.mxu0 0
      %4906 = vmatpush1.bf16.msra.mxu0 0
      %4907 = vmatprep.subr.bf16.mxu0 0
      %4908 = vmatpush1.bf16.msra.mxu0 0
      %4909 = vmatprep.subr.bf16.mxu0 0
      %4910 = vmatpush1.bf16.msra.mxu0 0
      %4911 = vmatprep.subr.bf16.mxu0 0
      %4912 = vmatpush1.bf16.msra.mxu0 0
      %4913 = vmatprep.subr.bf16.mxu0 0
      %4914 = vmatpush1.bf16.msra.mxu0 0
      %4915 = vmatprep.subr.bf16.mxu0 0
      %4916 = vmatpush1.bf16.msra.mxu0 0
      %4917 = vmatprep.subr.bf16.mxu0 0
      %4918 = vmatpush1.bf16.msra.mxu0 0
      %4919 = vmatprep.subr.bf16.mxu0 %v4900
      %4920 = vmatpush1.bf16.msra.mxu0 %v4897
      %4921 = vmatprep.subr.bf16.mxu0 0
      %4922 = vmatpush2.bf16.msra.mxu0 0
      %4923 = vmatprep.subr.bf16.mxu0 0
      %4924 = vmatpush2.bf16.msra.mxu0 0
      %4925 = vmatprep.subr.bf16.mxu0 0
      %4926 = vmatpush2.bf16.msra.mxu0 0
      %4927 = vmatprep.subr.bf16.mxu0 0
      %4928 = vmatpush2.bf16.msra.mxu0 0
      %4929 = vmatprep.subr.bf16.mxu0 0
      %4930 = vmatpush2.bf16.msra.mxu0 0
      %4931 = vmatprep.subr.bf16.mxu0 0
      %4932 = vmatpush2.bf16.msra.mxu0 0
      %4933 = vmatprep.subr.bf16.mxu0 0
      %4934 = vmatpush2.bf16.msra.mxu0 0
      %4935 = vmatprep.subr.bf16.mxu0 0
      %4936 = vmatpush2.bf16.msra.mxu0 0
      %4937 = vmatprep.mubr.bf16.mxu0 0
      %4938 = vmatmul.mubr.bf16.gmra.mxu0 %v4894
      %v4939 = vpop.f32.mrf.mxu0
      %v4940 = vadd.f32 0.0, %v4939
      %v4941 = vpop.f32.mrf.mxu0
      %v4942 = vadd.f32 0.0, %v4941
      %v4943 = vpop.f32.mrf.mxu0
      %v4944 = vpop.f32.mrf.mxu0
      %4945 = vdwg.mxu0
      %4946 = vmatprep.subr.bf16.mxu0 0
      %4947 = vmatpush1.bf16.msra.mxu0 0
      %4948 = vmatprep.subr.bf16.mxu0 0
      %4949 = vmatpush1.bf16.msra.mxu0 0
      %4950 = vmatprep.subr.bf16.mxu0 0
      %4951 = vmatpush1.bf16.msra.mxu0 0
      %4952 = vmatprep.subr.bf16.mxu0 0
      %4953 = vmatpush1.bf16.msra.mxu0 0
      %4954 = vmatprep.subr.bf16.mxu0 0
      %4955 = vmatpush1.bf16.msra.mxu0 0
      %4956 = vmatprep.subr.bf16.mxu0 0
      %4957 = vmatpush1.bf16.msra.mxu0 0
      %4958 = vmatprep.subr.bf16.mxu0 0
      %4959 = vmatpush1.bf16.msra.mxu0 0
      %4960 = vmatprep.subr.bf16.mxu0 0
      %4961 = vmatpush1.bf16.msra.mxu0 %v4903
      %4962 = vmatprep.subr.bf16.mxu0 0
      %4963 = vmatpush2.bf16.msra.mxu0 0
      %4964 = vmatprep.subr.bf16.mxu0 0
      %4965 = vmatpush2.bf16.msra.mxu0 0
      %4966 = vmatprep.subr.bf16.mxu0 0
      %4967 = vmatpush2.bf16.msra.mxu0 0
      %4968 = vmatprep.subr.bf16.mxu0 0
      %4969 = vmatpush2.bf16.msra.mxu0 0
      %4970 = vmatprep.subr.bf16.mxu0 0
      %4971 = vmatpush2.bf16.msra.mxu0 0
      %4972 = vmatprep.subr.bf16.mxu0 0
      %4973 = vmatpush2.bf16.msra.mxu0 0
      %4974 = vmatprep.subr.bf16.mxu0 0
      %4975 = vmatpush2.bf16.msra.mxu0 0
      %4976 = vmatprep.subr.bf16.mxu0 0
      %4977 = vmatpush2.bf16.msra.mxu0 0
      %4978 = vmatprep.mubr.bf16.mxu0 0
      %4979 = vmatmul.mubr.bf16.gmra.mxu0 %v4894
      %v4980 = vpop.f32.mrf.mxu0
      %v4981 = vadd.f32 0.0, %v4980
      %v4982 = vpop.f32.mrf.mxu0
      %v4983 = vpop.f32.mrf.mxu0
      %v4984 = vpop.f32.mrf.mxu0
      %4985 = vdwg.mxu0
      %v4986 = vadd.f32 %v4857, %v4940
      %v4987 = vadd.f32 %v4858, %v4942
      %v4988 = vadd.f32 %v4859, %v4981
      %v4989 = vld [vmem:[%s165] sm:$0xff]
      %s4990 = scalar_lea.vmem %s0, 152
      %v4991 = vld [vmem:[%s4990] sm:$0xf]
      %v4993 = vcombine.high %v4989, %v4989
      %v4995 = vunpack.c.l.s4 1983009808
      %v4996 = vunpack.c.0.s8 %v4995
      %v4997 = vlaneseq
      %v4998 = vshrl.u32 %v4997, 7
      %v4999 = vsub.s32 %v4996, %v4998
      %v5000 = vrot.slane %v4989, %v4999
      %v5002 = vunpack.c.l.s4 1983009808
      %v5003 = vunpack.c.0.s8 %v5002
      %v5004 = vlaneseq
      %v5005 = vshrl.u32 %v5004, 7
      %v5006 = vsub.s32 %v5003, %v5005
      %v5007 = vrot.slane %v4993, %v5006
      %v5008 = vcombine.high %v5000, %v5000
      %v5009 = vcombine.high %v5007, %v5007
      %5010 = vrot.lane.b32.xlu0 %v5000, 15
      %v5011 = vpop.permute.xlu0 %5010
      %5012 = vrot.lane.b32.xlu0 %v5008, 15
      %v5013 = vpop.permute.xlu0 %5012
      %5014 = vrot.lane.b32.xlu0 %v5007, 15
      %v5015 = vpop.permute.xlu0 %5014
      %5016 = vrot.lane.b32.xlu0 %v5009, 15
      %v5017 = vpop.permute.xlu0 %5016
      %vm5018 = vcmask 121856
      %v5019 = vsel %vm5018, %v5011, %v5013
      %v5020 = vsel %vm5018, %v5013, %v5015
      %v5021 = vsel %vm5018, %v5015, %v5017
      %v5023 = vsel %vm202, %v4991, 0
      %v5026 = vand.u32 %v5019, %v209
      %v5029 = vand.u32 %v5020, %v209
      %v5032 = vand.u32 %v5021, %v209
      %5034 = vmatprep.subr.bf16.mxu0 0
      %5035 = vmatpush1.bf16.msra.mxu0 0
      %5036 = vmatprep.subr.bf16.mxu0 0
      %5037 = vmatpush1.bf16.msra.mxu0 0
      %5038 = vmatprep.subr.bf16.mxu0 0
      %5039 = vmatpush1.bf16.msra.mxu0 0
      %5040 = vmatprep.subr.bf16.mxu0 0
      %5041 = vmatpush1.bf16.msra.mxu0 0
      %5042 = vmatprep.subr.bf16.mxu0 0
      %5043 = vmatpush1.bf16.msra.mxu0 0
      %5044 = vmatprep.subr.bf16.mxu0 0
      %5045 = vmatpush1.bf16.msra.mxu0 0
      %5046 = vmatprep.subr.bf16.mxu0 0
      %5047 = vmatpush1.bf16.msra.mxu0 0
      %5048 = vmatprep.subr.bf16.mxu0 %v5029
      %5049 = vmatpush1.bf16.msra.mxu0 %v5026
      %5050 = vmatprep.subr.bf16.mxu0 0
      %5051 = vmatpush2.bf16.msra.mxu0 0
      %5052 = vmatprep.subr.bf16.mxu0 0
      %5053 = vmatpush2.bf16.msra.mxu0 0
      %5054 = vmatprep.subr.bf16.mxu0 0
      %5055 = vmatpush2.bf16.msra.mxu0 0
      %5056 = vmatprep.subr.bf16.mxu0 0
      %5057 = vmatpush2.bf16.msra.mxu0 0
      %5058 = vmatprep.subr.bf16.mxu0 0
      %5059 = vmatpush2.bf16.msra.mxu0 0
      %5060 = vmatprep.subr.bf16.mxu0 0
      %5061 = vmatpush2.bf16.msra.mxu0 0
      %5062 = vmatprep.subr.bf16.mxu0 0
      %5063 = vmatpush2.bf16.msra.mxu0 0
      %5064 = vmatprep.subr.bf16.mxu0 0
      %5065 = vmatpush2.bf16.msra.mxu0 0
      %5066 = vmatprep.mubr.bf16.mxu0 0
      %5067 = vmatmul.mubr.bf16.gmra.mxu0 %v5023
      %v5068 = vpop.f32.mrf.mxu0
      %v5069 = vadd.f32 0.0, %v5068
      %v5070 = vpop.f32.mrf.mxu0
      %v5071 = vadd.f32 0.0, %v5070
      %v5072 = vpop.f32.mrf.mxu0
      %v5073 = vpop.f32.mrf.mxu0
      %5074 = vdwg.mxu0
      %5075 = vmatprep.subr.bf16.mxu0 0
      %5076 = vmatpush1.bf16.msra.mxu0 0
      %5077 = vmatprep.subr.bf16.mxu0 0
      %5078 = vmatpush1.bf16.msra.mxu0 0
      %5079 = vmatprep.subr.bf16.mxu0 0
      %5080 = vmatpush1.bf16.msra.mxu0 0
      %5081 = vmatprep.subr.bf16.mxu0 0
      %5082 = vmatpush1.bf16.msra.mxu0 0
      %5083 = vmatprep.subr.bf16.mxu0 0
      %5084 = vmatpush1.bf16.msra.mxu0 0
      %5085 = vmatprep.subr.bf16.mxu0 0
      %5086 = vmatpush1.bf16.msra.mxu0 0
      %5087 = vmatprep.subr.bf16.mxu0 0
      %5088 = vmatpush1.bf16.msra.mxu0 0
      %5089 = vmatprep.subr.bf16.mxu0 0
      %5090 = vmatpush1.bf16.msra.mxu0 %v5032
      %5091 = vmatprep.subr.bf16.mxu0 0
      %5092 = vmatpush2.bf16.msra.mxu0 0
      %5093 = vmatprep.subr.bf16.mxu0 0
      %5094 = vmatpush2.bf16.msra.mxu0 0
      %5095 = vmatprep.subr.bf16.mxu0 0
      %5096 = vmatpush2.bf16.msra.mxu0 0
      %5097 = vmatprep.subr.bf16.mxu0 0
      %5098 = vmatpush2.bf16.msra.mxu0 0
      %5099 = vmatprep.subr.bf16.mxu0 0
      %5100 = vmatpush2.bf16.msra.mxu0 0
      %5101 = vmatprep.subr.bf16.mxu0 0
      %5102 = vmatpush2.bf16.msra.mxu0 0
      %5103 = vmatprep.subr.bf16.mxu0 0
      %5104 = vmatpush2.bf16.msra.mxu0 0
      %5105 = vmatprep.subr.bf16.mxu0 0
      %5106 = vmatpush2.bf16.msra.mxu0 0
      %5107 = vmatprep.mubr.bf16.mxu0 0
      %5108 = vmatmul.mubr.bf16.gmra.mxu0 %v5023
      %v5109 = vpop.f32.mrf.mxu0
      %v5110 = vadd.f32 0.0, %v5109
      %v5111 = vpop.f32.mrf.mxu0
      %v5112 = vpop.f32.mrf.mxu0
      %v5113 = vpop.f32.mrf.mxu0
      %5114 = vdwg.mxu0
      %v5115 = vadd.f32 %v4986, %v5069
      %v5116 = vadd.f32 %v4987, %v5071
      %v5117 = vadd.f32 %v4988, %v5110
      %v5118 = vld [vmem:[%s165] sm:$0xff]
      %s5119 = scalar_lea.vmem %s0, 156
      %v5120 = vld [vmem:[%s5119] sm:$0xf]
      %v5122 = vcombine.high %v5118, %v5118
      %v5124 = vunpack.c.l.s4 1983009808
      %v5125 = vunpack.c.0.s8 %v5124
      %v5126 = vlaneseq
      %v5127 = vshrl.u32 %v5126, 7
      %v5128 = vsub.s32 %v5125, %v5127
      %v5129 = vrot.slane %v5118, %v5128
      %v5131 = vunpack.c.l.s4 1983009808
      %v5132 = vunpack.c.0.s8 %v5131
      %v5133 = vlaneseq
      %v5134 = vshrl.u32 %v5133, 7
      %v5135 = vsub.s32 %v5132, %v5134
      %v5136 = vrot.slane %v5122, %v5135
      %v5137 = vcombine.high %v5129, %v5129
      %v5138 = vcombine.high %v5136, %v5136
      %5139 = vrot.lane.b32.xlu0 %v5129, 14
      %v5140 = vpop.permute.xlu0 %5139
      %5141 = vrot.lane.b32.xlu0 %v5137, 14
      %v5142 = vpop.permute.xlu0 %5141
      %5143 = vrot.lane.b32.xlu0 %v5136, 14
      %v5144 = vpop.permute.xlu0 %5143
      %5145 = vrot.lane.b32.xlu0 %v5138, 14
      %v5146 = vpop.permute.xlu0 %5145
      %vm5147 = vcmask 113664
      %v5148 = vsel %vm5147, %v5140, %v5142
      %v5149 = vsel %vm5147, %v5142, %v5144
      %v5150 = vsel %vm5147, %v5144, %v5146
      %v5152 = vsel %vm202, %v5120, 0
      %v5155 = vand.u32 %v5148, %v209
      %v5158 = vand.u32 %v5149, %v209
      %v5161 = vand.u32 %v5150, %v209
      %5163 = vmatprep.subr.bf16.mxu0 0
      %5164 = vmatpush1.bf16.msra.mxu0 0
      %5165 = vmatprep.subr.bf16.mxu0 0
      %5166 = vmatpush1.bf16.msra.mxu0 0
      %5167 = vmatprep.subr.bf16.mxu0 0
      %5168 = vmatpush1.bf16.msra.mxu0 0
      %5169 = vmatprep.subr.bf16.mxu0 0
      %5170 = vmatpush1.bf16.msra.mxu0 0
      %5171 = vmatprep.subr.bf16.mxu0 0
      %5172 = vmatpush1.bf16.msra.mxu0 0
      %5173 = vmatprep.subr.bf16.mxu0 0
      %5174 = vmatpush1.bf16.msra.mxu0 0
      %5175 = vmatprep.subr.bf16.mxu0 0
      %5176 = vmatpush1.bf16.msra.mxu0 0
      %5177 = vmatprep.subr.bf16.mxu0 %v5158
      %5178 = vmatpush1.bf16.msra.mxu0 %v5155
      %5179 = vmatprep.subr.bf16.mxu0 0
      %5180 = vmatpush2.bf16.msra.mxu0 0
      %5181 = vmatprep.subr.bf16.mxu0 0
      %5182 = vmatpush2.bf16.msra.mxu0 0
      %5183 = vmatprep.subr.bf16.mxu0 0
      %5184 = vmatpush2.bf16.msra.mxu0 0
      %5185 = vmatprep.subr.bf16.mxu0 0
      %5186 = vmatpush2.bf16.msra.mxu0 0
      %5187 = vmatprep.subr.bf16.mxu0 0
      %5188 = vmatpush2.bf16.msra.mxu0 0
      %5189 = vmatprep.subr.bf16.mxu0 0
      %5190 = vmatpush2.bf16.msra.mxu0 0
      %5191 = vmatprep.subr.bf16.mxu0 0
      %5192 = vmatpush2.bf16.msra.mxu0 0
      %5193 = vmatprep.subr.bf16.mxu0 0
      %5194 = vmatpush2.bf16.msra.mxu0 0
      %5195 = vmatprep.mubr.bf16.mxu0 0
      %5196 = vmatmul.mubr.bf16.gmra.mxu0 %v5152
      %v5197 = vpop.f32.mrf.mxu0
      %v5198 = vadd.f32 0.0, %v5197
      %v5199 = vpop.f32.mrf.mxu0
      %v5200 = vadd.f32 0.0, %v5199
      %v5201 = vpop.f32.mrf.mxu0
      %v5202 = vpop.f32.mrf.mxu0
      %5203 = vdwg.mxu0
      %5204 = vmatprep.subr.bf16.mxu0 0
      %5205 = vmatpush1.bf16.msra.mxu0 0
      %5206 = vmatprep.subr.bf16.mxu0 0
      %5207 = vmatpush1.bf16.msra.mxu0 0
      %5208 = vmatprep.subr.bf16.mxu0 0
      %5209 = vmatpush1.bf16.msra.mxu0 0
      %5210 = vmatprep.subr.bf16.mxu0 0
      %5211 = vmatpush1.bf16.msra.mxu0 0
      %5212 = vmatprep.subr.bf16.mxu0 0
      %5213 = vmatpush1.bf16.msra.mxu0 0
      %5214 = vmatprep.subr.bf16.mxu0 0
      %5215 = vmatpush1.bf16.msra.mxu0 0
      %5216 = vmatprep.subr.bf16.mxu0 0
      %5217 = vmatpush1.bf16.msra.mxu0 0
      %5218 = vmatprep.subr.bf16.mxu0 0
      %5219 = vmatpush1.bf16.msra.mxu0 %v5161
      %5220 = vmatprep.subr.bf16.mxu0 0
      %5221 = vmatpush2.bf16.msra.mxu0 0
      %5222 = vmatprep.subr.bf16.mxu0 0
      %5223 = vmatpush2.bf16.msra.mxu0 0
      %5224 = vmatprep.subr.bf16.mxu0 0
      %5225 = vmatpush2.bf16.msra.mxu0 0
      %5226 = vmatprep.subr.bf16.mxu0 0
      %5227 = vmatpush2.bf16.msra.mxu0 0
      %5228 = vmatprep.subr.bf16.mxu0 0
      %5229 = vmatpush2.bf16.msra.mxu0 0
      %5230 = vmatprep.subr.bf16.mxu0 0
      %5231 = vmatpush2.bf16.msra.mxu0 0
      %5232 = vmatprep.subr.bf16.mxu0 0
      %5233 = vmatpush2.bf16.msra.mxu0 0
      %5234 = vmatprep.subr.bf16.mxu0 0
      %5235 = vmatpush2.bf16.msra.mxu0 0
      %5236 = vmatprep.mubr.bf16.mxu0 0
      %5237 = vmatmul.mubr.bf16.gmra.mxu0 %v5152
      %v5238 = vpop.f32.mrf.mxu0
      %v5239 = vadd.f32 0.0, %v5238
      %v5240 = vpop.f32.mrf.mxu0
      %v5241 = vpop.f32.mrf.mxu0
      %v5242 = vpop.f32.mrf.mxu0
      %5243 = vdwg.mxu0
      %v5244 = vadd.f32 %v5115, %v5198
      %v5245 = vadd.f32 %v5116, %v5200
      %v5246 = vadd.f32 %v5117, %v5239
      %v5247 = vld [vmem:[%s165] sm:$0xff]
      %s5248 = scalar_lea.vmem %s0, 160
      %v5249 = vld [vmem:[%s5248] sm:$0xf]
      %v5251 = vcombine.high %v5247, %v5247
      %v5253 = vunpack.c.l.s4 1983009808
      %v5254 = vunpack.c.0.s8 %v5253
      %v5255 = vlaneseq
      %v5256 = vshrl.u32 %v5255, 7
      %v5257 = vsub.s32 %v5254, %v5256
      %v5258 = vrot.slane %v5247, %v5257
      %v5260 = vunpack.c.l.s4 1983009808
      %v5261 = vunpack.c.0.s8 %v5260
      %v5262 = vlaneseq
      %v5263 = vshrl.u32 %v5262, 7
      %v5264 = vsub.s32 %v5261, %v5263
      %v5265 = vrot.slane %v5251, %v5264
      %v5266 = vcombine.high %v5258, %v5258
      %v5267 = vcombine.high %v5265, %v5265
      %5268 = vrot.lane.b32.xlu0 %v5258, 13
      %v5269 = vpop.permute.xlu0 %5268
      %5270 = vrot.lane.b32.xlu0 %v5266, 13
      %v5271 = vpop.permute.xlu0 %5270
      %5272 = vrot.lane.b32.xlu0 %v5265, 13
      %v5273 = vpop.permute.xlu0 %5272
      %5274 = vrot.lane.b32.xlu0 %v5267, 13
      %v5275 = vpop.permute.xlu0 %5274
      %vm5276 = vcmask 105472
      %v5277 = vsel %vm5276, %v5269, %v5271
      %v5278 = vsel %vm5276, %v5271, %v5273
      %v5279 = vsel %vm5276, %v5273, %v5275
      %v5281 = vsel %vm202, %v5249, 0
      %v5284 = vand.u32 %v5277, %v209
      %v5287 = vand.u32 %v5278, %v209
      %v5290 = vand.u32 %v5279, %v209
      %5292 = vmatprep.subr.bf16.mxu0 0
      %5293 = vmatpush1.bf16.msra.mxu0 0
      %5294 = vmatprep.subr.bf16.mxu0 0
      %5295 = vmatpush1.bf16.msra.mxu0 0
      %5296 = vmatprep.subr.bf16.mxu0 0
      %5297 = vmatpush1.bf16.msra.mxu0 0
      %5298 = vmatprep.subr.bf16.mxu0 0
      %5299 = vmatpush1.bf16.msra.mxu0 0
      %5300 = vmatprep.subr.bf16.mxu0 0
      %5301 = vmatpush1.bf16.msra.mxu0 0
      %5302 = vmatprep.subr.bf16.mxu0 0
      %5303 = vmatpush1.bf16.msra.mxu0 0
      %5304 = vmatprep.subr.bf16.mxu0 0
      %5305 = vmatpush1.bf16.msra.mxu0 0
      %5306 = vmatprep.subr.bf16.mxu0 %v5287
      %5307 = vmatpush1.bf16.msra.mxu0 %v5284
      %5308 = vmatprep.subr.bf16.mxu0 0
      %5309 = vmatpush2.bf16.msra.mxu0 0
      %5310 = vmatprep.subr.bf16.mxu0 0
      %5311 = vmatpush2.bf16.msra.mxu0 0
      %5312 = vmatprep.subr.bf16.mxu0 0
      %5313 = vmatpush2.bf16.msra.mxu0 0
      %5314 = vmatprep.subr.bf16.mxu0 0
      %5315 = vmatpush2.bf16.msra.mxu0 0
      %5316 = vmatprep.subr.bf16.mxu0 0
      %5317 = vmatpush2.bf16.msra.mxu0 0
      %5318 = vmatprep.subr.bf16.mxu0 0
      %5319 = vmatpush2.bf16.msra.mxu0 0
      %5320 = vmatprep.subr.bf16.mxu0 0
      %5321 = vmatpush2.bf16.msra.mxu0 0
      %5322 = vmatprep.subr.bf16.mxu0 0
      %5323 = vmatpush2.bf16.msra.mxu0 0
      %5324 = vmatprep.mubr.bf16.mxu0 0
      %5325 = vmatmul.mubr.bf16.gmra.mxu0 %v5281
      %v5326 = vpop.f32.mrf.mxu0
      %v5327 = vadd.f32 0.0, %v5326
      %v5328 = vpop.f32.mrf.mxu0
      %v5329 = vadd.f32 0.0, %v5328
      %v5330 = vpop.f32.mrf.mxu0
      %v5331 = vpop.f32.mrf.mxu0
      %5332 = vdwg.mxu0
      %5333 = vmatprep.subr.bf16.mxu0 0
      %5334 = vmatpush1.bf16.msra.mxu0 0
      %5335 = vmatprep.subr.bf16.mxu0 0
      %5336 = vmatpush1.bf16.msra.mxu0 0
      %5337 = vmatprep.subr.bf16.mxu0 0
      %5338 = vmatpush1.bf16.msra.mxu0 0
      %5339 = vmatprep.subr.bf16.mxu0 0
      %5340 = vmatpush1.bf16.msra.mxu0 0
      %5341 = vmatprep.subr.bf16.mxu0 0
      %5342 = vmatpush1.bf16.msra.mxu0 0
      %5343 = vmatprep.subr.bf16.mxu0 0
      %5344 = vmatpush1.bf16.msra.mxu0 0
      %5345 = vmatprep.subr.bf16.mxu0 0
      %5346 = vmatpush1.bf16.msra.mxu0 0
      %5347 = vmatprep.subr.bf16.mxu0 0
      %5348 = vmatpush1.bf16.msra.mxu0 %v5290
      %5349 = vmatprep.subr.bf16.mxu0 0
      %5350 = vmatpush2.bf16.msra.mxu0 0
      %5351 = vmatprep.subr.bf16.mxu0 0
      %5352 = vmatpush2.bf16.msra.mxu0 0
      %5353 = vmatprep.subr.bf16.mxu0 0
      %5354 = vmatpush2.bf16.msra.mxu0 0
      %5355 = vmatprep.subr.bf16.mxu0 0
      %5356 = vmatpush2.bf16.msra.mxu0 0
      %5357 = vmatprep.subr.bf16.mxu0 0
      %5358 = vmatpush2.bf16.msra.mxu0 0
      %5359 = vmatprep.subr.bf16.mxu0 0
      %5360 = vmatpush2.bf16.msra.mxu0 0
      %5361 = vmatprep.subr.bf16.mxu0 0
      %5362 = vmatpush2.bf16.msra.mxu0 0
      %5363 = vmatprep.subr.bf16.mxu0 0
      %5364 = vmatpush2.bf16.msra.mxu0 0
      %5365 = vmatprep.mubr.bf16.mxu0 0
      %5366 = vmatmul.mubr.bf16.gmra.mxu0 %v5281
      %v5367 = vpop.f32.mrf.mxu0
      %v5368 = vadd.f32 0.0, %v5367
      %v5369 = vpop.f32.mrf.mxu0
      %v5370 = vpop.f32.mrf.mxu0
      %v5371 = vpop.f32.mrf.mxu0
      %5372 = vdwg.mxu0
      %v5373 = vadd.f32 %v5244, %v5327
      %v5374 = vadd.f32 %v5245, %v5329
      %v5375 = vadd.f32 %v5246, %v5368
      %v5376 = vld [vmem:[%s165] sm:$0xff]
      %s5377 = scalar_lea.vmem %s0, 164
      %v5378 = vld [vmem:[%s5377] sm:$0xf]
      %v5380 = vcombine.high %v5376, %v5376
      %v5382 = vunpack.c.l.s4 1983009808
      %v5383 = vunpack.c.0.s8 %v5382
      %v5384 = vlaneseq
      %v5385 = vshrl.u32 %v5384, 7
      %v5386 = vsub.s32 %v5383, %v5385
      %v5387 = vrot.slane %v5376, %v5386
      %v5389 = vunpack.c.l.s4 1983009808
      %v5390 = vunpack.c.0.s8 %v5389
      %v5391 = vlaneseq
      %v5392 = vshrl.u32 %v5391, 7
      %v5393 = vsub.s32 %v5390, %v5392
      %v5394 = vrot.slane %v5380, %v5393
      %v5395 = vcombine.high %v5387, %v5387
      %v5396 = vcombine.high %v5394, %v5394
      %5397 = vrot.lane.b32.xlu0 %v5387, 12
      %v5398 = vpop.permute.xlu0 %5397
      %5399 = vrot.lane.b32.xlu0 %v5395, 12
      %v5400 = vpop.permute.xlu0 %5399
      %5401 = vrot.lane.b32.xlu0 %v5394, 12
      %v5402 = vpop.permute.xlu0 %5401
      %5403 = vrot.lane.b32.xlu0 %v5396, 12
      %v5404 = vpop.permute.xlu0 %5403
      %vm5405 = vcmask 97280
      %v5406 = vsel %vm5405, %v5398, %v5400
      %v5407 = vsel %vm5405, %v5400, %v5402
      %v5408 = vsel %vm5405, %v5402, %v5404
      %v5410 = vsel %vm202, %v5378, 0
      %v5413 = vand.u32 %v5406, %v209
      %v5416 = vand.u32 %v5407, %v209
      %v5419 = vand.u32 %v5408, %v209
      %5421 = vmatprep.subr.bf16.mxu0 0
      %5422 = vmatpush1.bf16.msra.mxu0 0
      %5423 = vmatprep.subr.bf16.mxu0 0
      %5424 = vmatpush1.bf16.msra.mxu0 0
      %5425 = vmatprep.subr.bf16.mxu0 0
      %5426 = vmatpush1.bf16.msra.mxu0 0
      %5427 = vmatprep.subr.bf16.mxu0 0
      %5428 = vmatpush1.bf16.msra.mxu0 0
      %5429 = vmatprep.subr.bf16.mxu0 0
      %5430 = vmatpush1.bf16.msra.mxu0 0
      %5431 = vmatprep.subr.bf16.mxu0 0
      %5432 = vmatpush1.bf16.msra.mxu0 0
      %5433 = vmatprep.subr.bf16.mxu0 0
      %5434 = vmatpush1.bf16.msra.mxu0 0
      %5435 = vmatprep.subr.bf16.mxu0 %v5416
      %5436 = vmatpush1.bf16.msra.mxu0 %v5413
      %5437 = vmatprep.subr.bf16.mxu0 0
      %5438 = vmatpush2.bf16.msra.mxu0 0
      %5439 = vmatprep.subr.bf16.mxu0 0
      %5440 = vmatpush2.bf16.msra.mxu0 0
      %5441 = vmatprep.subr.bf16.mxu0 0
      %5442 = vmatpush2.bf16.msra.mxu0 0
      %5443 = vmatprep.subr.bf16.mxu0 0
      %5444 = vmatpush2.bf16.msra.mxu0 0
      %5445 = vmatprep.subr.bf16.mxu0 0
      %5446 = vmatpush2.bf16.msra.mxu0 0
      %5447 = vmatprep.subr.bf16.mxu0 0
      %5448 = vmatpush2.bf16.msra.mxu0 0
      %5449 = vmatprep.subr.bf16.mxu0 0
      %5450 = vmatpush2.bf16.msra.mxu0 0
      %5451 = vmatprep.subr.bf16.mxu0 0
      %5452 = vmatpush2.bf16.msra.mxu0 0
      %5453 = vmatprep.mubr.bf16.mxu0 0
      %5454 = vmatmul.mubr.bf16.gmra.mxu0 %v5410
      %v5455 = vpop.f32.mrf.mxu0
      %v5456 = vadd.f32 0.0, %v5455
      %v5457 = vpop.f32.mrf.mxu0
      %v5458 = vadd.f32 0.0, %v5457
      %v5459 = vpop.f32.mrf.mxu0
      %v5460 = vpop.f32.mrf.mxu0
      %5461 = vdwg.mxu0
      %5462 = vmatprep.subr.bf16.mxu0 0
      %5463 = vmatpush1.bf16.msra.mxu0 0
      %5464 = vmatprep.subr.bf16.mxu0 0
      %5465 = vmatpush1.bf16.msra.mxu0 0
      %5466 = vmatprep.subr.bf16.mxu0 0
      %5467 = vmatpush1.bf16.msra.mxu0 0
      %5468 = vmatprep.subr.bf16.mxu0 0
      %5469 = vmatpush1.bf16.msra.mxu0 0
      %5470 = vmatprep.subr.bf16.mxu0 0
      %5471 = vmatpush1.bf16.msra.mxu0 0
      %5472 = vmatprep.subr.bf16.mxu0 0
      %5473 = vmatpush1.bf16.msra.mxu0 0
      %5474 = vmatprep.subr.bf16.mxu0 0
      %5475 = vmatpush1.bf16.msra.mxu0 0
      %5476 = vmatprep.subr.bf16.mxu0 0
      %5477 = vmatpush1.bf16.msra.mxu0 %v5419
      %5478 = vmatprep.subr.bf16.mxu0 0
      %5479 = vmatpush2.bf16.msra.mxu0 0
      %5480 = vmatprep.subr.bf16.mxu0 0
      %5481 = vmatpush2.bf16.msra.mxu0 0
      %5482 = vmatprep.subr.bf16.mxu0 0
      %5483 = vmatpush2.bf16.msra.mxu0 0
      %5484 = vmatprep.subr.bf16.mxu0 0
      %5485 = vmatpush2.bf16.msra.mxu0 0
      %5486 = vmatprep.subr.bf16.mxu0 0
      %5487 = vmatpush2.bf16.msra.mxu0 0
      %5488 = vmatprep.subr.bf16.mxu0 0
      %5489 = vmatpush2.bf16.msra.mxu0 0
      %5490 = vmatprep.subr.bf16.mxu0 0
      %5491 = vmatpush2.bf16.msra.mxu0 0
      %5492 = vmatprep.subr.bf16.mxu0 0
      %5493 = vmatpush2.bf16.msra.mxu0 0
      %5494 = vmatprep.mubr.bf16.mxu0 0
      %5495 = vmatmul.mubr.bf16.gmra.mxu0 %v5410
      %v5496 = vpop.f32.mrf.mxu0
      %v5497 = vadd.f32 0.0, %v5496
      %v5498 = vpop.f32.mrf.mxu0
      %v5499 = vpop.f32.mrf.mxu0
      %v5500 = vpop.f32.mrf.mxu0
      %5501 = vdwg.mxu0
      %v5502 = vadd.f32 %v5373, %v5456
      %v5503 = vadd.f32 %v5374, %v5458
      %v5504 = vadd.f32 %v5375, %v5497
      %v5505 = vld [vmem:[%s165 + $0x2] sm:$0x3f]
      %s5506 = scalar_lea.vmem %s0, 168
      %v5507 = vld [vmem:[%s5506] sm:$0xf]
      %v5509 = vcombine.high %v5505, %v5505
      %v5511 = vunpack.c.l.s4 1983009808
      %v5512 = vunpack.c.0.s8 %v5511
      %v5513 = vlaneseq
      %v5514 = vshrl.u32 %v5513, 7
      %v5515 = vsub.s32 %v5512, %v5514
      %v5516 = vrot.slane %v5505, %v5515
      %v5518 = vunpack.c.l.s4 1983009808
      %v5519 = vunpack.c.0.s8 %v5518
      %v5520 = vlaneseq
      %v5521 = vshrl.u32 %v5520, 7
      %v5522 = vsub.s32 %v5519, %v5521
      %v5523 = vrot.slane %v5509, %v5522
      %v5524 = vcombine.high %v5516, %v5516
      %5525 = vrot.lane.b32.xlu0 %v5516, 124
      %v5526 = vpop.permute.xlu0 %5525
      %5527 = vrot.lane.b32.xlu0 %v5524, 124
      %v5528 = vpop.permute.xlu0 %5527
      %5529 = vrot.lane.b32.xlu0 %v5523, 124
      %v5530 = vpop.permute.xlu0 %5529
      %v5531 = vsel %vm669, %v5526, %v5528
      %v5532 = vsel %vm669, %v5528, %v5530
      %v5534 = vsel %vm202, %v5507, 0
      %v5537 = vand.u32 %v5531, %v209
      %v5540 = vand.u32 %v5532, %v209
      %v5543 = vand.u32 %v5530, %v209
      %5545 = vmatprep.subr.bf16.mxu0 0
      %5546 = vmatpush1.bf16.msra.mxu0 0
      %5547 = vmatprep.subr.bf16.mxu0 0
      %5548 = vmatpush1.bf16.msra.mxu0 0
      %5549 = vmatprep.subr.bf16.mxu0 0
      %5550 = vmatpush1.bf16.msra.mxu0 0
      %5551 = vmatprep.subr.bf16.mxu0 0
      %5552 = vmatpush1.bf16.msra.mxu0 0
      %5553 = vmatprep.subr.bf16.mxu0 0
      %5554 = vmatpush1.bf16.msra.mxu0 0
      %5555 = vmatprep.subr.bf16.mxu0 0
      %5556 = vmatpush1.bf16.msra.mxu0 0
      %5557 = vmatprep.subr.bf16.mxu0 0
      %5558 = vmatpush1.bf16.msra.mxu0 0
      %5559 = vmatprep.subr.bf16.mxu0 %v5540
      %5560 = vmatpush1.bf16.msra.mxu0 %v5537
      %5561 = vmatprep.subr.bf16.mxu0 0
      %5562 = vmatpush2.bf16.msra.mxu0 0
      %5563 = vmatprep.subr.bf16.mxu0 0
      %5564 = vmatpush2.bf16.msra.mxu0 0
      %5565 = vmatprep.subr.bf16.mxu0 0
      %5566 = vmatpush2.bf16.msra.mxu0 0
      %5567 = vmatprep.subr.bf16.mxu0 0
      %5568 = vmatpush2.bf16.msra.mxu0 0
      %5569 = vmatprep.subr.bf16.mxu0 0
      %5570 = vmatpush2.bf16.msra.mxu0 0
      %5571 = vmatprep.subr.bf16.mxu0 0
      %5572 = vmatpush2.bf16.msra.mxu0 0
      %5573 = vmatprep.subr.bf16.mxu0 0
      %5574 = vmatpush2.bf16.msra.mxu0 0
      %5575 = vmatprep.subr.bf16.mxu0 0
      %5576 = vmatpush2.bf16.msra.mxu0 0
      %5577 = vmatprep.mubr.bf16.mxu0 0
      %5578 = vmatmul.mubr.bf16.gmra.mxu0 %v5534
      %v5579 = vpop.f32.mrf.mxu0
      %v5580 = vadd.f32 0.0, %v5579
      %v5581 = vpop.f32.mrf.mxu0
      %v5582 = vadd.f32 0.0, %v5581
      %v5583 = vpop.f32.mrf.mxu0
      %v5584 = vpop.f32.mrf.mxu0
      %5585 = vdwg.mxu0
      %5586 = vmatprep.subr.bf16.mxu0 0
      %5587 = vmatpush1.bf16.msra.mxu0 0
      %5588 = vmatprep.subr.bf16.mxu0 0
      %5589 = vmatpush1.bf16.msra.mxu0 0
      %5590 = vmatprep.subr.bf16.mxu0 0
      %5591 = vmatpush1.bf16.msra.mxu0 0
      %5592 = vmatprep.subr.bf16.mxu0 0
      %5593 = vmatpush1.bf16.msra.mxu0 0
      %5594 = vmatprep.subr.bf16.mxu0 0
      %5595 = vmatpush1.bf16.msra.mxu0 0
      %5596 = vmatprep.subr.bf16.mxu0 0
      %5597 = vmatpush1.bf16.msra.mxu0 0
      %5598 = vmatprep.subr.bf16.mxu0 0
      %5599 = vmatpush1.bf16.msra.mxu0 0
      %5600 = vmatprep.subr.bf16.mxu0 0
      %5601 = vmatpush1.bf16.msra.mxu0 %v5543
      %5602 = vmatprep.subr.bf16.mxu0 0
      %5603 = vmatpush2.bf16.msra.mxu0 0
      %5604 = vmatprep.subr.bf16.mxu0 0
      %5605 = vmatpush2.bf16.msra.mxu0 0
      %5606 = vmatprep.subr.bf16.mxu0 0
      %5607 = vmatpush2.bf16.msra.mxu0 0
      %5608 = vmatprep.subr.bf16.mxu0 0
      %5609 = vmatpush2.bf16.msra.mxu0 0
      %5610 = vmatprep.subr.bf16.mxu0 0
      %5611 = vmatpush2.bf16.msra.mxu0 0
      %5612 = vmatprep.subr.bf16.mxu0 0
      %5613 = vmatpush2.bf16.msra.mxu0 0
      %5614 = vmatprep.subr.bf16.mxu0 0
      %5615 = vmatpush2.bf16.msra.mxu0 0
      %5616 = vmatprep.subr.bf16.mxu0 0
      %5617 = vmatpush2.bf16.msra.mxu0 0
      %5618 = vmatprep.mubr.bf16.mxu0 0
      %5619 = vmatmul.mubr.bf16.gmra.mxu0 %v5534
      %v5620 = vpop.f32.mrf.mxu0
      %v5621 = vadd.f32 0.0, %v5620
      %v5622 = vpop.f32.mrf.mxu0
      %v5623 = vpop.f32.mrf.mxu0
      %v5624 = vpop.f32.mrf.mxu0
      %5625 = vdwg.mxu0
      %v5626 = vadd.f32 %v5502, %v5580
      %v5627 = vadd.f32 %v5503, %v5582
      %v5628 = vadd.f32 %v5504, %v5621
      %v5629 = vld [vmem:[%s165 + $0x2] sm:$0x3f]
      %s5630 = scalar_lea.vmem %s0, 172
      %v5631 = vld [vmem:[%s5630] sm:$0xf]
      %v5633 = vcombine.high %v5629, %v5629
      %v5635 = vunpack.c.l.s4 1983009808
      %v5636 = vunpack.c.0.s8 %v5635
      %v5637 = vlaneseq
      %v5638 = vshrl.u32 %v5637, 7
      %v5639 = vsub.s32 %v5636, %v5638
      %v5640 = vrot.slane %v5629, %v5639
      %v5642 = vunpack.c.l.s4 1983009808
      %v5643 = vunpack.c.0.s8 %v5642
      %v5644 = vlaneseq
      %v5645 = vshrl.u32 %v5644, 7
      %v5646 = vsub.s32 %v5643, %v5645
      %v5647 = vrot.slane %v5633, %v5646
      %v5648 = vcombine.high %v5640, %v5640
      %5649 = vrot.lane.b32.xlu0 %v5640, 123
      %v5650 = vpop.permute.xlu0 %5649
      %5651 = vrot.lane.b32.xlu0 %v5648, 123
      %v5652 = vpop.permute.xlu0 %5651
      %5653 = vrot.lane.b32.xlu0 %v5647, 123
      %v5654 = vpop.permute.xlu0 %5653
      %v5655 = vsel %vm794, %v5650, %v5652
      %v5656 = vsel %vm794, %v5652, %v5654
      %v5658 = vsel %vm202, %v5631, 0
      %v5661 = vand.u32 %v5655, %v209
      %v5664 = vand.u32 %v5656, %v209
      %v5667 = vand.u32 %v5654, %v209
      %5669 = vmatprep.subr.bf16.mxu0 0
      %5670 = vmatpush1.bf16.msra.mxu0 0
      %5671 = vmatprep.subr.bf16.mxu0 0
      %5672 = vmatpush1.bf16.msra.mxu0 0
      %5673 = vmatprep.subr.bf16.mxu0 0
      %5674 = vmatpush1.bf16.msra.mxu0 0
      %5675 = vmatprep.subr.bf16.mxu0 0
      %5676 = vmatpush1.bf16.msra.mxu0 0
      %5677 = vmatprep.subr.bf16.mxu0 0
      %5678 = vmatpush1.bf16.msra.mxu0 0
      %5679 = vmatprep.subr.bf16.mxu0 0
      %5680 = vmatpush1.bf16.msra.mxu0 0
      %5681 = vmatprep.subr.bf16.mxu0 0
      %5682 = vmatpush1.bf16.msra.mxu0 0
      %5683 = vmatprep.subr.bf16.mxu0 %v5664
      %5684 = vmatpush1.bf16.msra.mxu0 %v5661
      %5685 = vmatprep.subr.bf16.mxu0 0
      %5686 = vmatpush2.bf16.msra.mxu0 0
      %5687 = vmatprep.subr.bf16.mxu0 0
      %5688 = vmatpush2.bf16.msra.mxu0 0
      %5689 = vmatprep.subr.bf16.mxu0 0
      %5690 = vmatpush2.bf16.msra.mxu0 0
      %5691 = vmatprep.subr.bf16.mxu0 0
      %5692 = vmatpush2.bf16.msra.mxu0 0
      %5693 = vmatprep.subr.bf16.mxu0 0
      %5694 = vmatpush2.bf16.msra.mxu0 0
      %5695 = vmatprep.subr.bf16.mxu0 0
      %5696 = vmatpush2.bf16.msra.mxu0 0
      %5697 = vmatprep.subr.bf16.mxu0 0
      %5698 = vmatpush2.bf16.msra.mxu0 0
      %5699 = vmatprep.subr.bf16.mxu0 0
      %5700 = vmatpush2.bf16.msra.mxu0 0
      %5701 = vmatprep.mubr.bf16.mxu0 0
      %5702 = vmatmul.mubr.bf16.gmra.mxu0 %v5658
      %v5703 = vpop.f32.mrf.mxu0
      %v5704 = vadd.f32 0.0, %v5703
      %v5705 = vpop.f32.mrf.mxu0
      %v5706 = vadd.f32 0.0, %v5705
      %v5707 = vpop.f32.mrf.mxu0
      %v5708 = vpop.f32.mrf.mxu0
      %5709 = vdwg.mxu0
      %5710 = vmatprep.subr.bf16.mxu0 0
      %5711 = vmatpush1.bf16.msra.mxu0 0
      %5712 = vmatprep.subr.bf16.mxu0 0
      %5713 = vmatpush1.bf16.msra.mxu0 0
      %5714 = vmatprep.subr.bf16.mxu0 0
      %5715 = vmatpush1.bf16.msra.mxu0 0
      %5716 = vmatprep.subr.bf16.mxu0 0
      %5717 = vmatpush1.bf16.msra.mxu0 0
      %5718 = vmatprep.subr.bf16.mxu0 0
      %5719 = vmatpush1.bf16.msra.mxu0 0
      %5720 = vmatprep.subr.bf16.mxu0 0
      %5721 = vmatpush1.bf16.msra.mxu0 0
      %5722 = vmatprep.subr.bf16.mxu0 0
      %5723 = vmatpush1.bf16.msra.mxu0 0
      %5724 = vmatprep.subr.bf16.mxu0 0
      %5725 = vmatpush1.bf16.msra.mxu0 %v5667
      %5726 = vmatprep.subr.bf16.mxu0 0
      %5727 = vmatpush2.bf16.msra.mxu0 0
      %5728 = vmatprep.subr.bf16.mxu0 0
      %5729 = vmatpush2.bf16.msra.mxu0 0
      %5730 = vmatprep.subr.bf16.mxu0 0
      %5731 = vmatpush2.bf16.msra.mxu0 0
      %5732 = vmatprep.subr.bf16.mxu0 0
      %5733 = vmatpush2.bf16.msra.mxu0 0
      %5734 = vmatprep.subr.bf16.mxu0 0
      %5735 = vmatpush2.bf16.msra.mxu0 0
      %5736 = vmatprep.subr.bf16.mxu0 0
      %5737 = vmatpush2.bf16.msra.mxu0 0
      %5738 = vmatprep.subr.bf16.mxu0 0
      %5739 = vmatpush2.bf16.msra.mxu0 0
      %5740 = vmatprep.subr.bf16.mxu0 0
      %5741 = vmatpush2.bf16.msra.mxu0 0
      %5742 = vmatprep.mubr.bf16.mxu0 0
      %5743 = vmatmul.mubr.bf16.gmra.mxu0 %v5658
      %v5744 = vpop.f32.mrf.mxu0
      %v5745 = vadd.f32 0.0, %v5744
      %v5746 = vpop.f32.mrf.mxu0
      %v5747 = vpop.f32.mrf.mxu0
      %v5748 = vpop.f32.mrf.mxu0
      %5749 = vdwg.mxu0
      %v5750 = vadd.f32 %v5626, %v5704
      %v5751 = vadd.f32 %v5627, %v5706
      %v5752 = vadd.f32 %v5628, %v5745
      %v5753 = vld [vmem:[%s165 + $0x2] sm:$0x3f]
      %s5754 = scalar_lea.vmem %s0, 176
      %v5755 = vld [vmem:[%s5754] sm:$0xf]
      %v5757 = vcombine.high %v5753, %v5753
      %v5759 = vunpack.c.l.s4 1983009808
      %v5760 = vunpack.c.0.s8 %v5759
      %v5761 = vlaneseq
      %v5762 = vshrl.u32 %v5761, 7
      %v5763 = vsub.s32 %v5760, %v5762
      %v5764 = vrot.slane %v5753, %v5763
      %v5766 = vunpack.c.l.s4 1983009808
      %v5767 = vunpack.c.0.s8 %v5766
      %v5768 = vlaneseq
      %v5769 = vshrl.u32 %v5768, 7
      %v5770 = vsub.s32 %v5767, %v5769
      %v5771 = vrot.slane %v5757, %v5770
      %v5772 = vcombine.high %v5764, %v5764
      %5773 = vrot.lane.b32.xlu0 %v5764, 122
      %v5774 = vpop.permute.xlu0 %5773
      %5775 = vrot.lane.b32.xlu0 %v5772, 122
      %v5776 = vpop.permute.xlu0 %5775
      %5777 = vrot.lane.b32.xlu0 %v5771, 122
      %v5778 = vpop.permute.xlu0 %5777
      %v5779 = vsel %vm919, %v5774, %v5776
      %v5780 = vsel %vm919, %v5776, %v5778
      %v5782 = vsel %vm202, %v5755, 0
      %v5785 = vand.u32 %v5779, %v209
      %v5788 = vand.u32 %v5780, %v209
      %v5791 = vand.u32 %v5778, %v209
      %5793 = vmatprep.subr.bf16.mxu0 0
      %5794 = vmatpush1.bf16.msra.mxu0 0
      %5795 = vmatprep.subr.bf16.mxu0 0
      %5796 = vmatpush1.bf16.msra.mxu0 0
      %5797 = vmatprep.subr.bf16.mxu0 0
      %5798 = vmatpush1.bf16.msra.mxu0 0
      %5799 = vmatprep.subr.bf16.mxu0 0
      %5800 = vmatpush1.bf16.msra.mxu0 0
      %5801 = vmatprep.subr.bf16.mxu0 0
      %5802 = vmatpush1.bf16.msra.mxu0 0
      %5803 = vmatprep.subr.bf16.mxu0 0
      %5804 = vmatpush1.bf16.msra.mxu0 0
      %5805 = vmatprep.subr.bf16.mxu0 0
      %5806 = vmatpush1.bf16.msra.mxu0 0
      %5807 = vmatprep.subr.bf16.mxu0 %v5788
      %5808 = vmatpush1.bf16.msra.mxu0 %v5785
      %5809 = vmatprep.subr.bf16.mxu0 0
      %5810 = vmatpush2.bf16.msra.mxu0 0
      %5811 = vmatprep.subr.bf16.mxu0 0
      %5812 = vmatpush2.bf16.msra.mxu0 0
      %5813 = vmatprep.subr.bf16.mxu0 0
      %5814 = vmatpush2.bf16.msra.mxu0 0
      %5815 = vmatprep.subr.bf16.mxu0 0
      %5816 = vmatpush2.bf16.msra.mxu0 0
      %5817 = vmatprep.subr.bf16.mxu0 0
      %5818 = vmatpush2.bf16.msra.mxu0 0
      %5819 = vmatprep.subr.bf16.mxu0 0
      %5820 = vmatpush2.bf16.msra.mxu0 0
      %5821 = vmatprep.subr.bf16.mxu0 0
      %5822 = vmatpush2.bf16.msra.mxu0 0
      %5823 = vmatprep.subr.bf16.mxu0 0
      %5824 = vmatpush2.bf16.msra.mxu0 0
      %5825 = vmatprep.mubr.bf16.mxu0 0
      %5826 = vmatmul.mubr.bf16.gmra.mxu0 %v5782
      %v5827 = vpop.f32.mrf.mxu0
      %v5828 = vadd.f32 0.0, %v5827
      %v5829 = vpop.f32.mrf.mxu0
      %v5830 = vadd.f32 0.0, %v5829
      %v5831 = vpop.f32.mrf.mxu0
      %v5832 = vpop.f32.mrf.mxu0
      %5833 = vdwg.mxu0
      %5834 = vmatprep.subr.bf16.mxu0 0
      %5835 = vmatpush1.bf16.msra.mxu0 0
      %5836 = vmatprep.subr.bf16.mxu0 0
      %5837 = vmatpush1.bf16.msra.mxu0 0
      %5838 = vmatprep.subr.bf16.mxu0 0
      %5839 = vmatpush1.bf16.msra.mxu0 0
      %5840 = vmatprep.subr.bf16.mxu0 0
      %5841 = vmatpush1.bf16.msra.mxu0 0
      %5842 = vmatprep.subr.bf16.mxu0 0
      %5843 = vmatpush1.bf16.msra.mxu0 0
      %5844 = vmatprep.subr.bf16.mxu0 0
      %5845 = vmatpush1.bf16.msra.mxu0 0
      %5846 = vmatprep.subr.bf16.mxu0 0
      %5847 = vmatpush1.bf16.msra.mxu0 0
      %5848 = vmatprep.subr.bf16.mxu0 0
      %5849 = vmatpush1.bf16.msra.mxu0 %v5791
      %5850 = vmatprep.subr.bf16.mxu0 0
      %5851 = vmatpush2.bf16.msra.mxu0 0
      %5852 = vmatprep.subr.bf16.mxu0 0
      %5853 = vmatpush2.bf16.msra.mxu0 0
      %5854 = vmatprep.subr.bf16.mxu0 0
      %5855 = vmatpush2.bf16.msra.mxu0 0
      %5856 = vmatprep.subr.bf16.mxu0 0
      %5857 = vmatpush2.bf16.msra.mxu0 0
      %5858 = vmatprep.subr.bf16.mxu0 0
      %5859 = vmatpush2.bf16.msra.mxu0 0
      %5860 = vmatprep.subr.bf16.mxu0 0
      %5861 = vmatpush2.bf16.msra.mxu0 0
      %5862 = vmatprep.subr.bf16.mxu0 0
      %5863 = vmatpush2.bf16.msra.mxu0 0
      %5864 = vmatprep.subr.bf16.mxu0 0
      %5865 = vmatpush2.bf16.msra.mxu0 0
      %5866 = vmatprep.mubr.bf16.mxu0 0
      %5867 = vmatmul.mubr.bf16.gmra.mxu0 %v5782
      %v5868 = vpop.f32.mrf.mxu0
      %v5869 = vadd.f32 0.0, %v5868
      %v5870 = vpop.f32.mrf.mxu0
      %v5871 = vpop.f32.mrf.mxu0
      %v5872 = vpop.f32.mrf.mxu0
      %5873 = vdwg.mxu0
      %v5874 = vadd.f32 %v5750, %v5828
      %v5875 = vadd.f32 %v5751, %v5830
      %v5876 = vadd.f32 %v5752, %v5869
      %v5877 = vld [vmem:[%s165 + $0x2] sm:$0x3f]
      %s5878 = scalar_lea.vmem %s0, 180
      %v5879 = vld [vmem:[%s5878] sm:$0xf]
      %v5881 = vcombine.high %v5877, %v5877
      %v5883 = vunpack.c.l.s4 1983009808
      %v5884 = vunpack.c.0.s8 %v5883
      %v5885 = vlaneseq
      %v5886 = vshrl.u32 %v5885, 7
      %v5887 = vsub.s32 %v5884, %v5886
      %v5888 = vrot.slane %v5877, %v5887
      %v5890 = vunpack.c.l.s4 1983009808
      %v5891 = vunpack.c.0.s8 %v5890
      %v5892 = vlaneseq
      %v5893 = vshrl.u32 %v5892, 7
      %v5894 = vsub.s32 %v5891, %v5893
      %v5895 = vrot.slane %v5881, %v5894
      %v5896 = vcombine.high %v5888, %v5888
      %5897 = vrot.lane.b32.xlu0 %v5888, 121
      %v5898 = vpop.permute.xlu0 %5897
      %5899 = vrot.lane.b32.xlu0 %v5896, 121
      %v5900 = vpop.permute.xlu0 %5899
      %5901 = vrot.lane.b32.xlu0 %v5895, 121
      %v5902 = vpop.permute.xlu0 %5901
      %vm5903 = vcmask 990208
      %v5904 = vsel %vm5903, %v5898, %v5900
      %v5905 = vsel %vm5903, %v5900, %v5902
      %v5907 = vsel %vm202, %v5879, 0
      %v5910 = vand.u32 %v5904, %v209
      %v5913 = vand.u32 %v5905, %v209
      %v5916 = vand.u32 %v5902, %v209
      %5918 = vmatprep.subr.bf16.mxu0 0
      %5919 = vmatpush1.bf16.msra.mxu0 0
      %5920 = vmatprep.subr.bf16.mxu0 0
      %5921 = vmatpush1.bf16.msra.mxu0 0
      %5922 = vmatprep.subr.bf16.mxu0 0
      %5923 = vmatpush1.bf16.msra.mxu0 0
      %5924 = vmatprep.subr.bf16.mxu0 0
      %5925 = vmatpush1.bf16.msra.mxu0 0
      %5926 = vmatprep.subr.bf16.mxu0 0
      %5927 = vmatpush1.bf16.msra.mxu0 0
      %5928 = vmatprep.subr.bf16.mxu0 0
      %5929 = vmatpush1.bf16.msra.mxu0 0
      %5930 = vmatprep.subr.bf16.mxu0 0
      %5931 = vmatpush1.bf16.msra.mxu0 0
      %5932 = vmatprep.subr.bf16.mxu0 %v5913
      %5933 = vmatpush1.bf16.msra.mxu0 %v5910
      %5934 = vmatprep.subr.bf16.mxu0 0
      %5935 = vmatpush2.bf16.msra.mxu0 0
      %5936 = vmatprep.subr.bf16.mxu0 0
      %5937 = vmatpush2.bf16.msra.mxu0 0
      %5938 = vmatprep.subr.bf16.mxu0 0
      %5939 = vmatpush2.bf16.msra.mxu0 0
      %5940 = vmatprep.subr.bf16.mxu0 0
      %5941 = vmatpush2.bf16.msra.mxu0 0
      %5942 = vmatprep.subr.bf16.mxu0 0
      %5943 = vmatpush2.bf16.msra.mxu0 0
      %5944 = vmatprep.subr.bf16.mxu0 0
      %5945 = vmatpush2.bf16.msra.mxu0 0
      %5946 = vmatprep.subr.bf16.mxu0 0
      %5947 = vmatpush2.bf16.msra.mxu0 0
      %5948 = vmatprep.subr.bf16.mxu0 0
      %5949 = vmatpush2.bf16.msra.mxu0 0
      %5950 = vmatprep.mubr.bf16.mxu0 0
      %5951 = vmatmul.mubr.bf16.gmra.mxu0 %v5907
      %v5952 = vpop.f32.mrf.mxu0
      %v5953 = vadd.f32 0.0, %v5952
      %v5954 = vpop.f32.mrf.mxu0
      %v5955 = vadd.f32 0.0, %v5954
      %v5956 = vpop.f32.mrf.mxu0
      %v5957 = vpop.f32.mrf.mxu0
      %5958 = vdwg.mxu0
      %5959 = vmatprep.subr.bf16.mxu0 0
      %5960 = vmatpush1.bf16.msra.mxu0 0
      %5961 = vmatprep.subr.bf16.mxu0 0
      %5962 = vmatpush1.bf16.msra.mxu0 0
      %5963 = vmatprep.subr.bf16.mxu0 0
      %5964 = vmatpush1.bf16.msra.mxu0 0
      %5965 = vmatprep.subr.bf16.mxu0 0
      %5966 = vmatpush1.bf16.msra.mxu0 0
      %5967 = vmatprep.subr.bf16.mxu0 0
      %5968 = vmatpush1.bf16.msra.mxu0 0
      %5969 = vmatprep.subr.bf16.mxu0 0
      %5970 = vmatpush1.bf16.msra.mxu0 0
      %5971 = vmatprep.subr.bf16.mxu0 0
      %5972 = vmatpush1.bf16.msra.mxu0 0
      %5973 = vmatprep.subr.bf16.mxu0 0
      %5974 = vmatpush1.bf16.msra.mxu0 %v5916
      %5975 = vmatprep.subr.bf16.mxu0 0
      %5976 = vmatpush2.bf16.msra.mxu0 0
      %5977 = vmatprep.subr.bf16.mxu0 0
      %5978 = vmatpush2.bf16.msra.mxu0 0
      %5979 = vmatprep.subr.bf16.mxu0 0
      %5980 = vmatpush2.bf16.msra.mxu0 0
      %5981 = vmatprep.subr.bf16.mxu0 0
      %5982 = vmatpush2.bf16.msra.mxu0 0
      %5983 = vmatprep.subr.bf16.mxu0 0
      %5984 = vmatpush2.bf16.msra.mxu0 0
      %5985 = vmatprep.subr.bf16.mxu0 0
      %5986 = vmatpush2.bf16.msra.mxu0 0
      %5987 = vmatprep.subr.bf16.mxu0 0
      %5988 = vmatpush2.bf16.msra.mxu0 0
      %5989 = vmatprep.subr.bf16.mxu0 0
      %5990 = vmatpush2.bf16.msra.mxu0 0
      %5991 = vmatprep.mubr.bf16.mxu0 0
      %5992 = vmatmul.mubr.bf16.gmra.mxu0 %v5907
      %v5993 = vpop.f32.mrf.mxu0
      %v5994 = vadd.f32 0.0, %v5993
      %v5995 = vpop.f32.mrf.mxu0
      %v5996 = vpop.f32.mrf.mxu0
      %v5997 = vpop.f32.mrf.mxu0
      %5998 = vdwg.mxu0
      %v5999 = vadd.f32 %v5874, %v5953
      %v6000 = vadd.f32 %v5875, %v5955
      %v6001 = vadd.f32 %v5876, %v5994
      %v6002 = vld [vmem:[%s165 + $0x2] sm:$0x3f]
      %s6003 = scalar_lea.vmem %s0, 184
      %v6004 = vld [vmem:[%s6003] sm:$0xf]
      %v6006 = vcombine.high %v6002, %v6002
      %v6008 = vunpack.c.l.s4 1983009808
      %v6009 = vunpack.c.0.s8 %v6008
      %v6010 = vlaneseq
      %v6011 = vshrl.u32 %v6010, 7
      %v6012 = vsub.s32 %v6009, %v6011
      %v6013 = vrot.slane %v6002, %v6012
      %v6015 = vunpack.c.l.s4 1983009808
      %v6016 = vunpack.c.0.s8 %v6015
      %v6017 = vlaneseq
      %v6018 = vshrl.u32 %v6017, 7
      %v6019 = vsub.s32 %v6016, %v6018
      %v6020 = vrot.slane %v6006, %v6019
      %v6021 = vcombine.high %v6013, %v6013
      %6022 = vrot.lane.b32.xlu0 %v6013, 120
      %v6023 = vpop.permute.xlu0 %6022
      %6024 = vrot.lane.b32.xlu0 %v6021, 120
      %v6025 = vpop.permute.xlu0 %6024
      %6026 = vrot.lane.b32.xlu0 %v6020, 120
      %v6027 = vpop.permute.xlu0 %6026
      %vm6028 = vcmask 982016
      %v6029 = vsel %vm6028, %v6023, %v6025
      %v6030 = vsel %vm6028, %v6025, %v6027
      %v6032 = vsel %vm202, %v6004, 0
      %v6035 = vand.u32 %v6029, %v209
      %v6038 = vand.u32 %v6030, %v209
      %v6041 = vand.u32 %v6027, %v209
      %6043 = vmatprep.subr.bf16.mxu0 0
      %6044 = vmatpush1.bf16.msra.mxu0 0
      %6045 = vmatprep.subr.bf16.mxu0 0
      %6046 = vmatpush1.bf16.msra.mxu0 0
      %6047 = vmatprep.subr.bf16.mxu0 0
      %6048 = vmatpush1.bf16.msra.mxu0 0
      %6049 = vmatprep.subr.bf16.mxu0 0
      %6050 = vmatpush1.bf16.msra.mxu0 0
      %6051 = vmatprep.subr.bf16.mxu0 0
      %6052 = vmatpush1.bf16.msra.mxu0 0
      %6053 = vmatprep.subr.bf16.mxu0 0
      %6054 = vmatpush1.bf16.msra.mxu0 0
      %6055 = vmatprep.subr.bf16.mxu0 0
      %6056 = vmatpush1.bf16.msra.mxu0 0
      %6057 = vmatprep.subr.bf16.mxu0 %v6038
      %6058 = vmatpush1.bf16.msra.mxu0 %v6035
      %6059 = vmatprep.subr.bf16.mxu0 0
      %6060 = vmatpush2.bf16.msra.mxu0 0
      %6061 = vmatprep.subr.bf16.mxu0 0
      %6062 = vmatpush2.bf16.msra.mxu0 0
      %6063 = vmatprep.subr.bf16.mxu0 0
      %6064 = vmatpush2.bf16.msra.mxu0 0
      %6065 = vmatprep.subr.bf16.mxu0 0
      %6066 = vmatpush2.bf16.msra.mxu0 0
      %6067 = vmatprep.subr.bf16.mxu0 0
      %6068 = vmatpush2.bf16.msra.mxu0 0
      %6069 = vmatprep.subr.bf16.mxu0 0
      %6070 = vmatpush2.bf16.msra.mxu0 0
      %6071 = vmatprep.subr.bf16.mxu0 0
      %6072 = vmatpush2.bf16.msra.mxu0 0
      %6073 = vmatprep.subr.bf16.mxu0 0
      %6074 = vmatpush2.bf16.msra.mxu0 0
      %6075 = vmatprep.mubr.bf16.mxu0 0
      %6076 = vmatmul.mubr.bf16.gmra.mxu0 %v6032
      %v6077 = vpop.f32.mrf.mxu0
      %v6078 = vadd.f32 0.0, %v6077
      %v6079 = vpop.f32.mrf.mxu0
      %v6080 = vadd.f32 0.0, %v6079
      %v6081 = vpop.f32.mrf.mxu0
      %v6082 = vpop.f32.mrf.mxu0
      %6083 = vdwg.mxu0
      %6084 = vmatprep.subr.bf16.mxu0 0
      %6085 = vmatpush1.bf16.msra.mxu0 0
      %6086 = vmatprep.subr.bf16.mxu0 0
      %6087 = vmatpush1.bf16.msra.mxu0 0
      %6088 = vmatprep.subr.bf16.mxu0 0
      %6089 = vmatpush1.bf16.msra.mxu0 0
      %6090 = vmatprep.subr.bf16.mxu0 0
      %6091 = vmatpush1.bf16.msra.mxu0 0
      %6092 = vmatprep.subr.bf16.mxu0 0
      %6093 = vmatpush1.bf16.msra.mxu0 0
      %6094 = vmatprep.subr.bf16.mxu0 0
      %6095 = vmatpush1.bf16.msra.mxu0 0
      %6096 = vmatprep.subr.bf16.mxu0 0
      %6097 = vmatpush1.bf16.msra.mxu0 0
      %6098 = vmatprep.subr.bf16.mxu0 0
      %6099 = vmatpush1.bf16.msra.mxu0 %v6041
      %6100 = vmatprep.subr.bf16.mxu0 0
      %6101 = vmatpush2.bf16.msra.mxu0 0
      %6102 = vmatprep.subr.bf16.mxu0 0
      %6103 = vmatpush2.bf16.msra.mxu0 0
      %6104 = vmatprep.subr.bf16.mxu0 0
      %6105 = vmatpush2.bf16.msra.mxu0 0
      %6106 = vmatprep.subr.bf16.mxu0 0
      %6107 = vmatpush2.bf16.msra.mxu0 0
      %6108 = vmatprep.subr.bf16.mxu0 0
      %6109 = vmatpush2.bf16.msra.mxu0 0
      %6110 = vmatprep.subr.bf16.mxu0 0
      %6111 = vmatpush2.bf16.msra.mxu0 0
      %6112 = vmatprep.subr.bf16.mxu0 0
      %6113 = vmatpush2.bf16.msra.mxu0 0
      %6114 = vmatprep.subr.bf16.mxu0 0
      %6115 = vmatpush2.bf16.msra.mxu0 0
      %6116 = vmatprep.mubr.bf16.mxu0 0
      %6117 = vmatmul.mubr.bf16.gmra.mxu0 %v6032
      %v6118 = vpop.f32.mrf.mxu0
      %v6119 = vadd.f32 0.0, %v6118
      %v6120 = vpop.f32.mrf.mxu0
      %v6121 = vpop.f32.mrf.mxu0
      %v6122 = vpop.f32.mrf.mxu0
      %6123 = vdwg.mxu0
      %v6124 = vadd.f32 %v5999, %v6078
      %v6125 = vadd.f32 %v6000, %v6080
      %v6126 = vadd.f32 %v6001, %v6119
      %v6127 = vld [vmem:[%s165 + $0x2] sm:$0x3f]
      %s6128 = scalar_lea.vmem %s0, 188
      %v6129 = vld [vmem:[%s6128] sm:$0xf]
      %v6131 = vcombine.high %v6127, %v6127
      %v6133 = vunpack.c.l.s4 1983009808
      %v6134 = vunpack.c.0.s8 %v6133
      %v6135 = vlaneseq
      %v6136 = vshrl.u32 %v6135, 7
      %v6137 = vsub.s32 %v6134, %v6136
      %v6138 = vrot.slane %v6127, %v6137
      %v6140 = vunpack.c.l.s4 1983009808
      %v6141 = vunpack.c.0.s8 %v6140
      %v6142 = vlaneseq
      %v6143 = vshrl.u32 %v6142, 7
      %v6144 = vsub.s32 %v6141, %v6143
      %v6145 = vrot.slane %v6131, %v6144
      %v6146 = vcombine.high %v6138, %v6138
      %6147 = vrot.lane.b32.xlu0 %v6138, 119
      %v6148 = vpop.permute.xlu0 %6147
      %6149 = vrot.lane.b32.xlu0 %v6146, 119
      %v6150 = vpop.permute.xlu0 %6149
      %6151 = vrot.lane.b32.xlu0 %v6145, 119
      %v6152 = vpop.permute.xlu0 %6151
      %vm6153 = vcmask 973824
      %v6154 = vsel %vm6153, %v6148, %v6150
      %v6155 = vsel %vm6153, %v6150, %v6152
      %v6157 = vsel %vm202, %v6129, 0
      %v6160 = vand.u32 %v6154, %v209
      %v6163 = vand.u32 %v6155, %v209
      %v6166 = vand.u32 %v6152, %v209
      %6168 = vmatprep.subr.bf16.mxu0 0
      %6169 = vmatpush1.bf16.msra.mxu0 0
      %6170 = vmatprep.subr.bf16.mxu0 0
      %6171 = vmatpush1.bf16.msra.mxu0 0
      %6172 = vmatprep.subr.bf16.mxu0 0
      %6173 = vmatpush1.bf16.msra.mxu0 0
      %6174 = vmatprep.subr.bf16.mxu0 0
      %6175 = vmatpush1.bf16.msra.mxu0 0
      %6176 = vmatprep.subr.bf16.mxu0 0
      %6177 = vmatpush1.bf16.msra.mxu0 0
      %6178 = vmatprep.subr.bf16.mxu0 0
      %6179 = vmatpush1.bf16.msra.mxu0 0
      %6180 = vmatprep.subr.bf16.mxu0 0
      %6181 = vmatpush1.bf16.msra.mxu0 0
      %6182 = vmatprep.subr.bf16.mxu0 %v6163
      %6183 = vmatpush1.bf16.msra.mxu0 %v6160
      %6184 = vmatprep.subr.bf16.mxu0 0
      %6185 = vmatpush2.bf16.msra.mxu0 0
      %6186 = vmatprep.subr.bf16.mxu0 0
      %6187 = vmatpush2.bf16.msra.mxu0 0
      %6188 = vmatprep.subr.bf16.mxu0 0
      %6189 = vmatpush2.bf16.msra.mxu0 0
      %6190 = vmatprep.subr.bf16.mxu0 0
      %6191 = vmatpush2.bf16.msra.mxu0 0
      %6192 = vmatprep.subr.bf16.mxu0 0
      %6193 = vmatpush2.bf16.msra.mxu0 0
      %6194 = vmatprep.subr.bf16.mxu0 0
      %6195 = vmatpush2.bf16.msra.mxu0 0
      %6196 = vmatprep.subr.bf16.mxu0 0
      %6197 = vmatpush2.bf16.msra.mxu0 0
      %6198 = vmatprep.subr.bf16.mxu0 0
      %6199 = vmatpush2.bf16.msra.mxu0 0
      %6200 = vmatprep.mubr.bf16.mxu0 0
      %6201 = vmatmul.mubr.bf16.gmra.mxu0 %v6157
      %v6202 = vpop.f32.mrf.mxu0
      %v6203 = vadd.f32 0.0, %v6202
      %v6204 = vpop.f32.mrf.mxu0
      %v6205 = vadd.f32 0.0, %v6204
      %v6206 = vpop.f32.mrf.mxu0
      %v6207 = vpop.f32.mrf.mxu0
      %6208 = vdwg.mxu0
      %6209 = vmatprep.subr.bf16.mxu0 0
      %6210 = vmatpush1.bf16.msra.mxu0 0
      %6211 = vmatprep.subr.bf16.mxu0 0
      %6212 = vmatpush1.bf16.msra.mxu0 0
      %6213 = vmatprep.subr.bf16.mxu0 0
      %6214 = vmatpush1.bf16.msra.mxu0 0
      %6215 = vmatprep.subr.bf16.mxu0 0
      %6216 = vmatpush1.bf16.msra.mxu0 0
      %6217 = vmatprep.subr.bf16.mxu0 0
      %6218 = vmatpush1.bf16.msra.mxu0 0
      %6219 = vmatprep.subr.bf16.mxu0 0
      %6220 = vmatpush1.bf16.msra.mxu0 0
      %6221 = vmatprep.subr.bf16.mxu0 0
      %6222 = vmatpush1.bf16.msra.mxu0 0
      %6223 = vmatprep.subr.bf16.mxu0 0
      %6224 = vmatpush1.bf16.msra.mxu0 %v6166
      %6225 = vmatprep.subr.bf16.mxu0 0
      %6226 = vmatpush2.bf16.msra.mxu0 0
      %6227 = vmatprep.subr.bf16.mxu0 0
      %6228 = vmatpush2.bf16.msra.mxu0 0
      %6229 = vmatprep.subr.bf16.mxu0 0
      %6230 = vmatpush2.bf16.msra.mxu0 0
      %6231 = vmatprep.subr.bf16.mxu0 0
      %6232 = vmatpush2.bf16.msra.mxu0 0
      %6233 = vmatprep.subr.bf16.mxu0 0
      %6234 = vmatpush2.bf16.msra.mxu0 0
      %6235 = vmatprep.subr.bf16.mxu0 0
      %6236 = vmatpush2.bf16.msra.mxu0 0
      %6237 = vmatprep.subr.bf16.mxu0 0
      %6238 = vmatpush2.bf16.msra.mxu0 0
      %6239 = vmatprep.subr.bf16.mxu0 0
      %6240 = vmatpush2.bf16.msra.mxu0 0
      %6241 = vmatprep.mubr.bf16.mxu0 0
      %6242 = vmatmul.mubr.bf16.gmra.mxu0 %v6157
      %v6243 = vpop.f32.mrf.mxu0
      %v6244 = vadd.f32 0.0, %v6243
      %v6245 = vpop.f32.mrf.mxu0
      %v6246 = vpop.f32.mrf.mxu0
      %v6247 = vpop.f32.mrf.mxu0
      %6248 = vdwg.mxu0
      %v6249 = vadd.f32 %v6124, %v6203
      %v6250 = vadd.f32 %v6125, %v6205
      %v6251 = vadd.f32 %v6126, %v6244
      %v6252 = vld [vmem:[%s165 + $0x2] sm:$0x3f]
      %s6253 = scalar_lea.vmem %s0, 192
      %v6254 = vld [vmem:[%s6253] sm:$0xf]
      %v6256 = vcombine.high %v6252, %v6252
      %v6258 = vunpack.c.l.s4 1983009808
      %v6259 = vunpack.c.0.s8 %v6258
      %v6260 = vlaneseq
      %v6261 = vshrl.u32 %v6260, 7
      %v6262 = vsub.s32 %v6259, %v6261
      %v6263 = vrot.slane %v6252, %v6262
      %v6265 = vunpack.c.l.s4 1983009808
      %v6266 = vunpack.c.0.s8 %v6265
      %v6267 = vlaneseq
      %v6268 = vshrl.u32 %v6267, 7
      %v6269 = vsub.s32 %v6266, %v6268
      %v6270 = vrot.slane %v6256, %v6269
      %v6271 = vcombine.high %v6263, %v6263
      %6272 = vrot.lane.b32.xlu0 %v6263, 118
      %v6273 = vpop.permute.xlu0 %6272
      %6274 = vrot.lane.b32.xlu0 %v6271, 118
      %v6275 = vpop.permute.xlu0 %6274
      %6276 = vrot.lane.b32.xlu0 %v6270, 118
      %v6277 = vpop.permute.xlu0 %6276
      %vm6278 = vcmask 965632
      %v6279 = vsel %vm6278, %v6273, %v6275
      %v6280 = vsel %vm6278, %v6275, %v6277
      %v6282 = vsel %vm202, %v6254, 0
      %v6285 = vand.u32 %v6279, %v209
      %v6288 = vand.u32 %v6280, %v209
      %v6291 = vand.u32 %v6277, %v209
      %6293 = vmatprep.subr.bf16.mxu0 0
      %6294 = vmatpush1.bf16.msra.mxu0 0
      %6295 = vmatprep.subr.bf16.mxu0 0
      %6296 = vmatpush1.bf16.msra.mxu0 0
      %6297 = vmatprep.subr.bf16.mxu0 0
      %6298 = vmatpush1.bf16.msra.mxu0 0
      %6299 = vmatprep.subr.bf16.mxu0 0
      %6300 = vmatpush1.bf16.msra.mxu0 0
      %6301 = vmatprep.subr.bf16.mxu0 0
      %6302 = vmatpush1.bf16.msra.mxu0 0
      %6303 = vmatprep.subr.bf16.mxu0 0
      %6304 = vmatpush1.bf16.msra.mxu0 0
      %6305 = vmatprep.subr.bf16.mxu0 0
      %6306 = vmatpush1.bf16.msra.mxu0 0
      %6307 = vmatprep.subr.bf16.mxu0 %v6288
      %6308 = vmatpush1.bf16.msra.mxu0 %v6285
      %6309 = vmatprep.subr.bf16.mxu0 0
      %6310 = vmatpush2.bf16.msra.mxu0 0
      %6311 = vmatprep.subr.bf16.mxu0 0
      %6312 = vmatpush2.bf16.msra.mxu0 0
      %6313 = vmatprep.subr.bf16.mxu0 0
      %6314 = vmatpush2.bf16.msra.mxu0 0
      %6315 = vmatprep.subr.bf16.mxu0 0
      %6316 = vmatpush2.bf16.msra.mxu0 0
      %6317 = vmatprep.subr.bf16.mxu0 0
      %6318 = vmatpush2.bf16.msra.mxu0 0
      %6319 = vmatprep.subr.bf16.mxu0 0
      %6320 = vmatpush2.bf16.msra.mxu0 0
      %6321 = vmatprep.subr.bf16.mxu0 0
      %6322 = vmatpush2.bf16.msra.mxu0 0
      %6323 = vmatprep.subr.bf16.mxu0 0
      %6324 = vmatpush2.bf16.msra.mxu0 0
      %6325 = vmatprep.mubr.bf16.mxu0 0
      %6326 = vmatmul.mubr.bf16.gmra.mxu0 %v6282
      %v6327 = vpop.f32.mrf.mxu0
      %v6328 = vadd.f32 0.0, %v6327
      %v6329 = vpop.f32.mrf.mxu0
      %v6330 = vadd.f32 0.0, %v6329
      %v6331 = vpop.f32.mrf.mxu0
      %v6332 = vpop.f32.mrf.mxu0
      %6333 = vdwg.mxu0
      %6334 = vmatprep.subr.bf16.mxu0 0
      %6335 = vmatpush1.bf16.msra.mxu0 0
      %6336 = vmatprep.subr.bf16.mxu0 0
      %6337 = vmatpush1.bf16.msra.mxu0 0
      %6338 = vmatprep.subr.bf16.mxu0 0
      %6339 = vmatpush1.bf16.msra.mxu0 0
      %6340 = vmatprep.subr.bf16.mxu0 0
      %6341 = vmatpush1.bf16.msra.mxu0 0
      %6342 = vmatprep.subr.bf16.mxu0 0
      %6343 = vmatpush1.bf16.msra.mxu0 0
      %6344 = vmatprep.subr.bf16.mxu0 0
      %6345 = vmatpush1.bf16.msra.mxu0 0
      %6346 = vmatprep.subr.bf16.mxu0 0
      %6347 = vmatpush1.bf16.msra.mxu0 0
      %6348 = vmatprep.subr.bf16.mxu0 0
      %6349 = vmatpush1.bf16.msra.mxu0 %v6291
      %6350 = vmatprep.subr.bf16.mxu0 0
      %6351 = vmatpush2.bf16.msra.mxu0 0
      %6352 = vmatprep.subr.bf16.mxu0 0
      %6353 = vmatpush2.bf16.msra.mxu0 0
      %6354 = vmatprep.subr.bf16.mxu0 0
      %6355 = vmatpush2.bf16.msra.mxu0 0
      %6356 = vmatprep.subr.bf16.mxu0 0
      %6357 = vmatpush2.bf16.msra.mxu0 0
      %6358 = vmatprep.subr.bf16.mxu0 0
      %6359 = vmatpush2.bf16.msra.mxu0 0
      %6360 = vmatprep.subr.bf16.mxu0 0
      %6361 = vmatpush2.bf16.msra.mxu0 0
      %6362 = vmatprep.subr.bf16.mxu0 0
      %6363 = vmatpush2.bf16.msra.mxu0 0
      %6364 = vmatprep.subr.bf16.mxu0 0
      %6365 = vmatpush2.bf16.msra.mxu0 0
      %6366 = vmatprep.mubr.bf16.mxu0 0
      %6367 = vmatmul.mubr.bf16.gmra.mxu0 %v6282
      %v6368 = vpop.f32.mrf.mxu0
      %v6369 = vadd.f32 0.0, %v6368
      %v6370 = vpop.f32.mrf.mxu0
      %v6371 = vpop.f32.mrf.mxu0
      %v6372 = vpop.f32.mrf.mxu0
      %6373 = vdwg.mxu0
      %v6374 = vadd.f32 %v6249, %v6328
      %v6375 = vadd.f32 %v6250, %v6330
      %v6376 = vadd.f32 %v6251, %v6369
      %v6377 = vld [vmem:[%s1] sm:$0xff]
      %6379 = vset.pattern.permute.xlu0 0
      %6380 = vperm.xlu0 %6379, %v6377
      %v6381 = vpop.permute.xlu0 %6380
      %v6383 = vadd.f32 %v6374, %v6381
      %v6384 = vadd.f32 %v6375, %v6381
      %v6385 = vadd.f32 %v6376, %v6381
      %v6386 = vpack.c.bf16 %v6383, %v6383
      %v6387 = vpack.c.bf16 %v6384, %v6384
      %v6388 = vpack.c.bf16 %v6385, %v6385
      %v6392 = vunpack.c.l.b16 %v6386
      %v6393 = vunpack.c.l.b16 %v6387
      %v6394 = vunpack.c.l.b16 %v6388
      %v6395 = vpack.c.b16 %v6393, %v6392
      %v6396 = vpack.c.b16 %v6394, %v6394
      %6399 = vst [vmem:[%s170] sm:$0xff] %v6395
      %vm6400 = vcmask 781312
      %6401 = vst.msk [vmem:[%s170 + $0x8] sm:$0xf] %vm6400, %v6396
      %p6402 = scmp.lt.s32.totalorder %s14, 1
      %s6403 = scalar_select %p6402, %s14, 1
      %s6404 = smul.addr %s6403, 3
      %s6405 = smul.addr %s6404, 4
      %s6406 = scalar_lea.vmem %s3, %s6405
      // Predicated region
      $region33: #{_lambda_.11} parent=31 // pred_check
        %p6407 = pneg %p100
      $region34: #{_lambda_.11} parent=31 // pred_check_branch
        %6409 = sbr.rel (%p6407) target = $region36
      $region35: #{_lambda_.11} parent=31 // pred_region
        _
      $region36: #{_lambda_.11} parent=31 // pred_fallthru
        _
    $region32: #{_lambda_.11} parent=5 // pred_fallthru
      _
    %p6410 = scmp.le.s32.totalorder 2, %s9
    // Predicated region
    $region37: #{_lambda_.11} parent=5 // pred_check
      %p6411 = pneg %p6410
    $region38: #{_lambda_.11} parent=5 // pred_check_branch
      %6413 = sbr.rel (%p6411) target = $region40
    $region39: #{_lambda_.11} parent=5 // pred_region
      %s6414 = ssub.s32 %s9, 2
      // Predicated region
      $region41: #{_lambda_.11} parent=39 // pred_check
        %p6415 = pneg %p106
      $region42: #{_lambda_.11} parent=39 // pred_check_branch
        %6417 = sbr.rel (%p6415) target = $region44
      $region43: #{_lambda_.11} parent=39 // pred_region
        %p6418 = scmp.lt.s32.totalorder %s15, 1
        %s6419 = scalar_select %p6418, %s15, 1
        %s6420 = smul.addr %s6419, 3
        %s6421 = smul.addr %s6420, 4
        %s6422 = scalar_lea.vmem %s3, %s6421
      $region44: #{_lambda_.11} parent=39 // pred_fallthru
        _
    $region40: #{_lambda_.11} parent=5 // pred_fallthru
      _
  $region6: #{_lambda_.11} parent=0 // loop_footer
    %s13 = sadd.s32 1, %s9
  $region7: #{_lambda_.11} parent=0 // loop_footer_branch
    %8 = sbr.rel target = $region3
  $region8: #{_lambda_.11} parent=0 // loop_exit
    _

// kernel: _lambda_.15
$region0: #{_lambda_.15}
  #allocation0 [shape = 'u32[]', space=smem, size = 0x4, offset = 0x4, fixed_abs, tag = 'smem constant byte address 0x4 - core index']
  #allocation1 [shape = 'u32[144,128]{1,0:T(1,128)}', space=vmem, size = 0x12000, scoped, tag = 'internal scratch']
  %s0 = inlined_call_operand.vmem [shape: bf16[9,16,16], index: 0, kind: input, shape index: {}]
  %s1 = inlined_call_operand.vmem [shape: f32[16,1], index: 1, kind: input, shape index: {}]
  %s2 = inlined_call_operand.vmem [shape: bf16[2,16,110], index: 2, kind: input, shape index: {}]
  %s3 = inlined_call_operand.vmem [shape: bf16[2,16,80], index: 3, kind: output, shape index: {}]
  %s4 = sld [smem:[#allocation0]]
  $region45: #{_lambda_.15} parent=0
    _
  %s6 = ssub.s32 1, %s4
  %s7 = scalar_select 0, %s6, %s4
  loop: start=0, step=1, limit=4
  $region2: #{_lambda_.15} parent=0 // loop_pre_header
    _
  $region3: #{_lambda_.15} parent=0 // loop_header
    %s9 = sphi 0, %s13
    %p10 = scmp.ge.s32.totalorder %s9, 4
    %s17 = sphi 0, %s17
    %s19 = sphi 0, %s17
    %s20 = sphi 0, %s19
    %s34 = sphi 0, %s20
    %s38 = sphi 0, %s38
    %s40 = sphi 0, %s38
    %s41 = sphi 0, %s40
    %s55 = sphi 0, %s41
    %s61 = sphi 0, %s63
    %s64 = sphi 0, %s61
    %s65 = sphi 0, %s64
    %s81 = sphi 0, %s65
    %s87 = sphi 0, %s89
    %s90 = sphi 0, %s87
    %s91 = sphi 0, %s90
    %s107 = sphi 0, %s91
  $region4: #{_lambda_.15} parent=0 // loop_header_branch
    %12 = sbr.rel (%p10) target = $region8
  $region5: #{_lambda_.15} parent=0 // loop_body
    %s14 = ssub.s32 %s9, 1
    %s15 = ssub.s32 %s9, 2
    %s16 = sadd.s32 %s9, 1
    %s18 = sadd.s32 %s17, 1
    %p21 = scmp.eq.s32.totalorder %s9, 1
    %p22 = scmp.ne.s32.totalorder %s17, %s19
    %p23 = scmp.eq.s32.totalorder %s9, 0
    %p24 = por %p22, %p23
    %p25 = scmp.ne.s32.totalorder %s17, %s19
    %p26 = scmp.eq.s32.totalorder %s14, 1
    %p27 = por %p25, %p26
    %p28 = scmp.ne.s32.totalorder %s19, %s20
    %p29 = scmp.eq.s32.totalorder %s14, 0
    %p30 = por %p28, %p29
    %p31 = scmp.ne.s32.totalorder %s19, %s20
    %p32 = scmp.eq.s32.totalorder %s15, 1
    %p33 = por %p31, %p32
    %p35 = scmp.ne.s32.totalorder %s20, %s34
    %p36 = scmp.eq.s32.totalorder %s15, 0
    %p37 = por %p35, %p36
    %s39 = sadd.s32 %s38, 1
    %p42 = scmp.eq.s32.totalorder %s9, 1
    %p43 = scmp.ne.s32.totalorder %s38, %s40
    %p44 = scmp.eq.s32.totalorder %s9, 0
    %p45 = por %p43, %p44
    %p46 = scmp.ne.s32.totalorder %s38, %s40
    %p47 = scmp.eq.s32.totalorder %s14, 1
    %p48 = por %p46, %p47
    %p49 = scmp.ne.s32.totalorder %s40, %s41
    %p50 = scmp.eq.s32.totalorder %s14, 0
    %p51 = por %p49, %p50
    %p52 = scmp.ne.s32.totalorder %s40, %s41
    %p53 = scmp.eq.s32.totalorder %s15, 1
    %p54 = por %p52, %p53
    %p56 = scmp.ne.s32.totalorder %s41, %s55
    %p57 = scmp.eq.s32.totalorder %s15, 0
    %p58 = por %p56, %p57
    %s59 = ssub.s32 %s9, %s16
    %p60 = scmp.eq.s32.totalorder %s59, 0
    %s62 = sadd.s32 %s61, 1
    %s63 = scalar_select %p60, %s61, %s62
    %p66 = pneg %p60
    %p67 = scmp.eq.s32.totalorder %s9, 1
    %p68 = por %p66, %p67
    %p69 = scmp.ne.s32.totalorder %s61, %s64
    %p70 = scmp.eq.s32.totalorder %s9, 0
    %p71 = por %p69, %p70
    %p72 = scmp.ne.s32.totalorder %s61, %s64
    %p73 = scmp.eq.s32.totalorder %s14, 1
    %p74 = por %p72, %p73
    %p75 = scmp.ne.s32.totalorder %s64, %s65
    %p76 = scmp.eq.s32.totalorder %s14, 0
    %p77 = por %p75, %p76
    %p78 = scmp.ne.s32.totalorder %s64, %s65
    %p79 = scmp.eq.s32.totalorder %s15, 1
    %p80 = por %p78, %p79
    %p82 = scmp.ne.s32.totalorder %s65, %s81
    %p83 = scmp.eq.s32.totalorder %s15, 0
    %p84 = por %p82, %p83
    %s85 = ssub.s32 %s9, %s16
    %p86 = scmp.eq.s32.totalorder %s85, 0
    %s88 = sadd.s32 %s87, 1
    %s89 = scalar_select %p86, %s87, %s88
    %p92 = pneg %p86
    %p93 = scmp.eq.s32.totalorder %s9, 1
    %p94 = por %p92, %p93
    %p95 = scmp.ne.s32.totalorder %s87, %s90
    %p96 = scmp.eq.s32.totalorder %s9, 0
    %p97 = por %p95, %p96
    %p98 = scmp.ne.s32.totalorder %s87, %s90
    %p99 = scmp.eq.s32.totalorder %s14, 1
    %p100 = por %p98, %p99
    %p101 = scmp.ne.s32.totalorder %s90, %s91
    %p102 = scmp.eq.s32.totalorder %s14, 0
    %p103 = por %p101, %p102
    %p104 = scmp.ne.s32.totalorder %s90, %s91
    %p105 = scmp.eq.s32.totalorder %s15, 1
    %p106 = por %p104, %p105
    %p108 = scmp.ne.s32.totalorder %s91, %s107
    %p109 = scmp.eq.s32.totalorder %s15, 0
    %p110 = por %p108, %p109
    %p111 = scmp.le.s32.totalorder 1, %s9
    %p112 = scmp.lt.s32.totalorder %s9, 3
    %p113 = pnand %p111, %p112
    %p114 = pneg %p113
    // Predicated region
    $region9: #{_lambda_.15} parent=5 // pred_check
      _
    $region10: #{_lambda_.15} parent=5 // pred_check_branch
      %116 = sbr.rel (%p113) target = $region12
    $region11: #{_lambda_.15} parent=5 // pred_region
      %s117 = ssub.s32 %s9, 1
      // Predicated region
      $region13: #{_lambda_.15} parent=11 // pred_check
        %p118 = pneg %p30
      $region14: #{_lambda_.15} parent=11 // pred_check_branch
        %120 = sbr.rel (%p118) target = $region16
      $region15: #{_lambda_.15} parent=11 // pred_region
        _
      $region16: #{_lambda_.15} parent=11 // pred_fallthru
        _
      // Predicated region
      $region17: #{_lambda_.15} parent=11 // pred_check
        %p121 = pneg %p51
      $region18: #{_lambda_.15} parent=11 // pred_check_branch
        %123 = sbr.rel (%p121) target = $region20
      $region19: #{_lambda_.15} parent=11 // pred_region
        _
      $region20: #{_lambda_.15} parent=11 // pred_fallthru
        _
    $region12: #{_lambda_.15} parent=5 // pred_fallthru
      _
    %p124 = scmp.lt.s32.totalorder %s9, 2
    // Predicated region
    $region21: #{_lambda_.15} parent=5 // pred_check
      %p125 = pneg %p124
    $region22: #{_lambda_.15} parent=5 // pred_check_branch
      %127 = sbr.rel (%p125) target = $region24
    $region23: #{_lambda_.15} parent=5 // pred_region
      // Predicated region
      $region25: #{_lambda_.15} parent=23 // pred_check
        %p128 = pneg %p71
      $region26: #{_lambda_.15} parent=23 // pred_check_branch
        %130 = sbr.rel (%p128) target = $region28
      $region27: #{_lambda_.15} parent=23 // pred_region
        %p131 = scmp.lt.s32.totalorder %s9, 1
        %s132 = scalar_select %p131, %s9, 1
        %s133 = smul.addr %s132, 2
        %s134 = smul.addr %s133, 4
        %s135 = scalar_lea.vmem %s2, %s134
      $region28: #{_lambda_.15} parent=23 // pred_fallthru
        _
    $region24: #{_lambda_.15} parent=5 // pred_fallthru
      _
    %p136 = scmp.le.s32.totalorder 1, %s9
    %p137 = scmp.lt.s32.totalorder %s9, 3
    %p138 = pnand %p136, %p137
    %p139 = pneg %p138
    // Predicated region
    $region29: #{_lambda_.15} parent=5 // pred_check
      _
    $region30: #{_lambda_.15} parent=5 // pred_check_branch
      %141 = sbr.rel (%p138) target = $region32
    $region31: #{_lambda_.15} parent=5 // pred_region
      %s142 = ssub.s32 %s9, 1
      %p143 = pneg %p30
      %p144 = pneg %p27
      %p145 = pneg %p51
      %p146 = pneg %p48
      %p147 = scmp.lt.s32.totalorder %s14, 1
      %s148 = scalar_select %p147, %s14, 1
      %s149 = smul.addr %s148, 2
      %s150 = smul.addr %s149, 4
      %s151 = scalar_lea.vmem %s2, %s150
      %p152 = pneg %p77
      %p153 = pneg %p74
      %p154 = pneg %p103
      %p155 = pneg %p100
      %p156 = scmp.lt.s32.totalorder %s14, 1
      %s157 = scalar_select %p156, %s14, 1
      %s158 = smul.addr %s157, 2
      %s159 = smul.addr %s158, 4
      %s160 = scalar_lea.vmem %s3, %s159
      %p161 = scmp.lt.s32.totalorder %s14, 1
      %s162 = scalar_select %p161, %s14, 1
      %s163 = smul.addr %s162, 2
      %s164 = smul.addr %s163, 4
      %s165 = scalar_lea.vmem %s2, %s164
      %p166 = scmp.lt.s32.totalorder %s14, 1
      %s167 = scalar_select %p166, %s14, 1
      %s168 = smul.addr %s167, 2
      %s169 = smul.addr %s168, 4
      %s170 = scalar_lea.vmem %s3, %s169
      %v172 = vld [vmem:[%s165] sm:$0xf]
      %v173 = vld [vmem:[%s165 + $0x4] sm:$0xf]
      %v174 = vld [vmem:[%s0] sm:$0xf]
      %v175 = vld [vmem:[%s0 + $0x4] sm:$0xf]
      %s176 = scalar_lea.vmem %s0, 8
      %v177 = vld [vmem:[%s176] sm:$0xf]
      %v178 = vld [vmem:[%s176 + $0x4] sm:$0xf]
      %v181 = vunpack.c.l.b16 %v177
      %v182 = vunpack.c.l.b16 %v178
      %v183 = vpack.c.b16 %v182, %v181
      %v186 = vunpack.c.l.b16 %v172
      %v187 = vunpack.c.l.b16 %v173
      %v188 = vpack.c.b16 %v187, %v186
      %189 = vrot.lane.b32.xlu0 %v188, 127
      %v190 = vpop.permute.xlu0 %189
      %vm192 = vcmask 130048
      %v194 = vsel %vm192, %v183, 0
      %196 = vmatprep.subr.bf16.mxu0 0
      %197 = vmatpush1.bf16.msra.mxu0 0
      %198 = vmatprep.subr.bf16.mxu0 0
      %199 = vmatpush1.bf16.msra.mxu0 0
      %200 = vmatprep.subr.bf16.mxu0 0
      %201 = vmatpush1.bf16.msra.mxu0 0
      %202 = vmatprep.subr.bf16.mxu0 0
      %203 = vmatpush1.bf16.msra.mxu0 0
      %204 = vmatprep.subr.bf16.mxu0 0
      %205 = vmatpush1.bf16.msra.mxu0 0
      %206 = vmatprep.subr.bf16.mxu0 0
      %207 = vmatpush1.bf16.msra.mxu0 0
      %208 = vmatprep.subr.bf16.mxu0 0
      %209 = vmatpush1.bf16.msra.mxu0 0
      %210 = vmatprep.subr.bf16.mxu0 0
      %211 = vmatpush1.bf16.msra.mxu0 %v190
      %212 = vmatprep.subr.bf16.mxu0 0
      %213 = vmatpush2.bf16.msra.mxu0 0
      %214 = vmatprep.subr.bf16.mxu0 0
      %215 = vmatpush2.bf16.msra.mxu0 0
      %216 = vmatprep.subr.bf16.mxu0 0
      %217 = vmatpush2.bf16.msra.mxu0 0
      %218 = vmatprep.subr.bf16.mxu0 0
      %219 = vmatpush2.bf16.msra.mxu0 0
      %220 = vmatprep.subr.bf16.mxu0 0
      %221 = vmatpush2.bf16.msra.mxu0 0
      %222 = vmatprep.subr.bf16.mxu0 0
      %223 = vmatpush2.bf16.msra.mxu0 0
      %224 = vmatprep.subr.bf16.mxu0 0
      %225 = vmatpush2.bf16.msra.mxu0 0
      %226 = vmatprep.subr.bf16.mxu0 0
      %227 = vmatpush2.bf16.msra.mxu0 0
      %228 = vmatprep.mubr.bf16.mxu0 0
      %229 = vmatmul.mubr.bf16.gmra.mxu0 %v194
      %v230 = vpop.f32.mrf.mxu0
      %v231 = vadd.f32 0.0, %v230
      %v232 = vpop.f32.mrf.mxu0
      %v233 = vpop.f32.mrf.mxu0
      %v234 = vadd.f32 0.0, %v233
      %v235 = vpop.f32.mrf.mxu0
      %236 = vdwg.mxu0
      %v239 = vunpack.c.l.b16 %v174
      %v240 = vunpack.c.l.b16 %v175
      %v241 = vpack.c.b16 %v240, %v239
      %v244 = vsel %vm192, %v241, 0
      %246 = vmatprep.subr.bf16.mxu0 0
      %247 = vmatpush1.bf16.msra.mxu0 0
      %248 = vmatprep.subr.bf16.mxu0 0
      %249 = vmatpush1.bf16.msra.mxu0 0
      %250 = vmatprep.subr.bf16.mxu0 0
      %251 = vmatpush1.bf16.msra.mxu0 0
      %252 = vmatprep.subr.bf16.mxu0 0
      %253 = vmatpush1.bf16.msra.mxu0 0
      %254 = vmatprep.subr.bf16.mxu0 0
      %255 = vmatpush1.bf16.msra.mxu0 0
      %256 = vmatprep.subr.bf16.mxu0 0
      %257 = vmatpush1.bf16.msra.mxu0 0
      %258 = vmatprep.subr.bf16.mxu0 0
      %259 = vmatpush1.bf16.msra.mxu0 0
      %260 = vmatprep.subr.bf16.mxu0 0
      %261 = vmatpush1.bf16.msra.mxu0 %v188
      %262 = vmatprep.subr.bf16.mxu0 0
      %263 = vmatpush2.bf16.msra.mxu0 0
      %264 = vmatprep.subr.bf16.mxu0 0
      %265 = vmatpush2.bf16.msra.mxu0 0
      %266 = vmatprep.subr.bf16.mxu0 0
      %267 = vmatpush2.bf16.msra.mxu0 0
      %268 = vmatprep.subr.bf16.mxu0 0
      %269 = vmatpush2.bf16.msra.mxu0 0
      %270 = vmatprep.subr.bf16.mxu0 0
      %271 = vmatpush2.bf16.msra.mxu0 0
      %272 = vmatprep.subr.bf16.mxu0 0
      %273 = vmatpush2.bf16.msra.mxu0 0
      %274 = vmatprep.subr.bf16.mxu0 0
      %275 = vmatpush2.bf16.msra.mxu0 0
      %276 = vmatprep.subr.bf16.mxu0 0
      %277 = vmatpush2.bf16.msra.mxu0 0
      %278 = vmatprep.mubr.bf16.mxu0 0
      %279 = vmatmul.mubr.bf16.gmra.mxu0 %v244
      %v280 = vpop.f32.mrf.mxu0
      %v281 = vadd.f32 %v231, %v280
      %v282 = vpop.f32.mrf.mxu0
      %v283 = vpop.f32.mrf.mxu0
      %v284 = vadd.f32 %v234, %v283
      %v285 = vpop.f32.mrf.mxu0
      %286 = vdwg.mxu0
      %s287 = scalar_lea.vmem %s0, 16
      %v288 = vld [vmem:[%s287] sm:$0xf]
      %v289 = vld [vmem:[%s287 + $0x4] sm:$0xf]
      %v292 = vunpack.c.l.b16 %v288
      %v293 = vunpack.c.l.b16 %v289
      %v294 = vpack.c.b16 %v293, %v292
      %295 = vrot.lane.b32.xlu0 %v188, 126
      %v296 = vpop.permute.xlu0 %295
      %v299 = vsel %vm192, %v294, 0
      %301 = vmatprep.subr.bf16.mxu0 0
      %302 = vmatpush1.bf16.msra.mxu0 0
      %303 = vmatprep.subr.bf16.mxu0 0
      %304 = vmatpush1.bf16.msra.mxu0 0
      %305 = vmatprep.subr.bf16.mxu0 0
      %306 = vmatpush1.bf16.msra.mxu0 0
      %307 = vmatprep.subr.bf16.mxu0 0
      %308 = vmatpush1.bf16.msra.mxu0 0
      %309 = vmatprep.subr.bf16.mxu0 0
      %310 = vmatpush1.bf16.msra.mxu0 0
      %311 = vmatprep.subr.bf16.mxu0 0
      %312 = vmatpush1.bf16.msra.mxu0 0
      %313 = vmatprep.subr.bf16.mxu0 0
      %314 = vmatpush1.bf16.msra.mxu0 0
      %315 = vmatprep.subr.bf16.mxu0 0
      %316 = vmatpush1.bf16.msra.mxu0 %v296
      %317 = vmatprep.subr.bf16.mxu0 0
      %318 = vmatpush2.bf16.msra.mxu0 0
      %319 = vmatprep.subr.bf16.mxu0 0
      %320 = vmatpush2.bf16.msra.mxu0 0
      %321 = vmatprep.subr.bf16.mxu0 0
      %322 = vmatpush2.bf16.msra.mxu0 0
      %323 = vmatprep.subr.bf16.mxu0 0
      %324 = vmatpush2.bf16.msra.mxu0 0
      %325 = vmatprep.subr.bf16.mxu0 0
      %326 = vmatpush2.bf16.msra.mxu0 0
      %327 = vmatprep.subr.bf16.mxu0 0
      %328 = vmatpush2.bf16.msra.mxu0 0
      %329 = vmatprep.subr.bf16.mxu0 0
      %330 = vmatpush2.bf16.msra.mxu0 0
      %331 = vmatprep.subr.bf16.mxu0 0
      %332 = vmatpush2.bf16.msra.mxu0 0
      %333 = vmatprep.mubr.bf16.mxu0 0
      %334 = vmatmul.mubr.bf16.gmra.mxu0 %v299
      %v335 = vpop.f32.mrf.mxu0
      %v336 = vadd.f32 0.0, %v335
      %v337 = vpop.f32.mrf.mxu0
      %v338 = vpop.f32.mrf.mxu0
      %v339 = vadd.f32 0.0, %v338
      %v340 = vpop.f32.mrf.mxu0
      %341 = vdwg.mxu0
      %v342 = vadd.f32 %v281, %v336
      %v343 = vadd.f32 %v284, %v339
      %s344 = scalar_lea.vmem %s0, 24
      %v345 = vld [vmem:[%s344] sm:$0xf]
      %v346 = vld [vmem:[%s344 + $0x4] sm:$0xf]
      %v349 = vunpack.c.l.b16 %v345
      %v350 = vunpack.c.l.b16 %v346
      %v351 = vpack.c.b16 %v350, %v349
      %352 = vrot.lane.b32.xlu0 %v188, 118
      %v353 = vpop.permute.xlu0 %352
      %v356 = vsel %vm192, %v351, 0
      %358 = vmatprep.subr.bf16.mxu0 0
      %359 = vmatpush1.bf16.msra.mxu0 0
      %360 = vmatprep.subr.bf16.mxu0 0
      %361 = vmatpush1.bf16.msra.mxu0 0
      %362 = vmatprep.subr.bf16.mxu0 0
      %363 = vmatpush1.bf16.msra.mxu0 0
      %364 = vmatprep.subr.bf16.mxu0 0
      %365 = vmatpush1.bf16.msra.mxu0 0
      %366 = vmatprep.subr.bf16.mxu0 0
      %367 = vmatpush1.bf16.msra.mxu0 0
      %368 = vmatprep.subr.bf16.mxu0 0
      %369 = vmatpush1.bf16.msra.mxu0 0
      %370 = vmatprep.subr.bf16.mxu0 0
      %371 = vmatpush1.bf16.msra.mxu0 0
      %372 = vmatprep.subr.bf16.mxu0 0
      %373 = vmatpush1.bf16.msra.mxu0 %v353
      %374 = vmatprep.subr.bf16.mxu0 0
      %375 = vmatpush2.bf16.msra.mxu0 0
      %376 = vmatprep.subr.bf16.mxu0 0
      %377 = vmatpush2.bf16.msra.mxu0 0
      %378 = vmatprep.subr.bf16.mxu0 0
      %379 = vmatpush2.bf16.msra.mxu0 0
      %380 = vmatprep.subr.bf16.mxu0 0
      %381 = vmatpush2.bf16.msra.mxu0 0
      %382 = vmatprep.subr.bf16.mxu0 0
      %383 = vmatpush2.bf16.msra.mxu0 0
      %384 = vmatprep.subr.bf16.mxu0 0
      %385 = vmatpush2.bf16.msra.mxu0 0
      %386 = vmatprep.subr.bf16.mxu0 0
      %387 = vmatpush2.bf16.msra.mxu0 0
      %388 = vmatprep.subr.bf16.mxu0 0
      %389 = vmatpush2.bf16.msra.mxu0 0
      %390 = vmatprep.mubr.bf16.mxu0 0
      %391 = vmatmul.mubr.bf16.gmra.mxu0 %v356
      %v392 = vpop.f32.mrf.mxu0
      %v393 = vadd.f32 0.0, %v392
      %v394 = vpop.f32.mrf.mxu0
      %v395 = vpop.f32.mrf.mxu0
      %v396 = vadd.f32 0.0, %v395
      %v397 = vpop.f32.mrf.mxu0
      %398 = vdwg.mxu0
      %v399 = vadd.f32 %v342, %v393
      %v400 = vadd.f32 %v343, %v396
      %s401 = scalar_lea.vmem %s0, 32
      %v402 = vld [vmem:[%s401] sm:$0xf]
      %v403 = vld [vmem:[%s401 + $0x4] sm:$0xf]
      %v406 = vunpack.c.l.b16 %v402
      %v407 = vunpack.c.l.b16 %v403
      %v408 = vpack.c.b16 %v407, %v406
      %409 = vrot.lane.b32.xlu0 %v188, 117
      %v410 = vpop.permute.xlu0 %409
      %v413 = vsel %vm192, %v408, 0
      %415 = vmatprep.subr.bf16.mxu0 0
      %416 = vmatpush1.bf16.msra.mxu0 0
      %417 = vmatprep.subr.bf16.mxu0 0
      %418 = vmatpush1.bf16.msra.mxu0 0
      %419 = vmatprep.subr.bf16.mxu0 0
      %420 = vmatpush1.bf16.msra.mxu0 0
      %421 = vmatprep.subr.bf16.mxu0 0
      %422 = vmatpush1.bf16.msra.mxu0 0
      %423 = vmatprep.subr.bf16.mxu0 0
      %424 = vmatpush1.bf16.msra.mxu0 0
      %425 = vmatprep.subr.bf16.mxu0 0
      %426 = vmatpush1.bf16.msra.mxu0 0
      %427 = vmatprep.subr.bf16.mxu0 0
      %428 = vmatpush1.bf16.msra.mxu0 0
      %429 = vmatprep.subr.bf16.mxu0 0
      %430 = vmatpush1.bf16.msra.mxu0 %v410
      %431 = vmatprep.subr.bf16.mxu0 0
      %432 = vmatpush2.bf16.msra.mxu0 0
      %433 = vmatprep.subr.bf16.mxu0 0
      %434 = vmatpush2.bf16.msra.mxu0 0
      %435 = vmatprep.subr.bf16.mxu0 0
      %436 = vmatpush2.bf16.msra.mxu0 0
      %437 = vmatprep.subr.bf16.mxu0 0
      %438 = vmatpush2.bf16.msra.mxu0 0
      %439 = vmatprep.subr.bf16.mxu0 0
      %440 = vmatpush2.bf16.msra.mxu0 0
      %441 = vmatprep.subr.bf16.mxu0 0
      %442 = vmatpush2.bf16.msra.mxu0 0
      %443 = vmatprep.subr.bf16.mxu0 0
      %444 = vmatpush2.bf16.msra.mxu0 0
      %445 = vmatprep.subr.bf16.mxu0 0
      %446 = vmatpush2.bf16.msra.mxu0 0
      %447 = vmatprep.mubr.bf16.mxu0 0
      %448 = vmatmul.mubr.bf16.gmra.mxu0 %v413
      %v449 = vpop.f32.mrf.mxu0
      %v450 = vadd.f32 0.0, %v449
      %v451 = vpop.f32.mrf.mxu0
      %v452 = vpop.f32.mrf.mxu0
      %v453 = vadd.f32 0.0, %v452
      %v454 = vpop.f32.mrf.mxu0
      %455 = vdwg.mxu0
      %v456 = vadd.f32 %v399, %v450
      %v457 = vadd.f32 %v400, %v453
      %s458 = scalar_lea.vmem %s0, 40
      %v459 = vld [vmem:[%s458] sm:$0xf]
      %v460 = vld [vmem:[%s458 + $0x4] sm:$0xf]
      %v463 = vunpack.c.l.b16 %v459
      %v464 = vunpack.c.l.b16 %v460
      %v465 = vpack.c.b16 %v464, %v463
      %466 = vrot.lane.b32.xlu0 %v188, 116
      %v467 = vpop.permute.xlu0 %466
      %v470 = vsel %vm192, %v465, 0
      %472 = vmatprep.subr.bf16.mxu0 0
      %473 = vmatpush1.bf16.msra.mxu0 0
      %474 = vmatprep.subr.bf16.mxu0 0
      %475 = vmatpush1.bf16.msra.mxu0 0
      %476 = vmatprep.subr.bf16.mxu0 0
      %477 = vmatpush1.bf16.msra.mxu0 0
      %478 = vmatprep.subr.bf16.mxu0 0
      %479 = vmatpush1.bf16.msra.mxu0 0
      %480 = vmatprep.subr.bf16.mxu0 0
      %481 = vmatpush1.bf16.msra.mxu0 0
      %482 = vmatprep.subr.bf16.mxu0 0
      %483 = vmatpush1.bf16.msra.mxu0 0
      %484 = vmatprep.subr.bf16.mxu0 0
      %485 = vmatpush1.bf16.msra.mxu0 0
      %486 = vmatprep.subr.bf16.mxu0 0
      %487 = vmatpush1.bf16.msra.mxu0 %v467
      %488 = vmatprep.subr.bf16.mxu0 0
      %489 = vmatpush2.bf16.msra.mxu0 0
      %490 = vmatprep.subr.bf16.mxu0 0
      %491 = vmatpush2.bf16.msra.mxu0 0
      %492 = vmatprep.subr.bf16.mxu0 0
      %493 = vmatpush2.bf16.msra.mxu0 0
      %494 = vmatprep.subr.bf16.mxu0 0
      %495 = vmatpush2.bf16.msra.mxu0 0
      %496 = vmatprep.subr.bf16.mxu0 0
      %497 = vmatpush2.bf16.msra.mxu0 0
      %498 = vmatprep.subr.bf16.mxu0 0
      %499 = vmatpush2.bf16.msra.mxu0 0
      %500 = vmatprep.subr.bf16.mxu0 0
      %501 = vmatpush2.bf16.msra.mxu0 0
      %502 = vmatprep.subr.bf16.mxu0 0
      %503 = vmatpush2.bf16.msra.mxu0 0
      %504 = vmatprep.mubr.bf16.mxu0 0
      %505 = vmatmul.mubr.bf16.gmra.mxu0 %v470
      %v506 = vpop.f32.mrf.mxu0
      %v507 = vadd.f32 0.0, %v506
      %v508 = vpop.f32.mrf.mxu0
      %v509 = vpop.f32.mrf.mxu0
      %v510 = vadd.f32 0.0, %v509
      %v511 = vpop.f32.mrf.mxu0
      %512 = vdwg.mxu0
      %v513 = vadd.f32 %v456, %v507
      %v514 = vadd.f32 %v457, %v510
      %s515 = scalar_lea.vmem %s0, 48
      %v516 = vld [vmem:[%s515] sm:$0xf]
      %v517 = vld [vmem:[%s515 + $0x4] sm:$0xf]
      %v520 = vunpack.c.l.b16 %v516
      %v521 = vunpack.c.l.b16 %v517
      %v522 = vpack.c.b16 %v521, %v520
      %523 = vrot.lane.b32.xlu0 %v188, 108
      %v524 = vpop.permute.xlu0 %523
      %v527 = vsel %vm192, %v522, 0
      %529 = vmatprep.subr.bf16.mxu0 0
      %530 = vmatpush1.bf16.msra.mxu0 0
      %531 = vmatprep.subr.bf16.mxu0 0
      %532 = vmatpush1.bf16.msra.mxu0 0
      %533 = vmatprep.subr.bf16.mxu0 0
      %534 = vmatpush1.bf16.msra.mxu0 0
      %535 = vmatprep.subr.bf16.mxu0 0
      %536 = vmatpush1.bf16.msra.mxu0 0
      %537 = vmatprep.subr.bf16.mxu0 0
      %538 = vmatpush1.bf16.msra.mxu0 0
      %539 = vmatprep.subr.bf16.mxu0 0
      %540 = vmatpush1.bf16.msra.mxu0 0
      %541 = vmatprep.subr.bf16.mxu0 0
      %542 = vmatpush1.bf16.msra.mxu0 0
      %543 = vmatprep.subr.bf16.mxu0 0
      %544 = vmatpush1.bf16.msra.mxu0 %v524
      %545 = vmatprep.subr.bf16.mxu0 0
      %546 = vmatpush2.bf16.msra.mxu0 0
      %547 = vmatprep.subr.bf16.mxu0 0
      %548 = vmatpush2.bf16.msra.mxu0 0
      %549 = vmatprep.subr.bf16.mxu0 0
      %550 = vmatpush2.bf16.msra.mxu0 0
      %551 = vmatprep.subr.bf16.mxu0 0
      %552 = vmatpush2.bf16.msra.mxu0 0
      %553 = vmatprep.subr.bf16.mxu0 0
      %554 = vmatpush2.bf16.msra.mxu0 0
      %555 = vmatprep.subr.bf16.mxu0 0
      %556 = vmatpush2.bf16.msra.mxu0 0
      %557 = vmatprep.subr.bf16.mxu0 0
      %558 = vmatpush2.bf16.msra.mxu0 0
      %559 = vmatprep.subr.bf16.mxu0 0
      %560 = vmatpush2.bf16.msra.mxu0 0
      %561 = vmatprep.mubr.bf16.mxu0 0
      %562 = vmatmul.mubr.bf16.gmra.mxu0 %v527
      %v563 = vpop.f32.mrf.mxu0
      %v564 = vadd.f32 0.0, %v563
      %v565 = vpop.f32.mrf.mxu0
      %v566 = vpop.f32.mrf.mxu0
      %v567 = vadd.f32 0.0, %v566
      %v568 = vpop.f32.mrf.mxu0
      %569 = vdwg.mxu0
      %v570 = vadd.f32 %v513, %v564
      %v571 = vadd.f32 %v514, %v567
      %s572 = scalar_lea.vmem %s0, 56
      %v573 = vld [vmem:[%s572] sm:$0xf]
      %v574 = vld [vmem:[%s572 + $0x4] sm:$0xf]
      %v577 = vunpack.c.l.b16 %v573
      %v578 = vunpack.c.l.b16 %v574
      %v579 = vpack.c.b16 %v578, %v577
      %580 = vrot.lane.b32.xlu0 %v188, 107
      %v581 = vpop.permute.xlu0 %580
      %v584 = vsel %vm192, %v579, 0
      %586 = vmatprep.subr.bf16.mxu0 0
      %587 = vmatpush1.bf16.msra.mxu0 0
      %588 = vmatprep.subr.bf16.mxu0 0
      %589 = vmatpush1.bf16.msra.mxu0 0
      %590 = vmatprep.subr.bf16.mxu0 0
      %591 = vmatpush1.bf16.msra.mxu0 0
      %592 = vmatprep.subr.bf16.mxu0 0
      %593 = vmatpush1.bf16.msra.mxu0 0
      %594 = vmatprep.subr.bf16.mxu0 0
      %595 = vmatpush1.bf16.msra.mxu0 0
      %596 = vmatprep.subr.bf16.mxu0 0
      %597 = vmatpush1.bf16.msra.mxu0 0
      %598 = vmatprep.subr.bf16.mxu0 0
      %599 = vmatpush1.bf16.msra.mxu0 0
      %600 = vmatprep.subr.bf16.mxu0 0
      %601 = vmatpush1.bf16.msra.mxu0 %v581
      %602 = vmatprep.subr.bf16.mxu0 0
      %603 = vmatpush2.bf16.msra.mxu0 0
      %604 = vmatprep.subr.bf16.mxu0 0
      %605 = vmatpush2.bf16.msra.mxu0 0
      %606 = vmatprep.subr.bf16.mxu0 0
      %607 = vmatpush2.bf16.msra.mxu0 0
      %608 = vmatprep.subr.bf16.mxu0 0
      %609 = vmatpush2.bf16.msra.mxu0 0
      %610 = vmatprep.subr.bf16.mxu0 0
      %611 = vmatpush2.bf16.msra.mxu0 0
      %612 = vmatprep.subr.bf16.mxu0 0
      %613 = vmatpush2.bf16.msra.mxu0 0
      %614 = vmatprep.subr.bf16.mxu0 0
      %615 = vmatpush2.bf16.msra.mxu0 0
      %616 = vmatprep.subr.bf16.mxu0 0
      %617 = vmatpush2.bf16.msra.mxu0 0
      %618 = vmatprep.mubr.bf16.mxu0 0
      %619 = vmatmul.mubr.bf16.gmra.mxu0 %v584
      %v620 = vpop.f32.mrf.mxu0
      %v621 = vadd.f32 0.0, %v620
      %v622 = vpop.f32.mrf.mxu0
      %v623 = vpop.f32.mrf.mxu0
      %v624 = vadd.f32 0.0, %v623
      %v625 = vpop.f32.mrf.mxu0
      %626 = vdwg.mxu0
      %v627 = vadd.f32 %v570, %v621
      %v628 = vadd.f32 %v571, %v624
      %s629 = scalar_lea.vmem %s0, 64
      %v630 = vld [vmem:[%s629] sm:$0xf]
      %v631 = vld [vmem:[%s629 + $0x4] sm:$0xf]
      %v634 = vunpack.c.l.b16 %v630
      %v635 = vunpack.c.l.b16 %v631
      %v636 = vpack.c.b16 %v635, %v634
      %637 = vrot.lane.b32.xlu0 %v188, 106
      %v638 = vpop.permute.xlu0 %637
      %v641 = vsel %vm192, %v636, 0
      %643 = vmatprep.subr.bf16.mxu0 0
      %644 = vmatpush1.bf16.msra.mxu0 0
      %645 = vmatprep.subr.bf16.mxu0 0
      %646 = vmatpush1.bf16.msra.mxu0 0
      %647 = vmatprep.subr.bf16.mxu0 0
      %648 = vmatpush1.bf16.msra.mxu0 0
      %649 = vmatprep.subr.bf16.mxu0 0
      %650 = vmatpush1.bf16.msra.mxu0 0
      %651 = vmatprep.subr.bf16.mxu0 0
      %652 = vmatpush1.bf16.msra.mxu0 0
      %653 = vmatprep.subr.bf16.mxu0 0
      %654 = vmatpush1.bf16.msra.mxu0 0
      %655 = vmatprep.subr.bf16.mxu0 0
      %656 = vmatpush1.bf16.msra.mxu0 0
      %657 = vmatprep.subr.bf16.mxu0 0
      %658 = vmatpush1.bf16.msra.mxu0 %v638
      %659 = vmatprep.subr.bf16.mxu0 0
      %660 = vmatpush2.bf16.msra.mxu0 0
      %661 = vmatprep.subr.bf16.mxu0 0
      %662 = vmatpush2.bf16.msra.mxu0 0
      %663 = vmatprep.subr.bf16.mxu0 0
      %664 = vmatpush2.bf16.msra.mxu0 0
      %665 = vmatprep.subr.bf16.mxu0 0
      %666 = vmatpush2.bf16.msra.mxu0 0
      %667 = vmatprep.subr.bf16.mxu0 0
      %668 = vmatpush2.bf16.msra.mxu0 0
      %669 = vmatprep.subr.bf16.mxu0 0
      %670 = vmatpush2.bf16.msra.mxu0 0
      %671 = vmatprep.subr.bf16.mxu0 0
      %672 = vmatpush2.bf16.msra.mxu0 0
      %673 = vmatprep.subr.bf16.mxu0 0
      %674 = vmatpush2.bf16.msra.mxu0 0
      %675 = vmatprep.mubr.bf16.mxu0 0
      %676 = vmatmul.mubr.bf16.gmra.mxu0 %v641
      %v677 = vpop.f32.mrf.mxu0
      %v678 = vadd.f32 0.0, %v677
      %v679 = vpop.f32.mrf.mxu0
      %v680 = vpop.f32.mrf.mxu0
      %v681 = vadd.f32 0.0, %v680
      %v682 = vpop.f32.mrf.mxu0
      %683 = vdwg.mxu0
      %v684 = vadd.f32 %v627, %v678
      %v685 = vadd.f32 %v628, %v681
      %v686 = vld [vmem:[%s1] sm:$0xff]
      %v687 = vld [vmem:[%s1 + $0x8] sm:$0xff]
      %689 = vset.pattern.permute.xlu0 0
      %690 = vperm.xlu0 %689, %v686
      %v691 = vpop.permute.xlu0 %690
      %694 = vset.pattern.permute.xlu0 0
      %695 = vperm.xlu0 %694, %v687
      %v696 = vpop.permute.xlu0 %695
      %v698 = vadd.f32 %v684, %v691
      %v699 = vadd.f32 %v685, %v696
      %v700 = vpack.c.bf16 %v699, %v698
      %v702 = vunpack.c.l.b16 %v700
      %v703 = vunpack.c.h.b16 %v700
      %v704 = vpack.c.b16 %v702, %v702
      %v705 = vpack.c.b16 %v703, %v703
      %vm708 = vcmask 650240
      %709 = vst.msk [vmem:[%s170] sm:$0xf] %vm708, %v704
      %710 = vst.msk [vmem:[%s170 + $0x4] sm:$0xf] %vm708, %v705
      %p711 = scmp.lt.s32.totalorder %s14, 1
      %s712 = scalar_select %p711, %s14, 1
      %s713 = smul.addr %s712, 2
      %s714 = smul.addr %s713, 4
      %s715 = scalar_lea.vmem %s3, %s714
      // Predicated region
      $region33: #{_lambda_.15} parent=31 // pred_check
        %p716 = pneg %p100
      $region34: #{_lambda_.15} parent=31 // pred_check_branch
        %718 = sbr.rel (%p716) target = $region36
      $region35: #{_lambda_.15} parent=31 // pred_region
        _
      $region36: #{_lambda_.15} parent=31 // pred_fallthru
        _
    $region32: #{_lambda_.15} parent=5 // pred_fallthru
      _
    %p719 = scmp.le.s32.totalorder 2, %s9
    // Predicated region
    $region37: #{_lambda_.15} parent=5 // pred_check
      %p720 = pneg %p719
    $region38: #{_lambda_.15} parent=5 // pred_check_branch
      %722 = sbr.rel (%p720) target = $region40
    $region39: #{_lambda_.15} parent=5 // pred_region
      %s723 = ssub.s32 %s9, 2
      // Predicated region
      $region41: #{_lambda_.15} parent=39 // pred_check
        %p724 = pneg %p106
      $region42: #{_lambda_.15} parent=39 // pred_check_branch
        %726 = sbr.rel (%p724) target = $region44
      $region43: #{_lambda_.15} parent=39 // pred_region
        %p727 = scmp.lt.s32.totalorder %s15, 1
        %s728 = scalar_select %p727, %s15, 1
        %s729 = smul.addr %s728, 2
        %s730 = smul.addr %s729, 4
        %s731 = scalar_lea.vmem %s3, %s730
      $region44: #{_lambda_.15} parent=39 // pred_fallthru
        _
    $region40: #{_lambda_.15} parent=5 // pred_fallthru
      _
  $region6: #{_lambda_.15} parent=0 // loop_footer
    %s13 = sadd.s32 1, %s9
  $region7: #{_lambda_.15} parent=0 // loop_footer_branch
    %8 = sbr.rel target = $region3
  $region8: #{_lambda_.15} parent=0 // loop_exit
    _

// kernel: _lambda_.18
$region0: #{_lambda_.18}
  #allocation0 [shape = 'u32[]', space=smem, size = 0x4, offset = 0x4, fixed_abs, tag = 'smem constant byte address 0x4 - core index']
  #allocation1 [shape = 'u32[144,128]{1,0:T(1,128)}', space=vmem, size = 0x12000, scoped, tag = 'internal scratch']
  %s0 = inlined_call_operand.vmem [shape: bf16[32,64], index: 0, kind: input, shape index: {}]
  %s1 = inlined_call_operand.vmem [shape: bf16[32,64], index: 1, kind: input, shape index: {}]
  %s2 = inlined_call_operand.vmem [shape: bf16[32,64], index: 2, kind: output, shape index: {}]
  %s3 = sld [smem:[#allocation0]]
  $region18: #{_lambda_.18} parent=0
    _
  %s5 = ssub.s32 1, %s3
  %s6 = scalar_select 0, %s5, %s3
  // Predicated region
  $region2: #{_lambda_.18} parent=0 // pred_check
    _
  $region3: #{_lambda_.18} parent=0 // pred_check_branch
    %8 = sbr.rel (0) target = $region5
  $region4: #{_lambda_.18} parent=0 // pred_region
    _
  $region5: #{_lambda_.18} parent=0 // pred_fallthru
    _
  // Predicated region
  $region6: #{_lambda_.18} parent=0 // pred_check
    _
  $region7: #{_lambda_.18} parent=0 // pred_check_branch
    %10 = sbr.rel (0) target = $region9
  $region8: #{_lambda_.18} parent=0 // pred_region
    _
  $region9: #{_lambda_.18} parent=0 // pred_fallthru
    _
  %v11 = vld [vmem:[%s0] sm:$0xf]
  %v12 = vld [vmem:[%s0 + $0x4] sm:$0xf]
  %v13 = vld [vmem:[%s0 + $0x8] sm:$0xf]
  %v14 = vld [vmem:[%s0 + $0xc] sm:$0xf]
  %v15 = vunpack.c.l.bf16 %v11
  %v16 = vunpack.c.l.bf16 %v12
  %v17 = vunpack.c.l.bf16 %v13
  %v18 = vunpack.c.l.bf16 %v14
  %vm19 = vcmask 523264
  %v20 = vsel %vm19, %v15, 0.0
  %21 = vadd.xlane.f32.xlu0 %v20
  %v22 = vpop.xlane.xlu0 %21
  %v23 = vsel %vm19, %v16, 0.0
  %24 = vadd.xlane.f32.xlu0 %v23
  %v25 = vpop.xlane.xlu0 %24
  %v26 = vsel %vm19, %v17, 0.0
  %27 = vadd.xlane.f32.xlu0 %v26
  %v28 = vpop.xlane.xlu0 %27
  %v29 = vsel %vm19, %v18, 0.0
  %30 = vadd.xlane.f32.xlu0 %v29
  %v31 = vpop.xlane.xlu0 %30
  %v32 = vrcp.pop 64.0
  %v33 = vmul.f32 %v22, %v32
  %v34 = vmul.f32 %v25, %v32
  %v35 = vmul.f32 %v28, %v32
  %v36 = vmul.f32 %v31, %v32
  %v37 = vsub.f32 %v15, %v33
  %v38 = vsub.f32 %v16, %v34
  %v39 = vsub.f32 %v17, %v35
  %v40 = vsub.f32 %v18, %v36
  %v41 = vmul.f32 %v37, %v37
  %v42 = vmul.f32 %v38, %v38
  %v43 = vmul.f32 %v39, %v39
  %v44 = vmul.f32 %v40, %v40
  %v45 = vsel %vm19, %v41, 0.0
  %46 = vadd.xlane.f32.xlu0 %v45
  %v47 = vpop.xlane.xlu0 %46
  %v48 = vsel %vm19, %v42, 0.0
  %49 = vadd.xlane.f32.xlu0 %v48
  %v50 = vpop.xlane.xlu0 %49
  %v51 = vsel %vm19, %v43, 0.0
  %52 = vadd.xlane.f32.xlu0 %v51
  %v53 = vpop.xlane.xlu0 %52
  %v54 = vsel %vm19, %v44, 0.0
  %55 = vadd.xlane.f32.xlu0 %v54
  %v56 = vpop.xlane.xlu0 %55
  %v57 = vmul.f32 %v47, %v32
  %v58 = vmul.f32 %v50, %v32
  %v59 = vmul.f32 %v53, %v32
  %v60 = vmul.f32 %v56, %v32
  %v61 = vadd.f32 %v57, 1e-05
  %v62 = vadd.f32 %v58, 1e-05
  %v63 = vadd.f32 %v59, 1e-05
  %v64 = vadd.f32 %v60, 1e-05
  %v65 = vrsqrt.pop %v61
  %v66 = vrsqrt.pop %v62
  %v67 = vrsqrt.pop %v63
  %v68 = vrsqrt.pop %v64
  %v69 = vmul.f32 %v37, %v65
  %v70 = vmul.f32 %v38, %v66
  %v71 = vmul.f32 %v39, %v67
  %v72 = vmul.f32 %v40, %v68
  %v73 = vld [vmem:[%s1] sm:$0xf]
  %v74 = vld [vmem:[%s1 + $0x4] sm:$0xf]
  %v75 = vld [vmem:[%s1 + $0x8] sm:$0xf]
  %v76 = vld [vmem:[%s1 + $0xc] sm:$0xf]
  %v77 = vunpack.c.l.bf16 %v73
  %v78 = vunpack.c.l.bf16 %v74
  %v79 = vunpack.c.l.bf16 %v75
  %v80 = vunpack.c.l.bf16 %v76
  %v81 = vadd.f32 %v69, %v77
  %v82 = vadd.f32 %v70, %v78
  %v83 = vadd.f32 %v71, %v79
  %v84 = vadd.f32 %v72, %v80
  %v85 = vpack.c.bf16 %v82, %v81
  %v86 = vpack.c.bf16 %v84, %v83
  %v89 = vunpack.c.l.b16 %v85
  %v90 = vunpack.c.h.b16 %v85
  %v91 = vunpack.c.l.b16 %v86
  %v92 = vunpack.c.h.b16 %v86
  %v93 = vpack.c.b16 %v89, %v89
  %v94 = vpack.c.b16 %v90, %v90
  %v95 = vpack.c.b16 %v91, %v91
  %v96 = vpack.c.b16 %v92, %v92
  %vm101 = vcmask 519168
  %102 = vst.msk [vmem:[%s2] sm:$0xf] %vm101, %v93
  %103 = vst.msk [vmem:[%s2 + $0x4] sm:$0xf] %vm101, %v94
  %104 = vst.msk [vmem:[%s2 + $0x8] sm:$0xf] %vm101, %v95
  %105 = vst.msk [vmem:[%s2 + $0xc] sm:$0xf] %vm101, %v96
  // Predicated region
  $region10: #{_lambda_.18} parent=0 // pred_check
    _
  $region11: #{_lambda_.18} parent=0 // pred_check_branch
    %107 = sbr.rel (0) target = $region13
  $region12: #{_lambda_.18} parent=0 // pred_region
    _
  $region13: #{_lambda_.18} parent=0 // pred_fallthru
    _
  // Predicated region
  $region14: #{_lambda_.18} parent=0 // pred_check
    _
  $region15: #{_lambda_.18} parent=0 // pred_check_branch
    %109 = sbr.rel (0) target = $region17
  $region16: #{_lambda_.18} parent=0 // pred_region
    _
  $region17: #{_lambda_.18} parent=0 // pred_fallthru
    _

// kernel: _lambda_.20
$region0: #{_lambda_.20}
  #allocation0 [shape = 'u32[]', space=smem, size = 0x4, offset = 0x4, fixed_abs, tag = 'smem constant byte address 0x4 - core index']
  #allocation1 [shape = 'u32[144,128]{1,0:T(1,128)}', space=vmem, size = 0x12000, scoped, tag = 'internal scratch']
  %s0 = inlined_call_operand.vmem [shape: bf16[2,4,64], index: 0, kind: input, shape index: {}]
  %s1 = inlined_call_operand.vmem [shape: bf16[2,4,64], index: 1, kind: output, shape index: {0}]
  %s2 = inlined_call_operand.vmem [shape: f32[2,1,64], index: 2, kind: output, shape index: {1}]
  %3 = xla_tuple %s1, %s2
  %s4 = sld [smem:[#allocation0]]
  $region45: #{_lambda_.20} parent=0
    _
  %s6 = ssub.s32 1, %s4
  %s7 = scalar_select 0, %s6, %s4
  loop: start=0, step=1, limit=4
  $region2: #{_lambda_.20} parent=0 // loop_pre_header
    _
  $region3: #{_lambda_.20} parent=0 // loop_header
    %s9 = sphi 0, %s13
    %p10 = scmp.ge.s32.totalorder %s9, 4
    %s19 = sphi 0, %s21
    %s22 = sphi 0, %s19
    %s23 = sphi 0, %s22
    %s39 = sphi 0, %s23
    %s45 = sphi 0, %s47
    %s48 = sphi 0, %s45
    %s49 = sphi 0, %s48
    %s65 = sphi 0, %s49
    %s71 = sphi 0, %s73
    %s74 = sphi 0, %s71
    %s75 = sphi 0, %s74
    %s91 = sphi 0, %s75
  $region4: #{_lambda_.20} parent=0 // loop_header_branch
    %12 = sbr.rel (%p10) target = $region8
  $region5: #{_lambda_.20} parent=0 // loop_body
    %s14 = ssub.s32 %s9, 1
    %s15 = ssub.s32 %s9, 2
    %s16 = sadd.s32 %s9, 1
    %s17 = ssub.s32 %s9, %s16
    %p18 = scmp.eq.s32.totalorder %s17, 0
    %s20 = sadd.s32 %s19, 1
    %s21 = scalar_select %p18, %s19, %s20
    %p24 = pneg %p18
    %p25 = scmp.eq.s32.totalorder %s9, 1
    %p26 = por %p24, %p25
    %p27 = scmp.ne.s32.totalorder %s19, %s22
    %p28 = scmp.eq.s32.totalorder %s9, 0
    %p29 = por %p27, %p28
    %p30 = scmp.ne.s32.totalorder %s19, %s22
    %p31 = scmp.eq.s32.totalorder %s14, 1
    %p32 = por %p30, %p31
    %p33 = scmp.ne.s32.totalorder %s22, %s23
    %p34 = scmp.eq.s32.totalorder %s14, 0
    %p35 = por %p33, %p34
    %p36 = scmp.ne.s32.totalorder %s22, %s23
    %p37 = scmp.eq.s32.totalorder %s15, 1
    %p38 = por %p36, %p37
    %p40 = scmp.ne.s32.totalorder %s23, %s39
    %p41 = scmp.eq.s32.totalorder %s15, 0
    %p42 = por %p40, %p41
    %s43 = ssub.s32 %s9, %s16
    %p44 = scmp.eq.s32.totalorder %s43, 0
    %s46 = sadd.s32 %s45, 1
    %s47 = scalar_select %p44, %s45, %s46
    %p50 = pneg %p44
    %p51 = scmp.eq.s32.totalorder %s9, 1
    %p52 = por %p50, %p51
    %p53 = scmp.ne.s32.totalorder %s45, %s48
    %p54 = scmp.eq.s32.totalorder %s9, 0
    %p55 = por %p53, %p54
    %p56 = scmp.ne.s32.totalorder %s45, %s48
    %p57 = scmp.eq.s32.totalorder %s14, 1
    %p58 = por %p56, %p57
    %p59 = scmp.ne.s32.totalorder %s48, %s49
    %p60 = scmp.eq.s32.totalorder %s14, 0
    %p61 = por %p59, %p60
    %p62 = scmp.ne.s32.totalorder %s48, %s49
    %p63 = scmp.eq.s32.totalorder %s15, 1
    %p64 = por %p62, %p63
    %p66 = scmp.ne.s32.totalorder %s49, %s65
    %p67 = scmp.eq.s32.totalorder %s15, 0
    %p68 = por %p66, %p67
    %s69 = ssub.s32 %s9, %s16
    %p70 = scmp.eq.s32.totalorder %s69, 0
    %s72 = sadd.s32 %s71, 1
    %s73 = scalar_select %p70, %s71, %s72
    %p76 = pneg %p70
    %p77 = scmp.eq.s32.totalorder %s9, 1
    %p78 = por %p76, %p77
    %p79 = scmp.ne.s32.totalorder %s71, %s74
    %p80 = scmp.eq.s32.totalorder %s9, 0
    %p81 = por %p79, %p80
    %p82 = scmp.ne.s32.totalorder %s71, %s74
    %p83 = scmp.eq.s32.totalorder %s14, 1
    %p84 = por %p82, %p83
    %p85 = scmp.ne.s32.totalorder %s74, %s75
    %p86 = scmp.eq.s32.totalorder %s14, 0
    %p87 = por %p85, %p86
    %p88 = scmp.ne.s32.totalorder %s74, %s75
    %p89 = scmp.eq.s32.totalorder %s15, 1
    %p90 = por %p88, %p89
    %p92 = scmp.ne.s32.totalorder %s75, %s91
    %p93 = scmp.eq.s32.totalorder %s15, 0
    %p94 = por %p92, %p93
    %p95 = scmp.le.s32.totalorder 1, %s9
    %p96 = scmp.lt.s32.totalorder %s9, 3
    %p97 = pnand %p95, %p96
    %p98 = pneg %p97
    // Predicated region
    $region9: #{_lambda_.20} parent=5 // pred_check
      _
    $region10: #{_lambda_.20} parent=5 // pred_check_branch
      %100 = sbr.rel (%p97) target = $region12
    $region11: #{_lambda_.20} parent=5 // pred_region
      %s101 = ssub.s32 %s9, 1
    $region12: #{_lambda_.20} parent=5 // pred_fallthru
      _
    %p102 = scmp.lt.s32.totalorder %s9, 2
    // Predicated region
    $region13: #{_lambda_.20} parent=5 // pred_check
      %p103 = pneg %p102
    $region14: #{_lambda_.20} parent=5 // pred_check_branch
      %105 = sbr.rel (%p103) target = $region16
    $region15: #{_lambda_.20} parent=5 // pred_region
      // Predicated region
      $region17: #{_lambda_.20} parent=15 // pred_check
        %p106 = pneg %p29
      $region18: #{_lambda_.20} parent=15 // pred_check_branch
        %108 = sbr.rel (%p106) target = $region20
      $region19: #{_lambda_.20} parent=15 // pred_region
        %p109 = scmp.lt.s32.totalorder %s9, 1
        %s110 = scalar_select %p109, %s9, 1
        %s111 = smul.addr %s110, 2
        %s112 = scalar_lea.vmem %s0, %s111
      $region20: #{_lambda_.20} parent=15 // pred_fallthru
        _
    $region16: #{_lambda_.20} parent=5 // pred_fallthru
      _
    %p113 = scmp.le.s32.totalorder 1, %s9
    %p114 = scmp.lt.s32.totalorder %s9, 3
    %p115 = pnand %p113, %p114
    %p116 = pneg %p115
    // Predicated region
    $region21: #{_lambda_.20} parent=5 // pred_check
      _
    $region22: #{_lambda_.20} parent=5 // pred_check_branch
      %118 = sbr.rel (%p115) target = $region24
    $region23: #{_lambda_.20} parent=5 // pred_region
      %s119 = ssub.s32 %s9, 1
      %p120 = scmp.lt.s32.totalorder %s14, 1
      %s121 = scalar_select %p120, %s14, 1
      %s122 = smul.addr %s121, 2
      %s123 = scalar_lea.vmem %s0, %s122
      %p124 = pneg %p35
      %p125 = pneg %p32
      %p126 = pneg %p61
      %p127 = pneg %p58
      %p128 = scmp.lt.s32.totalorder %s14, 1
      %s129 = scalar_select %p128, %s14, 1
      %s130 = smul.addr %s129, 2
      %s131 = scalar_lea.vmem %s1, %s130
      %p132 = pneg %p87
      %p133 = pneg %p84
      %p134 = scmp.lt.s32.totalorder %s14, 1
      %s135 = scalar_select %p134, %s14, 1
      %s136 = scalar_lea.vmem %s2, %s135
      %p137 = scmp.lt.s32.totalorder %s14, 1
      %s138 = scalar_select %p137, %s14, 1
      %s139 = smul.addr %s138, 2
      %s140 = scalar_lea.vmem %s0, %s139
      %p141 = scmp.lt.s32.totalorder %s14, 1
      %s142 = scalar_select %p141, %s14, 1
      %s143 = smul.addr %s142, 2
      %s144 = scalar_lea.vmem %s1, %s143
      %p145 = scmp.lt.s32.totalorder %s14, 1
      %s146 = scalar_select %p145, %s14, 1
      %s147 = scalar_lea.vmem %s2, %s146
      %v148 = vld [vmem:[%s140] sm:$0x3]
      %v149 = vunpack.c.l.bf16 %v148
      %vm150 = vcmask 519168
      %v151 = vsel %vm150, %v149, 0.0
      %v152 = vrot.slane %v151, 4
      %v153 = vadd.f32 %v151, %v152
      %v154 = vrot.slane %v153, 2
      %v155 = vadd.f32 %v153, %v154
      %v156 = vrot.slane %v155, 1
      %v157 = vadd.f32 %v155, %v156
      %v158 = vrcp.pop 4.0
      %v159 = vmul.f32 %v157, %v158
      %v160 = vsub.f32 %v149, %v159
      %v161 = vpack.c.bf16 %v160, %v160
      %vm162 = vcmask 517120
      %163 = vst.msk [vmem:[%s144] sm:$0x3] %vm162, %v161
      %vm164 = vcmask 516096
      %165 = vst.msk [vmem:[%s147] sm:$0x1] %vm164, %v159
      %p166 = scmp.lt.s32.totalorder %s14, 1
      %s167 = scalar_select %p166, %s14, 1
      %s168 = smul.addr %s167, 2
      %s169 = scalar_lea.vmem %s1, %s168
      %p170 = scmp.lt.s32.totalorder %s14, 1
      %s171 = scalar_select %p170, %s14, 1
      %s172 = scalar_lea.vmem %s2, %s171
      // Predicated region
      $region25: #{_lambda_.20} parent=23 // pred_check
        %p173 = pneg %p58
      $region26: #{_lambda_.20} parent=23 // pred_check_branch
        %175 = sbr.rel (%p173) target = $region28
      $region27: #{_lambda_.20} parent=23 // pred_region
        _
      $region28: #{_lambda_.20} parent=23 // pred_fallthru
        _
      // Predicated region
      $region29: #{_lambda_.20} parent=23 // pred_check
        %p176 = pneg %p84
      $region30: #{_lambda_.20} parent=23 // pred_check_branch
        %178 = sbr.rel (%p176) target = $region32
      $region31: #{_lambda_.20} parent=23 // pred_region
        _
      $region32: #{_lambda_.20} parent=23 // pred_fallthru
        _
    $region24: #{_lambda_.20} parent=5 // pred_fallthru
      _
    %p179 = scmp.le.s32.totalorder 2, %s9
    // Predicated region
    $region33: #{_lambda_.20} parent=5 // pred_check
      %p180 = pneg %p179
    $region34: #{_lambda_.20} parent=5 // pred_check_branch
      %182 = sbr.rel (%p180) target = $region36
    $region35: #{_lambda_.20} parent=5 // pred_region
      %s183 = ssub.s32 %s9, 2
      // Predicated region
      $region37: #{_lambda_.20} parent=35 // pred_check
        %p184 = pneg %p64
      $region38: #{_lambda_.20} parent=35 // pred_check_branch
        %186 = sbr.rel (%p184) target = $region40
      $region39: #{_lambda_.20} parent=35 // pred_region
        %p187 = scmp.lt.s32.totalorder %s15, 1
        %s188 = scalar_select %p187, %s15, 1
        %s189 = smul.addr %s188, 2
        %s190 = scalar_lea.vmem %s1, %s189
      $region40: #{_lambda_.20} parent=35 // pred_fallthru
        _
      // Predicated region
      $region41: #{_lambda_.20} parent=35 // pred_check
        %p191 = pneg %p90
      $region42: #{_lambda_.20} parent=35 // pred_check_branch
        %193 = sbr.rel (%p191) target = $region44
      $region43: #{_lambda_.20} parent=35 // pred_region
        %p194 = scmp.lt.s32.totalorder %s15, 1
        %s195 = scalar_select %p194, %s15, 1
        %s196 = scalar_lea.vmem %s2, %s195
      $region44: #{_lambda_.20} parent=35 // pred_fallthru
        _
    $region36: #{_lambda_.20} parent=5 // pred_fallthru
      _
  $region6: #{_lambda_.20} parent=0 // loop_footer
    %s13 = sadd.s32 1, %s9
  $region7: #{_lambda_.20} parent=0 // loop_footer_branch
    %8 = sbr.rel target = $region3
  $region8: #{_lambda_.20} parent=0 // loop_exit
    _

// kernel: _lambda_.19
$region0: #{_lambda_.19}
  #allocation0 [shape = 'u32[]', space=smem, size = 0x4, offset = 0x4, fixed_abs, tag = 'smem constant byte address 0x4 - core index']
  #allocation1 [shape = 'u32[144,128]{1,0:T(1,128)}', space=vmem, size = 0x12000, scoped, tag = 'internal scratch']
  %s0 = inlined_call_operand.vmem [shape: bf16[9,4,16], index: 0, kind: input, shape index: {}]
  %s1 = inlined_call_operand.vmem [shape: f32[4,1], index: 1, kind: input, shape index: {}]
  %s2 = inlined_call_operand.vmem [shape: bf16[2,16,110], index: 2, kind: input, shape index: {}]
  %s3 = inlined_call_operand.vmem [shape: bf16[2,4,80], index: 3, kind: output, shape index: {}]
  %s4 = sld [smem:[#allocation0]]
  $region45: #{_lambda_.19} parent=0
    _
  %s6 = ssub.s32 1, %s4
  %s7 = scalar_select 0, %s6, %s4
  loop: start=0, step=1, limit=4
  $region2: #{_lambda_.19} parent=0 // loop_pre_header
    _
  $region3: #{_lambda_.19} parent=0 // loop_header
    %s9 = sphi 0, %s13
    %p10 = scmp.ge.s32.totalorder %s9, 4
    %s17 = sphi 0, %s17
    %s19 = sphi 0, %s17
    %s20 = sphi 0, %s19
    %s34 = sphi 0, %s20
    %s38 = sphi 0, %s38
    %s40 = sphi 0, %s38
    %s41 = sphi 0, %s40
    %s55 = sphi 0, %s41
    %s61 = sphi 0, %s63
    %s64 = sphi 0, %s61
    %s65 = sphi 0, %s64
    %s81 = sphi 0, %s65
    %s87 = sphi 0, %s89
    %s90 = sphi 0, %s87
    %s91 = sphi 0, %s90
    %s107 = sphi 0, %s91
  $region4: #{_lambda_.19} parent=0 // loop_header_branch
    %12 = sbr.rel (%p10) target = $region8
  $region5: #{_lambda_.19} parent=0 // loop_body
    %s14 = ssub.s32 %s9, 1
    %s15 = ssub.s32 %s9, 2
    %s16 = sadd.s32 %s9, 1
    %s18 = sadd.s32 %s17, 1
    %p21 = scmp.eq.s32.totalorder %s9, 1
    %p22 = scmp.ne.s32.totalorder %s17, %s19
    %p23 = scmp.eq.s32.totalorder %s9, 0
    %p24 = por %p22, %p23
    %p25 = scmp.ne.s32.totalorder %s17, %s19
    %p26 = scmp.eq.s32.totalorder %s14, 1
    %p27 = por %p25, %p26
    %p28 = scmp.ne.s32.totalorder %s19, %s20
    %p29 = scmp.eq.s32.totalorder %s14, 0
    %p30 = por %p28, %p29
    %p31 = scmp.ne.s32.totalorder %s19, %s20
    %p32 = scmp.eq.s32.totalorder %s15, 1
    %p33 = por %p31, %p32
    %p35 = scmp.ne.s32.totalorder %s20, %s34
    %p36 = scmp.eq.s32.totalorder %s15, 0
    %p37 = por %p35, %p36
    %s39 = sadd.s32 %s38, 1
    %p42 = scmp.eq.s32.totalorder %s9, 1
    %p43 = scmp.ne.s32.totalorder %s38, %s40
    %p44 = scmp.eq.s32.totalorder %s9, 0
    %p45 = por %p43, %p44
    %p46 = scmp.ne.s32.totalorder %s38, %s40
    %p47 = scmp.eq.s32.totalorder %s14, 1
    %p48 = por %p46, %p47
    %p49 = scmp.ne.s32.totalorder %s40, %s41
    %p50 = scmp.eq.s32.totalorder %s14, 0
    %p51 = por %p49, %p50
    %p52 = scmp.ne.s32.totalorder %s40, %s41
    %p53 = scmp.eq.s32.totalorder %s15, 1
    %p54 = por %p52, %p53
    %p56 = scmp.ne.s32.totalorder %s41, %s55
    %p57 = scmp.eq.s32.totalorder %s15, 0
    %p58 = por %p56, %p57
    %s59 = ssub.s32 %s9, %s16
    %p60 = scmp.eq.s32.totalorder %s59, 0
    %s62 = sadd.s32 %s61, 1
    %s63 = scalar_select %p60, %s61, %s62
    %p66 = pneg %p60
    %p67 = scmp.eq.s32.totalorder %s9, 1
    %p68 = por %p66, %p67
    %p69 = scmp.ne.s32.totalorder %s61, %s64
    %p70 = scmp.eq.s32.totalorder %s9, 0
    %p71 = por %p69, %p70
    %p72 = scmp.ne.s32.totalorder %s61, %s64
    %p73 = scmp.eq.s32.totalorder %s14, 1
    %p74 = por %p72, %p73
    %p75 = scmp.ne.s32.totalorder %s64, %s65
    %p76 = scmp.eq.s32.totalorder %s14, 0
    %p77 = por %p75, %p76
    %p78 = scmp.ne.s32.totalorder %s64, %s65
    %p79 = scmp.eq.s32.totalorder %s15, 1
    %p80 = por %p78, %p79
    %p82 = scmp.ne.s32.totalorder %s65, %s81
    %p83 = scmp.eq.s32.totalorder %s15, 0
    %p84 = por %p82, %p83
    %s85 = ssub.s32 %s9, %s16
    %p86 = scmp.eq.s32.totalorder %s85, 0
    %s88 = sadd.s32 %s87, 1
    %s89 = scalar_select %p86, %s87, %s88
    %p92 = pneg %p86
    %p93 = scmp.eq.s32.totalorder %s9, 1
    %p94 = por %p92, %p93
    %p95 = scmp.ne.s32.totalorder %s87, %s90
    %p96 = scmp.eq.s32.totalorder %s9, 0
    %p97 = por %p95, %p96
    %p98 = scmp.ne.s32.totalorder %s87, %s90
    %p99 = scmp.eq.s32.totalorder %s14, 1
    %p100 = por %p98, %p99
    %p101 = scmp.ne.s32.totalorder %s90, %s91
    %p102 = scmp.eq.s32.totalorder %s14, 0
    %p103 = por %p101, %p102
    %p104 = scmp.ne.s32.totalorder %s90, %s91
    %p105 = scmp.eq.s32.totalorder %s15, 1
    %p106 = por %p104, %p105
    %p108 = scmp.ne.s32.totalorder %s91, %s107
    %p109 = scmp.eq.s32.totalorder %s15, 0
    %p110 = por %p108, %p109
    %p111 = scmp.le.s32.totalorder 1, %s9
    %p112 = scmp.lt.s32.totalorder %s9, 3
    %p113 = pnand %p111, %p112
    %p114 = pneg %p113
    // Predicated region
    $region9: #{_lambda_.19} parent=5 // pred_check
      _
    $region10: #{_lambda_.19} parent=5 // pred_check_branch
      %116 = sbr.rel (%p113) target = $region12
    $region11: #{_lambda_.19} parent=5 // pred_region
      %s117 = ssub.s32 %s9, 1
      // Predicated region
      $region13: #{_lambda_.19} parent=11 // pred_check
        %p118 = pneg %p30
      $region14: #{_lambda_.19} parent=11 // pred_check_branch
        %120 = sbr.rel (%p118) target = $region16
      $region15: #{_lambda_.19} parent=11 // pred_region
        _
      $region16: #{_lambda_.19} parent=11 // pred_fallthru
        _
      // Predicated region
      $region17: #{_lambda_.19} parent=11 // pred_check
        %p121 = pneg %p51
      $region18: #{_lambda_.19} parent=11 // pred_check_branch
        %123 = sbr.rel (%p121) target = $region20
      $region19: #{_lambda_.19} parent=11 // pred_region
        _
      $region20: #{_lambda_.19} parent=11 // pred_fallthru
        _
    $region12: #{_lambda_.19} parent=5 // pred_fallthru
      _
    %p124 = scmp.lt.s32.totalorder %s9, 2
    // Predicated region
    $region21: #{_lambda_.19} parent=5 // pred_check
      %p125 = pneg %p124
    $region22: #{_lambda_.19} parent=5 // pred_check_branch
      %127 = sbr.rel (%p125) target = $region24
    $region23: #{_lambda_.19} parent=5 // pred_region
      // Predicated region
      $region25: #{_lambda_.19} parent=23 // pred_check
        %p128 = pneg %p71
      $region26: #{_lambda_.19} parent=23 // pred_check_branch
        %130 = sbr.rel (%p128) target = $region28
      $region27: #{_lambda_.19} parent=23 // pred_region
        %p131 = scmp.lt.s32.totalorder %s9, 1
        %s132 = scalar_select %p131, %s9, 1
        %s133 = smul.addr %s132, 2
        %s134 = smul.addr %s133, 4
        %s135 = scalar_lea.vmem %s2, %s134
      $region28: #{_lambda_.19} parent=23 // pred_fallthru
        _
    $region24: #{_lambda_.19} parent=5 // pred_fallthru
      _
    %p136 = scmp.le.s32.totalorder 1, %s9
    %p137 = scmp.lt.s32.totalorder %s9, 3
    %p138 = pnand %p136, %p137
    %p139 = pneg %p138
    // Predicated region
    $region29: #{_lambda_.19} parent=5 // pred_check
      _
    $region30: #{_lambda_.19} parent=5 // pred_check_branch
      %141 = sbr.rel (%p138) target = $region32
    $region31: #{_lambda_.19} parent=5 // pred_region
      %s142 = ssub.s32 %s9, 1
      %p143 = pneg %p30
      %p144 = pneg %p27
      %p145 = pneg %p51
      %p146 = pneg %p48
      %p147 = scmp.lt.s32.totalorder %s14, 1
      %s148 = scalar_select %p147, %s14, 1
      %s149 = smul.addr %s148, 2
      %s150 = smul.addr %s149, 4
      %s151 = scalar_lea.vmem %s2, %s150
      %p152 = pneg %p77
      %p153 = pneg %p74
      %p154 = pneg %p103
      %p155 = pneg %p100
      %p156 = scmp.lt.s32.totalorder %s14, 1
      %s157 = scalar_select %p156, %s14, 1
      %s158 = smul.addr %s157, 2
      %s159 = scalar_lea.vmem %s3, %s158
      %p160 = scmp.lt.s32.totalorder %s14, 1
      %s161 = scalar_select %p160, %s14, 1
      %s162 = smul.addr %s161, 2
      %s163 = smul.addr %s162, 4
      %s164 = scalar_lea.vmem %s2, %s163
      %p165 = scmp.lt.s32.totalorder %s14, 1
      %s166 = scalar_select %p165, %s14, 1
      %s167 = smul.addr %s166, 2
      %s168 = scalar_lea.vmem %s3, %s167
      %v170 = vld [vmem:[%s164] sm:$0xf]
      %v171 = vld [vmem:[%s164 + $0x4] sm:$0xf]
      %v172 = vld [vmem:[%s0] sm:$0x3]
      %s173 = scalar_lea.vmem %s0, 2
      %v174 = vld [vmem:[%s173] sm:$0x3]
      %v177 = vunpack.c.l.b16 %v170
      %v178 = vunpack.c.l.b16 %v171
      %v179 = vpack.c.b16 %v178, %v177
      %180 = vrot.lane.b32.xlu0 %v179, 127
      %v181 = vpop.permute.xlu0 %180
      %vm183 = vcmask 130048
      %v185 = vsel %vm183, %v174, 0
      %187 = vmatprep.subr.bf16.mxu0 0
      %188 = vmatpush1.bf16.msra.mxu0 0
      %189 = vmatprep.subr.bf16.mxu0 0
      %190 = vmatpush1.bf16.msra.mxu0 0
      %191 = vmatprep.subr.bf16.mxu0 0
      %192 = vmatpush1.bf16.msra.mxu0 0
      %193 = vmatprep.subr.bf16.mxu0 0
      %194 = vmatpush1.bf16.msra.mxu0 0
      %195 = vmatprep.subr.bf16.mxu0 0
      %196 = vmatpush1.bf16.msra.mxu0 0
      %197 = vmatprep.subr.bf16.mxu0 0
      %198 = vmatpush1.bf16.msra.mxu0 0
      %199 = vmatprep.subr.bf16.mxu0 0
      %200 = vmatpush1.bf16.msra.mxu0 0
      %201 = vmatprep.subr.bf16.mxu0 0
      %202 = vmatpush1.bf16.msra.mxu0 %v181
      %203 = vmatprep.subr.bf16.mxu0 0
      %204 = vmatpush2.bf16.msra.mxu0 0
      %205 = vmatprep.subr.bf16.mxu0 0
      %206 = vmatpush2.bf16.msra.mxu0 0
      %207 = vmatprep.subr.bf16.mxu0 0
      %208 = vmatpush2.bf16.msra.mxu0 0
      %209 = vmatprep.subr.bf16.mxu0 0
      %210 = vmatpush2.bf16.msra.mxu0 0
      %211 = vmatprep.subr.bf16.mxu0 0
      %212 = vmatpush2.bf16.msra.mxu0 0
      %213 = vmatprep.subr.bf16.mxu0 0
      %214 = vmatpush2.bf16.msra.mxu0 0
      %215 = vmatprep.subr.bf16.mxu0 0
      %216 = vmatpush2.bf16.msra.mxu0 0
      %217 = vmatprep.subr.bf16.mxu0 0
      %218 = vmatpush2.bf16.msra.mxu0 0
      %219 = vmatprep.mubr.bf16.mxu0 0
      %220 = vmatmul.mubr.bf16.gmra.mxu0 %v185
      %v221 = vpop.f32.mrf.mxu0
      %v222 = vadd.f32 0.0, %v221
      %v223 = vpop.f32.mrf.mxu0
      %v224 = vpop.f32.mrf.mxu0
      %v225 = vpop.f32.mrf.mxu0
      %226 = vdwg.mxu0
      %v229 = vsel %vm183, %v172, 0
      %231 = vmatprep.subr.bf16.mxu0 0
      %232 = vmatpush1.bf16.msra.mxu0 0
      %233 = vmatprep.subr.bf16.mxu0 0
      %234 = vmatpush1.bf16.msra.mxu0 0
      %235 = vmatprep.subr.bf16.mxu0 0
      %236 = vmatpush1.bf16.msra.mxu0 0
      %237 = vmatprep.subr.bf16.mxu0 0
      %238 = vmatpush1.bf16.msra.mxu0 0
      %239 = vmatprep.subr.bf16.mxu0 0
      %240 = vmatpush1.bf16.msra.mxu0 0
      %241 = vmatprep.subr.bf16.mxu0 0
      %242 = vmatpush1.bf16.msra.mxu0 0
      %243 = vmatprep.subr.bf16.mxu0 0
      %244 = vmatpush1.bf16.msra.mxu0 0
      %245 = vmatprep.subr.bf16.mxu0 0
      %246 = vmatpush1.bf16.msra.mxu0 %v179
      %247 = vmatprep.subr.bf16.mxu0 0
      %248 = vmatpush2.bf16.msra.mxu0 0
      %249 = vmatprep.subr.bf16.mxu0 0
      %250 = vmatpush2.bf16.msra.mxu0 0
      %251 = vmatprep.subr.bf16.mxu0 0
      %252 = vmatpush2.bf16.msra.mxu0 0
      %253 = vmatprep.subr.bf16.mxu0 0
      %254 = vmatpush2.bf16.msra.mxu0 0
      %255 = vmatprep.subr.bf16.mxu0 0
      %256 = vmatpush2.bf16.msra.mxu0 0
      %257 = vmatprep.subr.bf16.mxu0 0
      %258 = vmatpush2.bf16.msra.mxu0 0
      %259 = vmatprep.subr.bf16.mxu0 0
      %260 = vmatpush2.bf16.msra.mxu0 0
      %261 = vmatprep.subr.bf16.mxu0 0
      %262 = vmatpush2.bf16.msra.mxu0 0
      %263 = vmatprep.mubr.bf16.mxu0 0
      %264 = vmatmul.mubr.bf16.gmra.mxu0 %v229
      %v265 = vpop.f32.mrf.mxu0
      %v266 = vadd.f32 %v222, %v265
      %v267 = vpop.f32.mrf.mxu0
      %v268 = vpop.f32.mrf.mxu0
      %v269 = vpop.f32.mrf.mxu0
      %270 = vdwg.mxu0
      %s271 = scalar_lea.vmem %s0, 4
      %v272 = vld [vmem:[%s271] sm:$0x3]
      %273 = vrot.lane.b32.xlu0 %v179, 126
      %v274 = vpop.permute.xlu0 %273
      %v277 = vsel %vm183, %v272, 0
      %279 = vmatprep.subr.bf16.mxu0 0
      %280 = vmatpush1.bf16.msra.mxu0 0
      %281 = vmatprep.subr.bf16.mxu0 0
      %282 = vmatpush1.bf16.msra.mxu0 0
      %283 = vmatprep.subr.bf16.mxu0 0
      %284 = vmatpush1.bf16.msra.mxu0 0
      %285 = vmatprep.subr.bf16.mxu0 0
      %286 = vmatpush1.bf16.msra.mxu0 0
      %287 = vmatprep.subr.bf16.mxu0 0
      %288 = vmatpush1.bf16.msra.mxu0 0
      %289 = vmatprep.subr.bf16.mxu0 0
      %290 = vmatpush1.bf16.msra.mxu0 0
      %291 = vmatprep.subr.bf16.mxu0 0
      %292 = vmatpush1.bf16.msra.mxu0 0
      %293 = vmatprep.subr.bf16.mxu0 0
      %294 = vmatpush1.bf16.msra.mxu0 %v274
      %295 = vmatprep.subr.bf16.mxu0 0
      %296 = vmatpush2.bf16.msra.mxu0 0
      %297 = vmatprep.subr.bf16.mxu0 0
      %298 = vmatpush2.bf16.msra.mxu0 0
      %299 = vmatprep.subr.bf16.mxu0 0
      %300 = vmatpush2.bf16.msra.mxu0 0
      %301 = vmatprep.subr.bf16.mxu0 0
      %302 = vmatpush2.bf16.msra.mxu0 0
      %303 = vmatprep.subr.bf16.mxu0 0
      %304 = vmatpush2.bf16.msra.mxu0 0
      %305 = vmatprep.subr.bf16.mxu0 0
      %306 = vmatpush2.bf16.msra.mxu0 0
      %307 = vmatprep.subr.bf16.mxu0 0
      %308 = vmatpush2.bf16.msra.mxu0 0
      %309 = vmatprep.subr.bf16.mxu0 0
      %310 = vmatpush2.bf16.msra.mxu0 0
      %311 = vmatprep.mubr.bf16.mxu0 0
      %312 = vmatmul.mubr.bf16.gmra.mxu0 %v277
      %v313 = vpop.f32.mrf.mxu0
      %v314 = vadd.f32 0.0, %v313
      %v315 = vpop.f32.mrf.mxu0
      %v316 = vpop.f32.mrf.mxu0
      %v317 = vpop.f32.mrf.mxu0
      %318 = vdwg.mxu0
      %v319 = vadd.f32 %v266, %v314
      %s320 = scalar_lea.vmem %s0, 6
      %v321 = vld [vmem:[%s320] sm:$0x3]
      %322 = vrot.lane.b32.xlu0 %v179, 118
      %v323 = vpop.permute.xlu0 %322
      %v326 = vsel %vm183, %v321, 0
      %328 = vmatprep.subr.bf16.mxu0 0
      %329 = vmatpush1.bf16.msra.mxu0 0
      %330 = vmatprep.subr.bf16.mxu0 0
      %331 = vmatpush1.bf16.msra.mxu0 0
      %332 = vmatprep.subr.bf16.mxu0 0
      %333 = vmatpush1.bf16.msra.mxu0 0
      %334 = vmatprep.subr.bf16.mxu0 0
      %335 = vmatpush1.bf16.msra.mxu0 0
      %336 = vmatprep.subr.bf16.mxu0 0
      %337 = vmatpush1.bf16.msra.mxu0 0
      %338 = vmatprep.subr.bf16.mxu0 0
      %339 = vmatpush1.bf16.msra.mxu0 0
      %340 = vmatprep.subr.bf16.mxu0 0
      %341 = vmatpush1.bf16.msra.mxu0 0
      %342 = vmatprep.subr.bf16.mxu0 0
      %343 = vmatpush1.bf16.msra.mxu0 %v323
      %344 = vmatprep.subr.bf16.mxu0 0
      %345 = vmatpush2.bf16.msra.mxu0 0
      %346 = vmatprep.subr.bf16.mxu0 0
      %347 = vmatpush2.bf16.msra.mxu0 0
      %348 = vmatprep.subr.bf16.mxu0 0
      %349 = vmatpush2.bf16.msra.mxu0 0
      %350 = vmatprep.subr.bf16.mxu0 0
      %351 = vmatpush2.bf16.msra.mxu0 0
      %352 = vmatprep.subr.bf16.mxu0 0
      %353 = vmatpush2.bf16.msra.mxu0 0
      %354 = vmatprep.subr.bf16.mxu0 0
      %355 = vmatpush2.bf16.msra.mxu0 0
      %356 = vmatprep.subr.bf16.mxu0 0
      %357 = vmatpush2.bf16.msra.mxu0 0
      %358 = vmatprep.subr.bf16.mxu0 0
      %359 = vmatpush2.bf16.msra.mxu0 0
      %360 = vmatprep.mubr.bf16.mxu0 0
      %361 = vmatmul.mubr.bf16.gmra.mxu0 %v326
      %v362 = vpop.f32.mrf.mxu0
      %v363 = vadd.f32 0.0, %v362
      %v364 = vpop.f32.mrf.mxu0
      %v365 = vpop.f32.mrf.mxu0
      %v366 = vpop.f32.mrf.mxu0
      %367 = vdwg.mxu0
      %v368 = vadd.f32 %v319, %v363
      %s369 = scalar_lea.vmem %s0, 8
      %v370 = vld [vmem:[%s369] sm:$0x3]
      %371 = vrot.lane.b32.xlu0 %v179, 117
      %v372 = vpop.permute.xlu0 %371
      %v375 = vsel %vm183, %v370, 0
      %377 = vmatprep.subr.bf16.mxu0 0
      %378 = vmatpush1.bf16.msra.mxu0 0
      %379 = vmatprep.subr.bf16.mxu0 0
      %380 = vmatpush1.bf16.msra.mxu0 0
      %381 = vmatprep.subr.bf16.mxu0 0
      %382 = vmatpush1.bf16.msra.mxu0 0
      %383 = vmatprep.subr.bf16.mxu0 0
      %384 = vmatpush1.bf16.msra.mxu0 0
      %385 = vmatprep.subr.bf16.mxu0 0
      %386 = vmatpush1.bf16.msra.mxu0 0
      %387 = vmatprep.subr.bf16.mxu0 0
      %388 = vmatpush1.bf16.msra.mxu0 0
      %389 = vmatprep.subr.bf16.mxu0 0
      %390 = vmatpush1.bf16.msra.mxu0 0
      %391 = vmatprep.subr.bf16.mxu0 0
      %392 = vmatpush1.bf16.msra.mxu0 %v372
      %393 = vmatprep.subr.bf16.mxu0 0
      %394 = vmatpush2.bf16.msra.mxu0 0
      %395 = vmatprep.subr.bf16.mxu0 0
      %396 = vmatpush2.bf16.msra.mxu0 0
      %397 = vmatprep.subr.bf16.mxu0 0
      %398 = vmatpush2.bf16.msra.mxu0 0
      %399 = vmatprep.subr.bf16.mxu0 0
      %400 = vmatpush2.bf16.msra.mxu0 0
      %401 = vmatprep.subr.bf16.mxu0 0
      %402 = vmatpush2.bf16.msra.mxu0 0
      %403 = vmatprep.subr.bf16.mxu0 0
      %404 = vmatpush2.bf16.msra.mxu0 0
      %405 = vmatprep.subr.bf16.mxu0 0
      %406 = vmatpush2.bf16.msra.mxu0 0
      %407 = vmatprep.subr.bf16.mxu0 0
      %408 = vmatpush2.bf16.msra.mxu0 0
      %409 = vmatprep.mubr.bf16.mxu0 0
      %410 = vmatmul.mubr.bf16.gmra.mxu0 %v375
      %v411 = vpop.f32.mrf.mxu0
      %v412 = vadd.f32 0.0, %v411
      %v413 = vpop.f32.mrf.mxu0
      %v414 = vpop.f32.mrf.mxu0
      %v415 = vpop.f32.mrf.mxu0
      %416 = vdwg.mxu0
      %v417 = vadd.f32 %v368, %v412
      %s418 = scalar_lea.vmem %s0, 10
      %v419 = vld [vmem:[%s418] sm:$0x3]
      %420 = vrot.lane.b32.xlu0 %v179, 116
      %v421 = vpop.permute.xlu0 %420
      %v424 = vsel %vm183, %v419, 0
      %426 = vmatprep.subr.bf16.mxu0 0
      %427 = vmatpush1.bf16.msra.mxu0 0
      %428 = vmatprep.subr.bf16.mxu0 0
      %429 = vmatpush1.bf16.msra.mxu0 0
      %430 = vmatprep.subr.bf16.mxu0 0
      %431 = vmatpush1.bf16.msra.mxu0 0
      %432 = vmatprep.subr.bf16.mxu0 0
      %433 = vmatpush1.bf16.msra.mxu0 0
      %434 = vmatprep.subr.bf16.mxu0 0
      %435 = vmatpush1.bf16.msra.mxu0 0
      %436 = vmatprep.subr.bf16.mxu0 0
      %437 = vmatpush1.bf16.msra.mxu0 0
      %438 = vmatprep.subr.bf16.mxu0 0
      %439 = vmatpush1.bf16.msra.mxu0 0
      %440 = vmatprep.subr.bf16.mxu0 0
      %441 = vmatpush1.bf16.msra.mxu0 %v421
      %442 = vmatprep.subr.bf16.mxu0 0
      %443 = vmatpush2.bf16.msra.mxu0 0
      %444 = vmatprep.subr.bf16.mxu0 0
      %445 = vmatpush2.bf16.msra.mxu0 0
      %446 = vmatprep.subr.bf16.mxu0 0
      %447 = vmatpush2.bf16.msra.mxu0 0
      %448 = vmatprep.subr.bf16.mxu0 0
      %449 = vmatpush2.bf16.msra.mxu0 0
      %450 = vmatprep.subr.bf16.mxu0 0
      %451 = vmatpush2.bf16.msra.mxu0 0
      %452 = vmatprep.subr.bf16.mxu0 0
      %453 = vmatpush2.bf16.msra.mxu0 0
      %454 = vmatprep.subr.bf16.mxu0 0
      %455 = vmatpush2.bf16.msra.mxu0 0
      %456 = vmatprep.subr.bf16.mxu0 0
      %457 = vmatpush2.bf16.msra.mxu0 0
      %458 = vmatprep.mubr.bf16.mxu0 0
      %459 = vmatmul.mubr.bf16.gmra.mxu0 %v424
      %v460 = vpop.f32.mrf.mxu0
      %v461 = vadd.f32 0.0, %v460
      %v462 = vpop.f32.mrf.mxu0
      %v463 = vpop.f32.mrf.mxu0
      %v464 = vpop.f32.mrf.mxu0
      %465 = vdwg.mxu0
      %v466 = vadd.f32 %v417, %v461
      %s467 = scalar_lea.vmem %s0, 12
      %v468 = vld [vmem:[%s467] sm:$0x3]
      %469 = vrot.lane.b32.xlu0 %v179, 108
      %v470 = vpop.permute.xlu0 %469
      %v473 = vsel %vm183, %v468, 0
      %475 = vmatprep.subr.bf16.mxu0 0
      %476 = vmatpush1.bf16.msra.mxu0 0
      %477 = vmatprep.subr.bf16.mxu0 0
      %478 = vmatpush1.bf16.msra.mxu0 0
      %479 = vmatprep.subr.bf16.mxu0 0
      %480 = vmatpush1.bf16.msra.mxu0 0
      %481 = vmatprep.subr.bf16.mxu0 0
      %482 = vmatpush1.bf16.msra.mxu0 0
      %483 = vmatprep.subr.bf16.mxu0 0
      %484 = vmatpush1.bf16.msra.mxu0 0
      %485 = vmatprep.subr.bf16.mxu0 0
      %486 = vmatpush1.bf16.msra.mxu0 0
      %487 = vmatprep.subr.bf16.mxu0 0
      %488 = vmatpush1.bf16.msra.mxu0 0
      %489 = vmatprep.subr.bf16.mxu0 0
      %490 = vmatpush1.bf16.msra.mxu0 %v470
      %491 = vmatprep.subr.bf16.mxu0 0
      %492 = vmatpush2.bf16.msra.mxu0 0
      %493 = vmatprep.subr.bf16.mxu0 0
      %494 = vmatpush2.bf16.msra.mxu0 0
      %495 = vmatprep.subr.bf16.mxu0 0
      %496 = vmatpush2.bf16.msra.mxu0 0
      %497 = vmatprep.subr.bf16.mxu0 0
      %498 = vmatpush2.bf16.msra.mxu0 0
      %499 = vmatprep.subr.bf16.mxu0 0
      %500 = vmatpush2.bf16.msra.mxu0 0
      %501 = vmatprep.subr.bf16.mxu0 0
      %502 = vmatpush2.bf16.msra.mxu0 0
      %503 = vmatprep.subr.bf16.mxu0 0
      %504 = vmatpush2.bf16.msra.mxu0 0
      %505 = vmatprep.subr.bf16.mxu0 0
      %506 = vmatpush2.bf16.msra.mxu0 0
      %507 = vmatprep.mubr.bf16.mxu0 0
      %508 = vmatmul.mubr.bf16.gmra.mxu0 %v473
      %v509 = vpop.f32.mrf.mxu0
      %v510 = vadd.f32 0.0, %v509
      %v511 = vpop.f32.mrf.mxu0
      %v512 = vpop.f32.mrf.mxu0
      %v513 = vpop.f32.mrf.mxu0
      %514 = vdwg.mxu0
      %v515 = vadd.f32 %v466, %v510
      %s516 = scalar_lea.vmem %s0, 14
      %v517 = vld [vmem:[%s516] sm:$0x3]
      %518 = vrot.lane.b32.xlu0 %v179, 107
      %v519 = vpop.permute.xlu0 %518
      %v522 = vsel %vm183, %v517, 0
      %524 = vmatprep.subr.bf16.mxu0 0
      %525 = vmatpush1.bf16.msra.mxu0 0
      %526 = vmatprep.subr.bf16.mxu0 0
      %527 = vmatpush1.bf16.msra.mxu0 0
      %528 = vmatprep.subr.bf16.mxu0 0
      %529 = vmatpush1.bf16.msra.mxu0 0
      %530 = vmatprep.subr.bf16.mxu0 0
      %531 = vmatpush1.bf16.msra.mxu0 0
      %532 = vmatprep.subr.bf16.mxu0 0
      %533 = vmatpush1.bf16.msra.mxu0 0
      %534 = vmatprep.subr.bf16.mxu0 0
      %535 = vmatpush1.bf16.msra.mxu0 0
      %536 = vmatprep.subr.bf16.mxu0 0
      %537 = vmatpush1.bf16.msra.mxu0 0
      %538 = vmatprep.subr.bf16.mxu0 0
      %539 = vmatpush1.bf16.msra.mxu0 %v519
      %540 = vmatprep.subr.bf16.mxu0 0
      %541 = vmatpush2.bf16.msra.mxu0 0
      %542 = vmatprep.subr.bf16.mxu0 0
      %543 = vmatpush2.bf16.msra.mxu0 0
      %544 = vmatprep.subr.bf16.mxu0 0
      %545 = vmatpush2.bf16.msra.mxu0 0
      %546 = vmatprep.subr.bf16.mxu0 0
      %547 = vmatpush2.bf16.msra.mxu0 0
      %548 = vmatprep.subr.bf16.mxu0 0
      %549 = vmatpush2.bf16.msra.mxu0 0
      %550 = vmatprep.subr.bf16.mxu0 0
      %551 = vmatpush2.bf16.msra.mxu0 0
      %552 = vmatprep.subr.bf16.mxu0 0
      %553 = vmatpush2.bf16.msra.mxu0 0
      %554 = vmatprep.subr.bf16.mxu0 0
      %555 = vmatpush2.bf16.msra.mxu0 0
      %556 = vmatprep.mubr.bf16.mxu0 0
      %557 = vmatmul.mubr.bf16.gmra.mxu0 %v522
      %v558 = vpop.f32.mrf.mxu0
      %v559 = vadd.f32 0.0, %v558
      %v560 = vpop.f32.mrf.mxu0
      %v561 = vpop.f32.mrf.mxu0
      %v562 = vpop.f32.mrf.mxu0
      %563 = vdwg.mxu0
      %v564 = vadd.f32 %v515, %v559
      %s565 = scalar_lea.vmem %s0, 16
      %v566 = vld [vmem:[%s565] sm:$0x3]
      %567 = vrot.lane.b32.xlu0 %v179, 106
      %v568 = vpop.permute.xlu0 %567
      %v571 = vsel %vm183, %v566, 0
      %573 = vmatprep.subr.bf16.mxu0 0
      %574 = vmatpush1.bf16.msra.mxu0 0
      %575 = vmatprep.subr.bf16.mxu0 0
      %576 = vmatpush1.bf16.msra.mxu0 0
      %577 = vmatprep.subr.bf16.mxu0 0
      %578 = vmatpush1.bf16.msra.mxu0 0
      %579 = vmatprep.subr.bf16.mxu0 0
      %580 = vmatpush1.bf16.msra.mxu0 0
      %581 = vmatprep.subr.bf16.mxu0 0
      %582 = vmatpush1.bf16.msra.mxu0 0
      %583 = vmatprep.subr.bf16.mxu0 0
      %584 = vmatpush1.bf16.msra.mxu0 0
      %585 = vmatprep.subr.bf16.mxu0 0
      %586 = vmatpush1.bf16.msra.mxu0 0
      %587 = vmatprep.subr.bf16.mxu0 0
      %588 = vmatpush1.bf16.msra.mxu0 %v568
      %589 = vmatprep.subr.bf16.mxu0 0
      %590 = vmatpush2.bf16.msra.mxu0 0
      %591 = vmatprep.subr.bf16.mxu0 0
      %592 = vmatpush2.bf16.msra.mxu0 0
      %593 = vmatprep.subr.bf16.mxu0 0
      %594 = vmatpush2.bf16.msra.mxu0 0
      %595 = vmatprep.subr.bf16.mxu0 0
      %596 = vmatpush2.bf16.msra.mxu0 0
      %597 = vmatprep.subr.bf16.mxu0 0
      %598 = vmatpush2.bf16.msra.mxu0 0
      %599 = vmatprep.subr.bf16.mxu0 0
      %600 = vmatpush2.bf16.msra.mxu0 0
      %601 = vmatprep.subr.bf16.mxu0 0
      %602 = vmatpush2.bf16.msra.mxu0 0
      %603 = vmatprep.subr.bf16.mxu0 0
      %604 = vmatpush2.bf16.msra.mxu0 0
      %605 = vmatprep.mubr.bf16.mxu0 0
      %606 = vmatmul.mubr.bf16.gmra.mxu0 %v571
      %v607 = vpop.f32.mrf.mxu0
      %v608 = vadd.f32 0.0, %v607
      %v609 = vpop.f32.mrf.mxu0
      %v610 = vpop.f32.mrf.mxu0
      %v611 = vpop.f32.mrf.mxu0
      %612 = vdwg.mxu0
      %v613 = vadd.f32 %v564, %v608
      %v614 = vld [vmem:[%s1] sm:$0xf]
      %616 = vset.pattern.permute.xlu0 0
      %617 = vperm.xlu0 %616, %v614
      %v618 = vpop.permute.xlu0 %617
      %v620 = vadd.f32 %v613, %v618
      %v621 = vtanh.pop %v620
      %v622 = vpack.c.bf16 %v621, %v621
      %vm623 = vcmask 648192
      %624 = vst.msk [vmem:[%s168] sm:$0x3] %vm623, %v622
      %p625 = scmp.lt.s32.totalorder %s14, 1
      %s626 = scalar_select %p625, %s14, 1
      %s627 = smul.addr %s626, 2
      %s628 = scalar_lea.vmem %s3, %s627
      // Predicated region
      $region33: #{_lambda_.19} parent=31 // pred_check
        %p629 = pneg %p100
      $region34: #{_lambda_.19} parent=31 // pred_check_branch
        %631 = sbr.rel (%p629) target = $region36
      $region35: #{_lambda_.19} parent=31 // pred_region
        _
      $region36: #{_lambda_.19} parent=31 // pred_fallthru
        _
    $region32: #{_lambda_.19} parent=5 // pred_fallthru
      _
    %p632 = scmp.le.s32.totalorder 2, %s9
    // Predicated region
    $region37: #{_lambda_.19} parent=5 // pred_check
      %p633 = pneg %p632
    $region38: #{_lambda_.19} parent=5 // pred_check_branch
      %635 = sbr.rel (%p633) target = $region40
    $region39: #{_lambda_.19} parent=5 // pred_region
      %s636 = ssub.s32 %s9, 2
      // Predicated region
      $region41: #{_lambda_.19} parent=39 // pred_check
        %p637 = pneg %p106
      $region42: #{_lambda_.19} parent=39 // pred_check_branch
        %639 = sbr.rel (%p637) target = $region44
      $region43: #{_lambda_.19} parent=39 // pred_region
        %p640 = scmp.lt.s32.totalorder %s15, 1
        %s641 = scalar_select %p640, %s15, 1
        %s642 = smul.addr %s641, 2
        %s643 = scalar_lea.vmem %s3, %s642
      $region44: #{_lambda_.19} parent=39 // pred_fallthru
        _
    $region40: #{_lambda_.19} parent=5 // pred_fallthru
      _
  $region6: #{_lambda_.19} parent=0 // loop_footer
    %s13 = sadd.s32 1, %s9
  $region7: #{_lambda_.19} parent=0 // loop_footer_branch
    %8 = sbr.rel target = $region3
  $region8: #{_lambda_.19} parent=0 // loop_exit
    _

// kernel: _lambda_.21
$region0: #{_lambda_.21}
  #allocation0 [shape = 'u32[]', space=smem, size = 0x4, offset = 0x4, fixed_abs, tag = 'smem constant byte address 0x4 - core index']
  #allocation1 [shape = 'u32[144,128]{1,0:T(1,128)}', space=vmem, size = 0x12000, scoped, tag = 'internal scratch']
  %s0 = inlined_call_operand.vmem [shape: bf16[2,4,64], index: 0, kind: input, shape index: {}, may-alias: {0,1}]
  %s1 = inlined_call_operand.vmem [shape: bf16[2,4,64], index: 1, kind: input, shape index: {}, may-alias: {0,1}]
  %s2 = inlined_call_operand.vmem [shape: f32[2,64,64], index: 2, kind: output, shape index: {}]
  %s3 = sld [smem:[#allocation0]]
  $region41: #{_lambda_.21} parent=0
    _
  %s5 = ssub.s32 1, %s3
  %s6 = scalar_select 0, %s5, %s3
  loop: start=0, step=1, limit=4
  $region2: #{_lambda_.21} parent=0 // loop_pre_header
    _
  $region3: #{_lambda_.21} parent=0 // loop_header
    %s8 = sphi 0, %s12
    %p9 = scmp.ge.s32.totalorder %s8, 4
    %s15 = sphi 0, %s27
    %s16 = sphi 0, %s23
    %s17 = sphi 0, %s15
    %s18 = sphi 0, %s16
    %s19 = sphi 0, %s17
    %s20 = sphi 0, %s18
    %s30 = sphi 0, %s32
    %s33 = sphi 0, %s30
    %s34 = sphi 0, %s33
    %s50 = sphi 0, %s34
    %s58 = sphi 0, %s60
    %s61 = sphi 0, %s58
    %s62 = sphi 0, %s61
    %s78 = sphi 0, %s62
    %s86 = sphi 0, %s88
    %s89 = sphi 0, %s86
    %s90 = sphi 0, %s89
    %s106 = sphi 0, %s90
  $region4: #{_lambda_.21} parent=0 // loop_header_branch
    %11 = sbr.rel (%p9) target = $region8
  $region5: #{_lambda_.21} parent=0 // loop_body
    %s13 = ssub.s32 %s8, 1
    %s14 = ssub.s32 %s8, 2
    %s21 = sadd.s32 1, %s16
    %p22 = scmp.ge.s32.totalorder %s21, 1
    %s23 = scalar_select %p22, 0, %s21
    %s24 = sadd.s32 1, %s15
    %s25 = scalar_select %p22, %s24, %s15
    %p26 = scmp.ge.s32.totalorder %s25, 2
    %s27 = scalar_select %p26, 0, %s25
    %s28 = ssub.s32 %s15, %s27
    %p29 = scmp.eq.s32.totalorder %s28, 0
    %s31 = sadd.s32 %s30, 1
    %s32 = scalar_select %p29, %s30, %s31
    %p35 = pneg %p29
    %p36 = scmp.eq.s32.totalorder %s8, 1
    %p37 = por %p35, %p36
    %p38 = scmp.ne.s32.totalorder %s30, %s33
    %p39 = scmp.eq.s32.totalorder %s8, 0
    %p40 = por %p38, %p39
    %p41 = scmp.ne.s32.totalorder %s30, %s33
    %p42 = scmp.eq.s32.totalorder %s13, 1
    %p43 = por %p41, %p42
    %p44 = scmp.ne.s32.totalorder %s33, %s34
    %p45 = scmp.eq.s32.totalorder %s13, 0
    %p46 = por %p44, %p45
    %p47 = scmp.ne.s32.totalorder %s33, %s34
    %p48 = scmp.eq.s32.totalorder %s14, 1
    %p49 = por %p47, %p48
    %p51 = scmp.ne.s32.totalorder %s34, %s50
    %p52 = scmp.eq.s32.totalorder %s14, 0
    %p53 = por %p51, %p52
    %s54 = ssub.s32 %s15, %s27
    %s55 = ssub.s32 %s16, %s23
    %s56 = sor.u32 %s54, %s55
    %p57 = scmp.eq.s32.totalorder %s56, 0
    %s59 = sadd.s32 %s58, 1
    %s60 = scalar_select %p57, %s58, %s59
    %p63 = pneg %p57
    %p64 = scmp.eq.s32.totalorder %s8, 1
    %p65 = por %p63, %p64
    %p66 = scmp.ne.s32.totalorder %s58, %s61
    %p67 = scmp.eq.s32.totalorder %s8, 0
    %p68 = por %p66, %p67
    %p69 = scmp.ne.s32.totalorder %s58, %s61
    %p70 = scmp.eq.s32.totalorder %s13, 1
    %p71 = por %p69, %p70
    %p72 = scmp.ne.s32.totalorder %s61, %s62
    %p73 = scmp.eq.s32.totalorder %s13, 0
    %p74 = por %p72, %p73
    %p75 = scmp.ne.s32.totalorder %s61, %s62
    %p76 = scmp.eq.s32.totalorder %s14, 1
    %p77 = por %p75, %p76
    %p79 = scmp.ne.s32.totalorder %s62, %s78
    %p80 = scmp.eq.s32.totalorder %s14, 0
    %p81 = por %p79, %p80
    %s82 = ssub.s32 %s15, %s27
    %s83 = ssub.s32 %s16, %s23
    %s84 = sor.u32 %s82, %s83
    %p85 = scmp.eq.s32.totalorder %s84, 0
    %s87 = sadd.s32 %s86, 1
    %s88 = scalar_select %p85, %s86, %s87
    %p91 = pneg %p85
    %p92 = scmp.eq.s32.totalorder %s8, 1
    %p93 = por %p91, %p92
    %p94 = scmp.ne.s32.totalorder %s86, %s89
    %p95 = scmp.eq.s32.totalorder %s8, 0
    %p96 = por %p94, %p95
    %p97 = scmp.ne.s32.totalorder %s86, %s89
    %p98 = scmp.eq.s32.totalorder %s13, 1
    %p99 = por %p97, %p98
    %p100 = scmp.ne.s32.totalorder %s89, %s90
    %p101 = scmp.eq.s32.totalorder %s13, 0
    %p102 = por %p100, %p101
    %p103 = scmp.ne.s32.totalorder %s89, %s90
    %p104 = scmp.eq.s32.totalorder %s14, 1
    %p105 = por %p103, %p104
    %p107 = scmp.ne.s32.totalorder %s90, %s106
    %p108 = scmp.eq.s32.totalorder %s14, 0
    %p109 = por %p107, %p108
    %p110 = scmp.le.s32.totalorder 1, %s8
    %p111 = scmp.lt.s32.totalorder %s8, 3
    %p112 = pnand %p110, %p111
    %p113 = pneg %p112
    // Predicated region
    $region9: #{_lambda_.21} parent=5 // pred_check
      _
    $region10: #{_lambda_.21} parent=5 // pred_check_branch
      %115 = sbr.rel (%p112) target = $region12
    $region11: #{_lambda_.21} parent=5 // pred_region
      %s116 = ssub.s32 %s8, 1
    $region12: #{_lambda_.21} parent=5 // pred_fallthru
      _
    %p117 = scmp.lt.s32.totalorder %s8, 2
    // Predicated region
    $region13: #{_lambda_.21} parent=5 // pred_check
      %p118 = pneg %p117
    $region14: #{_lambda_.21} parent=5 // pred_check_branch
      %120 = sbr.rel (%p118) target = $region16
    $region15: #{_lambda_.21} parent=5 // pred_region
      // Predicated region
      $region17: #{_lambda_.21} parent=15 // pred_check
        %p121 = pneg %p40
      $region18: #{_lambda_.21} parent=15 // pred_check_branch
        %123 = sbr.rel (%p121) target = $region20
      $region19: #{_lambda_.21} parent=15 // pred_region
        %p124 = scmp.lt.s32.totalorder %s15, 1
        %s125 = scalar_select %p124, %s15, 1
        %s126 = smul.addr %s125, 2
        %s127 = scalar_lea.vmem %s0, %s126
      $region20: #{_lambda_.21} parent=15 // pred_fallthru
        _
      // Predicated region
      $region21: #{_lambda_.21} parent=15 // pred_check
        %p128 = pneg %p68
      $region22: #{_lambda_.21} parent=15 // pred_check_branch
        %130 = sbr.rel (%p128) target = $region24
      $region23: #{_lambda_.21} parent=15 // pred_region
        %p131 = scmp.lt.s32.totalorder %s15, 1
        %s132 = scalar_select %p131, %s15, 1
        %p133 = scmp.lt.s32.totalorder %s16, 0
        %s134 = scalar_select %p133, %s16, 0
        %s135 = sadd.s32 %s134, %s132
        %s136 = smul.addr %s135, 2
        %s137 = scalar_lea.vmem %s1, %s136
      $region24: #{_lambda_.21} parent=15 // pred_fallthru
        _
    $region16: #{_lambda_.21} parent=5 // pred_fallthru
      _
    %p138 = scmp.le.s32.totalorder 1, %s8
    %p139 = scmp.lt.s32.totalorder %s8, 3
    %p140 = pnand %p138, %p139
    %p141 = pneg %p140
    // Predicated region
    $region25: #{_lambda_.21} parent=5 // pred_check
      _
    $region26: #{_lambda_.21} parent=5 // pred_check_branch
      %143 = sbr.rel (%p140) target = $region28
    $region27: #{_lambda_.21} parent=5 // pred_region
      %s144 = ssub.s32 %s8, 1
      %p145 = scmp.lt.s32.totalorder %s17, 1
      %s146 = scalar_select %p145, %s17, 1
      %s147 = smul.addr %s146, 2
      %s148 = scalar_lea.vmem %s0, %s147
      %p149 = pneg %p46
      %p150 = pneg %p43
      %p151 = scmp.lt.s32.totalorder %s17, 1
      %s152 = scalar_select %p151, %s17, 1
      %p153 = scmp.lt.s32.totalorder %s18, 0
      %s154 = scalar_select %p153, %s18, 0
      %s155 = sadd.s32 %s154, %s152
      %s156 = smul.addr %s155, 2
      %s157 = scalar_lea.vmem %s1, %s156
      %p158 = pneg %p74
      %p159 = pneg %p71
      %p160 = pneg %p102
      %p161 = pneg %p99
      %p162 = scmp.lt.s32.totalorder %s17, 1
      %s163 = scalar_select %p162, %s17, 1
      %p164 = scmp.lt.s32.totalorder %s18, 0
      %s165 = scalar_select %p164, %s18, 0
      %s166 = smul.addr %s163, 8
      %s167 = sadd.s32 %s165, %s166
      %s168 = smul.addr %s167, 8
      %s169 = scalar_lea.vmem %s2, %s168
      %p170 = scmp.lt.s32.totalorder %s17, 1
      %s171 = scalar_select %p170, %s17, 1
      %s172 = smul.addr %s171, 2
      %s173 = scalar_lea.vmem %s0, %s172
      %p174 = scmp.lt.s32.totalorder %s17, 1
      %s175 = scalar_select %p174, %s17, 1
      %p176 = scmp.lt.s32.totalorder %s18, 0
      %s177 = scalar_select %p176, %s18, 0
      %s178 = sadd.s32 %s177, %s175
      %s179 = smul.addr %s178, 2
      %s180 = scalar_lea.vmem %s1, %s179
      %p181 = scmp.lt.s32.totalorder %s17, 1
      %s182 = scalar_select %p181, %s17, 1
      %p183 = scmp.lt.s32.totalorder %s18, 0
      %s184 = scalar_select %p183, %s18, 0
      %s185 = smul.addr %s182, 8
      %s186 = sadd.s32 %s184, %s185
      %s187 = smul.addr %s186, 8
      %s188 = scalar_lea.vmem %s2, %s187
      %v191 = vld [vmem:[%s173] sm:$0x3]
      %v192 = vld [vmem:[%s180] sm:$0x3]
      %v193 = vmul.bf16 %v192, 1079328853
      %194 = vxpose.xlu0.c.b16.start [1/8] %v191, 128
      %195 = vxpose.xlu0.c.b16.cont [2/8] 0, 128
      %196 = vxpose.xlu0.c.b16.cont [3/8] 0, 128
      %197 = vxpose.xlu0.c.b16.cont [4/8] 0, 128
      %198 = vxpose.xlu0.c.b16.cont [5/8] 0, 128
      %199 = vxpose.xlu0.c.b16.cont [6/8] 0, 128
      %200 = vxpose.xlu0.c.b16.cont [7/8] 0, 128
      %201 = vxpose.xlu0.c.b16.end [8/8] 0, 128
      %v202 = vpop.trf.xlu0
      %v203 = vpop.trf.xlu0
      %v204 = vpop.trf.xlu0
      %v205 = vpop.trf.xlu0
      %v206 = vpop.trf.xlu0
      %v207 = vpop.trf.xlu0
      %v208 = vpop.trf.xlu0
      %v209 = vpop.trf.xlu0
      %vm210 = vcmask 31744
      %v212 = vsel %vm210, %v202, 0
      %v215 = vsel %vm210, %v203, 0
      %v218 = vsel %vm210, %v204, 0
      %v221 = vsel %vm210, %v205, 0
      %vm223 = vcmask 1041408
      %v225 = vsel %vm223, %v193, 0
      %227 = vmatprep.subr.bf16.mxu0 0
      %228 = vmatpush1.bf16.msra.mxu0 0
      %229 = vmatprep.subr.bf16.mxu0 0
      %230 = vmatpush1.bf16.msra.mxu0 0
      %231 = vmatprep.subr.bf16.mxu0 0
      %232 = vmatpush1.bf16.msra.mxu0 0
      %233 = vmatprep.subr.bf16.mxu0 0
      %234 = vmatpush1.bf16.msra.mxu0 0
      %235 = vmatprep.subr.bf16.mxu0 0
      %236 = vmatpush1.bf16.msra.mxu0 0
      %237 = vmatprep.subr.bf16.mxu0 0
      %238 = vmatpush1.bf16.msra.mxu0 0
      %239 = vmatprep.subr.bf16.mxu0 0
      %240 = vmatpush1.bf16.msra.mxu0 0
      %241 = vmatprep.subr.bf16.mxu0 0
      %242 = vmatpush1.bf16.msra.mxu0 %v225
      %243 = vmatprep.subr.bf16.mxu0 0
      %244 = vmatpush2.bf16.msra.mxu0 0
      %245 = vmatprep.subr.bf16.mxu0 0
      %246 = vmatpush2.bf16.msra.mxu0 0
      %247 = vmatprep.subr.bf16.mxu0 0
      %248 = vmatpush2.bf16.msra.mxu0 0
      %249 = vmatprep.subr.bf16.mxu0 0
      %250 = vmatpush2.bf16.msra.mxu0 0
      %251 = vmatprep.subr.bf16.mxu0 0
      %252 = vmatpush2.bf16.msra.mxu0 0
      %253 = vmatprep.subr.bf16.mxu0 0
      %254 = vmatpush2.bf16.msra.mxu0 0
      %255 = vmatprep.subr.bf16.mxu0 0
      %256 = vmatpush2.bf16.msra.mxu0 0
      %257 = vmatprep.subr.bf16.mxu0 0
      %258 = vmatpush2.bf16.msra.mxu0 0
      %259 = vmatprep.mubr.bf16.mxu0 0
      %260 = vmatmul.mubr.bf16.gmra.mxu0 %v212
      %v261 = vpop.f32.mrf.mxu0
      %v262 = vadd.f32 0.0, %v261
      %v263 = vpop.f32.mrf.mxu0
      %v264 = vpop.f32.mrf.mxu0
      %v265 = vadd.f32 0.0, %v264
      %v266 = vpop.f32.mrf.mxu0
      %267 = vmatprep.mubr.bf16.mxu0 0
      %268 = vmatmul.mubr.bf16.gmra.mxu0 %v215
      %v269 = vpop.f32.mrf.mxu0
      %v270 = vadd.f32 0.0, %v269
      %v271 = vpop.f32.mrf.mxu0
      %v272 = vpop.f32.mrf.mxu0
      %v273 = vadd.f32 0.0, %v272
      %v274 = vpop.f32.mrf.mxu0
      %275 = vmatprep.mubr.bf16.mxu0 0
      %276 = vmatmul.mubr.bf16.gmra.mxu0 %v218
      %v277 = vpop.f32.mrf.mxu0
      %v278 = vadd.f32 0.0, %v277
      %v279 = vpop.f32.mrf.mxu0
      %v280 = vpop.f32.mrf.mxu0
      %v281 = vadd.f32 0.0, %v280
      %v282 = vpop.f32.mrf.mxu0
      %283 = vmatprep.mubr.bf16.mxu0 0
      %284 = vmatmul.mubr.bf16.gmra.mxu0 %v221
      %v285 = vpop.f32.mrf.mxu0
      %v286 = vadd.f32 0.0, %v285
      %v287 = vpop.f32.mrf.mxu0
      %v288 = vpop.f32.mrf.mxu0
      %v289 = vadd.f32 0.0, %v288
      %v290 = vpop.f32.mrf.mxu0
      %291 = vdwg.mxu0
      %vm292 = vcmask 523264
      %v293 = vsel %vm292, %v262, -inf
      %v294 = vsel %vm292, %v265, -inf
      %v295 = vsel %vm292, %v270, -inf
      %v296 = vsel %vm292, %v273, -inf
      %v297 = vsel %vm292, %v278, -inf
      %v298 = vmax.f32 %v293, %v297
      %v299 = vsel %vm292, %v281, -inf
      %v300 = vmax.f32 %v294, %v299
      %v301 = vsel %vm292, %v286, -inf
      %v302 = vmax.f32 %v295, %v301
      %v303 = vsel %vm292, %v289, -inf
      %v304 = vmax.f32 %v296, %v303
      %v305 = vmax.f32 %v298, %v300
      %v306 = vmax.f32 %v302, %v304
      %v307 = vmax.f32 %v305, %v306
      %v308 = vrot.slane %v307, 4
      %v309 = vmax.f32 %v307, %v308
      %v310 = vrot.slane %v309, 2
      %v311 = vmax.f32 %v309, %v310
      %v312 = vrot.slane %v311, 1
      %v313 = vmax.f32 %v311, %v312
      %v314 = vsub.f32 %v262, %v313
      %v315 = vsub.f32 %v265, %v313
      %v316 = vsub.f32 %v270, %v313
      %v317 = vsub.f32 %v273, %v313
      %v318 = vsub.f32 %v278, %v313
      %v319 = vsub.f32 %v281, %v313
      %v320 = vsub.f32 %v286, %v313
      %v321 = vsub.f32 %v289, %v313
      %v322 = vmul.f32 %v314, 1.442695
      %v323 = vpow.pop %v322
      %v324 = vmul.f32 %v315, 1.442695
      %v325 = vpow.pop %v324
      %v326 = vmul.f32 %v316, 1.442695
      %v327 = vpow.pop %v326
      %v328 = vmul.f32 %v317, 1.442695
      %v329 = vpow.pop %v328
      %v330 = vmul.f32 %v318, 1.442695
      %v331 = vpow.pop %v330
      %v332 = vmul.f32 %v319, 1.442695
      %v333 = vpow.pop %v332
      %v334 = vmul.f32 %v320, 1.442695
      %v335 = vpow.pop %v334
      %v336 = vmul.f32 %v321, 1.442695
      %v337 = vpow.pop %v336
      %v338 = vsel %vm292, %v323, 0.0
      %v339 = vsel %vm292, %v325, 0.0
      %v340 = vadd.f32 %v338, %v339
      %v341 = vsel %vm292, %v327, 0.0
      %v342 = vadd.f32 %v340, %v341
      %v343 = vsel %vm292, %v329, 0.0
      %v344 = vadd.f32 %v342, %v343
      %v345 = vsel %vm292, %v331, 0.0
      %v346 = vadd.f32 %v344, %v345
      %v347 = vsel %vm292, %v333, 0.0
      %v348 = vadd.f32 %v346, %v347
      %v349 = vsel %vm292, %v335, 0.0
      %v350 = vadd.f32 %v348, %v349
      %v351 = vsel %vm292, %v337, 0.0
      %v352 = vadd.f32 %v350, %v351
      %v353 = vrot.slane %v352, 4
      %v354 = vadd.f32 %v352, %v353
      %v355 = vrot.slane %v354, 2
      %v356 = vadd.f32 %v354, %v355
      %v357 = vrot.slane %v356, 1
      %v358 = vadd.f32 %v356, %v357
      %v359 = vrcp.pop %v358
      %v360 = vmul.f32 %v323, %v359
      %v361 = vmul.f32 %v325, %v359
      %v362 = vmul.f32 %v327, %v359
      %v363 = vmul.f32 %v329, %v359
      %v364 = vmul.f32 %v331, %v359
      %v365 = vmul.f32 %v333, %v359
      %v366 = vmul.f32 %v335, %v359
      %v367 = vmul.f32 %v337, %v359
      %368 = vst.msk [vmem:[%s188] sm:$0xff] %vm292, %v360
      %369 = vst.msk [vmem:[%s188 + $0x8] sm:$0xff] %vm292, %v361
      %370 = vst.msk [vmem:[%s188 + $0x10] sm:$0xff] %vm292, %v362
      %371 = vst.msk [vmem:[%s188 + $0x18] sm:$0xff] %vm292, %v363
      %372 = vst.msk [vmem:[%s188 + $0x20] sm:$0xff] %vm292, %v364
      %373 = vst.msk [vmem:[%s188 + $0x28] sm:$0xff] %vm292, %v365
      %374 = vst.msk [vmem:[%s188 + $0x30] sm:$0xff] %vm292, %v366
      %375 = vst.msk [vmem:[%s188 + $0x38] sm:$0xff] %vm292, %v367
      %p376 = scmp.lt.s32.totalorder %s17, 1
      %s377 = scalar_select %p376, %s17, 1
      %p378 = scmp.lt.s32.totalorder %s18, 0
      %s379 = scalar_select %p378, %s18, 0
      %s380 = smul.addr %s377, 8
      %s381 = sadd.s32 %s379, %s380
      %s382 = smul.addr %s381, 8
      %s383 = scalar_lea.vmem %s2, %s382
      // Predicated region
      $region29: #{_lambda_.21} parent=27 // pred_check
        %p384 = pneg %p99
      $region30: #{_lambda_.21} parent=27 // pred_check_branch
        %386 = sbr.rel (%p384) target = $region32
      $region31: #{_lambda_.21} parent=27 // pred_region
        _
      $region32: #{_lambda_.21} parent=27 // pred_fallthru
        _
    $region28: #{_lambda_.21} parent=5 // pred_fallthru
      _
    %p387 = scmp.le.s32.totalorder 2, %s8
    // Predicated region
    $region33: #{_lambda_.21} parent=5 // pred_check
      %p388 = pneg %p387
    $region34: #{_lambda_.21} parent=5 // pred_check_branch
      %390 = sbr.rel (%p388) target = $region36
    $region35: #{_lambda_.21} parent=5 // pred_region
      %s391 = ssub.s32 %s8, 2
      // Predicated region
      $region37: #{_lambda_.21} parent=35 // pred_check
        %p392 = pneg %p105
      $region38: #{_lambda_.21} parent=35 // pred_check_branch
        %394 = sbr.rel (%p392) target = $region40
      $region39: #{_lambda_.21} parent=35 // pred_region
        %p395 = scmp.lt.s32.totalorder %s19, 1
        %s396 = scalar_select %p395, %s19, 1
        %p397 = scmp.lt.s32.totalorder %s20, 0
        %s398 = scalar_select %p397, %s20, 0
        %s399 = smul.addr %s396, 8
        %s400 = sadd.s32 %s398, %s399
        %s401 = smul.addr %s400, 8
        %s402 = scalar_lea.vmem %s2, %s401
      $region40: #{_lambda_.21} parent=35 // pred_fallthru
        _
    $region36: #{_lambda_.21} parent=5 // pred_fallthru
      _
  $region6: #{_lambda_.21} parent=0 // loop_footer
    %s12 = sadd.s32 1, %s8
  $region7: #{_lambda_.21} parent=0 // loop_footer_branch
    %7 = sbr.rel target = $region3
  $region8: #{_lambda_.21} parent=0 // loop_exit
    _

</llo_original>
